<compile_context>
chip_gen: v7x
topology: tpu7x:2x2x1
jax: 0.10.0
libtpu: 0.0.40
codegen_flags: <defaults>
</compile_context>

<pallas_src>
import functools

import jax
import jax.numpy as jnp
import numpy as np
from jax.experimental import pallas as pl
from jax.experimental.pallas import tpu as pltpu

BT_CONV = 4            # images per grid step in the conv kernels
FC_TM_MAX = 128        # batch rows per FC grid step (128 fills v5e MXU; use 256 on v6e/v7x)
_VMEM_LIMIT = 32 * 1024 * 1024


def _round_up(n, m):
    return ((n + m - 1) // m) * m


# --------------------------------------------------------------------------- #
# Kernel 1: conv1 (Cin=1) + bias + ReLU + 2x2 max-pool, emitted directly in
# conv2's padded / column-parity-split (B, 18, 9, 32) layout.
# --------------------------------------------------------------------------- #
def _conv1_kernel(p_ref, w_ref, b_ref, oxe_ref, oxo_ref, *, bt):
    """p_ref:  (bt, 1024, 9)   im2col patch, rows ordered (h, e, s, q) with
                               conv column j = 4q + 2e + s.
       w_ref:  (9, 32)         conv1 weight, rows = kh*3+kw.
       b_ref:  (1, 32)
       oxe/oxo: (bt, 18, 9, 32) conv2-ready activations (even / odd padded columns)."""
    m = bt * 1024
    x = p_ref[...].reshape(m, 9)
    y = jnp.dot(x, w_ref[...], preferred_element_type=jnp.float32) + b_ref[...]
    y = y.reshape(bt, 32, 2, 2, 8, 32)                 # (b, h, e, s, q, c)
    y = jnp.maximum(y[:, :, :, 0], y[:, :, :, 1])      # max-pool over W pairs -> (b,h,e,q,c)
    y = y.reshape(bt, 16, 2, 2, 8, 32)                 # (b, m, hs, e, q, c)
    y = jnp.maximum(y[:, :, 0], y[:, :, 1])            # max-pool over H pairs -> (b,m,e,q,c)
    y = jnp.maximum(y, 0.0)                            # ReLU (commutes with max-pool)
    po = y[:, :, 0]                                    # even pooled cols  -> xo buffer
    pe = y[:, :, 1]                                    # odd  pooled cols  -> xe buffer
    oxo_ref[...] = jnp.zeros(oxo_ref.shape, oxo_ref.dtype)   # zero halos
    oxe_ref[...] = jnp.zeros(oxe_ref.shape, oxe_ref.dtype)
    oxo_ref[:, 1:17, 0:8, :] = po
    oxe_ref[:, 1:17, 1:9, :] = pe


# --------------------------------------------------------------------------- #
# Kernel 2: conv2 (32->64) + bias + ReLU + 2x2 max-pool.
# One K=288 im2col matmul per pooling parity; patch lives only in a VMEM scratch.
# --------------------------------------------------------------------------- #
def _conv2_kernel(xe_ref, xo_ref, w_ref, b_ref, o_ref, patch_ref, *, bt):
    """xe/xo: (bt, 18, 9, 32) padded, column-parity-split input.
       w_ref: (288, 64) rows = (kh*3+kw)*32 + cin.   b_ref: (1, 64).
       o_ref: (bt, 8, 8, 64) pooled NHWC output.   patch_ref: (bt*128, 288) scratch."""
    m = bt * 16 * 8

    def conv_cols(p):                                   # conv output columns 2*n + p
        for kh in range(3):
            for kw in range(3):
                t = kh * 3 + kw
                src = xe_ref if (p + kw) % 2 == 0 else xo_ref
                j0 = (p + kw) // 2
                sl = src[:, kh:kh + 16, j0:j0 + 8, :]   # (bt, 16, 8, 32)
                patch_ref[:, t * 32:(t + 1) * 32] = sl.reshape(m, 32)
        z = jnp.dot(patch_ref[...], w_ref[...], preferred_element_type=jnp.float32)
        return z + b_ref[...]                           # (m, 64)

    z = jnp.maximum(conv_cols(0), conv_cols(1))         # max-pool over W pairs
    z = jnp.maximum(z, 0.0)                             # ReLU
    z = z.reshape(bt, 8, 2, 8, 64)                      # split conv rows into (m2, hs)
    o_ref[...] = jnp.maximum(z[:, :, 0], z[:, :, 1])    # max-pool over H pairs


# --------------------------------------------------------------------------- #
# Kernel 3: fc1 + bias + ReLU + fc2 + bias, fused; batch-tiled; fc2 padded to 128.
# --------------------------------------------------------------------------- #
def _fc_kernel(x_ref, w1_ref, b1_ref, w2_ref, b2_ref, o_ref):
    h = jnp.dot(x_ref[...], w1_ref[...], preferred_element_type=jnp.float32)
    h = jnp.maximum(h + b1_ref[...], 0.0)
    o_ref[...] = jnp.dot(h, w2_ref[...], preferred_element_type=jnp.float32) + b2_ref[...]


# --------------------------------------------------------------------------- #
# Wrappers
# --------------------------------------------------------------------------- #
def conv1_relu_pool(x_bhw, w9c, b1c, *, bt):
    """(B,32,32) single-channel input -> (xe, xo), each (B,18,9,32) conv2-ready."""
    B = x_bhw.shape[0]
    # conv1's im2col runs in XLA on the tiny raw input (4 KB/image -> 36 KB/image):
    # it keeps the kernel free of in-register relayouts and lets pooling + the conv2
    # parity handoff be pure outer-dim maxes.  conv2's 288-wide im2col stays fused.
    xp = jnp.pad(x_bhw, ((0, 0), (1, 1), (1, 1)))                        # (B,34,34)
    taps = [xp[:, kh:kh + 32, kw:kw + 32] for kh in range(3) for kw in range(3)]
    a = jnp.stack(taps, axis=-1)                                         # (B,32,32,9)
    a = a.reshape(B, 32, 8, 2, 2, 9).transpose(0, 1, 3, 4, 2, 5)         # (b,h,e,s,q,t)
    patches = a.reshape(B, 32 * 2 * 2 * 8, 9)                            # (B,1024,9)

    kernel = functools.partial(_conv1_kernel, bt=bt)
    out_sds = jax.ShapeDtypeStruct((B, 18, 9, 32), jnp.float32)
    return pl.pallas_call(
        kernel,
        out_shape=(out_sds, out_sds),
        grid_spec=pltpu.PrefetchScalarGridSpec(
            num_scalar_prefetch=0,
            grid=(B // bt,),
            in_specs=[
                pl.BlockSpec((bt, 1024, 9), lambda i: (i, 0, 0)),
                pl.BlockSpec((9, 32), lambda i: (0, 0)),
                pl.BlockSpec((1, 32), lambda i: (0, 0)),
            ],
            out_specs=[
                pl.BlockSpec((bt, 18, 9, 32), lambda i: (i, 0, 0, 0)),
                pl.BlockSpec((bt, 18, 9, 32), lambda i: (i, 0, 0, 0)),
            ],
        ),
        compiler_params=pltpu.CompilerParams(
            dimension_semantics=("parallel",), vmem_limit_bytes=_VMEM_LIMIT),
    )(patches, w9c, b1c)


def conv2_relu_pool(xe, xo, w288, b1c, *, bt):
    """(xe, xo) (B,18,9,32) -> (B,8,8,64) pooled NHWC activation."""
    B = xe.shape[0]
    kernel = functools.partial(_conv2_kernel, bt=bt)
    return pl.pallas_call(
        kernel,
        out_shape=jax.ShapeDtypeStruct((B, 8, 8, 64), jnp.float32),
        grid_spec=pltpu.PrefetchScalarGridSpec(
            num_scalar_prefetch=0,
            grid=(B // bt,),
            in_specs=[
                pl.BlockSpec((bt, 18, 9, 32), lambda i: (i, 0, 0, 0)),
                pl.BlockSpec((bt, 18, 9, 32), lambda i: (i, 0, 0, 0)),
                pl.BlockSpec((288, 64), lambda i: (0, 0)),
                pl.BlockSpec((1, 64), lambda i: (0, 0)),
            ],
            out_specs=pl.BlockSpec((bt, 8, 8, 64), lambda i: (i, 0, 0, 0)),
            scratch_shapes=[pltpu.VMEM((bt * 128, 288), jnp.float32)],
        ),
        compiler_params=pltpu.CompilerParams(
            dimension_semantics=("parallel",), vmem_limit_bytes=_VMEM_LIMIT),
    )(xe, xo, w288, b1c)


def fc1_relu_fc2(x_flat, w1, b1, w2, b2):
    """x_flat: (B, 4096) -> (B, 10) logits via one fused, batch-tiled kernel."""
    B, K = x_flat.shape
    tm = B if B <= FC_TM_MAX else FC_TM_MAX
    Bp = _round_up(B, tm)
    if Bp != B:
        x_flat = jnp.pad(x_flat, ((0, Bp - B), (0, 0)))
    out = pl.pallas_call(
        _fc_kernel,
        out_shape=jax.ShapeDtypeStruct((Bp, 128), jnp.float32),
        grid_spec=pltpu.PrefetchScalarGridSpec(
            num_scalar_prefetch=0,
            grid=(Bp // tm,),
            in_specs=[
                pl.BlockSpec((tm, K), lambda i: (i, 0)),
                pl.BlockSpec((K, 128), lambda i: (0, 0)),   # constant blocks: fetched once
                pl.BlockSpec((1, 128), lambda i: (0, 0)),
                pl.BlockSpec((128, 128), lambda i: (0, 0)),
                pl.BlockSpec((1, 128), lambda i: (0, 0)),
            ],
            out_specs=pl.BlockSpec((tm, 128), lambda i: (i, 0)),
        ),
        compiler_params=pltpu.CompilerParams(
            dimension_semantics=("parallel",), vmem_limit_bytes=_VMEM_LIMIT),
    )(x_flat, w1, b1, w2, b2)
    return out[:B, :10]


# --------------------------------------------------------------------------- #
# Parameters (PyTorch layouts) + one-time kernel-layout preparation.
# --------------------------------------------------------------------------- #
def init_params(key):
    ks = jax.random.split(key, 8)

    def u(k, shape, fan_in):
        bound = 1.0 / np.sqrt(fan_in)
        return jax.random.uniform(k, shape, jnp.float32, -bound, bound)

    return {
        "conv1_w": u(ks[0], (32, 1, 3, 3), 1 * 9),
        "conv1_b": u(ks[1], (32,), 1 * 9),
        "conv2_w": u(ks[2], (64, 32, 3, 3), 32 * 9),
        "conv2_b": u(ks[3], (64,), 32 * 9),
        "fc1_w":   u(ks[4], (128, 64 * 8 * 8), 64 * 8 * 8),   # torch (out, in)
        "fc1_b":   u(ks[5], (128,), 64 * 8 * 8),
        "fc2_w":   u(ks[6], (10, 128), 128),
        "fc2_b":   u(ks[7], (10,), 128),
    }


def prepare_params(p):
    """One-time weight re-layout (runs outside the forward pass)."""
    w1t = p["conv1_w"].reshape(32, 9).T                                   # (9, 32)
    b1 = p["conv1_b"].reshape(1, 32)
    w2t = jnp.transpose(p["conv2_w"], (2, 3, 1, 0)).reshape(9 * 32, 64)   # (288, 64)
    b2 = p["conv2_b"].reshape(1, 64)
    # Fold torch's NCHW flatten order into fc1's weight rows so the runtime flatten of
    # the (B,8,8,64) NHWC pooled activation is a free reshape.
    fc1_w = jnp.transpose(p["fc1_w"].reshape(128, 64, 8, 8), (2, 3, 1, 0)).reshape(4096, 128)
    fc1_b = p["fc1_b"].reshape(1, 128)
    # fc2 padded to 128 output columns -> unmasked full-width stores; sliced back outside.
    fc2_w = jnp.pad(p["fc2_w"].T, ((0, 0), (0, 128 - 10)))                # (128, 128)
    fc2_b = jnp.pad(p["fc2_b"], (0, 128 - 10)).reshape(1, 128)
    return {"conv1_w": w1t, "conv1_b": b1, "conv2_w": w2t, "conv2_b": b2,
            "fc1_w": fc1_w, "fc1_b": fc1_b, "fc2_w": fc2_w, "fc2_b": fc2_b}


# --------------------------------------------------------------------------- #
# Forward pass (kernel path) and pure-JAX reference of the exact torch module.
# --------------------------------------------------------------------------- #
def simple_cnn_forward(kp, x_nchw):
    """x_nchw: (B, 1, 32, 32) float32 -> logits (B, 10)."""
    B = x_nchw.shape[0]
    bt = min(BT_CONV, B)
    Bp = _round_up(B, bt)
    x = x_nchw[:, 0]                                                # (B, 32, 32)
    if Bp != B:
        x = jnp.pad(x, ((0, Bp - B), (0, 0), (0, 0)))
    xe, xo = conv1_relu_pool(x, kp["conv1_w"], kp["conv1_b"], bt=bt)          # (Bp,18,9,32) x2
    p2 = conv2_relu_pool(xe, xo, kp["conv2_w"], kp["conv2_b"], bt=bt)         # (Bp,8,8,64)
    feats = p2.reshape(Bp, 64 * 8 * 8)                              # free reshape (order folded into fc1_w)
    logits = fc1_relu_fc2(feats, kp["fc1_w"], kp["fc1_b"], kp["fc2_w"], kp["fc2_b"])
    return logits[:B]


def simple_cnn_reference(params, x_nchw):
    """Pure-JAX mirror of the PyTorch forward, for verification."""
    def conv(x, w, b):
        y = jax.lax.conv_general_dilated(
            x, w, window_strides=(1, 1), padding=((1, 1), (1, 1)),
            dimension_numbers=("NCHW", "OIHW", "NCHW"))
        return jax.nn.relu(y + b[None, :, None, None])

    def pool(x):
        B, C, H, W = x.shape
        return jnp.max(x.reshape(B, C, H // 2, 2, W // 2, 2), axis=(3, 5))

    x = pool(conv(x_nchw, params["conv1_w"], params["conv1_b"]))
    x = pool(conv(x, params["conv2_w"], params["conv2_b"]))
    x = x.reshape(x.shape[0], 64 * 8 * 8)
    x = jax.nn.relu(x @ params["fc1_w"].T + params["fc1_b"])
    return x @ params["fc2_w"].T + params["fc2_b"]


if __name__ == "__main__":
    key = jax.random.PRNGKey(0)
    k_params, k_x = jax.random.split(key)
    params = init_params(k_params)
    kparams = prepare_params(params)
    # Architecture fixes the spatial size: 32x32 -> two 2x pools -> 8x8 -> fc1 in = 64*8*8.
    x = jax.random.normal(k_x, (2, 1, 32, 32), dtype=jnp.float32)

    fwd = jax.jit(simple_cnn_forward)
    out = jax.block_until_ready(fwd(kparams, x))
    assert out.shape == (2, 10) and out.dtype == jnp.float32

    ref = jax.block_until_ready(simple_cnn_reference(params, x))
    np.testing.assert_allclose(np.asarray(out), np.asarray(ref), rtol=1e-4, atol=1e-4)

    print("KERNEL_OK")
</pallas_src>

<mosaic_0001>
module attributes {stable_mosaic.version = 11 : i64} {
  func.func @_conv1_kernel(%arg0: i32, %arg1: memref<2x1024x9xf32, #tpu.memory_space<vmem>>, %arg2: memref<9x32xf32, #tpu.memory_space<vmem>>, %arg3: memref<1x32xf32, #tpu.memory_space<vmem>>, %arg4: memref<2x18x9x32xf32, #tpu.memory_space<vmem>>, %arg5: memref<2x18x9x32xf32, #tpu.memory_space<vmem>>) attributes {dimension_semantics = [#tpu.dimension_semantics<parallel>], iteration_bounds = array<i64: 1>, scalar_prefetch = 0 : i64, scratch_operands = 0 : i64, tpu.core_type = #tpu.core_type<tc>, window_params = [{transform_indices = @transform_0, window_bounds = array<i64: 2, 1024, 9>}, {pipeline_mode = #tpu.pipeline_mode<synchronous>, transform_indices = @transform_1, window_bounds = array<i64: 9, 32>}, {pipeline_mode = #tpu.pipeline_mode<synchronous>, transform_indices = @transform_2, window_bounds = array<i64: 1, 32>}, {transform_indices = @transform_3, window_bounds = array<i64: 2, 18, 9, 32>}, {transform_indices = @transform_4, window_bounds = array<i64: 2, 18, 9, 32>}]} {
    %c0 = arith.constant 0 : index
    %c0_0 = arith.constant 0 : index
    %c0_1 = arith.constant 0 : index
    %0 = vector.load %arg1[%c0, %c0_0, %c0_1] : memref<2x1024x9xf32, #tpu.memory_space<vmem>>, vector<2x1024x9xf32>
    %1 = vector.shape_cast %0 : vector<2x1024x9xf32> to vector<2048x9xf32>
    %c0_2 = arith.constant 0 : index
    %c0_3 = arith.constant 0 : index
    %2 = vector.load %arg2[%c0_2, %c0_3] : memref<9x32xf32, #tpu.memory_space<vmem>>, vector<9x32xf32>
    %cst = arith.constant dense<0.000000e+00> : vector<2048x32xf32>
    %3 = tpu.matmul %1, %2, %cst {dimension_numbers = #tpu.dot_dimension_numbers<[1], [0], [0], [1], [0, 0, 1, 1], [], []>} : vector<2048x9xf32>, vector<9x32xf32>, vector<2048x32xf32> -> vector<2048x32xf32>
    %c0_4 = arith.constant 0 : index
    %c0_5 = arith.constant 0 : index
    %4 = vector.load %arg3[%c0_4, %c0_5] : memref<1x32xf32, #tpu.memory_space<vmem>>, vector<1x32xf32>
    %5 = vector.broadcast %4 : vector<1x32xf32> to vector<2048x32xf32>
    %6 = arith.addf %3, %5 : vector<2048x32xf32>
    %7 = vector.shape_cast %6 : vector<2048x32xf32> to vector<2x32x2x2x8x32xf32>
    %8 = vector.extract_strided_slice %7 {offsets = [0, 0, 0, 0, 0, 0], sizes = [2, 32, 2, 1, 8, 32], strides = [1, 1, 1, 1, 1, 1]} : vector<2x32x2x2x8x32xf32> to vector<2x32x2x1x8x32xf32>
    %9 = vector.shape_cast %8 : vector<2x32x2x1x8x32xf32> to vector<2x32x2x8x32xf32>
    %10 = vector.extract_strided_slice %7 {offsets = [0, 0, 0, 1, 0, 0], sizes = [2, 32, 2, 1, 8, 32], strides = [1, 1, 1, 1, 1, 1]} : vector<2x32x2x2x8x32xf32> to vector<2x32x2x1x8x32xf32>
    %11 = vector.shape_cast %10 : vector<2x32x2x1x8x32xf32> to vector<2x32x2x8x32xf32>
    %12 = arith.maximumf %9, %11 : vector<2x32x2x8x32xf32>
    %13 = vector.shape_cast %12 : vector<2x32x2x8x32xf32> to vector<2x16x2x2x8x32xf32>
    %14 = vector.extract_strided_slice %13 {offsets = [0, 0, 0, 0, 0, 0], sizes = [2, 16, 1, 2, 8, 32], strides = [1, 1, 1, 1, 1, 1]} : vector<2x16x2x2x8x32xf32> to vector<2x16x1x2x8x32xf32>
    %15 = vector.shape_cast %14 : vector<2x16x1x2x8x32xf32> to vector<2x16x2x8x32xf32>
    %16 = vector.extract_strided_slice %13 {offsets = [0, 0, 1, 0, 0, 0], sizes = [2, 16, 1, 2, 8, 32], strides = [1, 1, 1, 1, 1, 1]} : vector<2x16x2x2x8x32xf32> to vector<2x16x1x2x8x32xf32>
    %17 = vector.shape_cast %16 : vector<2x16x1x2x8x32xf32> to vector<2x16x2x8x32xf32>
    %18 = arith.maximumf %15, %17 : vector<2x16x2x8x32xf32>
    %cst_6 = arith.constant 0.000000e+00 : f32
    %19 = vector.broadcast %cst_6 : f32 to vector<2x16x2x8x32xf32>
    %20 = arith.maximumf %18, %19 : vector<2x16x2x8x32xf32>
    %21 = vector.extract_strided_slice %20 {offsets = [0, 0, 0, 0, 0], sizes = [2, 16, 1, 8, 32], strides = [1, 1, 1, 1, 1]} : vector<2x16x2x8x32xf32> to vector<2x16x1x8x32xf32>
    %22 = vector.shape_cast %21 : vector<2x16x1x8x32xf32> to vector<2x16x8x32xf32>
    %23 = vector.extract_strided_slice %20 {offsets = [0, 0, 1, 0, 0], sizes = [2, 16, 1, 8, 32], strides = [1, 1, 1, 1, 1]} : vector<2x16x2x8x32xf32> to vector<2x16x1x8x32xf32>
    %24 = vector.shape_cast %23 : vector<2x16x1x8x32xf32> to vector<2x16x8x32xf32>
    %cst_7 = arith.constant 0.000000e+00 : f32
    %25 = vector.broadcast %cst_7 : f32 to vector<2x18x9x32xf32>
    %c0_8 = arith.constant 0 : index
    %c0_9 = arith.constant 0 : index
    %c0_10 = arith.constant 0 : index
    %c0_11 = arith.constant 0 : index
    %26 = vector.load %arg5[%c0_8, %c0_9, %c0_10, %c0_11] : memref<2x18x9x32xf32, #tpu.memory_space<vmem>>, vector<2x18x9x32xf32>
    tpu.vector_store %arg5[%c0_8, %c0_9, %c0_10, %c0_11], %25 {strides = array<i32>} : memref<2x18x9x32xf32, #tpu.memory_space<vmem>>, vector<2x18x9x32xf32>,
    %cst_12 = arith.constant 0.000000e+00 : f32
    %27 = vector.broadcast %cst_12 : f32 to vector<2x18x9x32xf32>
    %c0_13 = arith.constant 0 : index
    %c0_14 = arith.constant 0 : index
    %c0_15 = arith.constant 0 : index
    %c0_16 = arith.constant 0 : index
    %28 = vector.load %arg4[%c0_13, %c0_14, %c0_15, %c0_16] : memref<2x18x9x32xf32, #tpu.memory_space<vmem>>, vector<2x18x9x32xf32>
    tpu.vector_store %arg4[%c0_13, %c0_14, %c0_15, %c0_16], %27 {strides = array<i32>} : memref<2x18x9x32xf32, #tpu.memory_space<vmem>>, vector<2x18x9x32xf32>,
    %c0_17 = arith.constant 0 : index
    %c1 = arith.constant 1 : index
    %c0_18 = arith.constant 0 : index
    %c0_19 = arith.constant 0 : index
    %29 = vector.load %arg5[%c0_17, %c1, %c0_18, %c0_19] : memref<2x18x9x32xf32, #tpu.memory_space<vmem>>, vector<2x16x8x32xf32>
    tpu.vector_store %arg5[%c0_17, %c1, %c0_18, %c0_19], %22 {strides = array<i32>} : memref<2x18x9x32xf32, #tpu.memory_space<vmem>>, vector<2x16x8x32xf32>,
    %c0_20 = arith.constant 0 : index
    %c1_21 = arith.constant 1 : index
    %c1_22 = arith.constant 1 : index
    %c0_23 = arith.constant 0 : index
    %30 = vector.load %arg4[%c0_20, %c1_21, %c1_22, %c0_23] : memref<2x18x9x32xf32, #tpu.memory_space<vmem>>, vector<2x16x8x32xf32>
    tpu.vector_store %arg4[%c0_20, %c1_21, %c1_22, %c0_23], %24 {strides = array<i32>} : memref<2x18x9x32xf32, #tpu.memory_space<vmem>>, vector<2x16x8x32xf32>,
    return
  }
  func.func @transform_0(%arg0: i32) -> (i32, i32, i32) {
    %c0_i32 = arith.constant 0 : i32
    %c0_i32_0 = arith.constant 0 : i32
    %c0_i32_1 = arith.constant 0 : i32
    return %arg0, %c0_i32, %c0_i32_0 : i32, i32, i32
  }
  func.func @transform_1(%arg0: i32) -> (i32, i32) {
    %c0_i32 = arith.constant 0 : i32
    %c0_i32_0 = arith.constant 0 : i32
    %c0_i32_1 = arith.constant 0 : i32
    return %c0_i32, %c0_i32_0 : i32, i32
  }
  func.func @transform_2(%arg0: i32) -> (i32, i32) {
    %c0_i32 = arith.constant 0 : i32
    %c0_i32_0 = arith.constant 0 : i32
    %c0_i32_1 = arith.constant 0 : i32
    return %c0_i32, %c0_i32_0 : i32, i32
  }
  func.func @transform_3(%arg0: i32) -> (i32, i32, i32, i32) {
    %c0_i32 = arith.constant 0 : i32
    %c0_i32_0 = arith.constant 0 : i32
    %c0_i32_1 = arith.constant 0 : i32
    %c0_i32_2 = arith.constant 0 : i32
    return %arg0, %c0_i32, %c0_i32_0, %c0_i32_1 : i32, i32, i32, i32
  }
  func.func @transform_4(%arg0: i32) -> (i32, i32, i32, i32) {
    %c0_i32 = arith.constant 0 : i32
    %c0_i32_0 = arith.constant 0 : i32
    %c0_i32_1 = arith.constant 0 : i32
    %c0_i32_2 = arith.constant 0 : i32
    return %arg0, %c0_i32, %c0_i32_0, %c0_i32_1 : i32, i32, i32, i32
  }
}

module attributes {stable_mosaic.version = 11 : i64} {
  func.func @_conv2_kernel(%arg0: i32, %arg1: memref<2x18x9x32xf32, #tpu.memory_space<vmem>>, %arg2: memref<2x18x9x32xf32, #tpu.memory_space<vmem>>, %arg3: memref<288x64xf32, #tpu.memory_space<vmem>>, %arg4: memref<1x64xf32, #tpu.memory_space<vmem>>, %arg5: memref<2x8x8x64xf32, #tpu.memory_space<vmem>>, %arg6: memref<256x288xf32, #tpu.memory_space<vmem>>) attributes {dimension_semantics = [#tpu.dimension_semantics<parallel>], iteration_bounds = array<i64: 1>, scalar_prefetch = 0 : i64, scratch_operands = 1 : i64, tpu.core_type = #tpu.core_type<tc>, window_params = [{transform_indices = @transform_0, window_bounds = array<i64: 2, 18, 9, 32>}, {transform_indices = @transform_1, window_bounds = array<i64: 2, 18, 9, 32>}, {pipeline_mode = #tpu.pipeline_mode<synchronous>, transform_indices = @transform_2, window_bounds = array<i64: 288, 64>}, {pipeline_mode = #tpu.pipeline_mode<synchronous>, transform_indices = @transform_3, window_bounds = array<i64: 1, 64>}, {transform_indices = @transform_4, window_bounds = array<i64: 2, 8, 8, 64>}]} {
    %c0 = arith.constant 0 : index
    %c0_0 = arith.constant 0 : index
    %c0_1 = arith.constant 0 : index
    %c0_2 = arith.constant 0 : index
    %0 = vector.load %arg1[%c0, %c0_0, %c0_1, %c0_2] : memref<2x18x9x32xf32, #tpu.memory_space<vmem>>, vector<2x16x8x32xf32>
    %1 = vector.shape_cast %0 : vector<2x16x8x32xf32> to vector<256x32xf32>
    %c0_3 = arith.constant 0 : index
    %c0_4 = arith.constant 0 : index
    %2 = vector.load %arg6[%c0_3, %c0_4] : memref<256x288xf32, #tpu.memory_space<vmem>>, vector<256x32xf32>
    tpu.vector_store %arg6[%c0_3, %c0_4], %1 {strides = array<i32>} : memref<256x288xf32, #tpu.memory_space<vmem>>, vector<256x32xf32>,
    %c0_5 = arith.constant 0 : index
    %c0_6 = arith.constant 0 : index
    %c0_7 = arith.constant 0 : index
    %c0_8 = arith.constant 0 : index
    %3 = vector.load %arg2[%c0_5, %c0_6, %c0_7, %c0_8] : memref<2x18x9x32xf32, #tpu.memory_space<vmem>>, vector<2x16x8x32xf32>
    %4 = vector.shape_cast %3 : vector<2x16x8x32xf32> to vector<256x32xf32>
    %c0_9 = arith.constant 0 : index
    %c32 = arith.constant 32 : index
    %5 = vector.load %arg6[%c0_9, %c32] : memref<256x288xf32, #tpu.memory_space<vmem>>, vector<256x32xf32>
    tpu.vector_store %arg6[%c0_9, %c32], %4 {strides = array<i32>} : memref<256x288xf32, #tpu.memory_space<vmem>>, vector<256x32xf32>,
    %c0_10 = arith.constant 0 : index
    %c0_11 = arith.constant 0 : index
    %c1 = arith.constant 1 : index
    %c0_12 = arith.constant 0 : index
    %6 = vector.load %arg1[%c0_10, %c0_11, %c1, %c0_12] : memref<2x18x9x32xf32, #tpu.memory_space<vmem>>, vector<2x16x8x32xf32>
    %7 = vector.shape_cast %6 : vector<2x16x8x32xf32> to vector<256x32xf32>
    %c0_13 = arith.constant 0 : index
    %c64 = arith.constant 64 : index
    %8 = vector.load %arg6[%c0_13, %c64] : memref<256x288xf32, #tpu.memory_space<vmem>>, vector<256x32xf32>
    tpu.vector_store %arg6[%c0_13, %c64], %7 {strides = array<i32>} : memref<256x288xf32, #tpu.memory_space<vmem>>, vector<256x32xf32>,
    %c0_14 = arith.constant 0 : index
    %c1_15 = arith.constant 1 : index
    %c0_16 = arith.constant 0 : index
    %c0_17 = arith.constant 0 : index
    %9 = vector.load %arg1[%c0_14, %c1_15, %c0_16, %c0_17] : memref<2x18x9x32xf32, #tpu.memory_space<vmem>>, vector<2x16x8x32xf32>
    %10 = vector.shape_cast %9 : vector<2x16x8x32xf32> to vector<256x32xf32>
    %c0_18 = arith.constant 0 : index
    %c96 = arith.constant 96 : index
    %11 = vector.load %arg6[%c0_18, %c96] : memref<256x288xf32, #tpu.memory_space<vmem>>, vector<256x32xf32>
    tpu.vector_store %arg6[%c0_18, %c96], %10 {strides = array<i32>} : memref<256x288xf32, #tpu.memory_space<vmem>>, vector<256x32xf32>,
    %c0_19 = arith.constant 0 : index
    %c1_20 = arith.constant 1 : index
    %c0_21 = arith.constant 0 : index
    %c0_22 = arith.constant 0 : index
    %12 = vector.load %arg2[%c0_19, %c1_20, %c0_21, %c0_22] : memref<2x18x9x32xf32, #tpu.memory_space<vmem>>, vector<2x16x8x32xf32>
    %13 = vector.shape_cast %12 : vector<2x16x8x32xf32> to vector<256x32xf32>
    %c0_23 = arith.constant 0 : index
    %c128 = arith.constant 128 : index
    %14 = vector.load %arg6[%c0_23, %c128] : memref<256x288xf32, #tpu.memory_space<vmem>>, vector<256x32xf32>
    tpu.vector_store %arg6[%c0_23, %c128], %13 {strides = array<i32>} : memref<256x288xf32, #tpu.memory_space<vmem>>, vector<256x32xf32>,
    %c0_24 = arith.constant 0 : index
    %c1_25 = arith.constant 1 : index
    %c1_26 = arith.constant 1 : index
    %c0_27 = arith.constant 0 : index
    %15 = vector.load %arg1[%c0_24, %c1_25, %c1_26, %c0_27] : memref<2x18x9x32xf32, #tpu.memory_space<vmem>>, vector<2x16x8x32xf32>
    %16 = vector.shape_cast %15 : vector<2x16x8x32xf32> to vector<256x32xf32>
    %c0_28 = arith.constant 0 : index
    %c160 = arith.constant 160 : index
    %17 = vector.load %arg6[%c0_28, %c160] : memref<256x288xf32, #tpu.memory_space<vmem>>, vector<256x32xf32>
    tpu.vector_store %arg6[%c0_28, %c160], %16 {strides = array<i32>} : memref<256x288xf32, #tpu.memory_space<vmem>>, vector<256x32xf32>,
    %c0_29 = arith.constant 0 : index
    %c2 = arith.constant 2 : index
    %c0_30 = arith.constant 0 : index
    %c0_31 = arith.constant 0 : index
    %18 = vector.load %arg1[%c0_29, %c2, %c0_30, %c0_31] : memref<2x18x9x32xf32, #tpu.memory_space<vmem>>, vector<2x16x8x32xf32>
    %19 = vector.shape_cast %18 : vector<2x16x8x32xf32> to vector<256x32xf32>
    %c0_32 = arith.constant 0 : index
    %c192 = arith.constant 192 : index
    %20 = vector.load %arg6[%c0_32, %c192] : memref<256x288xf32, #tpu.memory_space<vmem>>, vector<256x32xf32>
    tpu.vector_store %arg6[%c0_32, %c192], %19 {strides = array<i32>} : memref<256x288xf32, #tpu.memory_space<vmem>>, vector<256x32xf32>,
    %c0_33 = arith.constant 0 : index
    %c2_34 = arith.constant 2 : index
    %c0_35 = arith.constant 0 : index
    %c0_36 = arith.constant 0 : index
    %21 = vector.load %arg2[%c0_33, %c2_34, %c0_35, %c0_36] : memref<2x18x9x32xf32, #tpu.memory_space<vmem>>, vector<2x16x8x32xf32>
    %22 = vector.shape_cast %21 : vector<2x16x8x32xf32> to vector<256x32xf32>
    %c0_37 = arith.constant 0 : index
    %c224 = arith.constant 224 : index
    %23 = vector.load %arg6[%c0_37, %c224] : memref<256x288xf32, #tpu.memory_space<vmem>>, vector<256x32xf32>
    tpu.vector_store %arg6[%c0_37, %c224], %22 {strides = array<i32>} : memref<256x288xf32, #tpu.memory_space<vmem>>, vector<256x32xf32>,
    %c0_38 = arith.constant 0 : index
    %c2_39 = arith.constant 2 : index
    %c1_40 = arith.constant 1 : index
    %c0_41 = arith.constant 0 : index
    %24 = vector.load %arg1[%c0_38, %c2_39, %c1_40, %c0_41] : memref<2x18x9x32xf32, #tpu.memory_space<vmem>>, vector<2x16x8x32xf32>
    %25 = vector.shape_cast %24 : vector<2x16x8x32xf32> to vector<256x32xf32>
    %c0_42 = arith.constant 0 : index
    %c256 = arith.constant 256 : index
    %26 = vector.load %arg6[%c0_42, %c256] : memref<256x288xf32, #tpu.memory_space<vmem>>, vector<256x32xf32>
    tpu.vector_store %arg6[%c0_42, %c256], %25 {strides = array<i32>} : memref<256x288xf32, #tpu.memory_space<vmem>>, vector<256x32xf32>,
    %c0_43 = arith.constant 0 : index
    %c0_44 = arith.constant 0 : index
    %27 = vector.load %arg6[%c0_43, %c0_44] : memref<256x288xf32, #tpu.memory_space<vmem>>, vector<256x288xf32>
    %c0_45 = arith.constant 0 : index
    %c0_46 = arith.constant 0 : index
    %28 = vector.load %arg3[%c0_45, %c0_46] : memref<288x64xf32, #tpu.memory_space<vmem>>, vector<288x64xf32>
    %cst = arith.constant dense<0.000000e+00> : vector<256x64xf32>
    %29 = tpu.matmul %27, %28, %cst {dimension_numbers = #tpu.dot_dimension_numbers<[1], [0], [0], [1], [0, 0, 1, 1], [], []>} : vector<256x288xf32>, vector<288x64xf32>, vector<256x64xf32> -> vector<256x64xf32>
    %c0_47 = arith.constant 0 : index
    %c0_48 = arith.constant 0 : index
    %30 = vector.load %arg4[%c0_47, %c0_48] : memref<1x64xf32, #tpu.memory_space<vmem>>, vector<1x64xf32>
    %31 = vector.broadcast %30 : vector<1x64xf32> to vector<256x64xf32>
    %32 = arith.addf %29, %31 : vector<256x64xf32>
    %c0_49 = arith.constant 0 : index
    %c0_50 = arith.constant 0 : index
    %c0_51 = arith.constant 0 : index
    %c0_52 = arith.constant 0 : index
    %33 = vector.load %arg2[%c0_49, %c0_50, %c0_51, %c0_52] : memref<2x18x9x32xf32, #tpu.memory_space<vmem>>, vector<2x16x8x32xf32>
    %34 = vector.shape_cast %33 : vector<2x16x8x32xf32> to vector<256x32xf32>
    %c0_53 = arith.constant 0 : index
    %c0_54 = arith.constant 0 : index
    %35 = vector.load %arg6[%c0_53, %c0_54] : memref<256x288xf32, #tpu.memory_space<vmem>>, vector<256x32xf32>
    tpu.vector_store %arg6[%c0_53, %c0_54], %34 {strides = array<i32>} : memref<256x288xf32, #tpu.memory_space<vmem>>, vector<256x32xf32>,
    %c0_55 = arith.constant 0 : index
    %c0_56 = arith.constant 0 : index
    %c1_57 = arith.constant 1 : index
    %c0_58 = arith.constant 0 : index
    %36 = vector.load %arg1[%c0_55, %c0_56, %c1_57, %c0_58] : memref<2x18x9x32xf32, #tpu.memory_space<vmem>>, vector<2x16x8x32xf32>
    %37 = vector.shape_cast %36 : vector<2x16x8x32xf32> to vector<256x32xf32>
    %c0_59 = arith.constant 0 : index
    %c32_60 = arith.constant 32 : index
    %38 = vector.load %arg6[%c0_59, %c32_60] : memref<256x288xf32, #tpu.memory_space<vmem>>, vector<256x32xf32>
    tpu.vector_store %arg6[%c0_59, %c32_60], %37 {strides = array<i32>} : memref<256x288xf32, #tpu.memory_space<vmem>>, vector<256x32xf32>,
    %c0_61 = arith.constant 0 : index
    %c0_62 = arith.constant 0 : index
    %c1_63 = arith.constant 1 : index
    %c0_64 = arith.constant 0 : index
    %39 = vector.load %arg2[%c0_61, %c0_62, %c1_63, %c0_64] : memref<2x18x9x32xf32, #tpu.memory_space<vmem>>, vector<2x16x8x32xf32>
    %40 = vector.shape_cast %39 : vector<2x16x8x32xf32> to vector<256x32xf32>
    %c0_65 = arith.constant 0 : index
    %c64_66 = arith.constant 64 : index
    %41 = vector.load %arg6[%c0_65, %c64_66] : memref<256x288xf32, #tpu.memory_space<vmem>>, vector<256x32xf32>
    tpu.vector_store %arg6[%c0_65, %c64_66], %40 {strides = array<i32>} : memref<256x288xf32, #tpu.memory_space<vmem>>, vector<256x32xf32>,
    %c0_67 = arith.constant 0 : index
    %c1_68 = arith.constant 1 : index
    %c0_69 = arith.constant 0 : index
    %c0_70 = arith.constant 0 : index
    %42 = vector.load %arg2[%c0_67, %c1_68, %c0_69, %c0_70] : memref<2x18x9x32xf32, #tpu.memory_space<vmem>>, vector<2x16x8x32xf32>
    %43 = vector.shape_cast %42 : vector<2x16x8x32xf32> to vector<256x32xf32>
    %c0_71 = arith.constant 0 : index
    %c96_72 = arith.constant 96 : index
    %44 = vector.load %arg6[%c0_71, %c96_72] : memref<256x288xf32, #tpu.memory_space<vmem>>, vector<256x32xf32>
    tpu.vector_store %arg6[%c0_71, %c96_72], %43 {strides = array<i32>} : memref<256x288xf32, #tpu.memory_space<vmem>>, vector<256x32xf32>,
    %c0_73 = arith.constant 0 : index
    %c1_74 = arith.constant 1 : index
    %c1_75 = arith.constant 1 : index
    %c0_76 = arith.constant 0 : index
    %45 = vector.load %arg1[%c0_73, %c1_74, %c1_75, %c0_76] : memref<2x18x9x32xf32, #tpu.memory_space<vmem>>, vector<2x16x8x32xf32>
    %46 = vector.shape_cast %45 : vector<2x16x8x32xf32> to vector<256x32xf32>
    %c0_77 = arith.constant 0 : index
    %c128_78 = arith.constant 128 : index
    %47 = vector.load %arg6[%c0_77, %c128_78] : memref<256x288xf32, #tpu.memory_space<vmem>>, vector<256x32xf32>
    tpu.vector_store %arg6[%c0_77, %c128_78], %46 {strides = array<i32>} : memref<256x288xf32, #tpu.memory_space<vmem>>, vector<256x32xf32>,
    %c0_79 = arith.constant 0 : index
    %c1_80 = arith.constant 1 : index
    %c1_81 = arith.constant 1 : index
    %c0_82 = arith.constant 0 : index
    %48 = vector.load %arg2[%c0_79, %c1_80, %c1_81, %c0_82] : memref<2x18x9x32xf32, #tpu.memory_space<vmem>>, vector<2x16x8x32xf32>
    %49 = vector.shape_cast %48 : vector<2x16x8x32xf32> to vector<256x32xf32>
    %c0_83 = arith.constant 0 : index
    %c160_84 = arith.constant 160 : index
    %50 = vector.load %arg6[%c0_83, %c160_84] : memref<256x288xf32, #tpu.memory_space<vmem>>, vector<256x32xf32>
    tpu.vector_store %arg6[%c0_83, %c160_84], %49 {strides = array<i32>} : memref<256x288xf32, #tpu.memory_space<vmem>>, vector<256x32xf32>,
    %c0_85 = arith.constant 0 : index
    %c2_86 = arith.constant 2 : index
    %c0_87 = arith.constant 0 : index
    %c0_88 = arith.constant 0 : index
    %51 = vector.load %arg2[%c0_85, %c2_86, %c0_87, %c0_88] : memref<2x18x9x32xf32, #tpu.memory_space<vmem>>, vector<2x16x8x32xf32>
    %52 = vector.shape_cast %51 : vector<2x16x8x32xf32> to vector<256x32xf32>
    %c0_89 = arith.constant 0 : index
    %c192_90 = arith.constant 192 : index
    %53 = vector.load %arg6[%c0_89, %c192_90] : memref<256x288xf32, #tpu.memory_space<vmem>>, vector<256x32xf32>
    tpu.vector_store %arg6[%c0_89, %c192_90], %52 {strides = array<i32>} : memref<256x288xf32, #tpu.memory_space<vmem>>, vector<256x32xf32>,
    %c0_91 = arith.constant 0 : index
    %c2_92 = arith.constant 2 : index
    %c1_93 = arith.constant 1 : index
    %c0_94 = arith.constant 0 : index
    %54 = vector.load %arg1[%c0_91, %c2_92, %c1_93, %c0_94] : memref<2x18x9x32xf32, #tpu.memory_space<vmem>>, vector<2x16x8x32xf32>
    %55 = vector.shape_cast %54 : vector<2x16x8x32xf32> to vector<256x32xf32>
    %c0_95 = arith.constant 0 : index
    %c224_96 = arith.constant 224 : index
    %56 = vector.load %arg6[%c0_95, %c224_96] : memref<256x288xf32, #tpu.memory_space<vmem>>, vector<256x32xf32>
    tpu.vector_store %arg6[%c0_95, %c224_96], %55 {strides = array<i32>} : memref<256x288xf32, #tpu.memory_space<vmem>>, vector<256x32xf32>,
    %c0_97 = arith.constant 0 : index
    %c2_98 = arith.constant 2 : index
    %c1_99 = arith.constant 1 : index
    %c0_100 = arith.constant 0 : index
    %57 = vector.load %arg2[%c0_97, %c2_98, %c1_99, %c0_100] : memref<2x18x9x32xf32, #tpu.memory_space<vmem>>, vector<2x16x8x32xf32>
    %58 = vector.shape_cast %57 : vector<2x16x8x32xf32> to vector<256x32xf32>
    %c0_101 = arith.constant 0 : index
    %c256_102 = arith.constant 256 : index
    %59 = vector.load %arg6[%c0_101, %c256_102] : memref<256x288xf32, #tpu.memory_space<vmem>>, vector<256x32xf32>
    tpu.vector_store %arg6[%c0_101, %c256_102], %58 {strides = array<i32>} : memref<256x288xf32, #tpu.memory_space<vmem>>, vector<256x32xf32>,
    %c0_103 = arith.constant 0 : index
    %c0_104 = arith.constant 0 : index
    %60 = vector.load %arg6[%c0_103, %c0_104] : memref<256x288xf32, #tpu.memory_space<vmem>>, vector<256x288xf32>
    %c0_105 = arith.constant 0 : index
    %c0_106 = arith.constant 0 : index
    %61 = vector.load %arg3[%c0_105, %c0_106] : memref<288x64xf32, #tpu.memory_space<vmem>>, vector<288x64xf32>
    %cst_107 = arith.constant dense<0.000000e+00> : vector<256x64xf32>
    %62 = tpu.matmul %60, %61, %cst_107 {dimension_numbers = #tpu.dot_dimension_numbers<[1], [0], [0], [1], [0, 0, 1, 1], [], []>} : vector<256x288xf32>, vector<288x64xf32>, vector<256x64xf32> -> vector<256x64xf32>
    %c0_108 = arith.constant 0 : index
    %c0_109 = arith.constant 0 : index
    %63 = vector.load %arg4[%c0_108, %c0_109] : memref<1x64xf32, #tpu.memory_space<vmem>>, vector<1x64xf32>
    %64 = vector.broadcast %63 : vector<1x64xf32> to vector<256x64xf32>
    %65 = arith.addf %62, %64 : vector<256x64xf32>
    %66 = arith.maximumf %32, %65 : vector<256x64xf32>
    %cst_110 = arith.constant 0.000000e+00 : f32
    %67 = vector.broadcast %cst_110 : f32 to vector<256x64xf32>
    %68 = arith.maximumf %66, %67 : vector<256x64xf32>
    %69 = vector.shape_cast %68 : vector<256x64xf32> to vector<2x8x2x8x64xf32>
    %70 = vector.extract_strided_slice %69 {offsets = [0, 0, 0, 0, 0], sizes = [2, 8, 1, 8, 64], strides = [1, 1, 1, 1, 1]} : vector<2x8x2x8x64xf32> to vector<2x8x1x8x64xf32>
    %71 = vector.shape_cast %70 : vector<2x8x1x8x64xf32> to vector<2x8x8x64xf32>
    %72 = vector.extract_strided_slice %69 {offsets = [0, 0, 1, 0, 0], sizes = [2, 8, 1, 8, 64], strides = [1, 1, 1, 1, 1]} : vector<2x8x2x8x64xf32> to vector<2x8x1x8x64xf32>
    %73 = vector.shape_cast %72 : vector<2x8x1x8x64xf32> to vector<2x8x8x64xf32>
    %74 = arith.maximumf %71, %73 : vector<2x8x8x64xf32>
    %c0_111 = arith.constant 0 : index
    %c0_112 = arith.constant 0 : index
    %c0_113 = arith.constant 0 : index
    %c0_114 = arith.constant 0 : index
    %75 = vector.load %arg5[%c0_111, %c0_112, %c0_113, %c0_114] : memref<2x8x8x64xf32, #tpu.memory_space<vmem>>, vector<2x8x8x64xf32>
    tpu.vector_store %arg5[%c0_111, %c0_112, %c0_113, %c0_114], %74 {strides = array<i32>} : memref<2x8x8x64xf32, #tpu.memory_space<vmem>>, vector<2x8x8x64xf32>,
    return
  }
  func.func @transform_0(%arg0: i32) -> (i32, i32, i32, i32) {
    %c0_i32 = arith.constant 0 : i32
    %c0_i32_0 = arith.constant 0 : i32
    %c0_i32_1 = arith.constant 0 : i32
    %c0_i32_2 = arith.constant 0 : i32
    return %arg0, %c0_i32, %c0_i32_0, %c0_i32_1 : i32, i32, i32, i32
  }
  func.func @transform_1(%arg0: i32) -> (i32, i32, i32, i32) {
    %c0_i32 = arith.constant 0 : i32
    %c0_i32_0 = arith.constant 0 : i32
    %c0_i32_1 = arith.constant 0 : i32
    %c0_i32_2 = arith.constant 0 : i32
    return %arg0, %c0_i32, %c0_i32_0, %c0_i32_1 : i32, i32, i32, i32
  }
  func.func @transform_2(%arg0: i32) -> (i32, i32) {
    %c0_i32 = arith.constant 0 : i32
    %c0_i32_0 = arith.constant 0 : i32
    %c0_i32_1 = arith.constant 0 : i32
    return %c0_i32, %c0_i32_0 : i32, i32
  }
  func.func @transform_3(%arg0: i32) -> (i32, i32) {
    %c0_i32 = arith.constant 0 : i32
    %c0_i32_0 = arith.constant 0 : i32
    %c0_i32_1 = arith.constant 0 : i32
    return %c0_i32, %c0_i32_0 : i32, i32
  }
  func.func @transform_4(%arg0: i32) -> (i32, i32, i32, i32) {
    %c0_i32 = arith.constant 0 : i32
    %c0_i32_0 = arith.constant 0 : i32
    %c0_i32_1 = arith.constant 0 : i32
    %c0_i32_2 = arith.constant 0 : i32
    return %arg0, %c0_i32, %c0_i32_0, %c0_i32_1 : i32, i32, i32, i32
  }
}

module attributes {stable_mosaic.version = 11 : i64} {
  func.func @_fc_kernel(%arg0: i32, %arg1: memref<2x4096xf32, #tpu.memory_space<vmem>>, %arg2: memref<4096x128xf32, #tpu.memory_space<vmem>>, %arg3: memref<1x128xf32, #tpu.memory_space<vmem>>, %arg4: memref<128x128xf32, #tpu.memory_space<vmem>>, %arg5: memref<1x128xf32, #tpu.memory_space<vmem>>, %arg6: memref<2x128xf32, #tpu.memory_space<vmem>>) attributes {dimension_semantics = [#tpu.dimension_semantics<parallel>], iteration_bounds = array<i64: 1>, scalar_prefetch = 0 : i64, scratch_operands = 0 : i64, tpu.core_type = #tpu.core_type<tc>, window_params = [{transform_indices = @transform_0, window_bounds = array<i64: 2, 4096>}, {pipeline_mode = #tpu.pipeline_mode<synchronous>, transform_indices = @transform_1, window_bounds = array<i64: 4096, 128>}, {pipeline_mode = #tpu.pipeline_mode<synchronous>, transform_indices = @transform_2, window_bounds = array<i64: 1, 128>}, {pipeline_mode = #tpu.pipeline_mode<synchronous>, transform_indices = @transform_3, window_bounds = array<i64: 128, 128>}, {pipeline_mode = #tpu.pipeline_mode<synchronous>, transform_indices = @transform_4, window_bounds = array<i64: 1, 128>}, {transform_indices = @transform_5, window_bounds = array<i64: 2, 128>}]} {
    %c0 = arith.constant 0 : index
    %c0_0 = arith.constant 0 : index
    %0 = vector.load %arg1[%c0, %c0_0] : memref<2x4096xf32, #tpu.memory_space<vmem>>, vector<2x4096xf32>
    %c0_1 = arith.constant 0 : index
    %c0_2 = arith.constant 0 : index
    %1 = vector.load %arg2[%c0_1, %c0_2] : memref<4096x128xf32, #tpu.memory_space<vmem>>, vector<4096x128xf32>
    %cst = arith.constant dense<0.000000e+00> : vector<2x128xf32>
    %2 = tpu.matmul %0, %1, %cst {dimension_numbers = #tpu.dot_dimension_numbers<[1], [0], [0], [1], [0, 0, 1, 1], [], []>} : vector<2x4096xf32>, vector<4096x128xf32>, vector<2x128xf32> -> vector<2x128xf32>
    %c0_3 = arith.constant 0 : index
    %c0_4 = arith.constant 0 : index
    %3 = vector.load %arg3[%c0_3, %c0_4] : memref<1x128xf32, #tpu.memory_space<vmem>>, vector<1x128xf32>
    %4 = vector.broadcast %3 : vector<1x128xf32> to vector<2x128xf32>
    %5 = arith.addf %2, %4 : vector<2x128xf32>
    %cst_5 = arith.constant 0.000000e+00 : f32
    %6 = vector.broadcast %cst_5 : f32 to vector<2x128xf32>
    %7 = arith.maximumf %5, %6 : vector<2x128xf32>
    %c0_6 = arith.constant 0 : index
    %c0_7 = arith.constant 0 : index
    %8 = vector.load %arg4[%c0_6, %c0_7] : memref<128x128xf32, #tpu.memory_space<vmem>>, vector<128x128xf32>
    %cst_8 = arith.constant dense<0.000000e+00> : vector<2x128xf32>
    %9 = tpu.matmul %7, %8, %cst_8 {dimension_numbers = #tpu.dot_dimension_numbers<[1], [0], [0], [1], [0, 0, 1, 1], [], []>} : vector<2x128xf32>, vector<128x128xf32>, vector<2x128xf32> -> vector<2x128xf32>
    %c0_9 = arith.constant 0 : index
    %c0_10 = arith.constant 0 : index
    %10 = vector.load %arg5[%c0_9, %c0_10] : memref<1x128xf32, #tpu.memory_space<vmem>>, vector<1x128xf32>
    %11 = vector.broadcast %10 : vector<1x128xf32> to vector<2x128xf32>
    %12 = arith.addf %9, %11 : vector<2x128xf32>
    %c0_11 = arith.constant 0 : index
    %c0_12 = arith.constant 0 : index
    %13 = vector.load %arg6[%c0_11, %c0_12] : memref<2x128xf32, #tpu.memory_space<vmem>>, vector<2x128xf32>
    tpu.vector_store %arg6[%c0_11, %c0_12], %12 {strides = array<i32>} : memref<2x128xf32, #tpu.memory_space<vmem>>, vector<2x128xf32>,
    return
  }
  func.func @transform_0(%arg0: i32) -> (i32, i32) {
    %c0_i32 = arith.constant 0 : i32
    %c0_i32_0 = arith.constant 0 : i32
    return %arg0, %c0_i32 : i32, i32
  }
  func.func @transform_1(%arg0: i32) -> (i32, i32) {
    %c0_i32 = arith.constant 0 : i32
    %c0_i32_0 = arith.constant 0 : i32
    %c0_i32_1 = arith.constant 0 : i32
    return %c0_i32, %c0_i32_0 : i32, i32
  }
  func.func @transform_2(%arg0: i32) -> (i32, i32) {
    %c0_i32 = arith.constant 0 : i32
    %c0_i32_0 = arith.constant 0 : i32
    %c0_i32_1 = arith.constant 0 : i32
    return %c0_i32, %c0_i32_0 : i32, i32
  }
  func.func @transform_3(%arg0: i32) -> (i32, i32) {
    %c0_i32 = arith.constant 0 : i32
    %c0_i32_0 = arith.constant 0 : i32
    %c0_i32_1 = arith.constant 0 : i32
    return %c0_i32, %c0_i32_0 : i32, i32
  }
  func.func @transform_4(%arg0: i32) -> (i32, i32) {
    %c0_i32 = arith.constant 0 : i32
    %c0_i32_0 = arith.constant 0 : i32
    %c0_i32_1 = arith.constant 0 : i32
    return %c0_i32, %c0_i32_0 : i32, i32
  }
  func.func @transform_5(%arg0: i32) -> (i32, i32) {
    %c0_i32 = arith.constant 0 : i32
    %c0_i32_0 = arith.constant 0 : i32
    return %arg0, %c0_i32 : i32, i32
  }
}

</mosaic_0001>

<llo_original>
// kernel: simple_cnn_forward.5
$region0: #{simple_cnn_forward.5}
  #allocation0 [shape = 'u32[]', space=smem, size = 0x4, offset = 0x4, fixed_abs, tag = 'smem constant byte address 0x4 - core index']
  #allocation1 [shape = 'u32[144,128]{1,0:T(1,128)}', space=vmem, size = 0x12000, scoped, tag = 'internal scratch']
  %s0 = inlined_call_operand.vmem [shape: f32[2,4096], index: 0, kind: input, shape index: {}]
  %s1 = inlined_call_operand.vmem [shape: f32[4096,128], index: 1, kind: input, shape index: {}]
  %s2 = inlined_call_operand.vmem [shape: f32[1,128], index: 2, kind: input, shape index: {}]
  %s3 = inlined_call_operand.vmem [shape: f32[128,128], index: 3, kind: input, shape index: {}]
  %s4 = inlined_call_operand.vmem [shape: f32[1,128], index: 4, kind: input, shape index: {}]
  %s5 = inlined_call_operand.hbm [shape: f32[2,128], index: 5, kind: output, shape index: {}]
  %s6 = sld [smem:[#allocation0]]
  $region30: #{simple_cnn_forward.5} parent=0
    _
  %s8 = ssub.s32 1, %s6
  %s9 = scalar_select 0, %s8, %s6
  $region1: #{simple_cnn_forward.5} parent=0
    #allocation2 [shape = 'u8[1024]{0}', space=vmem, size = 0x400, scoped, tag = 'output window, operand 0, single buffered']
    #allocation3 [shape = 's32[1]{0}', space=sflag, size = 0x4, scoped, tag = 'scoped memory for simple_cnn_forward.5']
    %10 = vsyncpa [#allocation3], 0
    // Predicated region
    $region2: #{simple_cnn_forward.5} parent=1 // pred_check
      _
    $region3: #{simple_cnn_forward.5} parent=1 // pred_check_branch
      %12 = sbr.rel (0) target = $region5
    $region4: #{simple_cnn_forward.5} parent=1 // pred_region
      _
    $region5: #{simple_cnn_forward.5} parent=1 // pred_fallthru
      _
    // Predicated region
    $region6: #{simple_cnn_forward.5} parent=1 // pred_check
      _
    $region7: #{simple_cnn_forward.5} parent=1 // pred_check_branch
      %14 = sbr.rel (0) target = $region9
    $region8: #{simple_cnn_forward.5} parent=1 // pred_region
      _
    $region9: #{simple_cnn_forward.5} parent=1 // pred_fallthru
      _
    // Predicated region
    $region10: #{simple_cnn_forward.5} parent=1 // pred_check
      _
    $region11: #{simple_cnn_forward.5} parent=1 // pred_check_branch
      %16 = sbr.rel (0) target = $region13
    $region12: #{simple_cnn_forward.5} parent=1 // pred_region
      _
    $region13: #{simple_cnn_forward.5} parent=1 // pred_fallthru
      _
    // Predicated region
    $region14: #{simple_cnn_forward.5} parent=1 // pred_check
      _
    $region15: #{simple_cnn_forward.5} parent=1 // pred_check_branch
      %18 = sbr.rel (0) target = $region17
    $region16: #{simple_cnn_forward.5} parent=1 // pred_region
      _
    $region17: #{simple_cnn_forward.5} parent=1 // pred_fallthru
      _
    // Predicated region
    $region18: #{simple_cnn_forward.5} parent=1 // pred_check
      _
    $region19: #{simple_cnn_forward.5} parent=1 // pred_check_branch
      %20 = sbr.rel (0) target = $region21
    $region20: #{simple_cnn_forward.5} parent=1 // pred_region
      _
    $region21: #{simple_cnn_forward.5} parent=1 // pred_fallthru
      _
    %v21 = vld [vmem:[%s0] sm:$0xff]
    %v22 = vld [vmem:[%s0 + $0x8] sm:$0xff]
    %v23 = vld [vmem:[%s0 + $0x10] sm:$0xff]
    %v24 = vld [vmem:[%s0 + $0x18] sm:$0xff]
    %v25 = vld [vmem:[%s0 + $0x20] sm:$0xff]
    %v26 = vld [vmem:[%s0 + $0x28] sm:$0xff]
    %v27 = vld [vmem:[%s0 + $0x30] sm:$0xff]
    %v28 = vld [vmem:[%s0 + $0x38] sm:$0xff]
    %v29 = vld [vmem:[%s1] sm:$0xff]
    %v30 = vld [vmem:[%s1 + $0x8] sm:$0xff]
    %v31 = vld [vmem:[%s1 + $0x10] sm:$0xff]
    %v32 = vld [vmem:[%s1 + $0x18] sm:$0xff]
    %v33 = vld [vmem:[%s1 + $0x20] sm:$0xff]
    %v34 = vld [vmem:[%s1 + $0x28] sm:$0xff]
    %v35 = vld [vmem:[%s1 + $0x30] sm:$0xff]
    %v36 = vld [vmem:[%s1 + $0x38] sm:$0xff]
    %v37 = vld [vmem:[%s1 + $0x40] sm:$0xff]
    %v38 = vld [vmem:[%s1 + $0x48] sm:$0xff]
    %v39 = vld [vmem:[%s1 + $0x50] sm:$0xff]
    %v40 = vld [vmem:[%s1 + $0x58] sm:$0xff]
    %v41 = vld [vmem:[%s1 + $0x60] sm:$0xff]
    %v42 = vld [vmem:[%s1 + $0x68] sm:$0xff]
    %v43 = vld [vmem:[%s1 + $0x70] sm:$0xff]
    %v44 = vld [vmem:[%s1 + $0x78] sm:$0xff]
    %v45 = vld [vmem:[%s1 + $0x80] sm:$0xff]
    %v46 = vld [vmem:[%s1 + $0x88] sm:$0xff]
    %v47 = vld [vmem:[%s1 + $0x90] sm:$0xff]
    %v48 = vld [vmem:[%s1 + $0x98] sm:$0xff]
    %v49 = vld [vmem:[%s1 + $0xa0] sm:$0xff]
    %v50 = vld [vmem:[%s1 + $0xa8] sm:$0xff]
    %v51 = vld [vmem:[%s1 + $0xb0] sm:$0xff]
    %v52 = vld [vmem:[%s1 + $0xb8] sm:$0xff]
    %v53 = vld [vmem:[%s1 + $0xc0] sm:$0xff]
    %v54 = vld [vmem:[%s1 + $0xc8] sm:$0xff]
    %v55 = vld [vmem:[%s1 + $0xd0] sm:$0xff]
    %v56 = vld [vmem:[%s1 + $0xd8] sm:$0xff]
    %v57 = vld [vmem:[%s1 + $0xe0] sm:$0xff]
    %v58 = vld [vmem:[%s1 + $0xe8] sm:$0xff]
    %v59 = vld [vmem:[%s1 + $0xf0] sm:$0xff]
    %v60 = vld [vmem:[%s1 + $0xf8] sm:$0xff]
    %v61 = vld [vmem:[%s1 + $0x100] sm:$0xff]
    %v62 = vld [vmem:[%s1 + $0x108] sm:$0xff]
    %v63 = vld [vmem:[%s1 + $0x110] sm:$0xff]
    %v64 = vld [vmem:[%s1 + $0x118] sm:$0xff]
    %v65 = vld [vmem:[%s1 + $0x120] sm:$0xff]
    %v66 = vld [vmem:[%s1 + $0x128] sm:$0xff]
    %v67 = vld [vmem:[%s1 + $0x130] sm:$0xff]
    %v68 = vld [vmem:[%s1 + $0x138] sm:$0xff]
    %v69 = vld [vmem:[%s1 + $0x140] sm:$0xff]
    %v70 = vld [vmem:[%s1 + $0x148] sm:$0xff]
    %v71 = vld [vmem:[%s1 + $0x150] sm:$0xff]
    %v72 = vld [vmem:[%s1 + $0x158] sm:$0xff]
    %v73 = vld [vmem:[%s1 + $0x160] sm:$0xff]
    %v74 = vld [vmem:[%s1 + $0x168] sm:$0xff]
    %v75 = vld [vmem:[%s1 + $0x170] sm:$0xff]
    %v76 = vld [vmem:[%s1 + $0x178] sm:$0xff]
    %v77 = vld [vmem:[%s1 + $0x180] sm:$0xff]
    %v78 = vld [vmem:[%s1 + $0x188] sm:$0xff]
    %v79 = vld [vmem:[%s1 + $0x190] sm:$0xff]
    %v80 = vld [vmem:[%s1 + $0x198] sm:$0xff]
    %v81 = vld [vmem:[%s1 + $0x1a0] sm:$0xff]
    %v82 = vld [vmem:[%s1 + $0x1a8] sm:$0xff]
    %v83 = vld [vmem:[%s1 + $0x1b0] sm:$0xff]
    %v84 = vld [vmem:[%s1 + $0x1b8] sm:$0xff]
    %v85 = vld [vmem:[%s1 + $0x1c0] sm:$0xff]
    %v86 = vld [vmem:[%s1 + $0x1c8] sm:$0xff]
    %v87 = vld [vmem:[%s1 + $0x1d0] sm:$0xff]
    %v88 = vld [vmem:[%s1 + $0x1d8] sm:$0xff]
    %v89 = vld [vmem:[%s1 + $0x1e0] sm:$0xff]
    %v90 = vld [vmem:[%s1 + $0x1e8] sm:$0xff]
    %v91 = vld [vmem:[%s1 + $0x1f0] sm:$0xff]
    %v92 = vld [vmem:[%s1 + $0x1f8] sm:$0xff]
    %v93 = vld [vmem:[%s1 + $0x200] sm:$0xff]
    %v94 = vld [vmem:[%s1 + $0x208] sm:$0xff]
    %v95 = vld [vmem:[%s1 + $0x210] sm:$0xff]
    %v96 = vld [vmem:[%s1 + $0x218] sm:$0xff]
    %v97 = vld [vmem:[%s1 + $0x220] sm:$0xff]
    %v98 = vld [vmem:[%s1 + $0x228] sm:$0xff]
    %v99 = vld [vmem:[%s1 + $0x230] sm:$0xff]
    %v100 = vld [vmem:[%s1 + $0x238] sm:$0xff]
    %v101 = vld [vmem:[%s1 + $0x240] sm:$0xff]
    %v102 = vld [vmem:[%s1 + $0x248] sm:$0xff]
    %v103 = vld [vmem:[%s1 + $0x250] sm:$0xff]
    %v104 = vld [vmem:[%s1 + $0x258] sm:$0xff]
    %v105 = vld [vmem:[%s1 + $0x260] sm:$0xff]
    %v106 = vld [vmem:[%s1 + $0x268] sm:$0xff]
    %v107 = vld [vmem:[%s1 + $0x270] sm:$0xff]
    %v108 = vld [vmem:[%s1 + $0x278] sm:$0xff]
    %v109 = vld [vmem:[%s1 + $0x280] sm:$0xff]
    %v110 = vld [vmem:[%s1 + $0x288] sm:$0xff]
    %v111 = vld [vmem:[%s1 + $0x290] sm:$0xff]
    %v112 = vld [vmem:[%s1 + $0x298] sm:$0xff]
    %v113 = vld [vmem:[%s1 + $0x2a0] sm:$0xff]
    %v114 = vld [vmem:[%s1 + $0x2a8] sm:$0xff]
    %v115 = vld [vmem:[%s1 + $0x2b0] sm:$0xff]
    %v116 = vld [vmem:[%s1 + $0x2b8] sm:$0xff]
    %v117 = vld [vmem:[%s1 + $0x2c0] sm:$0xff]
    %v118 = vld [vmem:[%s1 + $0x2c8] sm:$0xff]
    %v119 = vld [vmem:[%s1 + $0x2d0] sm:$0xff]
    %v120 = vld [vmem:[%s1 + $0x2d8] sm:$0xff]
    %v121 = vld [vmem:[%s1 + $0x2e0] sm:$0xff]
    %v122 = vld [vmem:[%s1 + $0x2e8] sm:$0xff]
    %v123 = vld [vmem:[%s1 + $0x2f0] sm:$0xff]
    %v124 = vld [vmem:[%s1 + $0x2f8] sm:$0xff]
    %v125 = vld [vmem:[%s1 + $0x300] sm:$0xff]
    %v126 = vld [vmem:[%s1 + $0x308] sm:$0xff]
    %v127 = vld [vmem:[%s1 + $0x310] sm:$0xff]
    %v128 = vld [vmem:[%s1 + $0x318] sm:$0xff]
    %v129 = vld [vmem:[%s1 + $0x320] sm:$0xff]
    %v130 = vld [vmem:[%s1 + $0x328] sm:$0xff]
    %v131 = vld [vmem:[%s1 + $0x330] sm:$0xff]
    %v132 = vld [vmem:[%s1 + $0x338] sm:$0xff]
    %v133 = vld [vmem:[%s1 + $0x340] sm:$0xff]
    %v134 = vld [vmem:[%s1 + $0x348] sm:$0xff]
    %v135 = vld [vmem:[%s1 + $0x350] sm:$0xff]
    %v136 = vld [vmem:[%s1 + $0x358] sm:$0xff]
    %v137 = vld [vmem:[%s1 + $0x360] sm:$0xff]
    %v138 = vld [vmem:[%s1 + $0x368] sm:$0xff]
    %v139 = vld [vmem:[%s1 + $0x370] sm:$0xff]
    %v140 = vld [vmem:[%s1 + $0x378] sm:$0xff]
    %v141 = vld [vmem:[%s1 + $0x380] sm:$0xff]
    %v142 = vld [vmem:[%s1 + $0x388] sm:$0xff]
    %v143 = vld [vmem:[%s1 + $0x390] sm:$0xff]
    %v144 = vld [vmem:[%s1 + $0x398] sm:$0xff]
    %v145 = vld [vmem:[%s1 + $0x3a0] sm:$0xff]
    %v146 = vld [vmem:[%s1 + $0x3a8] sm:$0xff]
    %v147 = vld [vmem:[%s1 + $0x3b0] sm:$0xff]
    %v148 = vld [vmem:[%s1 + $0x3b8] sm:$0xff]
    %v149 = vld [vmem:[%s1 + $0x3c0] sm:$0xff]
    %v150 = vld [vmem:[%s1 + $0x3c8] sm:$0xff]
    %v151 = vld [vmem:[%s1 + $0x3d0] sm:$0xff]
    %v152 = vld [vmem:[%s1 + $0x3d8] sm:$0xff]
    %v153 = vld [vmem:[%s1 + $0x3e0] sm:$0xff]
    %v154 = vld [vmem:[%s1 + $0x3e8] sm:$0xff]
    %v155 = vld [vmem:[%s1 + $0x3f0] sm:$0xff]
    %v156 = vld [vmem:[%s1 + $0x3f8] sm:$0xff]
    %v157 = vld [vmem:[%s1 + $0x400] sm:$0xff]
    %v158 = vld [vmem:[%s1 + $0x408] sm:$0xff]
    %v159 = vld [vmem:[%s1 + $0x410] sm:$0xff]
    %v160 = vld [vmem:[%s1 + $0x418] sm:$0xff]
    %v161 = vld [vmem:[%s1 + $0x420] sm:$0xff]
    %v162 = vld [vmem:[%s1 + $0x428] sm:$0xff]
    %v163 = vld [vmem:[%s1 + $0x430] sm:$0xff]
    %v164 = vld [vmem:[%s1 + $0x438] sm:$0xff]
    %v165 = vld [vmem:[%s1 + $0x440] sm:$0xff]
    %v166 = vld [vmem:[%s1 + $0x448] sm:$0xff]
    %v167 = vld [vmem:[%s1 + $0x450] sm:$0xff]
    %v168 = vld [vmem:[%s1 + $0x458] sm:$0xff]
    %v169 = vld [vmem:[%s1 + $0x460] sm:$0xff]
    %v170 = vld [vmem:[%s1 + $0x468] sm:$0xff]
    %v171 = vld [vmem:[%s1 + $0x470] sm:$0xff]
    %v172 = vld [vmem:[%s1 + $0x478] sm:$0xff]
    %v173 = vld [vmem:[%s1 + $0x480] sm:$0xff]
    %v174 = vld [vmem:[%s1 + $0x488] sm:$0xff]
    %v175 = vld [vmem:[%s1 + $0x490] sm:$0xff]
    %v176 = vld [vmem:[%s1 + $0x498] sm:$0xff]
    %v177 = vld [vmem:[%s1 + $0x4a0] sm:$0xff]
    %v178 = vld [vmem:[%s1 + $0x4a8] sm:$0xff]
    %v179 = vld [vmem:[%s1 + $0x4b0] sm:$0xff]
    %v180 = vld [vmem:[%s1 + $0x4b8] sm:$0xff]
    %v181 = vld [vmem:[%s1 + $0x4c0] sm:$0xff]
    %v182 = vld [vmem:[%s1 + $0x4c8] sm:$0xff]
    %v183 = vld [vmem:[%s1 + $0x4d0] sm:$0xff]
    %v184 = vld [vmem:[%s1 + $0x4d8] sm:$0xff]
    %v185 = vld [vmem:[%s1 + $0x4e0] sm:$0xff]
    %v186 = vld [vmem:[%s1 + $0x4e8] sm:$0xff]
    %v187 = vld [vmem:[%s1 + $0x4f0] sm:$0xff]
    %v188 = vld [vmem:[%s1 + $0x4f8] sm:$0xff]
    %v189 = vld [vmem:[%s1 + $0x500] sm:$0xff]
    %v190 = vld [vmem:[%s1 + $0x508] sm:$0xff]
    %v191 = vld [vmem:[%s1 + $0x510] sm:$0xff]
    %v192 = vld [vmem:[%s1 + $0x518] sm:$0xff]
    %v193 = vld [vmem:[%s1 + $0x520] sm:$0xff]
    %v194 = vld [vmem:[%s1 + $0x528] sm:$0xff]
    %v195 = vld [vmem:[%s1 + $0x530] sm:$0xff]
    %v196 = vld [vmem:[%s1 + $0x538] sm:$0xff]
    %v197 = vld [vmem:[%s1 + $0x540] sm:$0xff]
    %v198 = vld [vmem:[%s1 + $0x548] sm:$0xff]
    %v199 = vld [vmem:[%s1 + $0x550] sm:$0xff]
    %v200 = vld [vmem:[%s1 + $0x558] sm:$0xff]
    %v201 = vld [vmem:[%s1 + $0x560] sm:$0xff]
    %v202 = vld [vmem:[%s1 + $0x568] sm:$0xff]
    %v203 = vld [vmem:[%s1 + $0x570] sm:$0xff]
    %v204 = vld [vmem:[%s1 + $0x578] sm:$0xff]
    %v205 = vld [vmem:[%s1 + $0x580] sm:$0xff]
    %v206 = vld [vmem:[%s1 + $0x588] sm:$0xff]
    %v207 = vld [vmem:[%s1 + $0x590] sm:$0xff]
    %v208 = vld [vmem:[%s1 + $0x598] sm:$0xff]
    %v209 = vld [vmem:[%s1 + $0x5a0] sm:$0xff]
    %v210 = vld [vmem:[%s1 + $0x5a8] sm:$0xff]
    %v211 = vld [vmem:[%s1 + $0x5b0] sm:$0xff]
    %v212 = vld [vmem:[%s1 + $0x5b8] sm:$0xff]
    %v213 = vld [vmem:[%s1 + $0x5c0] sm:$0xff]
    %v214 = vld [vmem:[%s1 + $0x5c8] sm:$0xff]
    %v215 = vld [vmem:[%s1 + $0x5d0] sm:$0xff]
    %v216 = vld [vmem:[%s1 + $0x5d8] sm:$0xff]
    %v217 = vld [vmem:[%s1 + $0x5e0] sm:$0xff]
    %v218 = vld [vmem:[%s1 + $0x5e8] sm:$0xff]
    %v219 = vld [vmem:[%s1 + $0x5f0] sm:$0xff]
    %v220 = vld [vmem:[%s1 + $0x5f8] sm:$0xff]
    %v221 = vld [vmem:[%s1 + $0x600] sm:$0xff]
    %v222 = vld [vmem:[%s1 + $0x608] sm:$0xff]
    %v223 = vld [vmem:[%s1 + $0x610] sm:$0xff]
    %v224 = vld [vmem:[%s1 + $0x618] sm:$0xff]
    %v225 = vld [vmem:[%s1 + $0x620] sm:$0xff]
    %v226 = vld [vmem:[%s1 + $0x628] sm:$0xff]
    %v227 = vld [vmem:[%s1 + $0x630] sm:$0xff]
    %v228 = vld [vmem:[%s1 + $0x638] sm:$0xff]
    %v229 = vld [vmem:[%s1 + $0x640] sm:$0xff]
    %v230 = vld [vmem:[%s1 + $0x648] sm:$0xff]
    %v231 = vld [vmem:[%s1 + $0x650] sm:$0xff]
    %v232 = vld [vmem:[%s1 + $0x658] sm:$0xff]
    %v233 = vld [vmem:[%s1 + $0x660] sm:$0xff]
    %v234 = vld [vmem:[%s1 + $0x668] sm:$0xff]
    %v235 = vld [vmem:[%s1 + $0x670] sm:$0xff]
    %v236 = vld [vmem:[%s1 + $0x678] sm:$0xff]
    %v237 = vld [vmem:[%s1 + $0x680] sm:$0xff]
    %v238 = vld [vmem:[%s1 + $0x688] sm:$0xff]
    %v239 = vld [vmem:[%s1 + $0x690] sm:$0xff]
    %v240 = vld [vmem:[%s1 + $0x698] sm:$0xff]
    %v241 = vld [vmem:[%s1 + $0x6a0] sm:$0xff]
    %v242 = vld [vmem:[%s1 + $0x6a8] sm:$0xff]
    %v243 = vld [vmem:[%s1 + $0x6b0] sm:$0xff]
    %v244 = vld [vmem:[%s1 + $0x6b8] sm:$0xff]
    %v245 = vld [vmem:[%s1 + $0x6c0] sm:$0xff]
    %v246 = vld [vmem:[%s1 + $0x6c8] sm:$0xff]
    %v247 = vld [vmem:[%s1 + $0x6d0] sm:$0xff]
    %v248 = vld [vmem:[%s1 + $0x6d8] sm:$0xff]
    %v249 = vld [vmem:[%s1 + $0x6e0] sm:$0xff]
    %v250 = vld [vmem:[%s1 + $0x6e8] sm:$0xff]
    %v251 = vld [vmem:[%s1 + $0x6f0] sm:$0xff]
    %v252 = vld [vmem:[%s1 + $0x6f8] sm:$0xff]
    %v253 = vld [vmem:[%s1 + $0x700] sm:$0xff]
    %v254 = vld [vmem:[%s1 + $0x708] sm:$0xff]
    %v255 = vld [vmem:[%s1 + $0x710] sm:$0xff]
    %v256 = vld [vmem:[%s1 + $0x718] sm:$0xff]
    %v257 = vld [vmem:[%s1 + $0x720] sm:$0xff]
    %v258 = vld [vmem:[%s1 + $0x728] sm:$0xff]
    %v259 = vld [vmem:[%s1 + $0x730] sm:$0xff]
    %v260 = vld [vmem:[%s1 + $0x738] sm:$0xff]
    %v261 = vld [vmem:[%s1 + $0x740] sm:$0xff]
    %v262 = vld [vmem:[%s1 + $0x748] sm:$0xff]
    %v263 = vld [vmem:[%s1 + $0x750] sm:$0xff]
    %v264 = vld [vmem:[%s1 + $0x758] sm:$0xff]
    %v265 = vld [vmem:[%s1 + $0x760] sm:$0xff]
    %v266 = vld [vmem:[%s1 + $0x768] sm:$0xff]
    %v267 = vld [vmem:[%s1 + $0x770] sm:$0xff]
    %v268 = vld [vmem:[%s1 + $0x778] sm:$0xff]
    %v269 = vld [vmem:[%s1 + $0x780] sm:$0xff]
    %v270 = vld [vmem:[%s1 + $0x788] sm:$0xff]
    %v271 = vld [vmem:[%s1 + $0x790] sm:$0xff]
    %v272 = vld [vmem:[%s1 + $0x798] sm:$0xff]
    %v273 = vld [vmem:[%s1 + $0x7a0] sm:$0xff]
    %v274 = vld [vmem:[%s1 + $0x7a8] sm:$0xff]
    %v275 = vld [vmem:[%s1 + $0x7b0] sm:$0xff]
    %v276 = vld [vmem:[%s1 + $0x7b8] sm:$0xff]
    %v277 = vld [vmem:[%s1 + $0x7c0] sm:$0xff]
    %v278 = vld [vmem:[%s1 + $0x7c8] sm:$0xff]
    %v279 = vld [vmem:[%s1 + $0x7d0] sm:$0xff]
    %v280 = vld [vmem:[%s1 + $0x7d8] sm:$0xff]
    %v281 = vld [vmem:[%s1 + $0x7e0] sm:$0xff]
    %v282 = vld [vmem:[%s1 + $0x7e8] sm:$0xff]
    %v283 = vld [vmem:[%s1 + $0x7f0] sm:$0xff]
    %v284 = vld [vmem:[%s1 + $0x7f8] sm:$0xff]
    %v285 = vld [vmem:[%s1 + $0x800] sm:$0xff]
    %v286 = vld [vmem:[%s1 + $0x808] sm:$0xff]
    %v287 = vld [vmem:[%s1 + $0x810] sm:$0xff]
    %v288 = vld [vmem:[%s1 + $0x818] sm:$0xff]
    %v289 = vld [vmem:[%s1 + $0x820] sm:$0xff]
    %v290 = vld [vmem:[%s1 + $0x828] sm:$0xff]
    %v291 = vld [vmem:[%s1 + $0x830] sm:$0xff]
    %v292 = vld [vmem:[%s1 + $0x838] sm:$0xff]
    %v293 = vld [vmem:[%s1 + $0x840] sm:$0xff]
    %v294 = vld [vmem:[%s1 + $0x848] sm:$0xff]
    %v295 = vld [vmem:[%s1 + $0x850] sm:$0xff]
    %v296 = vld [vmem:[%s1 + $0x858] sm:$0xff]
    %v297 = vld [vmem:[%s1 + $0x860] sm:$0xff]
    %v298 = vld [vmem:[%s1 + $0x868] sm:$0xff]
    %v299 = vld [vmem:[%s1 + $0x870] sm:$0xff]
    %v300 = vld [vmem:[%s1 + $0x878] sm:$0xff]
    %v301 = vld [vmem:[%s1 + $0x880] sm:$0xff]
    %v302 = vld [vmem:[%s1 + $0x888] sm:$0xff]
    %v303 = vld [vmem:[%s1 + $0x890] sm:$0xff]
    %v304 = vld [vmem:[%s1 + $0x898] sm:$0xff]
    %v305 = vld [vmem:[%s1 + $0x8a0] sm:$0xff]
    %v306 = vld [vmem:[%s1 + $0x8a8] sm:$0xff]
    %v307 = vld [vmem:[%s1 + $0x8b0] sm:$0xff]
    %v308 = vld [vmem:[%s1 + $0x8b8] sm:$0xff]
    %v309 = vld [vmem:[%s1 + $0x8c0] sm:$0xff]
    %v310 = vld [vmem:[%s1 + $0x8c8] sm:$0xff]
    %v311 = vld [vmem:[%s1 + $0x8d0] sm:$0xff]
    %v312 = vld [vmem:[%s1 + $0x8d8] sm:$0xff]
    %v313 = vld [vmem:[%s1 + $0x8e0] sm:$0xff]
    %v314 = vld [vmem:[%s1 + $0x8e8] sm:$0xff]
    %v315 = vld [vmem:[%s1 + $0x8f0] sm:$0xff]
    %v316 = vld [vmem:[%s1 + $0x8f8] sm:$0xff]
    %v317 = vld [vmem:[%s1 + $0x900] sm:$0xff]
    %v318 = vld [vmem:[%s1 + $0x908] sm:$0xff]
    %v319 = vld [vmem:[%s1 + $0x910] sm:$0xff]
    %v320 = vld [vmem:[%s1 + $0x918] sm:$0xff]
    %v321 = vld [vmem:[%s1 + $0x920] sm:$0xff]
    %v322 = vld [vmem:[%s1 + $0x928] sm:$0xff]
    %v323 = vld [vmem:[%s1 + $0x930] sm:$0xff]
    %v324 = vld [vmem:[%s1 + $0x938] sm:$0xff]
    %v325 = vld [vmem:[%s1 + $0x940] sm:$0xff]
    %v326 = vld [vmem:[%s1 + $0x948] sm:$0xff]
    %v327 = vld [vmem:[%s1 + $0x950] sm:$0xff]
    %v328 = vld [vmem:[%s1 + $0x958] sm:$0xff]
    %v329 = vld [vmem:[%s1 + $0x960] sm:$0xff]
    %v330 = vld [vmem:[%s1 + $0x968] sm:$0xff]
    %v331 = vld [vmem:[%s1 + $0x970] sm:$0xff]
    %v332 = vld [vmem:[%s1 + $0x978] sm:$0xff]
    %v333 = vld [vmem:[%s1 + $0x980] sm:$0xff]
    %v334 = vld [vmem:[%s1 + $0x988] sm:$0xff]
    %v335 = vld [vmem:[%s1 + $0x990] sm:$0xff]
    %v336 = vld [vmem:[%s1 + $0x998] sm:$0xff]
    %v337 = vld [vmem:[%s1 + $0x9a0] sm:$0xff]
    %v338 = vld [vmem:[%s1 + $0x9a8] sm:$0xff]
    %v339 = vld [vmem:[%s1 + $0x9b0] sm:$0xff]
    %v340 = vld [vmem:[%s1 + $0x9b8] sm:$0xff]
    %v341 = vld [vmem:[%s1 + $0x9c0] sm:$0xff]
    %v342 = vld [vmem:[%s1 + $0x9c8] sm:$0xff]
    %v343 = vld [vmem:[%s1 + $0x9d0] sm:$0xff]
    %v344 = vld [vmem:[%s1 + $0x9d8] sm:$0xff]
    %v345 = vld [vmem:[%s1 + $0x9e0] sm:$0xff]
    %v346 = vld [vmem:[%s1 + $0x9e8] sm:$0xff]
    %v347 = vld [vmem:[%s1 + $0x9f0] sm:$0xff]
    %v348 = vld [vmem:[%s1 + $0x9f8] sm:$0xff]
    %v349 = vld [vmem:[%s1 + $0xa00] sm:$0xff]
    %v350 = vld [vmem:[%s1 + $0xa08] sm:$0xff]
    %v351 = vld [vmem:[%s1 + $0xa10] sm:$0xff]
    %v352 = vld [vmem:[%s1 + $0xa18] sm:$0xff]
    %v353 = vld [vmem:[%s1 + $0xa20] sm:$0xff]
    %v354 = vld [vmem:[%s1 + $0xa28] sm:$0xff]
    %v355 = vld [vmem:[%s1 + $0xa30] sm:$0xff]
    %v356 = vld [vmem:[%s1 + $0xa38] sm:$0xff]
    %v357 = vld [vmem:[%s1 + $0xa40] sm:$0xff]
    %v358 = vld [vmem:[%s1 + $0xa48] sm:$0xff]
    %v359 = vld [vmem:[%s1 + $0xa50] sm:$0xff]
    %v360 = vld [vmem:[%s1 + $0xa58] sm:$0xff]
    %v361 = vld [vmem:[%s1 + $0xa60] sm:$0xff]
    %v362 = vld [vmem:[%s1 + $0xa68] sm:$0xff]
    %v363 = vld [vmem:[%s1 + $0xa70] sm:$0xff]
    %v364 = vld [vmem:[%s1 + $0xa78] sm:$0xff]
    %v365 = vld [vmem:[%s1 + $0xa80] sm:$0xff]
    %v366 = vld [vmem:[%s1 + $0xa88] sm:$0xff]
    %v367 = vld [vmem:[%s1 + $0xa90] sm:$0xff]
    %v368 = vld [vmem:[%s1 + $0xa98] sm:$0xff]
    %v369 = vld [vmem:[%s1 + $0xaa0] sm:$0xff]
    %v370 = vld [vmem:[%s1 + $0xaa8] sm:$0xff]
    %v371 = vld [vmem:[%s1 + $0xab0] sm:$0xff]
    %v372 = vld [vmem:[%s1 + $0xab8] sm:$0xff]
    %v373 = vld [vmem:[%s1 + $0xac0] sm:$0xff]
    %v374 = vld [vmem:[%s1 + $0xac8] sm:$0xff]
    %v375 = vld [vmem:[%s1 + $0xad0] sm:$0xff]
    %v376 = vld [vmem:[%s1 + $0xad8] sm:$0xff]
    %v377 = vld [vmem:[%s1 + $0xae0] sm:$0xff]
    %v378 = vld [vmem:[%s1 + $0xae8] sm:$0xff]
    %v379 = vld [vmem:[%s1 + $0xaf0] sm:$0xff]
    %v380 = vld [vmem:[%s1 + $0xaf8] sm:$0xff]
    %v381 = vld [vmem:[%s1 + $0xb00] sm:$0xff]
    %v382 = vld [vmem:[%s1 + $0xb08] sm:$0xff]
    %v383 = vld [vmem:[%s1 + $0xb10] sm:$0xff]
    %v384 = vld [vmem:[%s1 + $0xb18] sm:$0xff]
    %v385 = vld [vmem:[%s1 + $0xb20] sm:$0xff]
    %v386 = vld [vmem:[%s1 + $0xb28] sm:$0xff]
    %v387 = vld [vmem:[%s1 + $0xb30] sm:$0xff]
    %v388 = vld [vmem:[%s1 + $0xb38] sm:$0xff]
    %v389 = vld [vmem:[%s1 + $0xb40] sm:$0xff]
    %v390 = vld [vmem:[%s1 + $0xb48] sm:$0xff]
    %v391 = vld [vmem:[%s1 + $0xb50] sm:$0xff]
    %v392 = vld [vmem:[%s1 + $0xb58] sm:$0xff]
    %v393 = vld [vmem:[%s1 + $0xb60] sm:$0xff]
    %v394 = vld [vmem:[%s1 + $0xb68] sm:$0xff]
    %v395 = vld [vmem:[%s1 + $0xb70] sm:$0xff]
    %v396 = vld [vmem:[%s1 + $0xb78] sm:$0xff]
    %v397 = vld [vmem:[%s1 + $0xb80] sm:$0xff]
    %v398 = vld [vmem:[%s1 + $0xb88] sm:$0xff]
    %v399 = vld [vmem:[%s1 + $0xb90] sm:$0xff]
    %v400 = vld [vmem:[%s1 + $0xb98] sm:$0xff]
    %v401 = vld [vmem:[%s1 + $0xba0] sm:$0xff]
    %v402 = vld [vmem:[%s1 + $0xba8] sm:$0xff]
    %v403 = vld [vmem:[%s1 + $0xbb0] sm:$0xff]
    %v404 = vld [vmem:[%s1 + $0xbb8] sm:$0xff]
    %v405 = vld [vmem:[%s1 + $0xbc0] sm:$0xff]
    %v406 = vld [vmem:[%s1 + $0xbc8] sm:$0xff]
    %v407 = vld [vmem:[%s1 + $0xbd0] sm:$0xff]
    %v408 = vld [vmem:[%s1 + $0xbd8] sm:$0xff]
    %v409 = vld [vmem:[%s1 + $0xbe0] sm:$0xff]
    %v410 = vld [vmem:[%s1 + $0xbe8] sm:$0xff]
    %v411 = vld [vmem:[%s1 + $0xbf0] sm:$0xff]
    %v412 = vld [vmem:[%s1 + $0xbf8] sm:$0xff]
    %v413 = vld [vmem:[%s1 + $0xc00] sm:$0xff]
    %v414 = vld [vmem:[%s1 + $0xc08] sm:$0xff]
    %v415 = vld [vmem:[%s1 + $0xc10] sm:$0xff]
    %v416 = vld [vmem:[%s1 + $0xc18] sm:$0xff]
    %v417 = vld [vmem:[%s1 + $0xc20] sm:$0xff]
    %v418 = vld [vmem:[%s1 + $0xc28] sm:$0xff]
    %v419 = vld [vmem:[%s1 + $0xc30] sm:$0xff]
    %v420 = vld [vmem:[%s1 + $0xc38] sm:$0xff]
    %v421 = vld [vmem:[%s1 + $0xc40] sm:$0xff]
    %v422 = vld [vmem:[%s1 + $0xc48] sm:$0xff]
    %v423 = vld [vmem:[%s1 + $0xc50] sm:$0xff]
    %v424 = vld [vmem:[%s1 + $0xc58] sm:$0xff]
    %v425 = vld [vmem:[%s1 + $0xc60] sm:$0xff]
    %v426 = vld [vmem:[%s1 + $0xc68] sm:$0xff]
    %v427 = vld [vmem:[%s1 + $0xc70] sm:$0xff]
    %v428 = vld [vmem:[%s1 + $0xc78] sm:$0xff]
    %v429 = vld [vmem:[%s1 + $0xc80] sm:$0xff]
    %v430 = vld [vmem:[%s1 + $0xc88] sm:$0xff]
    %v431 = vld [vmem:[%s1 + $0xc90] sm:$0xff]
    %v432 = vld [vmem:[%s1 + $0xc98] sm:$0xff]
    %v433 = vld [vmem:[%s1 + $0xca0] sm:$0xff]
    %v434 = vld [vmem:[%s1 + $0xca8] sm:$0xff]
    %v435 = vld [vmem:[%s1 + $0xcb0] sm:$0xff]
    %v436 = vld [vmem:[%s1 + $0xcb8] sm:$0xff]
    %v437 = vld [vmem:[%s1 + $0xcc0] sm:$0xff]
    %v438 = vld [vmem:[%s1 + $0xcc8] sm:$0xff]
    %v439 = vld [vmem:[%s1 + $0xcd0] sm:$0xff]
    %v440 = vld [vmem:[%s1 + $0xcd8] sm:$0xff]
    %v441 = vld [vmem:[%s1 + $0xce0] sm:$0xff]
    %v442 = vld [vmem:[%s1 + $0xce8] sm:$0xff]
    %v443 = vld [vmem:[%s1 + $0xcf0] sm:$0xff]
    %v444 = vld [vmem:[%s1 + $0xcf8] sm:$0xff]
    %v445 = vld [vmem:[%s1 + $0xd00] sm:$0xff]
    %v446 = vld [vmem:[%s1 + $0xd08] sm:$0xff]
    %v447 = vld [vmem:[%s1 + $0xd10] sm:$0xff]
    %v448 = vld [vmem:[%s1 + $0xd18] sm:$0xff]
    %v449 = vld [vmem:[%s1 + $0xd20] sm:$0xff]
    %v450 = vld [vmem:[%s1 + $0xd28] sm:$0xff]
    %v451 = vld [vmem:[%s1 + $0xd30] sm:$0xff]
    %v452 = vld [vmem:[%s1 + $0xd38] sm:$0xff]
    %v453 = vld [vmem:[%s1 + $0xd40] sm:$0xff]
    %v454 = vld [vmem:[%s1 + $0xd48] sm:$0xff]
    %v455 = vld [vmem:[%s1 + $0xd50] sm:$0xff]
    %v456 = vld [vmem:[%s1 + $0xd58] sm:$0xff]
    %v457 = vld [vmem:[%s1 + $0xd60] sm:$0xff]
    %v458 = vld [vmem:[%s1 + $0xd68] sm:$0xff]
    %v459 = vld [vmem:[%s1 + $0xd70] sm:$0xff]
    %v460 = vld [vmem:[%s1 + $0xd78] sm:$0xff]
    %v461 = vld [vmem:[%s1 + $0xd80] sm:$0xff]
    %v462 = vld [vmem:[%s1 + $0xd88] sm:$0xff]
    %v463 = vld [vmem:[%s1 + $0xd90] sm:$0xff]
    %v464 = vld [vmem:[%s1 + $0xd98] sm:$0xff]
    %v465 = vld [vmem:[%s1 + $0xda0] sm:$0xff]
    %v466 = vld [vmem:[%s1 + $0xda8] sm:$0xff]
    %v467 = vld [vmem:[%s1 + $0xdb0] sm:$0xff]
    %v468 = vld [vmem:[%s1 + $0xdb8] sm:$0xff]
    %v469 = vld [vmem:[%s1 + $0xdc0] sm:$0xff]
    %v470 = vld [vmem:[%s1 + $0xdc8] sm:$0xff]
    %v471 = vld [vmem:[%s1 + $0xdd0] sm:$0xff]
    %v472 = vld [vmem:[%s1 + $0xdd8] sm:$0xff]
    %v473 = vld [vmem:[%s1 + $0xde0] sm:$0xff]
    %v474 = vld [vmem:[%s1 + $0xde8] sm:$0xff]
    %v475 = vld [vmem:[%s1 + $0xdf0] sm:$0xff]
    %v476 = vld [vmem:[%s1 + $0xdf8] sm:$0xff]
    %v477 = vld [vmem:[%s1 + $0xe00] sm:$0xff]
    %v478 = vld [vmem:[%s1 + $0xe08] sm:$0xff]
    %v479 = vld [vmem:[%s1 + $0xe10] sm:$0xff]
    %v480 = vld [vmem:[%s1 + $0xe18] sm:$0xff]
    %v481 = vld [vmem:[%s1 + $0xe20] sm:$0xff]
    %v482 = vld [vmem:[%s1 + $0xe28] sm:$0xff]
    %v483 = vld [vmem:[%s1 + $0xe30] sm:$0xff]
    %v484 = vld [vmem:[%s1 + $0xe38] sm:$0xff]
    %v485 = vld [vmem:[%s1 + $0xe40] sm:$0xff]
    %v486 = vld [vmem:[%s1 + $0xe48] sm:$0xff]
    %v487 = vld [vmem:[%s1 + $0xe50] sm:$0xff]
    %v488 = vld [vmem:[%s1 + $0xe58] sm:$0xff]
    %v489 = vld [vmem:[%s1 + $0xe60] sm:$0xff]
    %v490 = vld [vmem:[%s1 + $0xe68] sm:$0xff]
    %v491 = vld [vmem:[%s1 + $0xe70] sm:$0xff]
    %v492 = vld [vmem:[%s1 + $0xe78] sm:$0xff]
    %v493 = vld [vmem:[%s1 + $0xe80] sm:$0xff]
    %v494 = vld [vmem:[%s1 + $0xe88] sm:$0xff]
    %v495 = vld [vmem:[%s1 + $0xe90] sm:$0xff]
    %v496 = vld [vmem:[%s1 + $0xe98] sm:$0xff]
    %v497 = vld [vmem:[%s1 + $0xea0] sm:$0xff]
    %v498 = vld [vmem:[%s1 + $0xea8] sm:$0xff]
    %v499 = vld [vmem:[%s1 + $0xeb0] sm:$0xff]
    %v500 = vld [vmem:[%s1 + $0xeb8] sm:$0xff]
    %v501 = vld [vmem:[%s1 + $0xec0] sm:$0xff]
    %v502 = vld [vmem:[%s1 + $0xec8] sm:$0xff]
    %v503 = vld [vmem:[%s1 + $0xed0] sm:$0xff]
    %v504 = vld [vmem:[%s1 + $0xed8] sm:$0xff]
    %v505 = vld [vmem:[%s1 + $0xee0] sm:$0xff]
    %v506 = vld [vmem:[%s1 + $0xee8] sm:$0xff]
    %v507 = vld [vmem:[%s1 + $0xef0] sm:$0xff]
    %v508 = vld [vmem:[%s1 + $0xef8] sm:$0xff]
    %v509 = vld [vmem:[%s1 + $0xf00] sm:$0xff]
    %v510 = vld [vmem:[%s1 + $0xf08] sm:$0xff]
    %v511 = vld [vmem:[%s1 + $0xf10] sm:$0xff]
    %v512 = vld [vmem:[%s1 + $0xf18] sm:$0xff]
    %v513 = vld [vmem:[%s1 + $0xf20] sm:$0xff]
    %v514 = vld [vmem:[%s1 + $0xf28] sm:$0xff]
    %v515 = vld [vmem:[%s1 + $0xf30] sm:$0xff]
    %v516 = vld [vmem:[%s1 + $0xf38] sm:$0xff]
    %v517 = vld [vmem:[%s1 + $0xf40] sm:$0xff]
    %v518 = vld [vmem:[%s1 + $0xf48] sm:$0xff]
    %v519 = vld [vmem:[%s1 + $0xf50] sm:$0xff]
    %v520 = vld [vmem:[%s1 + $0xf58] sm:$0xff]
    %v521 = vld [vmem:[%s1 + $0xf60] sm:$0xff]
    %v522 = vld [vmem:[%s1 + $0xf68] sm:$0xff]
    %v523 = vld [vmem:[%s1 + $0xf70] sm:$0xff]
    %v524 = vld [vmem:[%s1 + $0xf78] sm:$0xff]
    %v525 = vld [vmem:[%s1 + $0xf80] sm:$0xff]
    %v526 = vld [vmem:[%s1 + $0xf88] sm:$0xff]
    %v527 = vld [vmem:[%s1 + $0xf90] sm:$0xff]
    %v528 = vld [vmem:[%s1 + $0xf98] sm:$0xff]
    %v529 = vld [vmem:[%s1 + $0xfa0] sm:$0xff]
    %v530 = vld [vmem:[%s1 + $0xfa8] sm:$0xff]
    %v531 = vld [vmem:[%s1 + $0xfb0] sm:$0xff]
    %v532 = vld [vmem:[%s1 + $0xfb8] sm:$0xff]
    %v533 = vld [vmem:[%s1 + $0xfc0] sm:$0xff]
    %v534 = vld [vmem:[%s1 + $0xfc8] sm:$0xff]
    %v535 = vld [vmem:[%s1 + $0xfd0] sm:$0xff]
    %v536 = vld [vmem:[%s1 + $0xfd8] sm:$0xff]
    %v537 = vld [vmem:[%s1 + $0xfe0] sm:$0xff]
    %v538 = vld [vmem:[%s1 + $0xfe8] sm:$0xff]
    %v539 = vld [vmem:[%s1 + $0xff0] sm:$0xff]
    %v540 = vld [vmem:[%s1 + $0xff8] sm:$0xff]
    %v541 = vld [vmem:[%s2] sm:$0x1]
    %v543 = vlaneseq
    %v544 = vshrl.u32 %v543, 7
    %v545 = vsub.s32 0, %v544
    %v546 = vrot.slane %v541, %v545
    %v556 = vcombine.high %v21, %v21
    %v558 = vunpack.c.l.s4 1983009808
    %v559 = vunpack.c.0.s8 %v558
    %v560 = vlaneseq
    %v561 = vshrl.u32 %v560, 7
    %v562 = vsub.s32 %v559, %v561
    %v563 = vrot.slane %v21, %v562
    %v565 = vunpack.c.l.s4 1983009808
    %v566 = vunpack.c.0.s8 %v565
    %v567 = vlaneseq
    %v568 = vshrl.u32 %v567, 7
    %v569 = vsub.s32 %v566, %v568
    %v570 = vrot.slane %v556, %v569
    %v571 = vcombine.high %v563, %v563
    %v572 = vcombine.high %v570, %v570
    %v573 = vcombine.high %v22, %v22
    %v575 = vunpack.c.l.s4 1983009808
    %v576 = vunpack.c.0.s8 %v575
    %v577 = vlaneseq
    %v578 = vshrl.u32 %v577, 7
    %v579 = vsub.s32 %v576, %v578
    %v580 = vrot.slane %v22, %v579
    %v582 = vunpack.c.l.s4 1983009808
    %v583 = vunpack.c.0.s8 %v582
    %v584 = vlaneseq
    %v585 = vshrl.u32 %v584, 7
    %v586 = vsub.s32 %v583, %v585
    %v587 = vrot.slane %v573, %v586
    %v588 = vcombine.high %v580, %v580
    %v589 = vcombine.high %v587, %v587
    %v590 = vcombine.high %v23, %v23
    %v592 = vunpack.c.l.s4 1983009808
    %v593 = vunpack.c.0.s8 %v592
    %v594 = vlaneseq
    %v595 = vshrl.u32 %v594, 7
    %v596 = vsub.s32 %v593, %v595
    %v597 = vrot.slane %v23, %v596
    %v599 = vunpack.c.l.s4 1983009808
    %v600 = vunpack.c.0.s8 %v599
    %v601 = vlaneseq
    %v602 = vshrl.u32 %v601, 7
    %v603 = vsub.s32 %v600, %v602
    %v604 = vrot.slane %v590, %v603
    %v605 = vcombine.high %v597, %v597
    %v606 = vcombine.high %v604, %v604
    %v607 = vcombine.high %v24, %v24
    %v609 = vunpack.c.l.s4 1983009808
    %v610 = vunpack.c.0.s8 %v609
    %v611 = vlaneseq
    %v612 = vshrl.u32 %v611, 7
    %v613 = vsub.s32 %v610, %v612
    %v614 = vrot.slane %v24, %v613
    %v616 = vunpack.c.l.s4 1983009808
    %v617 = vunpack.c.0.s8 %v616
    %v618 = vlaneseq
    %v619 = vshrl.u32 %v618, 7
    %v620 = vsub.s32 %v617, %v619
    %v621 = vrot.slane %v607, %v620
    %v622 = vcombine.high %v614, %v614
    %v623 = vcombine.high %v621, %v621
    %v624 = vcombine.high %v25, %v25
    %v626 = vunpack.c.l.s4 1983009808
    %v627 = vunpack.c.0.s8 %v626
    %v628 = vlaneseq
    %v629 = vshrl.u32 %v628, 7
    %v630 = vsub.s32 %v627, %v629
    %v631 = vrot.slane %v25, %v630
    %v633 = vunpack.c.l.s4 1983009808
    %v634 = vunpack.c.0.s8 %v633
    %v635 = vlaneseq
    %v636 = vshrl.u32 %v635, 7
    %v637 = vsub.s32 %v634, %v636
    %v638 = vrot.slane %v624, %v637
    %v639 = vcombine.high %v631, %v631
    %v640 = vcombine.high %v638, %v638
    %v641 = vcombine.high %v26, %v26
    %v643 = vunpack.c.l.s4 1983009808
    %v644 = vunpack.c.0.s8 %v643
    %v645 = vlaneseq
    %v646 = vshrl.u32 %v645, 7
    %v647 = vsub.s32 %v644, %v646
    %v648 = vrot.slane %v26, %v647
    %v650 = vunpack.c.l.s4 1983009808
    %v651 = vunpack.c.0.s8 %v650
    %v652 = vlaneseq
    %v653 = vshrl.u32 %v652, 7
    %v654 = vsub.s32 %v651, %v653
    %v655 = vrot.slane %v641, %v654
    %v656 = vcombine.high %v648, %v648
    %v657 = vcombine.high %v655, %v655
    %v658 = vcombine.high %v27, %v27
    %v660 = vunpack.c.l.s4 1983009808
    %v661 = vunpack.c.0.s8 %v660
    %v662 = vlaneseq
    %v663 = vshrl.u32 %v662, 7
    %v664 = vsub.s32 %v661, %v663
    %v665 = vrot.slane %v27, %v664
    %v667 = vunpack.c.l.s4 1983009808
    %v668 = vunpack.c.0.s8 %v667
    %v669 = vlaneseq
    %v670 = vshrl.u32 %v669, 7
    %v671 = vsub.s32 %v668, %v670
    %v672 = vrot.slane %v658, %v671
    %v673 = vcombine.high %v665, %v665
    %v674 = vcombine.high %v672, %v672
    %v675 = vcombine.high %v28, %v28
    %v677 = vunpack.c.l.s4 1983009808
    %v678 = vunpack.c.0.s8 %v677
    %v679 = vlaneseq
    %v680 = vshrl.u32 %v679, 7
    %v681 = vsub.s32 %v678, %v680
    %v682 = vrot.slane %v28, %v681
    %v684 = vunpack.c.l.s4 1983009808
    %v685 = vunpack.c.0.s8 %v684
    %v686 = vlaneseq
    %v687 = vshrl.u32 %v686, 7
    %v688 = vsub.s32 %v685, %v687
    %v689 = vrot.slane %v675, %v688
    %v690 = vcombine.high %v682, %v682
    %v691 = vcombine.high %v689, %v689
    %724 = vmatprep.subr.mxu0 0.0
    %725 = vmatpush1.msra.mxu0 %v29
    %726 = vmatprep.subr.mxu0 0.0
    %727 = vmatpush1.msra.mxu0 %v30
    %728 = vmatprep.subr.mxu0 0.0
    %729 = vmatpush1.msra.mxu0 %v31
    %730 = vmatprep.subr.mxu0 0.0
    %731 = vmatpush1.msra.mxu0 %v32
    %732 = vmatprep.subr.mxu0 0.0
    %733 = vmatpush1.msra.mxu0 %v33
    %734 = vmatprep.subr.mxu0 0.0
    %735 = vmatpush1.msra.mxu0 %v34
    %736 = vmatprep.subr.mxu0 0.0
    %737 = vmatpush1.msra.mxu0 %v35
    %738 = vmatprep.subr.mxu0 0.0
    %739 = vmatpush1.msra.mxu0 %v36
    %740 = vmatprep.subr.mxu0 0.0
    %741 = vmatpush1.msra.mxu0 %v37
    %742 = vmatprep.subr.mxu0 0.0
    %743 = vmatpush1.msra.mxu0 %v38
    %744 = vmatprep.subr.mxu0 0.0
    %745 = vmatpush1.msra.mxu0 %v39
    %746 = vmatprep.subr.mxu0 0.0
    %747 = vmatpush1.msra.mxu0 %v40
    %748 = vmatprep.subr.mxu0 0.0
    %749 = vmatpush1.msra.mxu0 %v41
    %750 = vmatprep.subr.mxu0 0.0
    %751 = vmatpush1.msra.mxu0 %v42
    %752 = vmatprep.subr.mxu0 0.0
    %753 = vmatpush1.msra.mxu0 %v43
    %754 = vmatprep.subr.mxu0 0.0
    %755 = vmatpush1.msra.mxu0 %v44
    %756 = vmatprep.subr.mxu0 0.0
    %757 = vmatpush1.msra.mxu0 %v45
    %758 = vmatprep.subr.mxu0 0.0
    %759 = vmatpush1.msra.mxu0 %v46
    %760 = vmatprep.subr.mxu0 0.0
    %761 = vmatpush1.msra.mxu0 %v47
    %762 = vmatprep.subr.mxu0 0.0
    %763 = vmatpush1.msra.mxu0 %v48
    %764 = vmatprep.subr.mxu0 0.0
    %765 = vmatpush1.msra.mxu0 %v49
    %766 = vmatprep.subr.mxu0 0.0
    %767 = vmatpush1.msra.mxu0 %v50
    %768 = vmatprep.subr.mxu0 0.0
    %769 = vmatpush1.msra.mxu0 %v51
    %770 = vmatprep.subr.mxu0 0.0
    %771 = vmatpush1.msra.mxu0 %v52
    %772 = vmatprep.subr.mxu0 0.0
    %773 = vmatpush1.msra.mxu0 %v53
    %774 = vmatprep.subr.mxu0 0.0
    %775 = vmatpush1.msra.mxu0 %v54
    %776 = vmatprep.subr.mxu0 0.0
    %777 = vmatpush1.msra.mxu0 %v55
    %778 = vmatprep.subr.mxu0 0.0
    %779 = vmatpush1.msra.mxu0 %v56
    %780 = vmatprep.subr.mxu0 0.0
    %781 = vmatpush1.msra.mxu0 %v57
    %782 = vmatprep.subr.mxu0 0.0
    %783 = vmatpush1.msra.mxu0 %v58
    %784 = vmatprep.subr.mxu0 0.0
    %785 = vmatpush1.msra.mxu0 %v59
    %786 = vmatprep.subr.mxu0 0.0
    %787 = vmatpush1.msra.mxu0 %v60
    %788 = vmatprep.mubr.f32.mxu0 %v571
    %789 = vmatmul.mubr.f32.gmra.mrb[0].mxu0 %v563
    %v790 = vpop.f32.mrb[0].mxu0
    %v791 = vadd.f32 %v546, %v790
    %v792 = vpop.f32.mrb[0].mxu0
    %793 = vdwg.mxu0
    %794 = vmatprep.subr.mxu0 0.0
    %795 = vmatpush1.msra.mxu0 %v61
    %796 = vmatprep.subr.mxu0 0.0
    %797 = vmatpush1.msra.mxu0 %v62
    %798 = vmatprep.subr.mxu0 0.0
    %799 = vmatpush1.msra.mxu0 %v63
    %800 = vmatprep.subr.mxu0 0.0
    %801 = vmatpush1.msra.mxu0 %v64
    %802 = vmatprep.subr.mxu0 0.0
    %803 = vmatpush1.msra.mxu0 %v65
    %804 = vmatprep.subr.mxu0 0.0
    %805 = vmatpush1.msra.mxu0 %v66
    %806 = vmatprep.subr.mxu0 0.0
    %807 = vmatpush1.msra.mxu0 %v67
    %808 = vmatprep.subr.mxu0 0.0
    %809 = vmatpush1.msra.mxu0 %v68
    %810 = vmatprep.subr.mxu0 0.0
    %811 = vmatpush1.msra.mxu0 %v69
    %812 = vmatprep.subr.mxu0 0.0
    %813 = vmatpush1.msra.mxu0 %v70
    %814 = vmatprep.subr.mxu0 0.0
    %815 = vmatpush1.msra.mxu0 %v71
    %816 = vmatprep.subr.mxu0 0.0
    %817 = vmatpush1.msra.mxu0 %v72
    %818 = vmatprep.subr.mxu0 0.0
    %819 = vmatpush1.msra.mxu0 %v73
    %820 = vmatprep.subr.mxu0 0.0
    %821 = vmatpush1.msra.mxu0 %v74
    %822 = vmatprep.subr.mxu0 0.0
    %823 = vmatpush1.msra.mxu0 %v75
    %824 = vmatprep.subr.mxu0 0.0
    %825 = vmatpush1.msra.mxu0 %v76
    %826 = vmatprep.subr.mxu0 0.0
    %827 = vmatpush1.msra.mxu0 %v77
    %828 = vmatprep.subr.mxu0 0.0
    %829 = vmatpush1.msra.mxu0 %v78
    %830 = vmatprep.subr.mxu0 0.0
    %831 = vmatpush1.msra.mxu0 %v79
    %832 = vmatprep.subr.mxu0 0.0
    %833 = vmatpush1.msra.mxu0 %v80
    %834 = vmatprep.subr.mxu0 0.0
    %835 = vmatpush1.msra.mxu0 %v81
    %836 = vmatprep.subr.mxu0 0.0
    %837 = vmatpush1.msra.mxu0 %v82
    %838 = vmatprep.subr.mxu0 0.0
    %839 = vmatpush1.msra.mxu0 %v83
    %840 = vmatprep.subr.mxu0 0.0
    %841 = vmatpush1.msra.mxu0 %v84
    %842 = vmatprep.subr.mxu0 0.0
    %843 = vmatpush1.msra.mxu0 %v85
    %844 = vmatprep.subr.mxu0 0.0
    %845 = vmatpush1.msra.mxu0 %v86
    %846 = vmatprep.subr.mxu0 0.0
    %847 = vmatpush1.msra.mxu0 %v87
    %848 = vmatprep.subr.mxu0 0.0
    %849 = vmatpush1.msra.mxu0 %v88
    %850 = vmatprep.subr.mxu0 0.0
    %851 = vmatpush1.msra.mxu0 %v89
    %852 = vmatprep.subr.mxu0 0.0
    %853 = vmatpush1.msra.mxu0 %v90
    %854 = vmatprep.subr.mxu0 0.0
    %855 = vmatpush1.msra.mxu0 %v91
    %856 = vmatprep.subr.mxu0 0.0
    %857 = vmatpush1.msra.mxu0 %v92
    %858 = vmatprep.mubr.f32.mxu0 %v572
    %859 = vmatmul.mubr.f32.gmra.mrb[0].mxu0 %v570
    %v860 = vpop.f32.mrb[0].mxu0
    %v861 = vadd.f32 %v791, %v860
    %v862 = vpop.f32.mrb[0].mxu0
    %863 = vdwg.mxu0
    %864 = vmatprep.subr.mxu0 0.0
    %865 = vmatpush1.msra.mxu0 %v93
    %866 = vmatprep.subr.mxu0 0.0
    %867 = vmatpush1.msra.mxu0 %v94
    %868 = vmatprep.subr.mxu0 0.0
    %869 = vmatpush1.msra.mxu0 %v95
    %870 = vmatprep.subr.mxu0 0.0
    %871 = vmatpush1.msra.mxu0 %v96
    %872 = vmatprep.subr.mxu0 0.0
    %873 = vmatpush1.msra.mxu0 %v97
    %874 = vmatprep.subr.mxu0 0.0
    %875 = vmatpush1.msra.mxu0 %v98
    %876 = vmatprep.subr.mxu0 0.0
    %877 = vmatpush1.msra.mxu0 %v99
    %878 = vmatprep.subr.mxu0 0.0
    %879 = vmatpush1.msra.mxu0 %v100
    %880 = vmatprep.subr.mxu0 0.0
    %881 = vmatpush1.msra.mxu0 %v101
    %882 = vmatprep.subr.mxu0 0.0
    %883 = vmatpush1.msra.mxu0 %v102
    %884 = vmatprep.subr.mxu0 0.0
    %885 = vmatpush1.msra.mxu0 %v103
    %886 = vmatprep.subr.mxu0 0.0
    %887 = vmatpush1.msra.mxu0 %v104
    %888 = vmatprep.subr.mxu0 0.0
    %889 = vmatpush1.msra.mxu0 %v105
    %890 = vmatprep.subr.mxu0 0.0
    %891 = vmatpush1.msra.mxu0 %v106
    %892 = vmatprep.subr.mxu0 0.0
    %893 = vmatpush1.msra.mxu0 %v107
    %894 = vmatprep.subr.mxu0 0.0
    %895 = vmatpush1.msra.mxu0 %v108
    %896 = vmatprep.subr.mxu0 0.0
    %897 = vmatpush1.msra.mxu0 %v109
    %898 = vmatprep.subr.mxu0 0.0
    %899 = vmatpush1.msra.mxu0 %v110
    %900 = vmatprep.subr.mxu0 0.0
    %901 = vmatpush1.msra.mxu0 %v111
    %902 = vmatprep.subr.mxu0 0.0
    %903 = vmatpush1.msra.mxu0 %v112
    %904 = vmatprep.subr.mxu0 0.0
    %905 = vmatpush1.msra.mxu0 %v113
    %906 = vmatprep.subr.mxu0 0.0
    %907 = vmatpush1.msra.mxu0 %v114
    %908 = vmatprep.subr.mxu0 0.0
    %909 = vmatpush1.msra.mxu0 %v115
    %910 = vmatprep.subr.mxu0 0.0
    %911 = vmatpush1.msra.mxu0 %v116
    %912 = vmatprep.subr.mxu0 0.0
    %913 = vmatpush1.msra.mxu0 %v117
    %914 = vmatprep.subr.mxu0 0.0
    %915 = vmatpush1.msra.mxu0 %v118
    %916 = vmatprep.subr.mxu0 0.0
    %917 = vmatpush1.msra.mxu0 %v119
    %918 = vmatprep.subr.mxu0 0.0
    %919 = vmatpush1.msra.mxu0 %v120
    %920 = vmatprep.subr.mxu0 0.0
    %921 = vmatpush1.msra.mxu0 %v121
    %922 = vmatprep.subr.mxu0 0.0
    %923 = vmatpush1.msra.mxu0 %v122
    %924 = vmatprep.subr.mxu0 0.0
    %925 = vmatpush1.msra.mxu0 %v123
    %926 = vmatprep.subr.mxu0 0.0
    %927 = vmatpush1.msra.mxu0 %v124
    %928 = vmatprep.mubr.f32.mxu0 %v588
    %929 = vmatmul.mubr.f32.gmra.mrb[0].mxu0 %v580
    %v930 = vpop.f32.mrb[0].mxu0
    %v931 = vadd.f32 %v861, %v930
    %v932 = vpop.f32.mrb[0].mxu0
    %933 = vdwg.mxu0
    %934 = vmatprep.subr.mxu0 0.0
    %935 = vmatpush1.msra.mxu0 %v125
    %936 = vmatprep.subr.mxu0 0.0
    %937 = vmatpush1.msra.mxu0 %v126
    %938 = vmatprep.subr.mxu0 0.0
    %939 = vmatpush1.msra.mxu0 %v127
    %940 = vmatprep.subr.mxu0 0.0
    %941 = vmatpush1.msra.mxu0 %v128
    %942 = vmatprep.subr.mxu0 0.0
    %943 = vmatpush1.msra.mxu0 %v129
    %944 = vmatprep.subr.mxu0 0.0
    %945 = vmatpush1.msra.mxu0 %v130
    %946 = vmatprep.subr.mxu0 0.0
    %947 = vmatpush1.msra.mxu0 %v131
    %948 = vmatprep.subr.mxu0 0.0
    %949 = vmatpush1.msra.mxu0 %v132
    %950 = vmatprep.subr.mxu0 0.0
    %951 = vmatpush1.msra.mxu0 %v133
    %952 = vmatprep.subr.mxu0 0.0
    %953 = vmatpush1.msra.mxu0 %v134
    %954 = vmatprep.subr.mxu0 0.0
    %955 = vmatpush1.msra.mxu0 %v135
    %956 = vmatprep.subr.mxu0 0.0
    %957 = vmatpush1.msra.mxu0 %v136
    %958 = vmatprep.subr.mxu0 0.0
    %959 = vmatpush1.msra.mxu0 %v137
    %960 = vmatprep.subr.mxu0 0.0
    %961 = vmatpush1.msra.mxu0 %v138
    %962 = vmatprep.subr.mxu0 0.0
    %963 = vmatpush1.msra.mxu0 %v139
    %964 = vmatprep.subr.mxu0 0.0
    %965 = vmatpush1.msra.mxu0 %v140
    %966 = vmatprep.subr.mxu0 0.0
    %967 = vmatpush1.msra.mxu0 %v141
    %968 = vmatprep.subr.mxu0 0.0
    %969 = vmatpush1.msra.mxu0 %v142
    %970 = vmatprep.subr.mxu0 0.0
    %971 = vmatpush1.msra.mxu0 %v143
    %972 = vmatprep.subr.mxu0 0.0
    %973 = vmatpush1.msra.mxu0 %v144
    %974 = vmatprep.subr.mxu0 0.0
    %975 = vmatpush1.msra.mxu0 %v145
    %976 = vmatprep.subr.mxu0 0.0
    %977 = vmatpush1.msra.mxu0 %v146
    %978 = vmatprep.subr.mxu0 0.0
    %979 = vmatpush1.msra.mxu0 %v147
    %980 = vmatprep.subr.mxu0 0.0
    %981 = vmatpush1.msra.mxu0 %v148
    %982 = vmatprep.subr.mxu0 0.0
    %983 = vmatpush1.msra.mxu0 %v149
    %984 = vmatprep.subr.mxu0 0.0
    %985 = vmatpush1.msra.mxu0 %v150
    %986 = vmatprep.subr.mxu0 0.0
    %987 = vmatpush1.msra.mxu0 %v151
    %988 = vmatprep.subr.mxu0 0.0
    %989 = vmatpush1.msra.mxu0 %v152
    %990 = vmatprep.subr.mxu0 0.0
    %991 = vmatpush1.msra.mxu0 %v153
    %992 = vmatprep.subr.mxu0 0.0
    %993 = vmatpush1.msra.mxu0 %v154
    %994 = vmatprep.subr.mxu0 0.0
    %995 = vmatpush1.msra.mxu0 %v155
    %996 = vmatprep.subr.mxu0 0.0
    %997 = vmatpush1.msra.mxu0 %v156
    %998 = vmatprep.mubr.f32.mxu0 %v589
    %999 = vmatmul.mubr.f32.gmra.mrb[0].mxu0 %v587
    %v1000 = vpop.f32.mrb[0].mxu0
    %v1001 = vadd.f32 %v931, %v1000
    %v1002 = vpop.f32.mrb[0].mxu0
    %1003 = vdwg.mxu0
    %1004 = vmatprep.subr.mxu0 0.0
    %1005 = vmatpush1.msra.mxu0 %v157
    %1006 = vmatprep.subr.mxu0 0.0
    %1007 = vmatpush1.msra.mxu0 %v158
    %1008 = vmatprep.subr.mxu0 0.0
    %1009 = vmatpush1.msra.mxu0 %v159
    %1010 = vmatprep.subr.mxu0 0.0
    %1011 = vmatpush1.msra.mxu0 %v160
    %1012 = vmatprep.subr.mxu0 0.0
    %1013 = vmatpush1.msra.mxu0 %v161
    %1014 = vmatprep.subr.mxu0 0.0
    %1015 = vmatpush1.msra.mxu0 %v162
    %1016 = vmatprep.subr.mxu0 0.0
    %1017 = vmatpush1.msra.mxu0 %v163
    %1018 = vmatprep.subr.mxu0 0.0
    %1019 = vmatpush1.msra.mxu0 %v164
    %1020 = vmatprep.subr.mxu0 0.0
    %1021 = vmatpush1.msra.mxu0 %v165
    %1022 = vmatprep.subr.mxu0 0.0
    %1023 = vmatpush1.msra.mxu0 %v166
    %1024 = vmatprep.subr.mxu0 0.0
    %1025 = vmatpush1.msra.mxu0 %v167
    %1026 = vmatprep.subr.mxu0 0.0
    %1027 = vmatpush1.msra.mxu0 %v168
    %1028 = vmatprep.subr.mxu0 0.0
    %1029 = vmatpush1.msra.mxu0 %v169
    %1030 = vmatprep.subr.mxu0 0.0
    %1031 = vmatpush1.msra.mxu0 %v170
    %1032 = vmatprep.subr.mxu0 0.0
    %1033 = vmatpush1.msra.mxu0 %v171
    %1034 = vmatprep.subr.mxu0 0.0
    %1035 = vmatpush1.msra.mxu0 %v172
    %1036 = vmatprep.subr.mxu0 0.0
    %1037 = vmatpush1.msra.mxu0 %v173
    %1038 = vmatprep.subr.mxu0 0.0
    %1039 = vmatpush1.msra.mxu0 %v174
    %1040 = vmatprep.subr.mxu0 0.0
    %1041 = vmatpush1.msra.mxu0 %v175
    %1042 = vmatprep.subr.mxu0 0.0
    %1043 = vmatpush1.msra.mxu0 %v176
    %1044 = vmatprep.subr.mxu0 0.0
    %1045 = vmatpush1.msra.mxu0 %v177
    %1046 = vmatprep.subr.mxu0 0.0
    %1047 = vmatpush1.msra.mxu0 %v178
    %1048 = vmatprep.subr.mxu0 0.0
    %1049 = vmatpush1.msra.mxu0 %v179
    %1050 = vmatprep.subr.mxu0 0.0
    %1051 = vmatpush1.msra.mxu0 %v180
    %1052 = vmatprep.subr.mxu0 0.0
    %1053 = vmatpush1.msra.mxu0 %v181
    %1054 = vmatprep.subr.mxu0 0.0
    %1055 = vmatpush1.msra.mxu0 %v182
    %1056 = vmatprep.subr.mxu0 0.0
    %1057 = vmatpush1.msra.mxu0 %v183
    %1058 = vmatprep.subr.mxu0 0.0
    %1059 = vmatpush1.msra.mxu0 %v184
    %1060 = vmatprep.subr.mxu0 0.0
    %1061 = vmatpush1.msra.mxu0 %v185
    %1062 = vmatprep.subr.mxu0 0.0
    %1063 = vmatpush1.msra.mxu0 %v186
    %1064 = vmatprep.subr.mxu0 0.0
    %1065 = vmatpush1.msra.mxu0 %v187
    %1066 = vmatprep.subr.mxu0 0.0
    %1067 = vmatpush1.msra.mxu0 %v188
    %1068 = vmatprep.mubr.f32.mxu0 %v605
    %1069 = vmatmul.mubr.f32.gmra.mrb[0].mxu0 %v597
    %v1070 = vpop.f32.mrb[0].mxu0
    %v1071 = vadd.f32 %v1001, %v1070
    %v1072 = vpop.f32.mrb[0].mxu0
    %1073 = vdwg.mxu0
    %1074 = vmatprep.subr.mxu0 0.0
    %1075 = vmatpush1.msra.mxu0 %v189
    %1076 = vmatprep.subr.mxu0 0.0
    %1077 = vmatpush1.msra.mxu0 %v190
    %1078 = vmatprep.subr.mxu0 0.0
    %1079 = vmatpush1.msra.mxu0 %v191
    %1080 = vmatprep.subr.mxu0 0.0
    %1081 = vmatpush1.msra.mxu0 %v192
    %1082 = vmatprep.subr.mxu0 0.0
    %1083 = vmatpush1.msra.mxu0 %v193
    %1084 = vmatprep.subr.mxu0 0.0
    %1085 = vmatpush1.msra.mxu0 %v194
    %1086 = vmatprep.subr.mxu0 0.0
    %1087 = vmatpush1.msra.mxu0 %v195
    %1088 = vmatprep.subr.mxu0 0.0
    %1089 = vmatpush1.msra.mxu0 %v196
    %1090 = vmatprep.subr.mxu0 0.0
    %1091 = vmatpush1.msra.mxu0 %v197
    %1092 = vmatprep.subr.mxu0 0.0
    %1093 = vmatpush1.msra.mxu0 %v198
    %1094 = vmatprep.subr.mxu0 0.0
    %1095 = vmatpush1.msra.mxu0 %v199
    %1096 = vmatprep.subr.mxu0 0.0
    %1097 = vmatpush1.msra.mxu0 %v200
    %1098 = vmatprep.subr.mxu0 0.0
    %1099 = vmatpush1.msra.mxu0 %v201
    %1100 = vmatprep.subr.mxu0 0.0
    %1101 = vmatpush1.msra.mxu0 %v202
    %1102 = vmatprep.subr.mxu0 0.0
    %1103 = vmatpush1.msra.mxu0 %v203
    %1104 = vmatprep.subr.mxu0 0.0
    %1105 = vmatpush1.msra.mxu0 %v204
    %1106 = vmatprep.subr.mxu0 0.0
    %1107 = vmatpush1.msra.mxu0 %v205
    %1108 = vmatprep.subr.mxu0 0.0
    %1109 = vmatpush1.msra.mxu0 %v206
    %1110 = vmatprep.subr.mxu0 0.0
    %1111 = vmatpush1.msra.mxu0 %v207
    %1112 = vmatprep.subr.mxu0 0.0
    %1113 = vmatpush1.msra.mxu0 %v208
    %1114 = vmatprep.subr.mxu0 0.0
    %1115 = vmatpush1.msra.mxu0 %v209
    %1116 = vmatprep.subr.mxu0 0.0
    %1117 = vmatpush1.msra.mxu0 %v210
    %1118 = vmatprep.subr.mxu0 0.0
    %1119 = vmatpush1.msra.mxu0 %v211
    %1120 = vmatprep.subr.mxu0 0.0
    %1121 = vmatpush1.msra.mxu0 %v212
    %1122 = vmatprep.subr.mxu0 0.0
    %1123 = vmatpush1.msra.mxu0 %v213
    %1124 = vmatprep.subr.mxu0 0.0
    %1125 = vmatpush1.msra.mxu0 %v214
    %1126 = vmatprep.subr.mxu0 0.0
    %1127 = vmatpush1.msra.mxu0 %v215
    %1128 = vmatprep.subr.mxu0 0.0
    %1129 = vmatpush1.msra.mxu0 %v216
    %1130 = vmatprep.subr.mxu0 0.0
    %1131 = vmatpush1.msra.mxu0 %v217
    %1132 = vmatprep.subr.mxu0 0.0
    %1133 = vmatpush1.msra.mxu0 %v218
    %1134 = vmatprep.subr.mxu0 0.0
    %1135 = vmatpush1.msra.mxu0 %v219
    %1136 = vmatprep.subr.mxu0 0.0
    %1137 = vmatpush1.msra.mxu0 %v220
    %1138 = vmatprep.mubr.f32.mxu0 %v606
    %1139 = vmatmul.mubr.f32.gmra.mrb[0].mxu0 %v604
    %v1140 = vpop.f32.mrb[0].mxu0
    %v1141 = vadd.f32 %v1071, %v1140
    %v1142 = vpop.f32.mrb[0].mxu0
    %1143 = vdwg.mxu0
    %1144 = vmatprep.subr.mxu0 0.0
    %1145 = vmatpush1.msra.mxu0 %v221
    %1146 = vmatprep.subr.mxu0 0.0
    %1147 = vmatpush1.msra.mxu0 %v222
    %1148 = vmatprep.subr.mxu0 0.0
    %1149 = vmatpush1.msra.mxu0 %v223
    %1150 = vmatprep.subr.mxu0 0.0
    %1151 = vmatpush1.msra.mxu0 %v224
    %1152 = vmatprep.subr.mxu0 0.0
    %1153 = vmatpush1.msra.mxu0 %v225
    %1154 = vmatprep.subr.mxu0 0.0
    %1155 = vmatpush1.msra.mxu0 %v226
    %1156 = vmatprep.subr.mxu0 0.0
    %1157 = vmatpush1.msra.mxu0 %v227
    %1158 = vmatprep.subr.mxu0 0.0
    %1159 = vmatpush1.msra.mxu0 %v228
    %1160 = vmatprep.subr.mxu0 0.0
    %1161 = vmatpush1.msra.mxu0 %v229
    %1162 = vmatprep.subr.mxu0 0.0
    %1163 = vmatpush1.msra.mxu0 %v230
    %1164 = vmatprep.subr.mxu0 0.0
    %1165 = vmatpush1.msra.mxu0 %v231
    %1166 = vmatprep.subr.mxu0 0.0
    %1167 = vmatpush1.msra.mxu0 %v232
    %1168 = vmatprep.subr.mxu0 0.0
    %1169 = vmatpush1.msra.mxu0 %v233
    %1170 = vmatprep.subr.mxu0 0.0
    %1171 = vmatpush1.msra.mxu0 %v234
    %1172 = vmatprep.subr.mxu0 0.0
    %1173 = vmatpush1.msra.mxu0 %v235
    %1174 = vmatprep.subr.mxu0 0.0
    %1175 = vmatpush1.msra.mxu0 %v236
    %1176 = vmatprep.subr.mxu0 0.0
    %1177 = vmatpush1.msra.mxu0 %v237
    %1178 = vmatprep.subr.mxu0 0.0
    %1179 = vmatpush1.msra.mxu0 %v238
    %1180 = vmatprep.subr.mxu0 0.0
    %1181 = vmatpush1.msra.mxu0 %v239
    %1182 = vmatprep.subr.mxu0 0.0
    %1183 = vmatpush1.msra.mxu0 %v240
    %1184 = vmatprep.subr.mxu0 0.0
    %1185 = vmatpush1.msra.mxu0 %v241
    %1186 = vmatprep.subr.mxu0 0.0
    %1187 = vmatpush1.msra.mxu0 %v242
    %1188 = vmatprep.subr.mxu0 0.0
    %1189 = vmatpush1.msra.mxu0 %v243
    %1190 = vmatprep.subr.mxu0 0.0
    %1191 = vmatpush1.msra.mxu0 %v244
    %1192 = vmatprep.subr.mxu0 0.0
    %1193 = vmatpush1.msra.mxu0 %v245
    %1194 = vmatprep.subr.mxu0 0.0
    %1195 = vmatpush1.msra.mxu0 %v246
    %1196 = vmatprep.subr.mxu0 0.0
    %1197 = vmatpush1.msra.mxu0 %v247
    %1198 = vmatprep.subr.mxu0 0.0
    %1199 = vmatpush1.msra.mxu0 %v248
    %1200 = vmatprep.subr.mxu0 0.0
    %1201 = vmatpush1.msra.mxu0 %v249
    %1202 = vmatprep.subr.mxu0 0.0
    %1203 = vmatpush1.msra.mxu0 %v250
    %1204 = vmatprep.subr.mxu0 0.0
    %1205 = vmatpush1.msra.mxu0 %v251
    %1206 = vmatprep.subr.mxu0 0.0
    %1207 = vmatpush1.msra.mxu0 %v252
    %1208 = vmatprep.mubr.f32.mxu0 %v622
    %1209 = vmatmul.mubr.f32.gmra.mrb[0].mxu0 %v614
    %v1210 = vpop.f32.mrb[0].mxu0
    %v1211 = vadd.f32 %v1141, %v1210
    %v1212 = vpop.f32.mrb[0].mxu0
    %1213 = vdwg.mxu0
    %1214 = vmatprep.subr.mxu0 0.0
    %1215 = vmatpush1.msra.mxu0 %v253
    %1216 = vmatprep.subr.mxu0 0.0
    %1217 = vmatpush1.msra.mxu0 %v254
    %1218 = vmatprep.subr.mxu0 0.0
    %1219 = vmatpush1.msra.mxu0 %v255
    %1220 = vmatprep.subr.mxu0 0.0
    %1221 = vmatpush1.msra.mxu0 %v256
    %1222 = vmatprep.subr.mxu0 0.0
    %1223 = vmatpush1.msra.mxu0 %v257
    %1224 = vmatprep.subr.mxu0 0.0
    %1225 = vmatpush1.msra.mxu0 %v258
    %1226 = vmatprep.subr.mxu0 0.0
    %1227 = vmatpush1.msra.mxu0 %v259
    %1228 = vmatprep.subr.mxu0 0.0
    %1229 = vmatpush1.msra.mxu0 %v260
    %1230 = vmatprep.subr.mxu0 0.0
    %1231 = vmatpush1.msra.mxu0 %v261
    %1232 = vmatprep.subr.mxu0 0.0
    %1233 = vmatpush1.msra.mxu0 %v262
    %1234 = vmatprep.subr.mxu0 0.0
    %1235 = vmatpush1.msra.mxu0 %v263
    %1236 = vmatprep.subr.mxu0 0.0
    %1237 = vmatpush1.msra.mxu0 %v264
    %1238 = vmatprep.subr.mxu0 0.0
    %1239 = vmatpush1.msra.mxu0 %v265
    %1240 = vmatprep.subr.mxu0 0.0
    %1241 = vmatpush1.msra.mxu0 %v266
    %1242 = vmatprep.subr.mxu0 0.0
    %1243 = vmatpush1.msra.mxu0 %v267
    %1244 = vmatprep.subr.mxu0 0.0
    %1245 = vmatpush1.msra.mxu0 %v268
    %1246 = vmatprep.subr.mxu0 0.0
    %1247 = vmatpush1.msra.mxu0 %v269
    %1248 = vmatprep.subr.mxu0 0.0
    %1249 = vmatpush1.msra.mxu0 %v270
    %1250 = vmatprep.subr.mxu0 0.0
    %1251 = vmatpush1.msra.mxu0 %v271
    %1252 = vmatprep.subr.mxu0 0.0
    %1253 = vmatpush1.msra.mxu0 %v272
    %1254 = vmatprep.subr.mxu0 0.0
    %1255 = vmatpush1.msra.mxu0 %v273
    %1256 = vmatprep.subr.mxu0 0.0
    %1257 = vmatpush1.msra.mxu0 %v274
    %1258 = vmatprep.subr.mxu0 0.0
    %1259 = vmatpush1.msra.mxu0 %v275
    %1260 = vmatprep.subr.mxu0 0.0
    %1261 = vmatpush1.msra.mxu0 %v276
    %1262 = vmatprep.subr.mxu0 0.0
    %1263 = vmatpush1.msra.mxu0 %v277
    %1264 = vmatprep.subr.mxu0 0.0
    %1265 = vmatpush1.msra.mxu0 %v278
    %1266 = vmatprep.subr.mxu0 0.0
    %1267 = vmatpush1.msra.mxu0 %v279
    %1268 = vmatprep.subr.mxu0 0.0
    %1269 = vmatpush1.msra.mxu0 %v280
    %1270 = vmatprep.subr.mxu0 0.0
    %1271 = vmatpush1.msra.mxu0 %v281
    %1272 = vmatprep.subr.mxu0 0.0
    %1273 = vmatpush1.msra.mxu0 %v282
    %1274 = vmatprep.subr.mxu0 0.0
    %1275 = vmatpush1.msra.mxu0 %v283
    %1276 = vmatprep.subr.mxu0 0.0
    %1277 = vmatpush1.msra.mxu0 %v284
    %1278 = vmatprep.mubr.f32.mxu0 %v623
    %1279 = vmatmul.mubr.f32.gmra.mrb[0].mxu0 %v621
    %v1280 = vpop.f32.mrb[0].mxu0
    %v1281 = vadd.f32 %v1211, %v1280
    %v1282 = vpop.f32.mrb[0].mxu0
    %1283 = vdwg.mxu0
    %1284 = vmatprep.subr.mxu0 0.0
    %1285 = vmatpush1.msra.mxu0 %v285
    %1286 = vmatprep.subr.mxu0 0.0
    %1287 = vmatpush1.msra.mxu0 %v286
    %1288 = vmatprep.subr.mxu0 0.0
    %1289 = vmatpush1.msra.mxu0 %v287
    %1290 = vmatprep.subr.mxu0 0.0
    %1291 = vmatpush1.msra.mxu0 %v288
    %1292 = vmatprep.subr.mxu0 0.0
    %1293 = vmatpush1.msra.mxu0 %v289
    %1294 = vmatprep.subr.mxu0 0.0
    %1295 = vmatpush1.msra.mxu0 %v290
    %1296 = vmatprep.subr.mxu0 0.0
    %1297 = vmatpush1.msra.mxu0 %v291
    %1298 = vmatprep.subr.mxu0 0.0
    %1299 = vmatpush1.msra.mxu0 %v292
    %1300 = vmatprep.subr.mxu0 0.0
    %1301 = vmatpush1.msra.mxu0 %v293
    %1302 = vmatprep.subr.mxu0 0.0
    %1303 = vmatpush1.msra.mxu0 %v294
    %1304 = vmatprep.subr.mxu0 0.0
    %1305 = vmatpush1.msra.mxu0 %v295
    %1306 = vmatprep.subr.mxu0 0.0
    %1307 = vmatpush1.msra.mxu0 %v296
    %1308 = vmatprep.subr.mxu0 0.0
    %1309 = vmatpush1.msra.mxu0 %v297
    %1310 = vmatprep.subr.mxu0 0.0
    %1311 = vmatpush1.msra.mxu0 %v298
    %1312 = vmatprep.subr.mxu0 0.0
    %1313 = vmatpush1.msra.mxu0 %v299
    %1314 = vmatprep.subr.mxu0 0.0
    %1315 = vmatpush1.msra.mxu0 %v300
    %1316 = vmatprep.subr.mxu0 0.0
    %1317 = vmatpush1.msra.mxu0 %v301
    %1318 = vmatprep.subr.mxu0 0.0
    %1319 = vmatpush1.msra.mxu0 %v302
    %1320 = vmatprep.subr.mxu0 0.0
    %1321 = vmatpush1.msra.mxu0 %v303
    %1322 = vmatprep.subr.mxu0 0.0
    %1323 = vmatpush1.msra.mxu0 %v304
    %1324 = vmatprep.subr.mxu0 0.0
    %1325 = vmatpush1.msra.mxu0 %v305
    %1326 = vmatprep.subr.mxu0 0.0
    %1327 = vmatpush1.msra.mxu0 %v306
    %1328 = vmatprep.subr.mxu0 0.0
    %1329 = vmatpush1.msra.mxu0 %v307
    %1330 = vmatprep.subr.mxu0 0.0
    %1331 = vmatpush1.msra.mxu0 %v308
    %1332 = vmatprep.subr.mxu0 0.0
    %1333 = vmatpush1.msra.mxu0 %v309
    %1334 = vmatprep.subr.mxu0 0.0
    %1335 = vmatpush1.msra.mxu0 %v310
    %1336 = vmatprep.subr.mxu0 0.0
    %1337 = vmatpush1.msra.mxu0 %v311
    %1338 = vmatprep.subr.mxu0 0.0
    %1339 = vmatpush1.msra.mxu0 %v312
    %1340 = vmatprep.subr.mxu0 0.0
    %1341 = vmatpush1.msra.mxu0 %v313
    %1342 = vmatprep.subr.mxu0 0.0
    %1343 = vmatpush1.msra.mxu0 %v314
    %1344 = vmatprep.subr.mxu0 0.0
    %1345 = vmatpush1.msra.mxu0 %v315
    %1346 = vmatprep.subr.mxu0 0.0
    %1347 = vmatpush1.msra.mxu0 %v316
    %1348 = vmatprep.mubr.f32.mxu0 %v639
    %1349 = vmatmul.mubr.f32.gmra.mrb[0].mxu0 %v631
    %v1350 = vpop.f32.mrb[0].mxu0
    %v1351 = vadd.f32 %v1281, %v1350
    %v1352 = vpop.f32.mrb[0].mxu0
    %1353 = vdwg.mxu0
    %1354 = vmatprep.subr.mxu0 0.0
    %1355 = vmatpush1.msra.mxu0 %v317
    %1356 = vmatprep.subr.mxu0 0.0
    %1357 = vmatpush1.msra.mxu0 %v318
    %1358 = vmatprep.subr.mxu0 0.0
    %1359 = vmatpush1.msra.mxu0 %v319
    %1360 = vmatprep.subr.mxu0 0.0
    %1361 = vmatpush1.msra.mxu0 %v320
    %1362 = vmatprep.subr.mxu0 0.0
    %1363 = vmatpush1.msra.mxu0 %v321
    %1364 = vmatprep.subr.mxu0 0.0
    %1365 = vmatpush1.msra.mxu0 %v322
    %1366 = vmatprep.subr.mxu0 0.0
    %1367 = vmatpush1.msra.mxu0 %v323
    %1368 = vmatprep.subr.mxu0 0.0
    %1369 = vmatpush1.msra.mxu0 %v324
    %1370 = vmatprep.subr.mxu0 0.0
    %1371 = vmatpush1.msra.mxu0 %v325
    %1372 = vmatprep.subr.mxu0 0.0
    %1373 = vmatpush1.msra.mxu0 %v326
    %1374 = vmatprep.subr.mxu0 0.0
    %1375 = vmatpush1.msra.mxu0 %v327
    %1376 = vmatprep.subr.mxu0 0.0
    %1377 = vmatpush1.msra.mxu0 %v328
    %1378 = vmatprep.subr.mxu0 0.0
    %1379 = vmatpush1.msra.mxu0 %v329
    %1380 = vmatprep.subr.mxu0 0.0
    %1381 = vmatpush1.msra.mxu0 %v330
    %1382 = vmatprep.subr.mxu0 0.0
    %1383 = vmatpush1.msra.mxu0 %v331
    %1384 = vmatprep.subr.mxu0 0.0
    %1385 = vmatpush1.msra.mxu0 %v332
    %1386 = vmatprep.subr.mxu0 0.0
    %1387 = vmatpush1.msra.mxu0 %v333
    %1388 = vmatprep.subr.mxu0 0.0
    %1389 = vmatpush1.msra.mxu0 %v334
    %1390 = vmatprep.subr.mxu0 0.0
    %1391 = vmatpush1.msra.mxu0 %v335
    %1392 = vmatprep.subr.mxu0 0.0
    %1393 = vmatpush1.msra.mxu0 %v336
    %1394 = vmatprep.subr.mxu0 0.0
    %1395 = vmatpush1.msra.mxu0 %v337
    %1396 = vmatprep.subr.mxu0 0.0
    %1397 = vmatpush1.msra.mxu0 %v338
    %1398 = vmatprep.subr.mxu0 0.0
    %1399 = vmatpush1.msra.mxu0 %v339
    %1400 = vmatprep.subr.mxu0 0.0
    %1401 = vmatpush1.msra.mxu0 %v340
    %1402 = vmatprep.subr.mxu0 0.0
    %1403 = vmatpush1.msra.mxu0 %v341
    %1404 = vmatprep.subr.mxu0 0.0
    %1405 = vmatpush1.msra.mxu0 %v342
    %1406 = vmatprep.subr.mxu0 0.0
    %1407 = vmatpush1.msra.mxu0 %v343
    %1408 = vmatprep.subr.mxu0 0.0
    %1409 = vmatpush1.msra.mxu0 %v344
    %1410 = vmatprep.subr.mxu0 0.0
    %1411 = vmatpush1.msra.mxu0 %v345
    %1412 = vmatprep.subr.mxu0 0.0
    %1413 = vmatpush1.msra.mxu0 %v346
    %1414 = vmatprep.subr.mxu0 0.0
    %1415 = vmatpush1.msra.mxu0 %v347
    %1416 = vmatprep.subr.mxu0 0.0
    %1417 = vmatpush1.msra.mxu0 %v348
    %1418 = vmatprep.mubr.f32.mxu0 %v640
    %1419 = vmatmul.mubr.f32.gmra.mrb[0].mxu0 %v638
    %v1420 = vpop.f32.mrb[0].mxu0
    %v1421 = vadd.f32 %v1351, %v1420
    %v1422 = vpop.f32.mrb[0].mxu0
    %1423 = vdwg.mxu0
    %1424 = vmatprep.subr.mxu0 0.0
    %1425 = vmatpush1.msra.mxu0 %v349
    %1426 = vmatprep.subr.mxu0 0.0
    %1427 = vmatpush1.msra.mxu0 %v350
    %1428 = vmatprep.subr.mxu0 0.0
    %1429 = vmatpush1.msra.mxu0 %v351
    %1430 = vmatprep.subr.mxu0 0.0
    %1431 = vmatpush1.msra.mxu0 %v352
    %1432 = vmatprep.subr.mxu0 0.0
    %1433 = vmatpush1.msra.mxu0 %v353
    %1434 = vmatprep.subr.mxu0 0.0
    %1435 = vmatpush1.msra.mxu0 %v354
    %1436 = vmatprep.subr.mxu0 0.0
    %1437 = vmatpush1.msra.mxu0 %v355
    %1438 = vmatprep.subr.mxu0 0.0
    %1439 = vmatpush1.msra.mxu0 %v356
    %1440 = vmatprep.subr.mxu0 0.0
    %1441 = vmatpush1.msra.mxu0 %v357
    %1442 = vmatprep.subr.mxu0 0.0
    %1443 = vmatpush1.msra.mxu0 %v358
    %1444 = vmatprep.subr.mxu0 0.0
    %1445 = vmatpush1.msra.mxu0 %v359
    %1446 = vmatprep.subr.mxu0 0.0
    %1447 = vmatpush1.msra.mxu0 %v360
    %1448 = vmatprep.subr.mxu0 0.0
    %1449 = vmatpush1.msra.mxu0 %v361
    %1450 = vmatprep.subr.mxu0 0.0
    %1451 = vmatpush1.msra.mxu0 %v362
    %1452 = vmatprep.subr.mxu0 0.0
    %1453 = vmatpush1.msra.mxu0 %v363
    %1454 = vmatprep.subr.mxu0 0.0
    %1455 = vmatpush1.msra.mxu0 %v364
    %1456 = vmatprep.subr.mxu0 0.0
    %1457 = vmatpush1.msra.mxu0 %v365
    %1458 = vmatprep.subr.mxu0 0.0
    %1459 = vmatpush1.msra.mxu0 %v366
    %1460 = vmatprep.subr.mxu0 0.0
    %1461 = vmatpush1.msra.mxu0 %v367
    %1462 = vmatprep.subr.mxu0 0.0
    %1463 = vmatpush1.msra.mxu0 %v368
    %1464 = vmatprep.subr.mxu0 0.0
    %1465 = vmatpush1.msra.mxu0 %v369
    %1466 = vmatprep.subr.mxu0 0.0
    %1467 = vmatpush1.msra.mxu0 %v370
    %1468 = vmatprep.subr.mxu0 0.0
    %1469 = vmatpush1.msra.mxu0 %v371
    %1470 = vmatprep.subr.mxu0 0.0
    %1471 = vmatpush1.msra.mxu0 %v372
    %1472 = vmatprep.subr.mxu0 0.0
    %1473 = vmatpush1.msra.mxu0 %v373
    %1474 = vmatprep.subr.mxu0 0.0
    %1475 = vmatpush1.msra.mxu0 %v374
    %1476 = vmatprep.subr.mxu0 0.0
    %1477 = vmatpush1.msra.mxu0 %v375
    %1478 = vmatprep.subr.mxu0 0.0
    %1479 = vmatpush1.msra.mxu0 %v376
    %1480 = vmatprep.subr.mxu0 0.0
    %1481 = vmatpush1.msra.mxu0 %v377
    %1482 = vmatprep.subr.mxu0 0.0
    %1483 = vmatpush1.msra.mxu0 %v378
    %1484 = vmatprep.subr.mxu0 0.0
    %1485 = vmatpush1.msra.mxu0 %v379
    %1486 = vmatprep.subr.mxu0 0.0
    %1487 = vmatpush1.msra.mxu0 %v380
    %1488 = vmatprep.mubr.f32.mxu0 %v656
    %1489 = vmatmul.mubr.f32.gmra.mrb[0].mxu0 %v648
    %v1490 = vpop.f32.mrb[0].mxu0
    %v1491 = vadd.f32 %v1421, %v1490
    %v1492 = vpop.f32.mrb[0].mxu0
    %1493 = vdwg.mxu0
    %1494 = vmatprep.subr.mxu0 0.0
    %1495 = vmatpush1.msra.mxu0 %v381
    %1496 = vmatprep.subr.mxu0 0.0
    %1497 = vmatpush1.msra.mxu0 %v382
    %1498 = vmatprep.subr.mxu0 0.0
    %1499 = vmatpush1.msra.mxu0 %v383
    %1500 = vmatprep.subr.mxu0 0.0
    %1501 = vmatpush1.msra.mxu0 %v384
    %1502 = vmatprep.subr.mxu0 0.0
    %1503 = vmatpush1.msra.mxu0 %v385
    %1504 = vmatprep.subr.mxu0 0.0
    %1505 = vmatpush1.msra.mxu0 %v386
    %1506 = vmatprep.subr.mxu0 0.0
    %1507 = vmatpush1.msra.mxu0 %v387
    %1508 = vmatprep.subr.mxu0 0.0
    %1509 = vmatpush1.msra.mxu0 %v388
    %1510 = vmatprep.subr.mxu0 0.0
    %1511 = vmatpush1.msra.mxu0 %v389
    %1512 = vmatprep.subr.mxu0 0.0
    %1513 = vmatpush1.msra.mxu0 %v390
    %1514 = vmatprep.subr.mxu0 0.0
    %1515 = vmatpush1.msra.mxu0 %v391
    %1516 = vmatprep.subr.mxu0 0.0
    %1517 = vmatpush1.msra.mxu0 %v392
    %1518 = vmatprep.subr.mxu0 0.0
    %1519 = vmatpush1.msra.mxu0 %v393
    %1520 = vmatprep.subr.mxu0 0.0
    %1521 = vmatpush1.msra.mxu0 %v394
    %1522 = vmatprep.subr.mxu0 0.0
    %1523 = vmatpush1.msra.mxu0 %v395
    %1524 = vmatprep.subr.mxu0 0.0
    %1525 = vmatpush1.msra.mxu0 %v396
    %1526 = vmatprep.subr.mxu0 0.0
    %1527 = vmatpush1.msra.mxu0 %v397
    %1528 = vmatprep.subr.mxu0 0.0
    %1529 = vmatpush1.msra.mxu0 %v398
    %1530 = vmatprep.subr.mxu0 0.0
    %1531 = vmatpush1.msra.mxu0 %v399
    %1532 = vmatprep.subr.mxu0 0.0
    %1533 = vmatpush1.msra.mxu0 %v400
    %1534 = vmatprep.subr.mxu0 0.0
    %1535 = vmatpush1.msra.mxu0 %v401
    %1536 = vmatprep.subr.mxu0 0.0
    %1537 = vmatpush1.msra.mxu0 %v402
    %1538 = vmatprep.subr.mxu0 0.0
    %1539 = vmatpush1.msra.mxu0 %v403
    %1540 = vmatprep.subr.mxu0 0.0
    %1541 = vmatpush1.msra.mxu0 %v404
    %1542 = vmatprep.subr.mxu0 0.0
    %1543 = vmatpush1.msra.mxu0 %v405
    %1544 = vmatprep.subr.mxu0 0.0
    %1545 = vmatpush1.msra.mxu0 %v406
    %1546 = vmatprep.subr.mxu0 0.0
    %1547 = vmatpush1.msra.mxu0 %v407
    %1548 = vmatprep.subr.mxu0 0.0
    %1549 = vmatpush1.msra.mxu0 %v408
    %1550 = vmatprep.subr.mxu0 0.0
    %1551 = vmatpush1.msra.mxu0 %v409
    %1552 = vmatprep.subr.mxu0 0.0
    %1553 = vmatpush1.msra.mxu0 %v410
    %1554 = vmatprep.subr.mxu0 0.0
    %1555 = vmatpush1.msra.mxu0 %v411
    %1556 = vmatprep.subr.mxu0 0.0
    %1557 = vmatpush1.msra.mxu0 %v412
    %1558 = vmatprep.mubr.f32.mxu0 %v657
    %1559 = vmatmul.mubr.f32.gmra.mrb[0].mxu0 %v655
    %v1560 = vpop.f32.mrb[0].mxu0
    %v1561 = vadd.f32 %v1491, %v1560
    %v1562 = vpop.f32.mrb[0].mxu0
    %1563 = vdwg.mxu0
    %1564 = vmatprep.subr.mxu0 0.0
    %1565 = vmatpush1.msra.mxu0 %v413
    %1566 = vmatprep.subr.mxu0 0.0
    %1567 = vmatpush1.msra.mxu0 %v414
    %1568 = vmatprep.subr.mxu0 0.0
    %1569 = vmatpush1.msra.mxu0 %v415
    %1570 = vmatprep.subr.mxu0 0.0
    %1571 = vmatpush1.msra.mxu0 %v416
    %1572 = vmatprep.subr.mxu0 0.0
    %1573 = vmatpush1.msra.mxu0 %v417
    %1574 = vmatprep.subr.mxu0 0.0
    %1575 = vmatpush1.msra.mxu0 %v418
    %1576 = vmatprep.subr.mxu0 0.0
    %1577 = vmatpush1.msra.mxu0 %v419
    %1578 = vmatprep.subr.mxu0 0.0
    %1579 = vmatpush1.msra.mxu0 %v420
    %1580 = vmatprep.subr.mxu0 0.0
    %1581 = vmatpush1.msra.mxu0 %v421
    %1582 = vmatprep.subr.mxu0 0.0
    %1583 = vmatpush1.msra.mxu0 %v422
    %1584 = vmatprep.subr.mxu0 0.0
    %1585 = vmatpush1.msra.mxu0 %v423
    %1586 = vmatprep.subr.mxu0 0.0
    %1587 = vmatpush1.msra.mxu0 %v424
    %1588 = vmatprep.subr.mxu0 0.0
    %1589 = vmatpush1.msra.mxu0 %v425
    %1590 = vmatprep.subr.mxu0 0.0
    %1591 = vmatpush1.msra.mxu0 %v426
    %1592 = vmatprep.subr.mxu0 0.0
    %1593 = vmatpush1.msra.mxu0 %v427
    %1594 = vmatprep.subr.mxu0 0.0
    %1595 = vmatpush1.msra.mxu0 %v428
    %1596 = vmatprep.subr.mxu0 0.0
    %1597 = vmatpush1.msra.mxu0 %v429
    %1598 = vmatprep.subr.mxu0 0.0
    %1599 = vmatpush1.msra.mxu0 %v430
    %1600 = vmatprep.subr.mxu0 0.0
    %1601 = vmatpush1.msra.mxu0 %v431
    %1602 = vmatprep.subr.mxu0 0.0
    %1603 = vmatpush1.msra.mxu0 %v432
    %1604 = vmatprep.subr.mxu0 0.0
    %1605 = vmatpush1.msra.mxu0 %v433
    %1606 = vmatprep.subr.mxu0 0.0
    %1607 = vmatpush1.msra.mxu0 %v434
    %1608 = vmatprep.subr.mxu0 0.0
    %1609 = vmatpush1.msra.mxu0 %v435
    %1610 = vmatprep.subr.mxu0 0.0
    %1611 = vmatpush1.msra.mxu0 %v436
    %1612 = vmatprep.subr.mxu0 0.0
    %1613 = vmatpush1.msra.mxu0 %v437
    %1614 = vmatprep.subr.mxu0 0.0
    %1615 = vmatpush1.msra.mxu0 %v438
    %1616 = vmatprep.subr.mxu0 0.0
    %1617 = vmatpush1.msra.mxu0 %v439
    %1618 = vmatprep.subr.mxu0 0.0
    %1619 = vmatpush1.msra.mxu0 %v440
    %1620 = vmatprep.subr.mxu0 0.0
    %1621 = vmatpush1.msra.mxu0 %v441
    %1622 = vmatprep.subr.mxu0 0.0
    %1623 = vmatpush1.msra.mxu0 %v442
    %1624 = vmatprep.subr.mxu0 0.0
    %1625 = vmatpush1.msra.mxu0 %v443
    %1626 = vmatprep.subr.mxu0 0.0
    %1627 = vmatpush1.msra.mxu0 %v444
    %1628 = vmatprep.mubr.f32.mxu0 %v673
    %1629 = vmatmul.mubr.f32.gmra.mrb[0].mxu0 %v665
    %v1630 = vpop.f32.mrb[0].mxu0
    %v1631 = vadd.f32 %v1561, %v1630
    %v1632 = vpop.f32.mrb[0].mxu0
    %1633 = vdwg.mxu0
    %1634 = vmatprep.subr.mxu0 0.0
    %1635 = vmatpush1.msra.mxu0 %v445
    %1636 = vmatprep.subr.mxu0 0.0
    %1637 = vmatpush1.msra.mxu0 %v446
    %1638 = vmatprep.subr.mxu0 0.0
    %1639 = vmatpush1.msra.mxu0 %v447
    %1640 = vmatprep.subr.mxu0 0.0
    %1641 = vmatpush1.msra.mxu0 %v448
    %1642 = vmatprep.subr.mxu0 0.0
    %1643 = vmatpush1.msra.mxu0 %v449
    %1644 = vmatprep.subr.mxu0 0.0
    %1645 = vmatpush1.msra.mxu0 %v450
    %1646 = vmatprep.subr.mxu0 0.0
    %1647 = vmatpush1.msra.mxu0 %v451
    %1648 = vmatprep.subr.mxu0 0.0
    %1649 = vmatpush1.msra.mxu0 %v452
    %1650 = vmatprep.subr.mxu0 0.0
    %1651 = vmatpush1.msra.mxu0 %v453
    %1652 = vmatprep.subr.mxu0 0.0
    %1653 = vmatpush1.msra.mxu0 %v454
    %1654 = vmatprep.subr.mxu0 0.0
    %1655 = vmatpush1.msra.mxu0 %v455
    %1656 = vmatprep.subr.mxu0 0.0
    %1657 = vmatpush1.msra.mxu0 %v456
    %1658 = vmatprep.subr.mxu0 0.0
    %1659 = vmatpush1.msra.mxu0 %v457
    %1660 = vmatprep.subr.mxu0 0.0
    %1661 = vmatpush1.msra.mxu0 %v458
    %1662 = vmatprep.subr.mxu0 0.0
    %1663 = vmatpush1.msra.mxu0 %v459
    %1664 = vmatprep.subr.mxu0 0.0
    %1665 = vmatpush1.msra.mxu0 %v460
    %1666 = vmatprep.subr.mxu0 0.0
    %1667 = vmatpush1.msra.mxu0 %v461
    %1668 = vmatprep.subr.mxu0 0.0
    %1669 = vmatpush1.msra.mxu0 %v462
    %1670 = vmatprep.subr.mxu0 0.0
    %1671 = vmatpush1.msra.mxu0 %v463
    %1672 = vmatprep.subr.mxu0 0.0
    %1673 = vmatpush1.msra.mxu0 %v464
    %1674 = vmatprep.subr.mxu0 0.0
    %1675 = vmatpush1.msra.mxu0 %v465
    %1676 = vmatprep.subr.mxu0 0.0
    %1677 = vmatpush1.msra.mxu0 %v466
    %1678 = vmatprep.subr.mxu0 0.0
    %1679 = vmatpush1.msra.mxu0 %v467
    %1680 = vmatprep.subr.mxu0 0.0
    %1681 = vmatpush1.msra.mxu0 %v468
    %1682 = vmatprep.subr.mxu0 0.0
    %1683 = vmatpush1.msra.mxu0 %v469
    %1684 = vmatprep.subr.mxu0 0.0
    %1685 = vmatpush1.msra.mxu0 %v470
    %1686 = vmatprep.subr.mxu0 0.0
    %1687 = vmatpush1.msra.mxu0 %v471
    %1688 = vmatprep.subr.mxu0 0.0
    %1689 = vmatpush1.msra.mxu0 %v472
    %1690 = vmatprep.subr.mxu0 0.0
    %1691 = vmatpush1.msra.mxu0 %v473
    %1692 = vmatprep.subr.mxu0 0.0
    %1693 = vmatpush1.msra.mxu0 %v474
    %1694 = vmatprep.subr.mxu0 0.0
    %1695 = vmatpush1.msra.mxu0 %v475
    %1696 = vmatprep.subr.mxu0 0.0
    %1697 = vmatpush1.msra.mxu0 %v476
    %1698 = vmatprep.mubr.f32.mxu0 %v674
    %1699 = vmatmul.mubr.f32.gmra.mrb[0].mxu0 %v672
    %v1700 = vpop.f32.mrb[0].mxu0
    %v1701 = vadd.f32 %v1631, %v1700
    %v1702 = vpop.f32.mrb[0].mxu0
    %1703 = vdwg.mxu0
    %1704 = vmatprep.subr.mxu0 0.0
    %1705 = vmatpush1.msra.mxu0 %v477
    %1706 = vmatprep.subr.mxu0 0.0
    %1707 = vmatpush1.msra.mxu0 %v478
    %1708 = vmatprep.subr.mxu0 0.0
    %1709 = vmatpush1.msra.mxu0 %v479
    %1710 = vmatprep.subr.mxu0 0.0
    %1711 = vmatpush1.msra.mxu0 %v480
    %1712 = vmatprep.subr.mxu0 0.0
    %1713 = vmatpush1.msra.mxu0 %v481
    %1714 = vmatprep.subr.mxu0 0.0
    %1715 = vmatpush1.msra.mxu0 %v482
    %1716 = vmatprep.subr.mxu0 0.0
    %1717 = vmatpush1.msra.mxu0 %v483
    %1718 = vmatprep.subr.mxu0 0.0
    %1719 = vmatpush1.msra.mxu0 %v484
    %1720 = vmatprep.subr.mxu0 0.0
    %1721 = vmatpush1.msra.mxu0 %v485
    %1722 = vmatprep.subr.mxu0 0.0
    %1723 = vmatpush1.msra.mxu0 %v486
    %1724 = vmatprep.subr.mxu0 0.0
    %1725 = vmatpush1.msra.mxu0 %v487
    %1726 = vmatprep.subr.mxu0 0.0
    %1727 = vmatpush1.msra.mxu0 %v488
    %1728 = vmatprep.subr.mxu0 0.0
    %1729 = vmatpush1.msra.mxu0 %v489
    %1730 = vmatprep.subr.mxu0 0.0
    %1731 = vmatpush1.msra.mxu0 %v490
    %1732 = vmatprep.subr.mxu0 0.0
    %1733 = vmatpush1.msra.mxu0 %v491
    %1734 = vmatprep.subr.mxu0 0.0
    %1735 = vmatpush1.msra.mxu0 %v492
    %1736 = vmatprep.subr.mxu0 0.0
    %1737 = vmatpush1.msra.mxu0 %v493
    %1738 = vmatprep.subr.mxu0 0.0
    %1739 = vmatpush1.msra.mxu0 %v494
    %1740 = vmatprep.subr.mxu0 0.0
    %1741 = vmatpush1.msra.mxu0 %v495
    %1742 = vmatprep.subr.mxu0 0.0
    %1743 = vmatpush1.msra.mxu0 %v496
    %1744 = vmatprep.subr.mxu0 0.0
    %1745 = vmatpush1.msra.mxu0 %v497
    %1746 = vmatprep.subr.mxu0 0.0
    %1747 = vmatpush1.msra.mxu0 %v498
    %1748 = vmatprep.subr.mxu0 0.0
    %1749 = vmatpush1.msra.mxu0 %v499
    %1750 = vmatprep.subr.mxu0 0.0
    %1751 = vmatpush1.msra.mxu0 %v500
    %1752 = vmatprep.subr.mxu0 0.0
    %1753 = vmatpush1.msra.mxu0 %v501
    %1754 = vmatprep.subr.mxu0 0.0
    %1755 = vmatpush1.msra.mxu0 %v502
    %1756 = vmatprep.subr.mxu0 0.0
    %1757 = vmatpush1.msra.mxu0 %v503
    %1758 = vmatprep.subr.mxu0 0.0
    %1759 = vmatpush1.msra.mxu0 %v504
    %1760 = vmatprep.subr.mxu0 0.0
    %1761 = vmatpush1.msra.mxu0 %v505
    %1762 = vmatprep.subr.mxu0 0.0
    %1763 = vmatpush1.msra.mxu0 %v506
    %1764 = vmatprep.subr.mxu0 0.0
    %1765 = vmatpush1.msra.mxu0 %v507
    %1766 = vmatprep.subr.mxu0 0.0
    %1767 = vmatpush1.msra.mxu0 %v508
    %1768 = vmatprep.mubr.f32.mxu0 %v690
    %1769 = vmatmul.mubr.f32.gmra.mrb[0].mxu0 %v682
    %v1770 = vpop.f32.mrb[0].mxu0
    %v1771 = vadd.f32 %v1701, %v1770
    %v1772 = vpop.f32.mrb[0].mxu0
    %1773 = vdwg.mxu0
    %1774 = vmatprep.subr.mxu0 0.0
    %1775 = vmatpush1.msra.mxu0 %v509
    %1776 = vmatprep.subr.mxu0 0.0
    %1777 = vmatpush1.msra.mxu0 %v510
    %1778 = vmatprep.subr.mxu0 0.0
    %1779 = vmatpush1.msra.mxu0 %v511
    %1780 = vmatprep.subr.mxu0 0.0
    %1781 = vmatpush1.msra.mxu0 %v512
    %1782 = vmatprep.subr.mxu0 0.0
    %1783 = vmatpush1.msra.mxu0 %v513
    %1784 = vmatprep.subr.mxu0 0.0
    %1785 = vmatpush1.msra.mxu0 %v514
    %1786 = vmatprep.subr.mxu0 0.0
    %1787 = vmatpush1.msra.mxu0 %v515
    %1788 = vmatprep.subr.mxu0 0.0
    %1789 = vmatpush1.msra.mxu0 %v516
    %1790 = vmatprep.subr.mxu0 0.0
    %1791 = vmatpush1.msra.mxu0 %v517
    %1792 = vmatprep.subr.mxu0 0.0
    %1793 = vmatpush1.msra.mxu0 %v518
    %1794 = vmatprep.subr.mxu0 0.0
    %1795 = vmatpush1.msra.mxu0 %v519
    %1796 = vmatprep.subr.mxu0 0.0
    %1797 = vmatpush1.msra.mxu0 %v520
    %1798 = vmatprep.subr.mxu0 0.0
    %1799 = vmatpush1.msra.mxu0 %v521
    %1800 = vmatprep.subr.mxu0 0.0
    %1801 = vmatpush1.msra.mxu0 %v522
    %1802 = vmatprep.subr.mxu0 0.0
    %1803 = vmatpush1.msra.mxu0 %v523
    %1804 = vmatprep.subr.mxu0 0.0
    %1805 = vmatpush1.msra.mxu0 %v524
    %1806 = vmatprep.subr.mxu0 0.0
    %1807 = vmatpush1.msra.mxu0 %v525
    %1808 = vmatprep.subr.mxu0 0.0
    %1809 = vmatpush1.msra.mxu0 %v526
    %1810 = vmatprep.subr.mxu0 0.0
    %1811 = vmatpush1.msra.mxu0 %v527
    %1812 = vmatprep.subr.mxu0 0.0
    %1813 = vmatpush1.msra.mxu0 %v528
    %1814 = vmatprep.subr.mxu0 0.0
    %1815 = vmatpush1.msra.mxu0 %v529
    %1816 = vmatprep.subr.mxu0 0.0
    %1817 = vmatpush1.msra.mxu0 %v530
    %1818 = vmatprep.subr.mxu0 0.0
    %1819 = vmatpush1.msra.mxu0 %v531
    %1820 = vmatprep.subr.mxu0 0.0
    %1821 = vmatpush1.msra.mxu0 %v532
    %1822 = vmatprep.subr.mxu0 0.0
    %1823 = vmatpush1.msra.mxu0 %v533
    %1824 = vmatprep.subr.mxu0 0.0
    %1825 = vmatpush1.msra.mxu0 %v534
    %1826 = vmatprep.subr.mxu0 0.0
    %1827 = vmatpush1.msra.mxu0 %v535
    %1828 = vmatprep.subr.mxu0 0.0
    %1829 = vmatpush1.msra.mxu0 %v536
    %1830 = vmatprep.subr.mxu0 0.0
    %1831 = vmatpush1.msra.mxu0 %v537
    %1832 = vmatprep.subr.mxu0 0.0
    %1833 = vmatpush1.msra.mxu0 %v538
    %1834 = vmatprep.subr.mxu0 0.0
    %1835 = vmatpush1.msra.mxu0 %v539
    %1836 = vmatprep.subr.mxu0 0.0
    %1837 = vmatpush1.msra.mxu0 %v540
    %1838 = vmatprep.mubr.f32.mxu0 %v691
    %1839 = vmatmul.mubr.f32.gmra.mrb[0].mxu0 %v689
    %v1840 = vpop.f32.mrb[0].mxu0
    %v1841 = vadd.f32 %v1771, %v1840
    %v1842 = vpop.f32.mrb[0].mxu0
    %1843 = vdwg.mxu0
    %v1844 = vmax.f32 %v1841, 0.0
    %v1845 = vld [vmem:[%s3] sm:$0xff]
    %v1846 = vld [vmem:[%s3 + $0x8] sm:$0xff]
    %v1847 = vld [vmem:[%s3 + $0x10] sm:$0xff]
    %v1848 = vld [vmem:[%s3 + $0x18] sm:$0xff]
    %v1849 = vld [vmem:[%s3 + $0x20] sm:$0xff]
    %v1850 = vld [vmem:[%s3 + $0x28] sm:$0xff]
    %v1851 = vld [vmem:[%s3 + $0x30] sm:$0xff]
    %v1852 = vld [vmem:[%s3 + $0x38] sm:$0xff]
    %v1853 = vld [vmem:[%s3 + $0x40] sm:$0xff]
    %v1854 = vld [vmem:[%s3 + $0x48] sm:$0xff]
    %v1855 = vld [vmem:[%s3 + $0x50] sm:$0xff]
    %v1856 = vld [vmem:[%s3 + $0x58] sm:$0xff]
    %v1857 = vld [vmem:[%s3 + $0x60] sm:$0xff]
    %v1858 = vld [vmem:[%s3 + $0x68] sm:$0xff]
    %v1859 = vld [vmem:[%s3 + $0x70] sm:$0xff]
    %v1860 = vld [vmem:[%s3 + $0x78] sm:$0xff]
    %v1861 = vld [vmem:[%s4] sm:$0x1]
    %v1863 = vlaneseq
    %v1864 = vshrl.u32 %v1863, 7
    %v1865 = vsub.s32 0, %v1864
    %v1866 = vrot.slane %v1861, %v1865
    %1868 = vmatprep.subr.mxu0 0.0
    %1869 = vmatpush1.msra.mxu0 %v1845
    %1870 = vmatprep.subr.mxu0 0.0
    %1871 = vmatpush1.msra.mxu0 %v1846
    %1872 = vmatprep.subr.mxu0 0.0
    %1873 = vmatpush1.msra.mxu0 %v1847
    %1874 = vmatprep.subr.mxu0 0.0
    %1875 = vmatpush1.msra.mxu0 %v1848
    %1876 = vmatprep.subr.mxu0 0.0
    %1877 = vmatpush1.msra.mxu0 %v1849
    %1878 = vmatprep.subr.mxu0 0.0
    %1879 = vmatpush1.msra.mxu0 %v1850
    %1880 = vmatprep.subr.mxu0 0.0
    %1881 = vmatpush1.msra.mxu0 %v1851
    %1882 = vmatprep.subr.mxu0 0.0
    %1883 = vmatpush1.msra.mxu0 %v1852
    %1884 = vmatprep.subr.mxu0 0.0
    %1885 = vmatpush1.msra.mxu0 %v1853
    %1886 = vmatprep.subr.mxu0 0.0
    %1887 = vmatpush1.msra.mxu0 %v1854
    %1888 = vmatprep.subr.mxu0 0.0
    %1889 = vmatpush1.msra.mxu0 %v1855
    %1890 = vmatprep.subr.mxu0 0.0
    %1891 = vmatpush1.msra.mxu0 %v1856
    %1892 = vmatprep.subr.mxu0 0.0
    %1893 = vmatpush1.msra.mxu0 %v1857
    %1894 = vmatprep.subr.mxu0 0.0
    %1895 = vmatpush1.msra.mxu0 %v1858
    %1896 = vmatprep.subr.mxu0 0.0
    %1897 = vmatpush1.msra.mxu0 %v1859
    %1898 = vmatprep.subr.mxu0 0.0
    %1899 = vmatpush1.msra.mxu0 %v1860
    %1900 = vmatprep.subr.mxu0 0.0
    %1901 = vmatpush1.msra.mxu0 0.0
    %1902 = vmatprep.subr.mxu0 0.0
    %1903 = vmatpush1.msra.mxu0 0.0
    %1904 = vmatprep.subr.mxu0 0.0
    %1905 = vmatpush1.msra.mxu0 0.0
    %1906 = vmatprep.subr.mxu0 0.0
    %1907 = vmatpush1.msra.mxu0 0.0
    %1908 = vmatprep.subr.mxu0 0.0
    %1909 = vmatpush1.msra.mxu0 0.0
    %1910 = vmatprep.subr.mxu0 0.0
    %1911 = vmatpush1.msra.mxu0 0.0
    %1912 = vmatprep.subr.mxu0 0.0
    %1913 = vmatpush1.msra.mxu0 0.0
    %1914 = vmatprep.subr.mxu0 0.0
    %1915 = vmatpush1.msra.mxu0 0.0
    %1916 = vmatprep.subr.mxu0 0.0
    %1917 = vmatpush1.msra.mxu0 0.0
    %1918 = vmatprep.subr.mxu0 0.0
    %1919 = vmatpush1.msra.mxu0 0.0
    %1920 = vmatprep.subr.mxu0 0.0
    %1921 = vmatpush1.msra.mxu0 0.0
    %1922 = vmatprep.subr.mxu0 0.0
    %1923 = vmatpush1.msra.mxu0 0.0
    %1924 = vmatprep.subr.mxu0 0.0
    %1925 = vmatpush1.msra.mxu0 0.0
    %1926 = vmatprep.subr.mxu0 0.0
    %1927 = vmatpush1.msra.mxu0 0.0
    %1928 = vmatprep.subr.mxu0 0.0
    %1929 = vmatpush1.msra.mxu0 0.0
    %1930 = vmatprep.subr.mxu0 0.0
    %1931 = vmatpush1.msra.mxu0 0.0
    %1932 = vmatprep.mubr.f32.mxu0 0.0
    %1933 = vmatmul.mubr.f32.gmra.mrb[0].mxu0 %v1844
    %v1934 = vpop.f32.mrb[0].mxu0
    %v1935 = vadd.f32 %v1866, %v1934
    %v1936 = vpop.f32.mrb[0].mxu0
    %1937 = vdwg.mxu0
    %1938 = vst [vmem:[#allocation2] sm:$0x3] %v1935
    // Predicated region
    $region22: #{simple_cnn_forward.5} parent=1 // pred_check
      _
    $region23: #{simple_cnn_forward.5} parent=1 // pred_check_branch
      %1940 = sbr.rel (0) target = $region25
    $region24: #{simple_cnn_forward.5} parent=1 // pred_region
      %s1942 = ssub.s32 32, 32
      %1943 = vsyncadd [#allocation3], %s1942
      %s1945 = sshll.u32 [#allocation2], 4
      %s1946 = int_to_ptr.vmem [resolvable:$true] %s1945
      %1948 = dma.vmem_to_hbm [thread:$0]  %s1946, 32, %s5, [#allocation3]
    $region25: #{simple_cnn_forward.5} parent=1 // pred_fallthru
      _
    // Predicated region
    $region26: #{simple_cnn_forward.5} parent=1 // pred_check
      _
    $region27: #{simple_cnn_forward.5} parent=1 // pred_check_branch
      %1950 = sbr.rel (0) target = $region29
    $region28: #{simple_cnn_forward.5} parent=1 // pred_region
      %1951 = dma.done [#allocation3], 32
    $region29: #{simple_cnn_forward.5} parent=1 // pred_fallthru
      _
    %1952 = vsyncpa [#allocation3], 1

// kernel: simple_cnn_forward.3
$region0: #{simple_cnn_forward.3}
  #allocation0 [shape = 'u32[]', space=smem, size = 0x4, offset = 0x4, fixed_abs, tag = 'smem constant byte address 0x4 - core index']
  #allocation1 [shape = 'u32[144,128]{1,0:T(1,128)}', space=vmem, size = 0x12000, scoped, tag = 'internal scratch']
  %s0 = inlined_call_operand.vmem [shape: f32[2,1024,9], index: 0, kind: input, shape index: {}]
  %s1 = inlined_call_operand.vmem [shape: f32[9,32], index: 1, kind: input, shape index: {}]
  %s2 = inlined_call_operand.vmem [shape: f32[1,32], index: 2, kind: input, shape index: {}]
  %s3 = inlined_call_operand.vmem [shape: f32[2,18,9,32], index: 3, kind: output, shape index: {0}]
  %s4 = inlined_call_operand.vmem [shape: f32[2,18,9,32], index: 4, kind: output, shape index: {1}]
  %5 = xla_tuple %s3, %s4
  %s6 = sld [smem:[#allocation0]]
  $region30: #{simple_cnn_forward.3} parent=0
    _
  %s8 = ssub.s32 1, %s6
  %s9 = scalar_select 0, %s8, %s6
  // Predicated region
  $region2: #{simple_cnn_forward.3} parent=0 // pred_check
    _
  $region3: #{simple_cnn_forward.3} parent=0 // pred_check_branch
    %11 = sbr.rel (0) target = $region5
  $region4: #{simple_cnn_forward.3} parent=0 // pred_region
    _
  $region5: #{simple_cnn_forward.3} parent=0 // pred_fallthru
    _
  // Predicated region
  $region6: #{simple_cnn_forward.3} parent=0 // pred_check
    _
  $region7: #{simple_cnn_forward.3} parent=0 // pred_check_branch
    %13 = sbr.rel (0) target = $region9
  $region8: #{simple_cnn_forward.3} parent=0 // pred_region
    _
  $region9: #{simple_cnn_forward.3} parent=0 // pred_fallthru
    _
  // Predicated region
  $region10: #{simple_cnn_forward.3} parent=0 // pred_check
    _
  $region11: #{simple_cnn_forward.3} parent=0 // pred_check_branch
    %15 = sbr.rel (0) target = $region13
  $region12: #{simple_cnn_forward.3} parent=0 // pred_region
    _
  $region13: #{simple_cnn_forward.3} parent=0 // pred_fallthru
    _
  %v16 = vld [vmem:[%s0] sm:$0xff]
  %v17 = vld [vmem:[%s0 + $0x8] sm:$0xff]
  %v18 = vld [vmem:[%s0 + $0x10] sm:$0xff]
  %v19 = vld [vmem:[%s0 + $0x18] sm:$0xff]
  %v20 = vld [vmem:[%s0 + $0x20] sm:$0xff]
  %v21 = vld [vmem:[%s0 + $0x28] sm:$0xff]
  %v22 = vld [vmem:[%s0 + $0x30] sm:$0xff]
  %v23 = vld [vmem:[%s0 + $0x38] sm:$0xff]
  %v24 = vld [vmem:[%s0 + $0x40] sm:$0xff]
  %v25 = vld [vmem:[%s0 + $0x48] sm:$0xff]
  %v26 = vld [vmem:[%s0 + $0x50] sm:$0xff]
  %v27 = vld [vmem:[%s0 + $0x58] sm:$0xff]
  %v28 = vld [vmem:[%s0 + $0x60] sm:$0xff]
  %v29 = vld [vmem:[%s0 + $0x68] sm:$0xff]
  %v30 = vld [vmem:[%s0 + $0x70] sm:$0xff]
  %v31 = vld [vmem:[%s0 + $0x78] sm:$0xff]
  %v32 = vld [vmem:[%s0 + $0x80] sm:$0xff]
  %v33 = vld [vmem:[%s0 + $0x88] sm:$0xff]
  %v34 = vld [vmem:[%s0 + $0x90] sm:$0xff]
  %v35 = vld [vmem:[%s0 + $0x98] sm:$0xff]
  %v36 = vld [vmem:[%s0 + $0xa0] sm:$0xff]
  %v37 = vld [vmem:[%s0 + $0xa8] sm:$0xff]
  %v38 = vld [vmem:[%s0 + $0xb0] sm:$0xff]
  %v39 = vld [vmem:[%s0 + $0xb8] sm:$0xff]
  %v40 = vld [vmem:[%s0 + $0xc0] sm:$0xff]
  %v41 = vld [vmem:[%s0 + $0xc8] sm:$0xff]
  %v42 = vld [vmem:[%s0 + $0xd0] sm:$0xff]
  %v43 = vld [vmem:[%s0 + $0xd8] sm:$0xff]
  %v44 = vld [vmem:[%s0 + $0xe0] sm:$0xff]
  %v45 = vld [vmem:[%s0 + $0xe8] sm:$0xff]
  %v46 = vld [vmem:[%s0 + $0xf0] sm:$0xff]
  %v47 = vld [vmem:[%s0 + $0xf8] sm:$0xff]
  %v48 = vld [vmem:[%s0 + $0x100] sm:$0xff]
  %v49 = vld [vmem:[%s0 + $0x108] sm:$0xff]
  %v50 = vld [vmem:[%s0 + $0x110] sm:$0xff]
  %v51 = vld [vmem:[%s0 + $0x118] sm:$0xff]
  %v52 = vld [vmem:[%s0 + $0x120] sm:$0xff]
  %v53 = vld [vmem:[%s0 + $0x128] sm:$0xff]
  %v54 = vld [vmem:[%s0 + $0x130] sm:$0xff]
  %v55 = vld [vmem:[%s0 + $0x138] sm:$0xff]
  %v56 = vld [vmem:[%s0 + $0x140] sm:$0xff]
  %v57 = vld [vmem:[%s0 + $0x148] sm:$0xff]
  %v58 = vld [vmem:[%s0 + $0x150] sm:$0xff]
  %v59 = vld [vmem:[%s0 + $0x158] sm:$0xff]
  %v60 = vld [vmem:[%s0 + $0x160] sm:$0xff]
  %v61 = vld [vmem:[%s0 + $0x168] sm:$0xff]
  %v62 = vld [vmem:[%s0 + $0x170] sm:$0xff]
  %v63 = vld [vmem:[%s0 + $0x178] sm:$0xff]
  %v64 = vld [vmem:[%s0 + $0x180] sm:$0xff]
  %v65 = vld [vmem:[%s0 + $0x188] sm:$0xff]
  %v66 = vld [vmem:[%s0 + $0x190] sm:$0xff]
  %v67 = vld [vmem:[%s0 + $0x198] sm:$0xff]
  %v68 = vld [vmem:[%s0 + $0x1a0] sm:$0xff]
  %v69 = vld [vmem:[%s0 + $0x1a8] sm:$0xff]
  %v70 = vld [vmem:[%s0 + $0x1b0] sm:$0xff]
  %v71 = vld [vmem:[%s0 + $0x1b8] sm:$0xff]
  %v72 = vld [vmem:[%s0 + $0x1c0] sm:$0xff]
  %v73 = vld [vmem:[%s0 + $0x1c8] sm:$0xff]
  %v74 = vld [vmem:[%s0 + $0x1d0] sm:$0xff]
  %v75 = vld [vmem:[%s0 + $0x1d8] sm:$0xff]
  %v76 = vld [vmem:[%s0 + $0x1e0] sm:$0xff]
  %v77 = vld [vmem:[%s0 + $0x1e8] sm:$0xff]
  %v78 = vld [vmem:[%s0 + $0x1f0] sm:$0xff]
  %v79 = vld [vmem:[%s0 + $0x1f8] sm:$0xff]
  %v80 = vld [vmem:[%s0 + $0x200] sm:$0xff]
  %v81 = vld [vmem:[%s0 + $0x208] sm:$0xff]
  %v82 = vld [vmem:[%s0 + $0x210] sm:$0xff]
  %v83 = vld [vmem:[%s0 + $0x218] sm:$0xff]
  %v84 = vld [vmem:[%s0 + $0x220] sm:$0xff]
  %v85 = vld [vmem:[%s0 + $0x228] sm:$0xff]
  %v86 = vld [vmem:[%s0 + $0x230] sm:$0xff]
  %v87 = vld [vmem:[%s0 + $0x238] sm:$0xff]
  %v88 = vld [vmem:[%s0 + $0x240] sm:$0xff]
  %v89 = vld [vmem:[%s0 + $0x248] sm:$0xff]
  %v90 = vld [vmem:[%s0 + $0x250] sm:$0xff]
  %v91 = vld [vmem:[%s0 + $0x258] sm:$0xff]
  %v92 = vld [vmem:[%s0 + $0x260] sm:$0xff]
  %v93 = vld [vmem:[%s0 + $0x268] sm:$0xff]
  %v94 = vld [vmem:[%s0 + $0x270] sm:$0xff]
  %v95 = vld [vmem:[%s0 + $0x278] sm:$0xff]
  %v96 = vld [vmem:[%s0 + $0x280] sm:$0xff]
  %v97 = vld [vmem:[%s0 + $0x288] sm:$0xff]
  %v98 = vld [vmem:[%s0 + $0x290] sm:$0xff]
  %v99 = vld [vmem:[%s0 + $0x298] sm:$0xff]
  %v100 = vld [vmem:[%s0 + $0x2a0] sm:$0xff]
  %v101 = vld [vmem:[%s0 + $0x2a8] sm:$0xff]
  %v102 = vld [vmem:[%s0 + $0x2b0] sm:$0xff]
  %v103 = vld [vmem:[%s0 + $0x2b8] sm:$0xff]
  %v104 = vld [vmem:[%s0 + $0x2c0] sm:$0xff]
  %v105 = vld [vmem:[%s0 + $0x2c8] sm:$0xff]
  %v106 = vld [vmem:[%s0 + $0x2d0] sm:$0xff]
  %v107 = vld [vmem:[%s0 + $0x2d8] sm:$0xff]
  %v108 = vld [vmem:[%s0 + $0x2e0] sm:$0xff]
  %v109 = vld [vmem:[%s0 + $0x2e8] sm:$0xff]
  %v110 = vld [vmem:[%s0 + $0x2f0] sm:$0xff]
  %v111 = vld [vmem:[%s0 + $0x2f8] sm:$0xff]
  %v112 = vld [vmem:[%s0 + $0x300] sm:$0xff]
  %v113 = vld [vmem:[%s0 + $0x308] sm:$0xff]
  %v114 = vld [vmem:[%s0 + $0x310] sm:$0xff]
  %v115 = vld [vmem:[%s0 + $0x318] sm:$0xff]
  %v116 = vld [vmem:[%s0 + $0x320] sm:$0xff]
  %v117 = vld [vmem:[%s0 + $0x328] sm:$0xff]
  %v118 = vld [vmem:[%s0 + $0x330] sm:$0xff]
  %v119 = vld [vmem:[%s0 + $0x338] sm:$0xff]
  %v120 = vld [vmem:[%s0 + $0x340] sm:$0xff]
  %v121 = vld [vmem:[%s0 + $0x348] sm:$0xff]
  %v122 = vld [vmem:[%s0 + $0x350] sm:$0xff]
  %v123 = vld [vmem:[%s0 + $0x358] sm:$0xff]
  %v124 = vld [vmem:[%s0 + $0x360] sm:$0xff]
  %v125 = vld [vmem:[%s0 + $0x368] sm:$0xff]
  %v126 = vld [vmem:[%s0 + $0x370] sm:$0xff]
  %v127 = vld [vmem:[%s0 + $0x378] sm:$0xff]
  %v128 = vld [vmem:[%s0 + $0x380] sm:$0xff]
  %v129 = vld [vmem:[%s0 + $0x388] sm:$0xff]
  %v130 = vld [vmem:[%s0 + $0x390] sm:$0xff]
  %v131 = vld [vmem:[%s0 + $0x398] sm:$0xff]
  %v132 = vld [vmem:[%s0 + $0x3a0] sm:$0xff]
  %v133 = vld [vmem:[%s0 + $0x3a8] sm:$0xff]
  %v134 = vld [vmem:[%s0 + $0x3b0] sm:$0xff]
  %v135 = vld [vmem:[%s0 + $0x3b8] sm:$0xff]
  %v136 = vld [vmem:[%s0 + $0x3c0] sm:$0xff]
  %v137 = vld [vmem:[%s0 + $0x3c8] sm:$0xff]
  %v138 = vld [vmem:[%s0 + $0x3d0] sm:$0xff]
  %v139 = vld [vmem:[%s0 + $0x3d8] sm:$0xff]
  %v140 = vld [vmem:[%s0 + $0x3e0] sm:$0xff]
  %v141 = vld [vmem:[%s0 + $0x3e8] sm:$0xff]
  %v142 = vld [vmem:[%s0 + $0x3f0] sm:$0xff]
  %v143 = vld [vmem:[%s0 + $0x3f8] sm:$0xff]
  %v144 = vld [vmem:[%s0 + $0x400] sm:$0xff]
  %v145 = vld [vmem:[%s0 + $0x408] sm:$0xff]
  %v146 = vld [vmem:[%s0 + $0x410] sm:$0xff]
  %v147 = vld [vmem:[%s0 + $0x418] sm:$0xff]
  %v148 = vld [vmem:[%s0 + $0x420] sm:$0xff]
  %v149 = vld [vmem:[%s0 + $0x428] sm:$0xff]
  %v150 = vld [vmem:[%s0 + $0x430] sm:$0xff]
  %v151 = vld [vmem:[%s0 + $0x438] sm:$0xff]
  %v152 = vld [vmem:[%s0 + $0x440] sm:$0xff]
  %v153 = vld [vmem:[%s0 + $0x448] sm:$0xff]
  %v154 = vld [vmem:[%s0 + $0x450] sm:$0xff]
  %v155 = vld [vmem:[%s0 + $0x458] sm:$0xff]
  %v156 = vld [vmem:[%s0 + $0x460] sm:$0xff]
  %v157 = vld [vmem:[%s0 + $0x468] sm:$0xff]
  %v158 = vld [vmem:[%s0 + $0x470] sm:$0xff]
  %v159 = vld [vmem:[%s0 + $0x478] sm:$0xff]
  %v160 = vld [vmem:[%s0 + $0x480] sm:$0xff]
  %v161 = vld [vmem:[%s0 + $0x488] sm:$0xff]
  %v162 = vld [vmem:[%s0 + $0x490] sm:$0xff]
  %v163 = vld [vmem:[%s0 + $0x498] sm:$0xff]
  %v164 = vld [vmem:[%s0 + $0x4a0] sm:$0xff]
  %v165 = vld [vmem:[%s0 + $0x4a8] sm:$0xff]
  %v166 = vld [vmem:[%s0 + $0x4b0] sm:$0xff]
  %v167 = vld [vmem:[%s0 + $0x4b8] sm:$0xff]
  %v168 = vld [vmem:[%s0 + $0x4c0] sm:$0xff]
  %v169 = vld [vmem:[%s0 + $0x4c8] sm:$0xff]
  %v170 = vld [vmem:[%s0 + $0x4d0] sm:$0xff]
  %v171 = vld [vmem:[%s0 + $0x4d8] sm:$0xff]
  %v172 = vld [vmem:[%s0 + $0x4e0] sm:$0xff]
  %v173 = vld [vmem:[%s0 + $0x4e8] sm:$0xff]
  %v174 = vld [vmem:[%s0 + $0x4f0] sm:$0xff]
  %v175 = vld [vmem:[%s0 + $0x4f8] sm:$0xff]
  %v176 = vld [vmem:[%s0 + $0x500] sm:$0xff]
  %v177 = vld [vmem:[%s0 + $0x508] sm:$0xff]
  %v178 = vld [vmem:[%s0 + $0x510] sm:$0xff]
  %v179 = vld [vmem:[%s0 + $0x518] sm:$0xff]
  %v180 = vld [vmem:[%s0 + $0x520] sm:$0xff]
  %v181 = vld [vmem:[%s0 + $0x528] sm:$0xff]
  %v182 = vld [vmem:[%s0 + $0x530] sm:$0xff]
  %v183 = vld [vmem:[%s0 + $0x538] sm:$0xff]
  %v184 = vld [vmem:[%s0 + $0x540] sm:$0xff]
  %v185 = vld [vmem:[%s0 + $0x548] sm:$0xff]
  %v186 = vld [vmem:[%s0 + $0x550] sm:$0xff]
  %v187 = vld [vmem:[%s0 + $0x558] sm:$0xff]
  %v188 = vld [vmem:[%s0 + $0x560] sm:$0xff]
  %v189 = vld [vmem:[%s0 + $0x568] sm:$0xff]
  %v190 = vld [vmem:[%s0 + $0x570] sm:$0xff]
  %v191 = vld [vmem:[%s0 + $0x578] sm:$0xff]
  %v192 = vld [vmem:[%s0 + $0x580] sm:$0xff]
  %v193 = vld [vmem:[%s0 + $0x588] sm:$0xff]
  %v194 = vld [vmem:[%s0 + $0x590] sm:$0xff]
  %v195 = vld [vmem:[%s0 + $0x598] sm:$0xff]
  %v196 = vld [vmem:[%s0 + $0x5a0] sm:$0xff]
  %v197 = vld [vmem:[%s0 + $0x5a8] sm:$0xff]
  %v198 = vld [vmem:[%s0 + $0x5b0] sm:$0xff]
  %v199 = vld [vmem:[%s0 + $0x5b8] sm:$0xff]
  %v200 = vld [vmem:[%s0 + $0x5c0] sm:$0xff]
  %v201 = vld [vmem:[%s0 + $0x5c8] sm:$0xff]
  %v202 = vld [vmem:[%s0 + $0x5d0] sm:$0xff]
  %v203 = vld [vmem:[%s0 + $0x5d8] sm:$0xff]
  %v204 = vld [vmem:[%s0 + $0x5e0] sm:$0xff]
  %v205 = vld [vmem:[%s0 + $0x5e8] sm:$0xff]
  %v206 = vld [vmem:[%s0 + $0x5f0] sm:$0xff]
  %v207 = vld [vmem:[%s0 + $0x5f8] sm:$0xff]
  %v208 = vld [vmem:[%s0 + $0x600] sm:$0xff]
  %v209 = vld [vmem:[%s0 + $0x608] sm:$0xff]
  %v210 = vld [vmem:[%s0 + $0x610] sm:$0xff]
  %v211 = vld [vmem:[%s0 + $0x618] sm:$0xff]
  %v212 = vld [vmem:[%s0 + $0x620] sm:$0xff]
  %v213 = vld [vmem:[%s0 + $0x628] sm:$0xff]
  %v214 = vld [vmem:[%s0 + $0x630] sm:$0xff]
  %v215 = vld [vmem:[%s0 + $0x638] sm:$0xff]
  %v216 = vld [vmem:[%s0 + $0x640] sm:$0xff]
  %v217 = vld [vmem:[%s0 + $0x648] sm:$0xff]
  %v218 = vld [vmem:[%s0 + $0x650] sm:$0xff]
  %v219 = vld [vmem:[%s0 + $0x658] sm:$0xff]
  %v220 = vld [vmem:[%s0 + $0x660] sm:$0xff]
  %v221 = vld [vmem:[%s0 + $0x668] sm:$0xff]
  %v222 = vld [vmem:[%s0 + $0x670] sm:$0xff]
  %v223 = vld [vmem:[%s0 + $0x678] sm:$0xff]
  %v224 = vld [vmem:[%s0 + $0x680] sm:$0xff]
  %v225 = vld [vmem:[%s0 + $0x688] sm:$0xff]
  %v226 = vld [vmem:[%s0 + $0x690] sm:$0xff]
  %v227 = vld [vmem:[%s0 + $0x698] sm:$0xff]
  %v228 = vld [vmem:[%s0 + $0x6a0] sm:$0xff]
  %v229 = vld [vmem:[%s0 + $0x6a8] sm:$0xff]
  %v230 = vld [vmem:[%s0 + $0x6b0] sm:$0xff]
  %v231 = vld [vmem:[%s0 + $0x6b8] sm:$0xff]
  %v232 = vld [vmem:[%s0 + $0x6c0] sm:$0xff]
  %v233 = vld [vmem:[%s0 + $0x6c8] sm:$0xff]
  %v234 = vld [vmem:[%s0 + $0x6d0] sm:$0xff]
  %v235 = vld [vmem:[%s0 + $0x6d8] sm:$0xff]
  %v236 = vld [vmem:[%s0 + $0x6e0] sm:$0xff]
  %v237 = vld [vmem:[%s0 + $0x6e8] sm:$0xff]
  %v238 = vld [vmem:[%s0 + $0x6f0] sm:$0xff]
  %v239 = vld [vmem:[%s0 + $0x6f8] sm:$0xff]
  %v240 = vld [vmem:[%s0 + $0x700] sm:$0xff]
  %v241 = vld [vmem:[%s0 + $0x708] sm:$0xff]
  %v242 = vld [vmem:[%s0 + $0x710] sm:$0xff]
  %v243 = vld [vmem:[%s0 + $0x718] sm:$0xff]
  %v244 = vld [vmem:[%s0 + $0x720] sm:$0xff]
  %v245 = vld [vmem:[%s0 + $0x728] sm:$0xff]
  %v246 = vld [vmem:[%s0 + $0x730] sm:$0xff]
  %v247 = vld [vmem:[%s0 + $0x738] sm:$0xff]
  %v248 = vld [vmem:[%s0 + $0x740] sm:$0xff]
  %v249 = vld [vmem:[%s0 + $0x748] sm:$0xff]
  %v250 = vld [vmem:[%s0 + $0x750] sm:$0xff]
  %v251 = vld [vmem:[%s0 + $0x758] sm:$0xff]
  %v252 = vld [vmem:[%s0 + $0x760] sm:$0xff]
  %v253 = vld [vmem:[%s0 + $0x768] sm:$0xff]
  %v254 = vld [vmem:[%s0 + $0x770] sm:$0xff]
  %v255 = vld [vmem:[%s0 + $0x778] sm:$0xff]
  %v256 = vld [vmem:[%s0 + $0x780] sm:$0xff]
  %v257 = vld [vmem:[%s0 + $0x788] sm:$0xff]
  %v258 = vld [vmem:[%s0 + $0x790] sm:$0xff]
  %v259 = vld [vmem:[%s0 + $0x798] sm:$0xff]
  %v260 = vld [vmem:[%s0 + $0x7a0] sm:$0xff]
  %v261 = vld [vmem:[%s0 + $0x7a8] sm:$0xff]
  %v262 = vld [vmem:[%s0 + $0x7b0] sm:$0xff]
  %v263 = vld [vmem:[%s0 + $0x7b8] sm:$0xff]
  %v264 = vld [vmem:[%s0 + $0x7c0] sm:$0xff]
  %v265 = vld [vmem:[%s0 + $0x7c8] sm:$0xff]
  %v266 = vld [vmem:[%s0 + $0x7d0] sm:$0xff]
  %v267 = vld [vmem:[%s0 + $0x7d8] sm:$0xff]
  %v268 = vld [vmem:[%s0 + $0x7e0] sm:$0xff]
  %v269 = vld [vmem:[%s0 + $0x7e8] sm:$0xff]
  %v270 = vld [vmem:[%s0 + $0x7f0] sm:$0xff]
  %v271 = vld [vmem:[%s0 + $0x7f8] sm:$0xff]
  %v272 = vld [vmem:[%s1] sm:$0xff]
  %v273 = vld [vmem:[%s1 + $0x8] sm:$0x1]
  %v274 = vld [vmem:[%s2] sm:$0x1]
  %v276 = vlaneseq
  %v277 = vshrl.u32 %v276, 7
  %v278 = vsub.s32 0, %v277
  %v279 = vrot.slane %v274, %v278
  %vm281 = vcmask 72704
  %v283 = vsel %vm281, %v16, 0
  %v286 = vsel %vm281, %v17, 0
  %v289 = vsel %vm281, %v18, 0
  %v292 = vsel %vm281, %v19, 0
  %v295 = vsel %vm281, %v20, 0
  %v298 = vsel %vm281, %v21, 0
  %v301 = vsel %vm281, %v22, 0
  %v304 = vsel %vm281, %v23, 0
  %v307 = vsel %vm281, %v24, 0
  %v310 = vsel %vm281, %v25, 0
  %v313 = vsel %vm281, %v26, 0
  %v316 = vsel %vm281, %v27, 0
  %v319 = vsel %vm281, %v28, 0
  %v322 = vsel %vm281, %v29, 0
  %v325 = vsel %vm281, %v30, 0
  %v328 = vsel %vm281, %v31, 0
  %v331 = vsel %vm281, %v32, 0
  %v334 = vsel %vm281, %v33, 0
  %v337 = vsel %vm281, %v34, 0
  %v340 = vsel %vm281, %v35, 0
  %v343 = vsel %vm281, %v36, 0
  %v346 = vsel %vm281, %v37, 0
  %v349 = vsel %vm281, %v38, 0
  %v352 = vsel %vm281, %v39, 0
  %v355 = vsel %vm281, %v40, 0
  %v358 = vsel %vm281, %v41, 0
  %v361 = vsel %vm281, %v42, 0
  %v364 = vsel %vm281, %v43, 0
  %v367 = vsel %vm281, %v44, 0
  %v370 = vsel %vm281, %v45, 0
  %v373 = vsel %vm281, %v46, 0
  %v376 = vsel %vm281, %v47, 0
  %v379 = vsel %vm281, %v48, 0
  %v382 = vsel %vm281, %v49, 0
  %v385 = vsel %vm281, %v50, 0
  %v388 = vsel %vm281, %v51, 0
  %v391 = vsel %vm281, %v52, 0
  %v394 = vsel %vm281, %v53, 0
  %v397 = vsel %vm281, %v54, 0
  %v400 = vsel %vm281, %v55, 0
  %v403 = vsel %vm281, %v56, 0
  %v406 = vsel %vm281, %v57, 0
  %v409 = vsel %vm281, %v58, 0
  %v412 = vsel %vm281, %v59, 0
  %v415 = vsel %vm281, %v60, 0
  %v418 = vsel %vm281, %v61, 0
  %v421 = vsel %vm281, %v62, 0
  %v424 = vsel %vm281, %v63, 0
  %v427 = vsel %vm281, %v64, 0
  %v430 = vsel %vm281, %v65, 0
  %v433 = vsel %vm281, %v66, 0
  %v436 = vsel %vm281, %v67, 0
  %v439 = vsel %vm281, %v68, 0
  %v442 = vsel %vm281, %v69, 0
  %v445 = vsel %vm281, %v70, 0
  %v448 = vsel %vm281, %v71, 0
  %v451 = vsel %vm281, %v72, 0
  %v454 = vsel %vm281, %v73, 0
  %v457 = vsel %vm281, %v74, 0
  %v460 = vsel %vm281, %v75, 0
  %v463 = vsel %vm281, %v76, 0
  %v466 = vsel %vm281, %v77, 0
  %v469 = vsel %vm281, %v78, 0
  %v472 = vsel %vm281, %v79, 0
  %v475 = vsel %vm281, %v80, 0
  %v478 = vsel %vm281, %v81, 0
  %v481 = vsel %vm281, %v82, 0
  %v484 = vsel %vm281, %v83, 0
  %v487 = vsel %vm281, %v84, 0
  %v490 = vsel %vm281, %v85, 0
  %v493 = vsel %vm281, %v86, 0
  %v496 = vsel %vm281, %v87, 0
  %v499 = vsel %vm281, %v88, 0
  %v502 = vsel %vm281, %v89, 0
  %v505 = vsel %vm281, %v90, 0
  %v508 = vsel %vm281, %v91, 0
  %v511 = vsel %vm281, %v92, 0
  %v514 = vsel %vm281, %v93, 0
  %v517 = vsel %vm281, %v94, 0
  %v520 = vsel %vm281, %v95, 0
  %v523 = vsel %vm281, %v96, 0
  %v526 = vsel %vm281, %v97, 0
  %v529 = vsel %vm281, %v98, 0
  %v532 = vsel %vm281, %v99, 0
  %v535 = vsel %vm281, %v100, 0
  %v538 = vsel %vm281, %v101, 0
  %v541 = vsel %vm281, %v102, 0
  %v544 = vsel %vm281, %v103, 0
  %v547 = vsel %vm281, %v104, 0
  %v550 = vsel %vm281, %v105, 0
  %v553 = vsel %vm281, %v106, 0
  %v556 = vsel %vm281, %v107, 0
  %v559 = vsel %vm281, %v108, 0
  %v562 = vsel %vm281, %v109, 0
  %v565 = vsel %vm281, %v110, 0
  %v568 = vsel %vm281, %v111, 0
  %v571 = vsel %vm281, %v112, 0
  %v574 = vsel %vm281, %v113, 0
  %v577 = vsel %vm281, %v114, 0
  %v580 = vsel %vm281, %v115, 0
  %v583 = vsel %vm281, %v116, 0
  %v586 = vsel %vm281, %v117, 0
  %v589 = vsel %vm281, %v118, 0
  %v592 = vsel %vm281, %v119, 0
  %v595 = vsel %vm281, %v120, 0
  %v598 = vsel %vm281, %v121, 0
  %v601 = vsel %vm281, %v122, 0
  %v604 = vsel %vm281, %v123, 0
  %v607 = vsel %vm281, %v124, 0
  %v610 = vsel %vm281, %v125, 0
  %v613 = vsel %vm281, %v126, 0
  %v616 = vsel %vm281, %v127, 0
  %v619 = vsel %vm281, %v128, 0
  %v622 = vsel %vm281, %v129, 0
  %v625 = vsel %vm281, %v130, 0
  %v628 = vsel %vm281, %v131, 0
  %v631 = vsel %vm281, %v132, 0
  %v634 = vsel %vm281, %v133, 0
  %v637 = vsel %vm281, %v134, 0
  %v640 = vsel %vm281, %v135, 0
  %v643 = vsel %vm281, %v136, 0
  %v646 = vsel %vm281, %v137, 0
  %v649 = vsel %vm281, %v138, 0
  %v652 = vsel %vm281, %v139, 0
  %v655 = vsel %vm281, %v140, 0
  %v658 = vsel %vm281, %v141, 0
  %v661 = vsel %vm281, %v142, 0
  %v664 = vsel %vm281, %v143, 0
  %v667 = vsel %vm281, %v144, 0
  %v670 = vsel %vm281, %v145, 0
  %v673 = vsel %vm281, %v146, 0
  %v676 = vsel %vm281, %v147, 0
  %v679 = vsel %vm281, %v148, 0
  %v682 = vsel %vm281, %v149, 0
  %v685 = vsel %vm281, %v150, 0
  %v688 = vsel %vm281, %v151, 0
  %v691 = vsel %vm281, %v152, 0
  %v694 = vsel %vm281, %v153, 0
  %v697 = vsel %vm281, %v154, 0
  %v700 = vsel %vm281, %v155, 0
  %v703 = vsel %vm281, %v156, 0
  %v706 = vsel %vm281, %v157, 0
  %v709 = vsel %vm281, %v158, 0
  %v712 = vsel %vm281, %v159, 0
  %v715 = vsel %vm281, %v160, 0
  %v718 = vsel %vm281, %v161, 0
  %v721 = vsel %vm281, %v162, 0
  %v724 = vsel %vm281, %v163, 0
  %v727 = vsel %vm281, %v164, 0
  %v730 = vsel %vm281, %v165, 0
  %v733 = vsel %vm281, %v166, 0
  %v736 = vsel %vm281, %v167, 0
  %v739 = vsel %vm281, %v168, 0
  %v742 = vsel %vm281, %v169, 0
  %v745 = vsel %vm281, %v170, 0
  %v748 = vsel %vm281, %v171, 0
  %v751 = vsel %vm281, %v172, 0
  %v754 = vsel %vm281, %v173, 0
  %v757 = vsel %vm281, %v174, 0
  %v760 = vsel %vm281, %v175, 0
  %v763 = vsel %vm281, %v176, 0
  %v766 = vsel %vm281, %v177, 0
  %v769 = vsel %vm281, %v178, 0
  %v772 = vsel %vm281, %v179, 0
  %v775 = vsel %vm281, %v180, 0
  %v778 = vsel %vm281, %v181, 0
  %v781 = vsel %vm281, %v182, 0
  %v784 = vsel %vm281, %v183, 0
  %v787 = vsel %vm281, %v184, 0
  %v790 = vsel %vm281, %v185, 0
  %v793 = vsel %vm281, %v186, 0
  %v796 = vsel %vm281, %v187, 0
  %v799 = vsel %vm281, %v188, 0
  %v802 = vsel %vm281, %v189, 0
  %v805 = vsel %vm281, %v190, 0
  %v808 = vsel %vm281, %v191, 0
  %v811 = vsel %vm281, %v192, 0
  %v814 = vsel %vm281, %v193, 0
  %v817 = vsel %vm281, %v194, 0
  %v820 = vsel %vm281, %v195, 0
  %v823 = vsel %vm281, %v196, 0
  %v826 = vsel %vm281, %v197, 0
  %v829 = vsel %vm281, %v198, 0
  %v832 = vsel %vm281, %v199, 0
  %v835 = vsel %vm281, %v200, 0
  %v838 = vsel %vm281, %v201, 0
  %v841 = vsel %vm281, %v202, 0
  %v844 = vsel %vm281, %v203, 0
  %v847 = vsel %vm281, %v204, 0
  %v850 = vsel %vm281, %v205, 0
  %v853 = vsel %vm281, %v206, 0
  %v856 = vsel %vm281, %v207, 0
  %v859 = vsel %vm281, %v208, 0
  %v862 = vsel %vm281, %v209, 0
  %v865 = vsel %vm281, %v210, 0
  %v868 = vsel %vm281, %v211, 0
  %v871 = vsel %vm281, %v212, 0
  %v874 = vsel %vm281, %v213, 0
  %v877 = vsel %vm281, %v214, 0
  %v880 = vsel %vm281, %v215, 0
  %v883 = vsel %vm281, %v216, 0
  %v886 = vsel %vm281, %v217, 0
  %v889 = vsel %vm281, %v218, 0
  %v892 = vsel %vm281, %v219, 0
  %v895 = vsel %vm281, %v220, 0
  %v898 = vsel %vm281, %v221, 0
  %v901 = vsel %vm281, %v222, 0
  %v904 = vsel %vm281, %v223, 0
  %v907 = vsel %vm281, %v224, 0
  %v910 = vsel %vm281, %v225, 0
  %v913 = vsel %vm281, %v226, 0
  %v916 = vsel %vm281, %v227, 0
  %v919 = vsel %vm281, %v228, 0
  %v922 = vsel %vm281, %v229, 0
  %v925 = vsel %vm281, %v230, 0
  %v928 = vsel %vm281, %v231, 0
  %v931 = vsel %vm281, %v232, 0
  %v934 = vsel %vm281, %v233, 0
  %v937 = vsel %vm281, %v234, 0
  %v940 = vsel %vm281, %v235, 0
  %v943 = vsel %vm281, %v236, 0
  %v946 = vsel %vm281, %v237, 0
  %v949 = vsel %vm281, %v238, 0
  %v952 = vsel %vm281, %v239, 0
  %v955 = vsel %vm281, %v240, 0
  %v958 = vsel %vm281, %v241, 0
  %v961 = vsel %vm281, %v242, 0
  %v964 = vsel %vm281, %v243, 0
  %v967 = vsel %vm281, %v244, 0
  %v970 = vsel %vm281, %v245, 0
  %v973 = vsel %vm281, %v246, 0
  %v976 = vsel %vm281, %v247, 0
  %v979 = vsel %vm281, %v248, 0
  %v982 = vsel %vm281, %v249, 0
  %v985 = vsel %vm281, %v250, 0
  %v988 = vsel %vm281, %v251, 0
  %v991 = vsel %vm281, %v252, 0
  %v994 = vsel %vm281, %v253, 0
  %v997 = vsel %vm281, %v254, 0
  %v1000 = vsel %vm281, %v255, 0
  %v1003 = vsel %vm281, %v256, 0
  %v1006 = vsel %vm281, %v257, 0
  %v1009 = vsel %vm281, %v258, 0
  %v1012 = vsel %vm281, %v259, 0
  %v1015 = vsel %vm281, %v260, 0
  %v1018 = vsel %vm281, %v261, 0
  %v1021 = vsel %vm281, %v262, 0
  %v1024 = vsel %vm281, %v263, 0
  %v1027 = vsel %vm281, %v264, 0
  %v1030 = vsel %vm281, %v265, 0
  %v1033 = vsel %vm281, %v266, 0
  %v1036 = vsel %vm281, %v267, 0
  %v1039 = vsel %vm281, %v268, 0
  %v1042 = vsel %vm281, %v269, 0
  %v1045 = vsel %vm281, %v270, 0
  %v1048 = vsel %vm281, %v271, 0
  %vm1050 = vcmask 1040384
  %v1052 = vsel %vm1050, %v273, 0
  %1054 = vmatprep.subr.mxu0 0.0
  %1055 = vmatpush1.msra.mxu0 %v272
  %1056 = vmatprep.subr.mxu0 0.0
  %1057 = vmatpush1.msra.mxu0 %v1052
  %1058 = vmatprep.subr.mxu0 0.0
  %1059 = vmatpush1.msra.mxu0 0.0
  %1060 = vmatprep.subr.mxu0 0.0
  %1061 = vmatpush1.msra.mxu0 0.0
  %1062 = vmatprep.subr.mxu0 0.0
  %1063 = vmatpush1.msra.mxu0 0.0
  %1064 = vmatprep.subr.mxu0 0.0
  %1065 = vmatpush1.msra.mxu0 0.0
  %1066 = vmatprep.subr.mxu0 0.0
  %1067 = vmatpush1.msra.mxu0 0.0
  %1068 = vmatprep.subr.mxu0 0.0
  %1069 = vmatpush1.msra.mxu0 0.0
  %1070 = vmatprep.subr.mxu0 0.0
  %1071 = vmatpush1.msra.mxu0 0.0
  %1072 = vmatprep.subr.mxu0 0.0
  %1073 = vmatpush1.msra.mxu0 0.0
  %1074 = vmatprep.subr.mxu0 0.0
  %1075 = vmatpush1.msra.mxu0 0.0
  %1076 = vmatprep.subr.mxu0 0.0
  %1077 = vmatpush1.msra.mxu0 0.0
  %1078 = vmatprep.subr.mxu0 0.0
  %1079 = vmatpush1.msra.mxu0 0.0
  %1080 = vmatprep.subr.mxu0 0.0
  %1081 = vmatpush1.msra.mxu0 0.0
  %1082 = vmatprep.subr.mxu0 0.0
  %1083 = vmatpush1.msra.mxu0 0.0
  %1084 = vmatprep.subr.mxu0 0.0
  %1085 = vmatpush1.msra.mxu0 0.0
  %1086 = vmatprep.subr.mxu0 0.0
  %1087 = vmatpush1.msra.mxu0 0.0
  %1088 = vmatprep.subr.mxu0 0.0
  %1089 = vmatpush1.msra.mxu0 0.0
  %1090 = vmatprep.subr.mxu0 0.0
  %1091 = vmatpush1.msra.mxu0 0.0
  %1092 = vmatprep.subr.mxu0 0.0
  %1093 = vmatpush1.msra.mxu0 0.0
  %1094 = vmatprep.subr.mxu0 0.0
  %1095 = vmatpush1.msra.mxu0 0.0
  %1096 = vmatprep.subr.mxu0 0.0
  %1097 = vmatpush1.msra.mxu0 0.0
  %1098 = vmatprep.subr.mxu0 0.0
  %1099 = vmatpush1.msra.mxu0 0.0
  %1100 = vmatprep.subr.mxu0 0.0
  %1101 = vmatpush1.msra.mxu0 0.0
  %1102 = vmatprep.subr.mxu0 0.0
  %1103 = vmatpush1.msra.mxu0 0.0
  %1104 = vmatprep.subr.mxu0 0.0
  %1105 = vmatpush1.msra.mxu0 0.0
  %1106 = vmatprep.subr.mxu0 0.0
  %1107 = vmatpush1.msra.mxu0 0.0
  %1108 = vmatprep.subr.mxu0 0.0
  %1109 = vmatpush1.msra.mxu0 0.0
  %1110 = vmatprep.subr.mxu0 0.0
  %1111 = vmatpush1.msra.mxu0 0.0
  %1112 = vmatprep.subr.mxu0 0.0
  %1113 = vmatpush1.msra.mxu0 0.0
  %1114 = vmatprep.subr.mxu0 0.0
  %1115 = vmatpush1.msra.mxu0 0.0
  %1116 = vmatprep.subr.mxu0 0.0
  %1117 = vmatpush1.msra.mxu0 0.0
  %1118 = vmatprep.mubr.f32.mxu0 0.0
  %1119 = vmatmul.mubr.f32.gmra.mrb[0].mxu0 %v283
  %v1120 = vpop.f32.mrb[0].mxu0
  %v1121 = vadd.f32 %v279, %v1120
  %v1122 = vpop.f32.mrb[0].mxu0
  %1123 = vmatprep.mubr.f32.mxu0 0.0
  %1124 = vmatmul.mubr.f32.gmra.mrb[0].mxu0 %v286
  %v1125 = vpop.f32.mrb[0].mxu0
  %v1126 = vadd.f32 %v279, %v1125
  %v1127 = vpop.f32.mrb[0].mxu0
  %1128 = vmatprep.mubr.f32.mxu0 0.0
  %1129 = vmatmul.mubr.f32.gmra.mrb[0].mxu0 %v289
  %v1130 = vpop.f32.mrb[0].mxu0
  %v1131 = vadd.f32 %v279, %v1130
  %v1132 = vpop.f32.mrb[0].mxu0
  %1133 = vmatprep.mubr.f32.mxu0 0.0
  %1134 = vmatmul.mubr.f32.gmra.mrb[0].mxu0 %v292
  %v1135 = vpop.f32.mrb[0].mxu0
  %v1136 = vadd.f32 %v279, %v1135
  %v1137 = vpop.f32.mrb[0].mxu0
  %1138 = vmatprep.mubr.f32.mxu0 0.0
  %1139 = vmatmul.mubr.f32.gmra.mrb[0].mxu0 %v295
  %v1140 = vpop.f32.mrb[0].mxu0
  %v1141 = vadd.f32 %v279, %v1140
  %v1142 = vpop.f32.mrb[0].mxu0
  %1143 = vmatprep.mubr.f32.mxu0 0.0
  %1144 = vmatmul.mubr.f32.gmra.mrb[0].mxu0 %v298
  %v1145 = vpop.f32.mrb[0].mxu0
  %v1146 = vadd.f32 %v279, %v1145
  %v1147 = vpop.f32.mrb[0].mxu0
  %1148 = vmatprep.mubr.f32.mxu0 0.0
  %1149 = vmatmul.mubr.f32.gmra.mrb[0].mxu0 %v301
  %v1150 = vpop.f32.mrb[0].mxu0
  %v1151 = vadd.f32 %v279, %v1150
  %v1152 = vpop.f32.mrb[0].mxu0
  %1153 = vmatprep.mubr.f32.mxu0 0.0
  %1154 = vmatmul.mubr.f32.gmra.mrb[0].mxu0 %v304
  %v1155 = vpop.f32.mrb[0].mxu0
  %v1156 = vadd.f32 %v279, %v1155
  %v1157 = vpop.f32.mrb[0].mxu0
  %1158 = vmatprep.mubr.f32.mxu0 0.0
  %1159 = vmatmul.mubr.f32.gmra.mrb[0].mxu0 %v307
  %v1160 = vpop.f32.mrb[0].mxu0
  %v1161 = vadd.f32 %v279, %v1160
  %v1162 = vpop.f32.mrb[0].mxu0
  %1163 = vmatprep.mubr.f32.mxu0 0.0
  %1164 = vmatmul.mubr.f32.gmra.mrb[0].mxu0 %v310
  %v1165 = vpop.f32.mrb[0].mxu0
  %v1166 = vadd.f32 %v279, %v1165
  %v1167 = vpop.f32.mrb[0].mxu0
  %1168 = vmatprep.mubr.f32.mxu0 0.0
  %1169 = vmatmul.mubr.f32.gmra.mrb[0].mxu0 %v313
  %v1170 = vpop.f32.mrb[0].mxu0
  %v1171 = vadd.f32 %v279, %v1170
  %v1172 = vpop.f32.mrb[0].mxu0
  %1173 = vmatprep.mubr.f32.mxu0 0.0
  %1174 = vmatmul.mubr.f32.gmra.mrb[0].mxu0 %v316
  %v1175 = vpop.f32.mrb[0].mxu0
  %v1176 = vadd.f32 %v279, %v1175
  %v1177 = vpop.f32.mrb[0].mxu0
  %1178 = vmatprep.mubr.f32.mxu0 0.0
  %1179 = vmatmul.mubr.f32.gmra.mrb[0].mxu0 %v319
  %v1180 = vpop.f32.mrb[0].mxu0
  %v1181 = vadd.f32 %v279, %v1180
  %v1182 = vpop.f32.mrb[0].mxu0
  %1183 = vmatprep.mubr.f32.mxu0 0.0
  %1184 = vmatmul.mubr.f32.gmra.mrb[0].mxu0 %v322
  %v1185 = vpop.f32.mrb[0].mxu0
  %v1186 = vadd.f32 %v279, %v1185
  %v1187 = vpop.f32.mrb[0].mxu0
  %1188 = vmatprep.mubr.f32.mxu0 0.0
  %1189 = vmatmul.mubr.f32.gmra.mrb[0].mxu0 %v325
  %v1190 = vpop.f32.mrb[0].mxu0
  %v1191 = vadd.f32 %v279, %v1190
  %v1192 = vpop.f32.mrb[0].mxu0
  %1193 = vmatprep.mubr.f32.mxu0 0.0
  %1194 = vmatmul.mubr.f32.gmra.mrb[0].mxu0 %v328
  %v1195 = vpop.f32.mrb[0].mxu0
  %v1196 = vadd.f32 %v279, %v1195
  %v1197 = vpop.f32.mrb[0].mxu0
  %1198 = vmatprep.mubr.f32.mxu0 0.0
  %1199 = vmatmul.mubr.f32.gmra.mrb[0].mxu0 %v331
  %v1200 = vpop.f32.mrb[0].mxu0
  %v1201 = vadd.f32 %v279, %v1200
  %v1202 = vpop.f32.mrb[0].mxu0
  %1203 = vmatprep.mubr.f32.mxu0 0.0
  %1204 = vmatmul.mubr.f32.gmra.mrb[0].mxu0 %v334
  %v1205 = vpop.f32.mrb[0].mxu0
  %v1206 = vadd.f32 %v279, %v1205
  %v1207 = vpop.f32.mrb[0].mxu0
  %1208 = vmatprep.mubr.f32.mxu0 0.0
  %1209 = vmatmul.mubr.f32.gmra.mrb[0].mxu0 %v337
  %v1210 = vpop.f32.mrb[0].mxu0
  %v1211 = vadd.f32 %v279, %v1210
  %v1212 = vpop.f32.mrb[0].mxu0
  %1213 = vmatprep.mubr.f32.mxu0 0.0
  %1214 = vmatmul.mubr.f32.gmra.mrb[0].mxu0 %v340
  %v1215 = vpop.f32.mrb[0].mxu0
  %v1216 = vadd.f32 %v279, %v1215
  %v1217 = vpop.f32.mrb[0].mxu0
  %1218 = vmatprep.mubr.f32.mxu0 0.0
  %1219 = vmatmul.mubr.f32.gmra.mrb[0].mxu0 %v343
  %v1220 = vpop.f32.mrb[0].mxu0
  %v1221 = vadd.f32 %v279, %v1220
  %v1222 = vpop.f32.mrb[0].mxu0
  %1223 = vmatprep.mubr.f32.mxu0 0.0
  %1224 = vmatmul.mubr.f32.gmra.mrb[0].mxu0 %v346
  %v1225 = vpop.f32.mrb[0].mxu0
  %v1226 = vadd.f32 %v279, %v1225
  %v1227 = vpop.f32.mrb[0].mxu0
  %1228 = vmatprep.mubr.f32.mxu0 0.0
  %1229 = vmatmul.mubr.f32.gmra.mrb[0].mxu0 %v349
  %v1230 = vpop.f32.mrb[0].mxu0
  %v1231 = vadd.f32 %v279, %v1230
  %v1232 = vpop.f32.mrb[0].mxu0
  %1233 = vmatprep.mubr.f32.mxu0 0.0
  %1234 = vmatmul.mubr.f32.gmra.mrb[0].mxu0 %v352
  %v1235 = vpop.f32.mrb[0].mxu0
  %v1236 = vadd.f32 %v279, %v1235
  %v1237 = vpop.f32.mrb[0].mxu0
  %1238 = vmatprep.mubr.f32.mxu0 0.0
  %1239 = vmatmul.mubr.f32.gmra.mrb[0].mxu0 %v355
  %v1240 = vpop.f32.mrb[0].mxu0
  %v1241 = vadd.f32 %v279, %v1240
  %v1242 = vpop.f32.mrb[0].mxu0
  %1243 = vmatprep.mubr.f32.mxu0 0.0
  %1244 = vmatmul.mubr.f32.gmra.mrb[0].mxu0 %v358
  %v1245 = vpop.f32.mrb[0].mxu0
  %v1246 = vadd.f32 %v279, %v1245
  %v1247 = vpop.f32.mrb[0].mxu0
  %1248 = vmatprep.mubr.f32.mxu0 0.0
  %1249 = vmatmul.mubr.f32.gmra.mrb[0].mxu0 %v361
  %v1250 = vpop.f32.mrb[0].mxu0
  %v1251 = vadd.f32 %v279, %v1250
  %v1252 = vpop.f32.mrb[0].mxu0
  %1253 = vmatprep.mubr.f32.mxu0 0.0
  %1254 = vmatmul.mubr.f32.gmra.mrb[0].mxu0 %v364
  %v1255 = vpop.f32.mrb[0].mxu0
  %v1256 = vadd.f32 %v279, %v1255
  %v1257 = vpop.f32.mrb[0].mxu0
  %1258 = vmatprep.mubr.f32.mxu0 0.0
  %1259 = vmatmul.mubr.f32.gmra.mrb[0].mxu0 %v367
  %v1260 = vpop.f32.mrb[0].mxu0
  %v1261 = vadd.f32 %v279, %v1260
  %v1262 = vpop.f32.mrb[0].mxu0
  %1263 = vmatprep.mubr.f32.mxu0 0.0
  %1264 = vmatmul.mubr.f32.gmra.mrb[0].mxu0 %v370
  %v1265 = vpop.f32.mrb[0].mxu0
  %v1266 = vadd.f32 %v279, %v1265
  %v1267 = vpop.f32.mrb[0].mxu0
  %1268 = vmatprep.mubr.f32.mxu0 0.0
  %1269 = vmatmul.mubr.f32.gmra.mrb[0].mxu0 %v373
  %v1270 = vpop.f32.mrb[0].mxu0
  %v1271 = vadd.f32 %v279, %v1270
  %v1272 = vpop.f32.mrb[0].mxu0
  %1273 = vmatprep.mubr.f32.mxu0 0.0
  %1274 = vmatmul.mubr.f32.gmra.mrb[0].mxu0 %v376
  %v1275 = vpop.f32.mrb[0].mxu0
  %v1276 = vadd.f32 %v279, %v1275
  %v1277 = vpop.f32.mrb[0].mxu0
  %1278 = vmatprep.mubr.f32.mxu0 0.0
  %1279 = vmatmul.mubr.f32.gmra.mrb[0].mxu0 %v379
  %v1280 = vpop.f32.mrb[0].mxu0
  %v1281 = vadd.f32 %v279, %v1280
  %v1282 = vpop.f32.mrb[0].mxu0
  %1283 = vmatprep.mubr.f32.mxu0 0.0
  %1284 = vmatmul.mubr.f32.gmra.mrb[0].mxu0 %v382
  %v1285 = vpop.f32.mrb[0].mxu0
  %v1286 = vadd.f32 %v279, %v1285
  %v1287 = vpop.f32.mrb[0].mxu0
  %1288 = vmatprep.mubr.f32.mxu0 0.0
  %1289 = vmatmul.mubr.f32.gmra.mrb[0].mxu0 %v385
  %v1290 = vpop.f32.mrb[0].mxu0
  %v1291 = vadd.f32 %v279, %v1290
  %v1292 = vpop.f32.mrb[0].mxu0
  %1293 = vmatprep.mubr.f32.mxu0 0.0
  %1294 = vmatmul.mubr.f32.gmra.mrb[0].mxu0 %v388
  %v1295 = vpop.f32.mrb[0].mxu0
  %v1296 = vadd.f32 %v279, %v1295
  %v1297 = vpop.f32.mrb[0].mxu0
  %1298 = vmatprep.mubr.f32.mxu0 0.0
  %1299 = vmatmul.mubr.f32.gmra.mrb[0].mxu0 %v391
  %v1300 = vpop.f32.mrb[0].mxu0
  %v1301 = vadd.f32 %v279, %v1300
  %v1302 = vpop.f32.mrb[0].mxu0
  %1303 = vmatprep.mubr.f32.mxu0 0.0
  %1304 = vmatmul.mubr.f32.gmra.mrb[0].mxu0 %v394
  %v1305 = vpop.f32.mrb[0].mxu0
  %v1306 = vadd.f32 %v279, %v1305
  %v1307 = vpop.f32.mrb[0].mxu0
  %1308 = vmatprep.mubr.f32.mxu0 0.0
  %1309 = vmatmul.mubr.f32.gmra.mrb[0].mxu0 %v397
  %v1310 = vpop.f32.mrb[0].mxu0
  %v1311 = vadd.f32 %v279, %v1310
  %v1312 = vpop.f32.mrb[0].mxu0
  %1313 = vmatprep.mubr.f32.mxu0 0.0
  %1314 = vmatmul.mubr.f32.gmra.mrb[0].mxu0 %v400
  %v1315 = vpop.f32.mrb[0].mxu0
  %v1316 = vadd.f32 %v279, %v1315
  %v1317 = vpop.f32.mrb[0].mxu0
  %1318 = vmatprep.mubr.f32.mxu0 0.0
  %1319 = vmatmul.mubr.f32.gmra.mrb[0].mxu0 %v403
  %v1320 = vpop.f32.mrb[0].mxu0
  %v1321 = vadd.f32 %v279, %v1320
  %v1322 = vpop.f32.mrb[0].mxu0
  %1323 = vmatprep.mubr.f32.mxu0 0.0
  %1324 = vmatmul.mubr.f32.gmra.mrb[0].mxu0 %v406
  %v1325 = vpop.f32.mrb[0].mxu0
  %v1326 = vadd.f32 %v279, %v1325
  %v1327 = vpop.f32.mrb[0].mxu0
  %1328 = vmatprep.mubr.f32.mxu0 0.0
  %1329 = vmatmul.mubr.f32.gmra.mrb[0].mxu0 %v409
  %v1330 = vpop.f32.mrb[0].mxu0
  %v1331 = vadd.f32 %v279, %v1330
  %v1332 = vpop.f32.mrb[0].mxu0
  %1333 = vmatprep.mubr.f32.mxu0 0.0
  %1334 = vmatmul.mubr.f32.gmra.mrb[0].mxu0 %v412
  %v1335 = vpop.f32.mrb[0].mxu0
  %v1336 = vadd.f32 %v279, %v1335
  %v1337 = vpop.f32.mrb[0].mxu0
  %1338 = vmatprep.mubr.f32.mxu0 0.0
  %1339 = vmatmul.mubr.f32.gmra.mrb[0].mxu0 %v415
  %v1340 = vpop.f32.mrb[0].mxu0
  %v1341 = vadd.f32 %v279, %v1340
  %v1342 = vpop.f32.mrb[0].mxu0
  %1343 = vmatprep.mubr.f32.mxu0 0.0
  %1344 = vmatmul.mubr.f32.gmra.mrb[0].mxu0 %v418
  %v1345 = vpop.f32.mrb[0].mxu0
  %v1346 = vadd.f32 %v279, %v1345
  %v1347 = vpop.f32.mrb[0].mxu0
  %1348 = vmatprep.mubr.f32.mxu0 0.0
  %1349 = vmatmul.mubr.f32.gmra.mrb[0].mxu0 %v421
  %v1350 = vpop.f32.mrb[0].mxu0
  %v1351 = vadd.f32 %v279, %v1350
  %v1352 = vpop.f32.mrb[0].mxu0
  %1353 = vmatprep.mubr.f32.mxu0 0.0
  %1354 = vmatmul.mubr.f32.gmra.mrb[0].mxu0 %v424
  %v1355 = vpop.f32.mrb[0].mxu0
  %v1356 = vadd.f32 %v279, %v1355
  %v1357 = vpop.f32.mrb[0].mxu0
  %1358 = vmatprep.mubr.f32.mxu0 0.0
  %1359 = vmatmul.mubr.f32.gmra.mrb[0].mxu0 %v427
  %v1360 = vpop.f32.mrb[0].mxu0
  %v1361 = vadd.f32 %v279, %v1360
  %v1362 = vpop.f32.mrb[0].mxu0
  %1363 = vmatprep.mubr.f32.mxu0 0.0
  %1364 = vmatmul.mubr.f32.gmra.mrb[0].mxu0 %v430
  %v1365 = vpop.f32.mrb[0].mxu0
  %v1366 = vadd.f32 %v279, %v1365
  %v1367 = vpop.f32.mrb[0].mxu0
  %1368 = vmatprep.mubr.f32.mxu0 0.0
  %1369 = vmatmul.mubr.f32.gmra.mrb[0].mxu0 %v433
  %v1370 = vpop.f32.mrb[0].mxu0
  %v1371 = vadd.f32 %v279, %v1370
  %v1372 = vpop.f32.mrb[0].mxu0
  %1373 = vmatprep.mubr.f32.mxu0 0.0
  %1374 = vmatmul.mubr.f32.gmra.mrb[0].mxu0 %v436
  %v1375 = vpop.f32.mrb[0].mxu0
  %v1376 = vadd.f32 %v279, %v1375
  %v1377 = vpop.f32.mrb[0].mxu0
  %1378 = vmatprep.mubr.f32.mxu0 0.0
  %1379 = vmatmul.mubr.f32.gmra.mrb[0].mxu0 %v439
  %v1380 = vpop.f32.mrb[0].mxu0
  %v1381 = vadd.f32 %v279, %v1380
  %v1382 = vpop.f32.mrb[0].mxu0
  %1383 = vmatprep.mubr.f32.mxu0 0.0
  %1384 = vmatmul.mubr.f32.gmra.mrb[0].mxu0 %v442
  %v1385 = vpop.f32.mrb[0].mxu0
  %v1386 = vadd.f32 %v279, %v1385
  %v1387 = vpop.f32.mrb[0].mxu0
  %1388 = vmatprep.mubr.f32.mxu0 0.0
  %1389 = vmatmul.mubr.f32.gmra.mrb[0].mxu0 %v445
  %v1390 = vpop.f32.mrb[0].mxu0
  %v1391 = vadd.f32 %v279, %v1390
  %v1392 = vpop.f32.mrb[0].mxu0
  %1393 = vmatprep.mubr.f32.mxu0 0.0
  %1394 = vmatmul.mubr.f32.gmra.mrb[0].mxu0 %v448
  %v1395 = vpop.f32.mrb[0].mxu0
  %v1396 = vadd.f32 %v279, %v1395
  %v1397 = vpop.f32.mrb[0].mxu0
  %1398 = vmatprep.mubr.f32.mxu0 0.0
  %1399 = vmatmul.mubr.f32.gmra.mrb[0].mxu0 %v451
  %v1400 = vpop.f32.mrb[0].mxu0
  %v1401 = vadd.f32 %v279, %v1400
  %v1402 = vpop.f32.mrb[0].mxu0
  %1403 = vmatprep.mubr.f32.mxu0 0.0
  %1404 = vmatmul.mubr.f32.gmra.mrb[0].mxu0 %v454
  %v1405 = vpop.f32.mrb[0].mxu0
  %v1406 = vadd.f32 %v279, %v1405
  %v1407 = vpop.f32.mrb[0].mxu0
  %1408 = vmatprep.mubr.f32.mxu0 0.0
  %1409 = vmatmul.mubr.f32.gmra.mrb[0].mxu0 %v457
  %v1410 = vpop.f32.mrb[0].mxu0
  %v1411 = vadd.f32 %v279, %v1410
  %v1412 = vpop.f32.mrb[0].mxu0
  %1413 = vmatprep.mubr.f32.mxu0 0.0
  %1414 = vmatmul.mubr.f32.gmra.mrb[0].mxu0 %v460
  %v1415 = vpop.f32.mrb[0].mxu0
  %v1416 = vadd.f32 %v279, %v1415
  %v1417 = vpop.f32.mrb[0].mxu0
  %1418 = vmatprep.mubr.f32.mxu0 0.0
  %1419 = vmatmul.mubr.f32.gmra.mrb[0].mxu0 %v463
  %v1420 = vpop.f32.mrb[0].mxu0
  %v1421 = vadd.f32 %v279, %v1420
  %v1422 = vpop.f32.mrb[0].mxu0
  %1423 = vmatprep.mubr.f32.mxu0 0.0
  %1424 = vmatmul.mubr.f32.gmra.mrb[0].mxu0 %v466
  %v1425 = vpop.f32.mrb[0].mxu0
  %v1426 = vadd.f32 %v279, %v1425
  %v1427 = vpop.f32.mrb[0].mxu0
  %1428 = vmatprep.mubr.f32.mxu0 0.0
  %1429 = vmatmul.mubr.f32.gmra.mrb[0].mxu0 %v469
  %v1430 = vpop.f32.mrb[0].mxu0
  %v1431 = vadd.f32 %v279, %v1430
  %v1432 = vpop.f32.mrb[0].mxu0
  %1433 = vmatprep.mubr.f32.mxu0 0.0
  %1434 = vmatmul.mubr.f32.gmra.mrb[0].mxu0 %v472
  %v1435 = vpop.f32.mrb[0].mxu0
  %v1436 = vadd.f32 %v279, %v1435
  %v1437 = vpop.f32.mrb[0].mxu0
  %1438 = vmatprep.mubr.f32.mxu0 0.0
  %1439 = vmatmul.mubr.f32.gmra.mrb[0].mxu0 %v475
  %v1440 = vpop.f32.mrb[0].mxu0
  %v1441 = vadd.f32 %v279, %v1440
  %v1442 = vpop.f32.mrb[0].mxu0
  %1443 = vmatprep.mubr.f32.mxu0 0.0
  %1444 = vmatmul.mubr.f32.gmra.mrb[0].mxu0 %v478
  %v1445 = vpop.f32.mrb[0].mxu0
  %v1446 = vadd.f32 %v279, %v1445
  %v1447 = vpop.f32.mrb[0].mxu0
  %1448 = vmatprep.mubr.f32.mxu0 0.0
  %1449 = vmatmul.mubr.f32.gmra.mrb[0].mxu0 %v481
  %v1450 = vpop.f32.mrb[0].mxu0
  %v1451 = vadd.f32 %v279, %v1450
  %v1452 = vpop.f32.mrb[0].mxu0
  %1453 = vmatprep.mubr.f32.mxu0 0.0
  %1454 = vmatmul.mubr.f32.gmra.mrb[0].mxu0 %v484
  %v1455 = vpop.f32.mrb[0].mxu0
  %v1456 = vadd.f32 %v279, %v1455
  %v1457 = vpop.f32.mrb[0].mxu0
  %1458 = vmatprep.mubr.f32.mxu0 0.0
  %1459 = vmatmul.mubr.f32.gmra.mrb[0].mxu0 %v487
  %v1460 = vpop.f32.mrb[0].mxu0
  %v1461 = vadd.f32 %v279, %v1460
  %v1462 = vpop.f32.mrb[0].mxu0
  %1463 = vmatprep.mubr.f32.mxu0 0.0
  %1464 = vmatmul.mubr.f32.gmra.mrb[0].mxu0 %v490
  %v1465 = vpop.f32.mrb[0].mxu0
  %v1466 = vadd.f32 %v279, %v1465
  %v1467 = vpop.f32.mrb[0].mxu0
  %1468 = vmatprep.mubr.f32.mxu0 0.0
  %1469 = vmatmul.mubr.f32.gmra.mrb[0].mxu0 %v493
  %v1470 = vpop.f32.mrb[0].mxu0
  %v1471 = vadd.f32 %v279, %v1470
  %v1472 = vpop.f32.mrb[0].mxu0
  %1473 = vmatprep.mubr.f32.mxu0 0.0
  %1474 = vmatmul.mubr.f32.gmra.mrb[0].mxu0 %v496
  %v1475 = vpop.f32.mrb[0].mxu0
  %v1476 = vadd.f32 %v279, %v1475
  %v1477 = vpop.f32.mrb[0].mxu0
  %1478 = vmatprep.mubr.f32.mxu0 0.0
  %1479 = vmatmul.mubr.f32.gmra.mrb[0].mxu0 %v499
  %v1480 = vpop.f32.mrb[0].mxu0
  %v1481 = vadd.f32 %v279, %v1480
  %v1482 = vpop.f32.mrb[0].mxu0
  %1483 = vmatprep.mubr.f32.mxu0 0.0
  %1484 = vmatmul.mubr.f32.gmra.mrb[0].mxu0 %v502
  %v1485 = vpop.f32.mrb[0].mxu0
  %v1486 = vadd.f32 %v279, %v1485
  %v1487 = vpop.f32.mrb[0].mxu0
  %1488 = vmatprep.mubr.f32.mxu0 0.0
  %1489 = vmatmul.mubr.f32.gmra.mrb[0].mxu0 %v505
  %v1490 = vpop.f32.mrb[0].mxu0
  %v1491 = vadd.f32 %v279, %v1490
  %v1492 = vpop.f32.mrb[0].mxu0
  %1493 = vmatprep.mubr.f32.mxu0 0.0
  %1494 = vmatmul.mubr.f32.gmra.mrb[0].mxu0 %v508
  %v1495 = vpop.f32.mrb[0].mxu0
  %v1496 = vadd.f32 %v279, %v1495
  %v1497 = vpop.f32.mrb[0].mxu0
  %1498 = vmatprep.mubr.f32.mxu0 0.0
  %1499 = vmatmul.mubr.f32.gmra.mrb[0].mxu0 %v511
  %v1500 = vpop.f32.mrb[0].mxu0
  %v1501 = vadd.f32 %v279, %v1500
  %v1502 = vpop.f32.mrb[0].mxu0
  %1503 = vmatprep.mubr.f32.mxu0 0.0
  %1504 = vmatmul.mubr.f32.gmra.mrb[0].mxu0 %v514
  %v1505 = vpop.f32.mrb[0].mxu0
  %v1506 = vadd.f32 %v279, %v1505
  %v1507 = vpop.f32.mrb[0].mxu0
  %1508 = vmatprep.mubr.f32.mxu0 0.0
  %1509 = vmatmul.mubr.f32.gmra.mrb[0].mxu0 %v517
  %v1510 = vpop.f32.mrb[0].mxu0
  %v1511 = vadd.f32 %v279, %v1510
  %v1512 = vpop.f32.mrb[0].mxu0
  %1513 = vmatprep.mubr.f32.mxu0 0.0
  %1514 = vmatmul.mubr.f32.gmra.mrb[0].mxu0 %v520
  %v1515 = vpop.f32.mrb[0].mxu0
  %v1516 = vadd.f32 %v279, %v1515
  %v1517 = vpop.f32.mrb[0].mxu0
  %1518 = vmatprep.mubr.f32.mxu0 0.0
  %1519 = vmatmul.mubr.f32.gmra.mrb[0].mxu0 %v523
  %v1520 = vpop.f32.mrb[0].mxu0
  %v1521 = vadd.f32 %v279, %v1520
  %v1522 = vpop.f32.mrb[0].mxu0
  %1523 = vmatprep.mubr.f32.mxu0 0.0
  %1524 = vmatmul.mubr.f32.gmra.mrb[0].mxu0 %v526
  %v1525 = vpop.f32.mrb[0].mxu0
  %v1526 = vadd.f32 %v279, %v1525
  %v1527 = vpop.f32.mrb[0].mxu0
  %1528 = vmatprep.mubr.f32.mxu0 0.0
  %1529 = vmatmul.mubr.f32.gmra.mrb[0].mxu0 %v529
  %v1530 = vpop.f32.mrb[0].mxu0
  %v1531 = vadd.f32 %v279, %v1530
  %v1532 = vpop.f32.mrb[0].mxu0
  %1533 = vmatprep.mubr.f32.mxu0 0.0
  %1534 = vmatmul.mubr.f32.gmra.mrb[0].mxu0 %v532
  %v1535 = vpop.f32.mrb[0].mxu0
  %v1536 = vadd.f32 %v279, %v1535
  %v1537 = vpop.f32.mrb[0].mxu0
  %1538 = vmatprep.mubr.f32.mxu0 0.0
  %1539 = vmatmul.mubr.f32.gmra.mrb[0].mxu0 %v535
  %v1540 = vpop.f32.mrb[0].mxu0
  %v1541 = vadd.f32 %v279, %v1540
  %v1542 = vpop.f32.mrb[0].mxu0
  %1543 = vmatprep.mubr.f32.mxu0 0.0
  %1544 = vmatmul.mubr.f32.gmra.mrb[0].mxu0 %v538
  %v1545 = vpop.f32.mrb[0].mxu0
  %v1546 = vadd.f32 %v279, %v1545
  %v1547 = vpop.f32.mrb[0].mxu0
  %1548 = vmatprep.mubr.f32.mxu0 0.0
  %1549 = vmatmul.mubr.f32.gmra.mrb[0].mxu0 %v541
  %v1550 = vpop.f32.mrb[0].mxu0
  %v1551 = vadd.f32 %v279, %v1550
  %v1552 = vpop.f32.mrb[0].mxu0
  %1553 = vmatprep.mubr.f32.mxu0 0.0
  %1554 = vmatmul.mubr.f32.gmra.mrb[0].mxu0 %v544
  %v1555 = vpop.f32.mrb[0].mxu0
  %v1556 = vadd.f32 %v279, %v1555
  %v1557 = vpop.f32.mrb[0].mxu0
  %1558 = vmatprep.mubr.f32.mxu0 0.0
  %1559 = vmatmul.mubr.f32.gmra.mrb[0].mxu0 %v547
  %v1560 = vpop.f32.mrb[0].mxu0
  %v1561 = vadd.f32 %v279, %v1560
  %v1562 = vpop.f32.mrb[0].mxu0
  %1563 = vmatprep.mubr.f32.mxu0 0.0
  %1564 = vmatmul.mubr.f32.gmra.mrb[0].mxu0 %v550
  %v1565 = vpop.f32.mrb[0].mxu0
  %v1566 = vadd.f32 %v279, %v1565
  %v1567 = vpop.f32.mrb[0].mxu0
  %1568 = vmatprep.mubr.f32.mxu0 0.0
  %1569 = vmatmul.mubr.f32.gmra.mrb[0].mxu0 %v553
  %v1570 = vpop.f32.mrb[0].mxu0
  %v1571 = vadd.f32 %v279, %v1570
  %v1572 = vpop.f32.mrb[0].mxu0
  %1573 = vmatprep.mubr.f32.mxu0 0.0
  %1574 = vmatmul.mubr.f32.gmra.mrb[0].mxu0 %v556
  %v1575 = vpop.f32.mrb[0].mxu0
  %v1576 = vadd.f32 %v279, %v1575
  %v1577 = vpop.f32.mrb[0].mxu0
  %1578 = vmatprep.mubr.f32.mxu0 0.0
  %1579 = vmatmul.mubr.f32.gmra.mrb[0].mxu0 %v559
  %v1580 = vpop.f32.mrb[0].mxu0
  %v1581 = vadd.f32 %v279, %v1580
  %v1582 = vpop.f32.mrb[0].mxu0
  %1583 = vmatprep.mubr.f32.mxu0 0.0
  %1584 = vmatmul.mubr.f32.gmra.mrb[0].mxu0 %v562
  %v1585 = vpop.f32.mrb[0].mxu0
  %v1586 = vadd.f32 %v279, %v1585
  %v1587 = vpop.f32.mrb[0].mxu0
  %1588 = vmatprep.mubr.f32.mxu0 0.0
  %1589 = vmatmul.mubr.f32.gmra.mrb[0].mxu0 %v565
  %v1590 = vpop.f32.mrb[0].mxu0
  %v1591 = vadd.f32 %v279, %v1590
  %v1592 = vpop.f32.mrb[0].mxu0
  %1593 = vmatprep.mubr.f32.mxu0 0.0
  %1594 = vmatmul.mubr.f32.gmra.mrb[0].mxu0 %v568
  %v1595 = vpop.f32.mrb[0].mxu0
  %v1596 = vadd.f32 %v279, %v1595
  %v1597 = vpop.f32.mrb[0].mxu0
  %1598 = vmatprep.mubr.f32.mxu0 0.0
  %1599 = vmatmul.mubr.f32.gmra.mrb[0].mxu0 %v571
  %v1600 = vpop.f32.mrb[0].mxu0
  %v1601 = vadd.f32 %v279, %v1600
  %v1602 = vpop.f32.mrb[0].mxu0
  %1603 = vmatprep.mubr.f32.mxu0 0.0
  %1604 = vmatmul.mubr.f32.gmra.mrb[0].mxu0 %v574
  %v1605 = vpop.f32.mrb[0].mxu0
  %v1606 = vadd.f32 %v279, %v1605
  %v1607 = vpop.f32.mrb[0].mxu0
  %1608 = vmatprep.mubr.f32.mxu0 0.0
  %1609 = vmatmul.mubr.f32.gmra.mrb[0].mxu0 %v577
  %v1610 = vpop.f32.mrb[0].mxu0
  %v1611 = vadd.f32 %v279, %v1610
  %v1612 = vpop.f32.mrb[0].mxu0
  %1613 = vmatprep.mubr.f32.mxu0 0.0
  %1614 = vmatmul.mubr.f32.gmra.mrb[0].mxu0 %v580
  %v1615 = vpop.f32.mrb[0].mxu0
  %v1616 = vadd.f32 %v279, %v1615
  %v1617 = vpop.f32.mrb[0].mxu0
  %1618 = vmatprep.mubr.f32.mxu0 0.0
  %1619 = vmatmul.mubr.f32.gmra.mrb[0].mxu0 %v583
  %v1620 = vpop.f32.mrb[0].mxu0
  %v1621 = vadd.f32 %v279, %v1620
  %v1622 = vpop.f32.mrb[0].mxu0
  %1623 = vmatprep.mubr.f32.mxu0 0.0
  %1624 = vmatmul.mubr.f32.gmra.mrb[0].mxu0 %v586
  %v1625 = vpop.f32.mrb[0].mxu0
  %v1626 = vadd.f32 %v279, %v1625
  %v1627 = vpop.f32.mrb[0].mxu0
  %1628 = vmatprep.mubr.f32.mxu0 0.0
  %1629 = vmatmul.mubr.f32.gmra.mrb[0].mxu0 %v589
  %v1630 = vpop.f32.mrb[0].mxu0
  %v1631 = vadd.f32 %v279, %v1630
  %v1632 = vpop.f32.mrb[0].mxu0
  %1633 = vmatprep.mubr.f32.mxu0 0.0
  %1634 = vmatmul.mubr.f32.gmra.mrb[0].mxu0 %v592
  %v1635 = vpop.f32.mrb[0].mxu0
  %v1636 = vadd.f32 %v279, %v1635
  %v1637 = vpop.f32.mrb[0].mxu0
  %1638 = vmatprep.mubr.f32.mxu0 0.0
  %1639 = vmatmul.mubr.f32.gmra.mrb[0].mxu0 %v595
  %v1640 = vpop.f32.mrb[0].mxu0
  %v1641 = vadd.f32 %v279, %v1640
  %v1642 = vpop.f32.mrb[0].mxu0
  %1643 = vmatprep.mubr.f32.mxu0 0.0
  %1644 = vmatmul.mubr.f32.gmra.mrb[0].mxu0 %v598
  %v1645 = vpop.f32.mrb[0].mxu0
  %v1646 = vadd.f32 %v279, %v1645
  %v1647 = vpop.f32.mrb[0].mxu0
  %1648 = vmatprep.mubr.f32.mxu0 0.0
  %1649 = vmatmul.mubr.f32.gmra.mrb[0].mxu0 %v601
  %v1650 = vpop.f32.mrb[0].mxu0
  %v1651 = vadd.f32 %v279, %v1650
  %v1652 = vpop.f32.mrb[0].mxu0
  %1653 = vmatprep.mubr.f32.mxu0 0.0
  %1654 = vmatmul.mubr.f32.gmra.mrb[0].mxu0 %v604
  %v1655 = vpop.f32.mrb[0].mxu0
  %v1656 = vadd.f32 %v279, %v1655
  %v1657 = vpop.f32.mrb[0].mxu0
  %1658 = vmatprep.mubr.f32.mxu0 0.0
  %1659 = vmatmul.mubr.f32.gmra.mrb[0].mxu0 %v607
  %v1660 = vpop.f32.mrb[0].mxu0
  %v1661 = vadd.f32 %v279, %v1660
  %v1662 = vpop.f32.mrb[0].mxu0
  %1663 = vmatprep.mubr.f32.mxu0 0.0
  %1664 = vmatmul.mubr.f32.gmra.mrb[0].mxu0 %v610
  %v1665 = vpop.f32.mrb[0].mxu0
  %v1666 = vadd.f32 %v279, %v1665
  %v1667 = vpop.f32.mrb[0].mxu0
  %1668 = vmatprep.mubr.f32.mxu0 0.0
  %1669 = vmatmul.mubr.f32.gmra.mrb[0].mxu0 %v613
  %v1670 = vpop.f32.mrb[0].mxu0
  %v1671 = vadd.f32 %v279, %v1670
  %v1672 = vpop.f32.mrb[0].mxu0
  %1673 = vmatprep.mubr.f32.mxu0 0.0
  %1674 = vmatmul.mubr.f32.gmra.mrb[0].mxu0 %v616
  %v1675 = vpop.f32.mrb[0].mxu0
  %v1676 = vadd.f32 %v279, %v1675
  %v1677 = vpop.f32.mrb[0].mxu0
  %1678 = vmatprep.mubr.f32.mxu0 0.0
  %1679 = vmatmul.mubr.f32.gmra.mrb[0].mxu0 %v619
  %v1680 = vpop.f32.mrb[0].mxu0
  %v1681 = vadd.f32 %v279, %v1680
  %v1682 = vpop.f32.mrb[0].mxu0
  %1683 = vmatprep.mubr.f32.mxu0 0.0
  %1684 = vmatmul.mubr.f32.gmra.mrb[0].mxu0 %v622
  %v1685 = vpop.f32.mrb[0].mxu0
  %v1686 = vadd.f32 %v279, %v1685
  %v1687 = vpop.f32.mrb[0].mxu0
  %1688 = vmatprep.mubr.f32.mxu0 0.0
  %1689 = vmatmul.mubr.f32.gmra.mrb[0].mxu0 %v625
  %v1690 = vpop.f32.mrb[0].mxu0
  %v1691 = vadd.f32 %v279, %v1690
  %v1692 = vpop.f32.mrb[0].mxu0
  %1693 = vmatprep.mubr.f32.mxu0 0.0
  %1694 = vmatmul.mubr.f32.gmra.mrb[0].mxu0 %v628
  %v1695 = vpop.f32.mrb[0].mxu0
  %v1696 = vadd.f32 %v279, %v1695
  %v1697 = vpop.f32.mrb[0].mxu0
  %1698 = vmatprep.mubr.f32.mxu0 0.0
  %1699 = vmatmul.mubr.f32.gmra.mrb[0].mxu0 %v631
  %v1700 = vpop.f32.mrb[0].mxu0
  %v1701 = vadd.f32 %v279, %v1700
  %v1702 = vpop.f32.mrb[0].mxu0
  %1703 = vmatprep.mubr.f32.mxu0 0.0
  %1704 = vmatmul.mubr.f32.gmra.mrb[0].mxu0 %v634
  %v1705 = vpop.f32.mrb[0].mxu0
  %v1706 = vadd.f32 %v279, %v1705
  %v1707 = vpop.f32.mrb[0].mxu0
  %1708 = vmatprep.mubr.f32.mxu0 0.0
  %1709 = vmatmul.mubr.f32.gmra.mrb[0].mxu0 %v637
  %v1710 = vpop.f32.mrb[0].mxu0
  %v1711 = vadd.f32 %v279, %v1710
  %v1712 = vpop.f32.mrb[0].mxu0
  %1713 = vmatprep.mubr.f32.mxu0 0.0
  %1714 = vmatmul.mubr.f32.gmra.mrb[0].mxu0 %v640
  %v1715 = vpop.f32.mrb[0].mxu0
  %v1716 = vadd.f32 %v279, %v1715
  %v1717 = vpop.f32.mrb[0].mxu0
  %1718 = vmatprep.mubr.f32.mxu0 0.0
  %1719 = vmatmul.mubr.f32.gmra.mrb[0].mxu0 %v643
  %v1720 = vpop.f32.mrb[0].mxu0
  %v1721 = vadd.f32 %v279, %v1720
  %v1722 = vpop.f32.mrb[0].mxu0
  %1723 = vmatprep.mubr.f32.mxu0 0.0
  %1724 = vmatmul.mubr.f32.gmra.mrb[0].mxu0 %v646
  %v1725 = vpop.f32.mrb[0].mxu0
  %v1726 = vadd.f32 %v279, %v1725
  %v1727 = vpop.f32.mrb[0].mxu0
  %1728 = vmatprep.mubr.f32.mxu0 0.0
  %1729 = vmatmul.mubr.f32.gmra.mrb[0].mxu0 %v649
  %v1730 = vpop.f32.mrb[0].mxu0
  %v1731 = vadd.f32 %v279, %v1730
  %v1732 = vpop.f32.mrb[0].mxu0
  %1733 = vmatprep.mubr.f32.mxu0 0.0
  %1734 = vmatmul.mubr.f32.gmra.mrb[0].mxu0 %v652
  %v1735 = vpop.f32.mrb[0].mxu0
  %v1736 = vadd.f32 %v279, %v1735
  %v1737 = vpop.f32.mrb[0].mxu0
  %1738 = vmatprep.mubr.f32.mxu0 0.0
  %1739 = vmatmul.mubr.f32.gmra.mrb[0].mxu0 %v655
  %v1740 = vpop.f32.mrb[0].mxu0
  %v1741 = vadd.f32 %v279, %v1740
  %v1742 = vpop.f32.mrb[0].mxu0
  %1743 = vmatprep.mubr.f32.mxu0 0.0
  %1744 = vmatmul.mubr.f32.gmra.mrb[0].mxu0 %v658
  %v1745 = vpop.f32.mrb[0].mxu0
  %v1746 = vadd.f32 %v279, %v1745
  %v1747 = vpop.f32.mrb[0].mxu0
  %1748 = vmatprep.mubr.f32.mxu0 0.0
  %1749 = vmatmul.mubr.f32.gmra.mrb[0].mxu0 %v661
  %v1750 = vpop.f32.mrb[0].mxu0
  %v1751 = vadd.f32 %v279, %v1750
  %v1752 = vpop.f32.mrb[0].mxu0
  %1753 = vmatprep.mubr.f32.mxu0 0.0
  %1754 = vmatmul.mubr.f32.gmra.mrb[0].mxu0 %v664
  %v1755 = vpop.f32.mrb[0].mxu0
  %v1756 = vadd.f32 %v279, %v1755
  %v1757 = vpop.f32.mrb[0].mxu0
  %1758 = vmatprep.mubr.f32.mxu0 0.0
  %1759 = vmatmul.mubr.f32.gmra.mrb[0].mxu0 %v667
  %v1760 = vpop.f32.mrb[0].mxu0
  %v1761 = vadd.f32 %v279, %v1760
  %v1762 = vpop.f32.mrb[0].mxu0
  %1763 = vmatprep.mubr.f32.mxu0 0.0
  %1764 = vmatmul.mubr.f32.gmra.mrb[0].mxu0 %v670
  %v1765 = vpop.f32.mrb[0].mxu0
  %v1766 = vadd.f32 %v279, %v1765
  %v1767 = vpop.f32.mrb[0].mxu0
  %1768 = vmatprep.mubr.f32.mxu0 0.0
  %1769 = vmatmul.mubr.f32.gmra.mrb[0].mxu0 %v673
  %v1770 = vpop.f32.mrb[0].mxu0
  %v1771 = vadd.f32 %v279, %v1770
  %v1772 = vpop.f32.mrb[0].mxu0
  %1773 = vmatprep.mubr.f32.mxu0 0.0
  %1774 = vmatmul.mubr.f32.gmra.mrb[0].mxu0 %v676
  %v1775 = vpop.f32.mrb[0].mxu0
  %v1776 = vadd.f32 %v279, %v1775
  %v1777 = vpop.f32.mrb[0].mxu0
  %1778 = vmatprep.mubr.f32.mxu0 0.0
  %1779 = vmatmul.mubr.f32.gmra.mrb[0].mxu0 %v679
  %v1780 = vpop.f32.mrb[0].mxu0
  %v1781 = vadd.f32 %v279, %v1780
  %v1782 = vpop.f32.mrb[0].mxu0
  %1783 = vmatprep.mubr.f32.mxu0 0.0
  %1784 = vmatmul.mubr.f32.gmra.mrb[0].mxu0 %v682
  %v1785 = vpop.f32.mrb[0].mxu0
  %v1786 = vadd.f32 %v279, %v1785
  %v1787 = vpop.f32.mrb[0].mxu0
  %1788 = vmatprep.mubr.f32.mxu0 0.0
  %1789 = vmatmul.mubr.f32.gmra.mrb[0].mxu0 %v685
  %v1790 = vpop.f32.mrb[0].mxu0
  %v1791 = vadd.f32 %v279, %v1790
  %v1792 = vpop.f32.mrb[0].mxu0
  %1793 = vmatprep.mubr.f32.mxu0 0.0
  %1794 = vmatmul.mubr.f32.gmra.mrb[0].mxu0 %v688
  %v1795 = vpop.f32.mrb[0].mxu0
  %v1796 = vadd.f32 %v279, %v1795
  %v1797 = vpop.f32.mrb[0].mxu0
  %1798 = vmatprep.mubr.f32.mxu0 0.0
  %1799 = vmatmul.mubr.f32.gmra.mrb[0].mxu0 %v691
  %v1800 = vpop.f32.mrb[0].mxu0
  %v1801 = vadd.f32 %v279, %v1800
  %v1802 = vpop.f32.mrb[0].mxu0
  %1803 = vmatprep.mubr.f32.mxu0 0.0
  %1804 = vmatmul.mubr.f32.gmra.mrb[0].mxu0 %v694
  %v1805 = vpop.f32.mrb[0].mxu0
  %v1806 = vadd.f32 %v279, %v1805
  %v1807 = vpop.f32.mrb[0].mxu0
  %1808 = vmatprep.mubr.f32.mxu0 0.0
  %1809 = vmatmul.mubr.f32.gmra.mrb[0].mxu0 %v697
  %v1810 = vpop.f32.mrb[0].mxu0
  %v1811 = vadd.f32 %v279, %v1810
  %v1812 = vpop.f32.mrb[0].mxu0
  %1813 = vmatprep.mubr.f32.mxu0 0.0
  %1814 = vmatmul.mubr.f32.gmra.mrb[0].mxu0 %v700
  %v1815 = vpop.f32.mrb[0].mxu0
  %v1816 = vadd.f32 %v279, %v1815
  %v1817 = vpop.f32.mrb[0].mxu0
  %1818 = vmatprep.mubr.f32.mxu0 0.0
  %1819 = vmatmul.mubr.f32.gmra.mrb[0].mxu0 %v703
  %v1820 = vpop.f32.mrb[0].mxu0
  %v1821 = vadd.f32 %v279, %v1820
  %v1822 = vpop.f32.mrb[0].mxu0
  %1823 = vmatprep.mubr.f32.mxu0 0.0
  %1824 = vmatmul.mubr.f32.gmra.mrb[0].mxu0 %v706
  %v1825 = vpop.f32.mrb[0].mxu0
  %v1826 = vadd.f32 %v279, %v1825
  %v1827 = vpop.f32.mrb[0].mxu0
  %1828 = vmatprep.mubr.f32.mxu0 0.0
  %1829 = vmatmul.mubr.f32.gmra.mrb[0].mxu0 %v709
  %v1830 = vpop.f32.mrb[0].mxu0
  %v1831 = vadd.f32 %v279, %v1830
  %v1832 = vpop.f32.mrb[0].mxu0
  %1833 = vmatprep.mubr.f32.mxu0 0.0
  %1834 = vmatmul.mubr.f32.gmra.mrb[0].mxu0 %v712
  %v1835 = vpop.f32.mrb[0].mxu0
  %v1836 = vadd.f32 %v279, %v1835
  %v1837 = vpop.f32.mrb[0].mxu0
  %1838 = vmatprep.mubr.f32.mxu0 0.0
  %1839 = vmatmul.mubr.f32.gmra.mrb[0].mxu0 %v715
  %v1840 = vpop.f32.mrb[0].mxu0
  %v1841 = vadd.f32 %v279, %v1840
  %v1842 = vpop.f32.mrb[0].mxu0
  %1843 = vmatprep.mubr.f32.mxu0 0.0
  %1844 = vmatmul.mubr.f32.gmra.mrb[0].mxu0 %v718
  %v1845 = vpop.f32.mrb[0].mxu0
  %v1846 = vadd.f32 %v279, %v1845
  %v1847 = vpop.f32.mrb[0].mxu0
  %1848 = vmatprep.mubr.f32.mxu0 0.0
  %1849 = vmatmul.mubr.f32.gmra.mrb[0].mxu0 %v721
  %v1850 = vpop.f32.mrb[0].mxu0
  %v1851 = vadd.f32 %v279, %v1850
  %v1852 = vpop.f32.mrb[0].mxu0
  %1853 = vmatprep.mubr.f32.mxu0 0.0
  %1854 = vmatmul.mubr.f32.gmra.mrb[0].mxu0 %v724
  %v1855 = vpop.f32.mrb[0].mxu0
  %v1856 = vadd.f32 %v279, %v1855
  %v1857 = vpop.f32.mrb[0].mxu0
  %1858 = vmatprep.mubr.f32.mxu0 0.0
  %1859 = vmatmul.mubr.f32.gmra.mrb[0].mxu0 %v727
  %v1860 = vpop.f32.mrb[0].mxu0
  %v1861 = vadd.f32 %v279, %v1860
  %v1862 = vpop.f32.mrb[0].mxu0
  %1863 = vmatprep.mubr.f32.mxu0 0.0
  %1864 = vmatmul.mubr.f32.gmra.mrb[0].mxu0 %v730
  %v1865 = vpop.f32.mrb[0].mxu0
  %v1866 = vadd.f32 %v279, %v1865
  %v1867 = vpop.f32.mrb[0].mxu0
  %1868 = vmatprep.mubr.f32.mxu0 0.0
  %1869 = vmatmul.mubr.f32.gmra.mrb[0].mxu0 %v733
  %v1870 = vpop.f32.mrb[0].mxu0
  %v1871 = vadd.f32 %v279, %v1870
  %v1872 = vpop.f32.mrb[0].mxu0
  %1873 = vmatprep.mubr.f32.mxu0 0.0
  %1874 = vmatmul.mubr.f32.gmra.mrb[0].mxu0 %v736
  %v1875 = vpop.f32.mrb[0].mxu0
  %v1876 = vadd.f32 %v279, %v1875
  %v1877 = vpop.f32.mrb[0].mxu0
  %1878 = vmatprep.mubr.f32.mxu0 0.0
  %1879 = vmatmul.mubr.f32.gmra.mrb[0].mxu0 %v739
  %v1880 = vpop.f32.mrb[0].mxu0
  %v1881 = vadd.f32 %v279, %v1880
  %v1882 = vpop.f32.mrb[0].mxu0
  %1883 = vmatprep.mubr.f32.mxu0 0.0
  %1884 = vmatmul.mubr.f32.gmra.mrb[0].mxu0 %v742
  %v1885 = vpop.f32.mrb[0].mxu0
  %v1886 = vadd.f32 %v279, %v1885
  %v1887 = vpop.f32.mrb[0].mxu0
  %1888 = vmatprep.mubr.f32.mxu0 0.0
  %1889 = vmatmul.mubr.f32.gmra.mrb[0].mxu0 %v745
  %v1890 = vpop.f32.mrb[0].mxu0
  %v1891 = vadd.f32 %v279, %v1890
  %v1892 = vpop.f32.mrb[0].mxu0
  %1893 = vmatprep.mubr.f32.mxu0 0.0
  %1894 = vmatmul.mubr.f32.gmra.mrb[0].mxu0 %v748
  %v1895 = vpop.f32.mrb[0].mxu0
  %v1896 = vadd.f32 %v279, %v1895
  %v1897 = vpop.f32.mrb[0].mxu0
  %1898 = vmatprep.mubr.f32.mxu0 0.0
  %1899 = vmatmul.mubr.f32.gmra.mrb[0].mxu0 %v751
  %v1900 = vpop.f32.mrb[0].mxu0
  %v1901 = vadd.f32 %v279, %v1900
  %v1902 = vpop.f32.mrb[0].mxu0
  %1903 = vmatprep.mubr.f32.mxu0 0.0
  %1904 = vmatmul.mubr.f32.gmra.mrb[0].mxu0 %v754
  %v1905 = vpop.f32.mrb[0].mxu0
  %v1906 = vadd.f32 %v279, %v1905
  %v1907 = vpop.f32.mrb[0].mxu0
  %1908 = vmatprep.mubr.f32.mxu0 0.0
  %1909 = vmatmul.mubr.f32.gmra.mrb[0].mxu0 %v757
  %v1910 = vpop.f32.mrb[0].mxu0
  %v1911 = vadd.f32 %v279, %v1910
  %v1912 = vpop.f32.mrb[0].mxu0
  %1913 = vmatprep.mubr.f32.mxu0 0.0
  %1914 = vmatmul.mubr.f32.gmra.mrb[0].mxu0 %v760
  %v1915 = vpop.f32.mrb[0].mxu0
  %v1916 = vadd.f32 %v279, %v1915
  %v1917 = vpop.f32.mrb[0].mxu0
  %1918 = vmatprep.mubr.f32.mxu0 0.0
  %1919 = vmatmul.mubr.f32.gmra.mrb[0].mxu0 %v763
  %v1920 = vpop.f32.mrb[0].mxu0
  %v1921 = vadd.f32 %v279, %v1920
  %v1922 = vpop.f32.mrb[0].mxu0
  %1923 = vmatprep.mubr.f32.mxu0 0.0
  %1924 = vmatmul.mubr.f32.gmra.mrb[0].mxu0 %v766
  %v1925 = vpop.f32.mrb[0].mxu0
  %v1926 = vadd.f32 %v279, %v1925
  %v1927 = vpop.f32.mrb[0].mxu0
  %1928 = vmatprep.mubr.f32.mxu0 0.0
  %1929 = vmatmul.mubr.f32.gmra.mrb[0].mxu0 %v769
  %v1930 = vpop.f32.mrb[0].mxu0
  %v1931 = vadd.f32 %v279, %v1930
  %v1932 = vpop.f32.mrb[0].mxu0
  %1933 = vmatprep.mubr.f32.mxu0 0.0
  %1934 = vmatmul.mubr.f32.gmra.mrb[0].mxu0 %v772
  %v1935 = vpop.f32.mrb[0].mxu0
  %v1936 = vadd.f32 %v279, %v1935
  %v1937 = vpop.f32.mrb[0].mxu0
  %1938 = vmatprep.mubr.f32.mxu0 0.0
  %1939 = vmatmul.mubr.f32.gmra.mrb[0].mxu0 %v775
  %v1940 = vpop.f32.mrb[0].mxu0
  %v1941 = vadd.f32 %v279, %v1940
  %v1942 = vpop.f32.mrb[0].mxu0
  %1943 = vmatprep.mubr.f32.mxu0 0.0
  %1944 = vmatmul.mubr.f32.gmra.mrb[0].mxu0 %v778
  %v1945 = vpop.f32.mrb[0].mxu0
  %v1946 = vadd.f32 %v279, %v1945
  %v1947 = vpop.f32.mrb[0].mxu0
  %1948 = vmatprep.mubr.f32.mxu0 0.0
  %1949 = vmatmul.mubr.f32.gmra.mrb[0].mxu0 %v781
  %v1950 = vpop.f32.mrb[0].mxu0
  %v1951 = vadd.f32 %v279, %v1950
  %v1952 = vpop.f32.mrb[0].mxu0
  %1953 = vmatprep.mubr.f32.mxu0 0.0
  %1954 = vmatmul.mubr.f32.gmra.mrb[0].mxu0 %v784
  %v1955 = vpop.f32.mrb[0].mxu0
  %v1956 = vadd.f32 %v279, %v1955
  %v1957 = vpop.f32.mrb[0].mxu0
  %1958 = vmatprep.mubr.f32.mxu0 0.0
  %1959 = vmatmul.mubr.f32.gmra.mrb[0].mxu0 %v787
  %v1960 = vpop.f32.mrb[0].mxu0
  %v1961 = vadd.f32 %v279, %v1960
  %v1962 = vpop.f32.mrb[0].mxu0
  %1963 = vmatprep.mubr.f32.mxu0 0.0
  %1964 = vmatmul.mubr.f32.gmra.mrb[0].mxu0 %v790
  %v1965 = vpop.f32.mrb[0].mxu0
  %v1966 = vadd.f32 %v279, %v1965
  %v1967 = vpop.f32.mrb[0].mxu0
  %1968 = vmatprep.mubr.f32.mxu0 0.0
  %1969 = vmatmul.mubr.f32.gmra.mrb[0].mxu0 %v793
  %v1970 = vpop.f32.mrb[0].mxu0
  %v1971 = vadd.f32 %v279, %v1970
  %v1972 = vpop.f32.mrb[0].mxu0
  %1973 = vmatprep.mubr.f32.mxu0 0.0
  %1974 = vmatmul.mubr.f32.gmra.mrb[0].mxu0 %v796
  %v1975 = vpop.f32.mrb[0].mxu0
  %v1976 = vadd.f32 %v279, %v1975
  %v1977 = vpop.f32.mrb[0].mxu0
  %1978 = vmatprep.mubr.f32.mxu0 0.0
  %1979 = vmatmul.mubr.f32.gmra.mrb[0].mxu0 %v799
  %v1980 = vpop.f32.mrb[0].mxu0
  %v1981 = vadd.f32 %v279, %v1980
  %v1982 = vpop.f32.mrb[0].mxu0
  %1983 = vmatprep.mubr.f32.mxu0 0.0
  %1984 = vmatmul.mubr.f32.gmra.mrb[0].mxu0 %v802
  %v1985 = vpop.f32.mrb[0].mxu0
  %v1986 = vadd.f32 %v279, %v1985
  %v1987 = vpop.f32.mrb[0].mxu0
  %1988 = vmatprep.mubr.f32.mxu0 0.0
  %1989 = vmatmul.mubr.f32.gmra.mrb[0].mxu0 %v805
  %v1990 = vpop.f32.mrb[0].mxu0
  %v1991 = vadd.f32 %v279, %v1990
  %v1992 = vpop.f32.mrb[0].mxu0
  %1993 = vmatprep.mubr.f32.mxu0 0.0
  %1994 = vmatmul.mubr.f32.gmra.mrb[0].mxu0 %v808
  %v1995 = vpop.f32.mrb[0].mxu0
  %v1996 = vadd.f32 %v279, %v1995
  %v1997 = vpop.f32.mrb[0].mxu0
  %1998 = vmatprep.mubr.f32.mxu0 0.0
  %1999 = vmatmul.mubr.f32.gmra.mrb[0].mxu0 %v811
  %v2000 = vpop.f32.mrb[0].mxu0
  %v2001 = vadd.f32 %v279, %v2000
  %v2002 = vpop.f32.mrb[0].mxu0
  %2003 = vmatprep.mubr.f32.mxu0 0.0
  %2004 = vmatmul.mubr.f32.gmra.mrb[0].mxu0 %v814
  %v2005 = vpop.f32.mrb[0].mxu0
  %v2006 = vadd.f32 %v279, %v2005
  %v2007 = vpop.f32.mrb[0].mxu0
  %2008 = vmatprep.mubr.f32.mxu0 0.0
  %2009 = vmatmul.mubr.f32.gmra.mrb[0].mxu0 %v817
  %v2010 = vpop.f32.mrb[0].mxu0
  %v2011 = vadd.f32 %v279, %v2010
  %v2012 = vpop.f32.mrb[0].mxu0
  %2013 = vmatprep.mubr.f32.mxu0 0.0
  %2014 = vmatmul.mubr.f32.gmra.mrb[0].mxu0 %v820
  %v2015 = vpop.f32.mrb[0].mxu0
  %v2016 = vadd.f32 %v279, %v2015
  %v2017 = vpop.f32.mrb[0].mxu0
  %2018 = vmatprep.mubr.f32.mxu0 0.0
  %2019 = vmatmul.mubr.f32.gmra.mrb[0].mxu0 %v823
  %v2020 = vpop.f32.mrb[0].mxu0
  %v2021 = vadd.f32 %v279, %v2020
  %v2022 = vpop.f32.mrb[0].mxu0
  %2023 = vmatprep.mubr.f32.mxu0 0.0
  %2024 = vmatmul.mubr.f32.gmra.mrb[0].mxu0 %v826
  %v2025 = vpop.f32.mrb[0].mxu0
  %v2026 = vadd.f32 %v279, %v2025
  %v2027 = vpop.f32.mrb[0].mxu0
  %2028 = vmatprep.mubr.f32.mxu0 0.0
  %2029 = vmatmul.mubr.f32.gmra.mrb[0].mxu0 %v829
  %v2030 = vpop.f32.mrb[0].mxu0
  %v2031 = vadd.f32 %v279, %v2030
  %v2032 = vpop.f32.mrb[0].mxu0
  %2033 = vmatprep.mubr.f32.mxu0 0.0
  %2034 = vmatmul.mubr.f32.gmra.mrb[0].mxu0 %v832
  %v2035 = vpop.f32.mrb[0].mxu0
  %v2036 = vadd.f32 %v279, %v2035
  %v2037 = vpop.f32.mrb[0].mxu0
  %2038 = vmatprep.mubr.f32.mxu0 0.0
  %2039 = vmatmul.mubr.f32.gmra.mrb[0].mxu0 %v835
  %v2040 = vpop.f32.mrb[0].mxu0
  %v2041 = vadd.f32 %v279, %v2040
  %v2042 = vpop.f32.mrb[0].mxu0
  %2043 = vmatprep.mubr.f32.mxu0 0.0
  %2044 = vmatmul.mubr.f32.gmra.mrb[0].mxu0 %v838
  %v2045 = vpop.f32.mrb[0].mxu0
  %v2046 = vadd.f32 %v279, %v2045
  %v2047 = vpop.f32.mrb[0].mxu0
  %2048 = vmatprep.mubr.f32.mxu0 0.0
  %2049 = vmatmul.mubr.f32.gmra.mrb[0].mxu0 %v841
  %v2050 = vpop.f32.mrb[0].mxu0
  %v2051 = vadd.f32 %v279, %v2050
  %v2052 = vpop.f32.mrb[0].mxu0
  %2053 = vmatprep.mubr.f32.mxu0 0.0
  %2054 = vmatmul.mubr.f32.gmra.mrb[0].mxu0 %v844
  %v2055 = vpop.f32.mrb[0].mxu0
  %v2056 = vadd.f32 %v279, %v2055
  %v2057 = vpop.f32.mrb[0].mxu0
  %2058 = vmatprep.mubr.f32.mxu0 0.0
  %2059 = vmatmul.mubr.f32.gmra.mrb[0].mxu0 %v847
  %v2060 = vpop.f32.mrb[0].mxu0
  %v2061 = vadd.f32 %v279, %v2060
  %v2062 = vpop.f32.mrb[0].mxu0
  %2063 = vmatprep.mubr.f32.mxu0 0.0
  %2064 = vmatmul.mubr.f32.gmra.mrb[0].mxu0 %v850
  %v2065 = vpop.f32.mrb[0].mxu0
  %v2066 = vadd.f32 %v279, %v2065
  %v2067 = vpop.f32.mrb[0].mxu0
  %2068 = vmatprep.mubr.f32.mxu0 0.0
  %2069 = vmatmul.mubr.f32.gmra.mrb[0].mxu0 %v853
  %v2070 = vpop.f32.mrb[0].mxu0
  %v2071 = vadd.f32 %v279, %v2070
  %v2072 = vpop.f32.mrb[0].mxu0
  %2073 = vmatprep.mubr.f32.mxu0 0.0
  %2074 = vmatmul.mubr.f32.gmra.mrb[0].mxu0 %v856
  %v2075 = vpop.f32.mrb[0].mxu0
  %v2076 = vadd.f32 %v279, %v2075
  %v2077 = vpop.f32.mrb[0].mxu0
  %2078 = vmatprep.mubr.f32.mxu0 0.0
  %2079 = vmatmul.mubr.f32.gmra.mrb[0].mxu0 %v859
  %v2080 = vpop.f32.mrb[0].mxu0
  %v2081 = vadd.f32 %v279, %v2080
  %v2082 = vpop.f32.mrb[0].mxu0
  %2083 = vmatprep.mubr.f32.mxu0 0.0
  %2084 = vmatmul.mubr.f32.gmra.mrb[0].mxu0 %v862
  %v2085 = vpop.f32.mrb[0].mxu0
  %v2086 = vadd.f32 %v279, %v2085
  %v2087 = vpop.f32.mrb[0].mxu0
  %2088 = vmatprep.mubr.f32.mxu0 0.0
  %2089 = vmatmul.mubr.f32.gmra.mrb[0].mxu0 %v865
  %v2090 = vpop.f32.mrb[0].mxu0
  %v2091 = vadd.f32 %v279, %v2090
  %v2092 = vpop.f32.mrb[0].mxu0
  %2093 = vmatprep.mubr.f32.mxu0 0.0
  %2094 = vmatmul.mubr.f32.gmra.mrb[0].mxu0 %v868
  %v2095 = vpop.f32.mrb[0].mxu0
  %v2096 = vadd.f32 %v279, %v2095
  %v2097 = vpop.f32.mrb[0].mxu0
  %2098 = vmatprep.mubr.f32.mxu0 0.0
  %2099 = vmatmul.mubr.f32.gmra.mrb[0].mxu0 %v871
  %v2100 = vpop.f32.mrb[0].mxu0
  %v2101 = vadd.f32 %v279, %v2100
  %v2102 = vpop.f32.mrb[0].mxu0
  %2103 = vmatprep.mubr.f32.mxu0 0.0
  %2104 = vmatmul.mubr.f32.gmra.mrb[0].mxu0 %v874
  %v2105 = vpop.f32.mrb[0].mxu0
  %v2106 = vadd.f32 %v279, %v2105
  %v2107 = vpop.f32.mrb[0].mxu0
  %2108 = vmatprep.mubr.f32.mxu0 0.0
  %2109 = vmatmul.mubr.f32.gmra.mrb[0].mxu0 %v877
  %v2110 = vpop.f32.mrb[0].mxu0
  %v2111 = vadd.f32 %v279, %v2110
  %v2112 = vpop.f32.mrb[0].mxu0
  %2113 = vmatprep.mubr.f32.mxu0 0.0
  %2114 = vmatmul.mubr.f32.gmra.mrb[0].mxu0 %v880
  %v2115 = vpop.f32.mrb[0].mxu0
  %v2116 = vadd.f32 %v279, %v2115
  %v2117 = vpop.f32.mrb[0].mxu0
  %2118 = vmatprep.mubr.f32.mxu0 0.0
  %2119 = vmatmul.mubr.f32.gmra.mrb[0].mxu0 %v883
  %v2120 = vpop.f32.mrb[0].mxu0
  %v2121 = vadd.f32 %v279, %v2120
  %v2122 = vpop.f32.mrb[0].mxu0
  %2123 = vmatprep.mubr.f32.mxu0 0.0
  %2124 = vmatmul.mubr.f32.gmra.mrb[0].mxu0 %v886
  %v2125 = vpop.f32.mrb[0].mxu0
  %v2126 = vadd.f32 %v279, %v2125
  %v2127 = vpop.f32.mrb[0].mxu0
  %2128 = vmatprep.mubr.f32.mxu0 0.0
  %2129 = vmatmul.mubr.f32.gmra.mrb[0].mxu0 %v889
  %v2130 = vpop.f32.mrb[0].mxu0
  %v2131 = vadd.f32 %v279, %v2130
  %v2132 = vpop.f32.mrb[0].mxu0
  %2133 = vmatprep.mubr.f32.mxu0 0.0
  %2134 = vmatmul.mubr.f32.gmra.mrb[0].mxu0 %v892
  %v2135 = vpop.f32.mrb[0].mxu0
  %v2136 = vadd.f32 %v279, %v2135
  %v2137 = vpop.f32.mrb[0].mxu0
  %2138 = vmatprep.mubr.f32.mxu0 0.0
  %2139 = vmatmul.mubr.f32.gmra.mrb[0].mxu0 %v895
  %v2140 = vpop.f32.mrb[0].mxu0
  %v2141 = vadd.f32 %v279, %v2140
  %v2142 = vpop.f32.mrb[0].mxu0
  %2143 = vmatprep.mubr.f32.mxu0 0.0
  %2144 = vmatmul.mubr.f32.gmra.mrb[0].mxu0 %v898
  %v2145 = vpop.f32.mrb[0].mxu0
  %v2146 = vadd.f32 %v279, %v2145
  %v2147 = vpop.f32.mrb[0].mxu0
  %2148 = vmatprep.mubr.f32.mxu0 0.0
  %2149 = vmatmul.mubr.f32.gmra.mrb[0].mxu0 %v901
  %v2150 = vpop.f32.mrb[0].mxu0
  %v2151 = vadd.f32 %v279, %v2150
  %v2152 = vpop.f32.mrb[0].mxu0
  %2153 = vmatprep.mubr.f32.mxu0 0.0
  %2154 = vmatmul.mubr.f32.gmra.mrb[0].mxu0 %v904
  %v2155 = vpop.f32.mrb[0].mxu0
  %v2156 = vadd.f32 %v279, %v2155
  %v2157 = vpop.f32.mrb[0].mxu0
  %2158 = vmatprep.mubr.f32.mxu0 0.0
  %2159 = vmatmul.mubr.f32.gmra.mrb[0].mxu0 %v907
  %v2160 = vpop.f32.mrb[0].mxu0
  %v2161 = vadd.f32 %v279, %v2160
  %v2162 = vpop.f32.mrb[0].mxu0
  %2163 = vmatprep.mubr.f32.mxu0 0.0
  %2164 = vmatmul.mubr.f32.gmra.mrb[0].mxu0 %v910
  %v2165 = vpop.f32.mrb[0].mxu0
  %v2166 = vadd.f32 %v279, %v2165
  %v2167 = vpop.f32.mrb[0].mxu0
  %2168 = vmatprep.mubr.f32.mxu0 0.0
  %2169 = vmatmul.mubr.f32.gmra.mrb[0].mxu0 %v913
  %v2170 = vpop.f32.mrb[0].mxu0
  %v2171 = vadd.f32 %v279, %v2170
  %v2172 = vpop.f32.mrb[0].mxu0
  %2173 = vmatprep.mubr.f32.mxu0 0.0
  %2174 = vmatmul.mubr.f32.gmra.mrb[0].mxu0 %v916
  %v2175 = vpop.f32.mrb[0].mxu0
  %v2176 = vadd.f32 %v279, %v2175
  %v2177 = vpop.f32.mrb[0].mxu0
  %2178 = vmatprep.mubr.f32.mxu0 0.0
  %2179 = vmatmul.mubr.f32.gmra.mrb[0].mxu0 %v919
  %v2180 = vpop.f32.mrb[0].mxu0
  %v2181 = vadd.f32 %v279, %v2180
  %v2182 = vpop.f32.mrb[0].mxu0
  %2183 = vmatprep.mubr.f32.mxu0 0.0
  %2184 = vmatmul.mubr.f32.gmra.mrb[0].mxu0 %v922
  %v2185 = vpop.f32.mrb[0].mxu0
  %v2186 = vadd.f32 %v279, %v2185
  %v2187 = vpop.f32.mrb[0].mxu0
  %2188 = vmatprep.mubr.f32.mxu0 0.0
  %2189 = vmatmul.mubr.f32.gmra.mrb[0].mxu0 %v925
  %v2190 = vpop.f32.mrb[0].mxu0
  %v2191 = vadd.f32 %v279, %v2190
  %v2192 = vpop.f32.mrb[0].mxu0
  %2193 = vmatprep.mubr.f32.mxu0 0.0
  %2194 = vmatmul.mubr.f32.gmra.mrb[0].mxu0 %v928
  %v2195 = vpop.f32.mrb[0].mxu0
  %v2196 = vadd.f32 %v279, %v2195
  %v2197 = vpop.f32.mrb[0].mxu0
  %2198 = vmatprep.mubr.f32.mxu0 0.0
  %2199 = vmatmul.mubr.f32.gmra.mrb[0].mxu0 %v931
  %v2200 = vpop.f32.mrb[0].mxu0
  %v2201 = vadd.f32 %v279, %v2200
  %v2202 = vpop.f32.mrb[0].mxu0
  %2203 = vmatprep.mubr.f32.mxu0 0.0
  %2204 = vmatmul.mubr.f32.gmra.mrb[0].mxu0 %v934
  %v2205 = vpop.f32.mrb[0].mxu0
  %v2206 = vadd.f32 %v279, %v2205
  %v2207 = vpop.f32.mrb[0].mxu0
  %2208 = vmatprep.mubr.f32.mxu0 0.0
  %2209 = vmatmul.mubr.f32.gmra.mrb[0].mxu0 %v937
  %v2210 = vpop.f32.mrb[0].mxu0
  %v2211 = vadd.f32 %v279, %v2210
  %v2212 = vpop.f32.mrb[0].mxu0
  %2213 = vmatprep.mubr.f32.mxu0 0.0
  %2214 = vmatmul.mubr.f32.gmra.mrb[0].mxu0 %v940
  %v2215 = vpop.f32.mrb[0].mxu0
  %v2216 = vadd.f32 %v279, %v2215
  %v2217 = vpop.f32.mrb[0].mxu0
  %2218 = vmatprep.mubr.f32.mxu0 0.0
  %2219 = vmatmul.mubr.f32.gmra.mrb[0].mxu0 %v943
  %v2220 = vpop.f32.mrb[0].mxu0
  %v2221 = vadd.f32 %v279, %v2220
  %v2222 = vpop.f32.mrb[0].mxu0
  %2223 = vmatprep.mubr.f32.mxu0 0.0
  %2224 = vmatmul.mubr.f32.gmra.mrb[0].mxu0 %v946
  %v2225 = vpop.f32.mrb[0].mxu0
  %v2226 = vadd.f32 %v279, %v2225
  %v2227 = vpop.f32.mrb[0].mxu0
  %2228 = vmatprep.mubr.f32.mxu0 0.0
  %2229 = vmatmul.mubr.f32.gmra.mrb[0].mxu0 %v949
  %v2230 = vpop.f32.mrb[0].mxu0
  %v2231 = vadd.f32 %v279, %v2230
  %v2232 = vpop.f32.mrb[0].mxu0
  %2233 = vmatprep.mubr.f32.mxu0 0.0
  %2234 = vmatmul.mubr.f32.gmra.mrb[0].mxu0 %v952
  %v2235 = vpop.f32.mrb[0].mxu0
  %v2236 = vadd.f32 %v279, %v2235
  %v2237 = vpop.f32.mrb[0].mxu0
  %2238 = vmatprep.mubr.f32.mxu0 0.0
  %2239 = vmatmul.mubr.f32.gmra.mrb[0].mxu0 %v955
  %v2240 = vpop.f32.mrb[0].mxu0
  %v2241 = vadd.f32 %v279, %v2240
  %v2242 = vpop.f32.mrb[0].mxu0
  %2243 = vmatprep.mubr.f32.mxu0 0.0
  %2244 = vmatmul.mubr.f32.gmra.mrb[0].mxu0 %v958
  %v2245 = vpop.f32.mrb[0].mxu0
  %v2246 = vadd.f32 %v279, %v2245
  %v2247 = vpop.f32.mrb[0].mxu0
  %2248 = vmatprep.mubr.f32.mxu0 0.0
  %2249 = vmatmul.mubr.f32.gmra.mrb[0].mxu0 %v961
  %v2250 = vpop.f32.mrb[0].mxu0
  %v2251 = vadd.f32 %v279, %v2250
  %v2252 = vpop.f32.mrb[0].mxu0
  %2253 = vmatprep.mubr.f32.mxu0 0.0
  %2254 = vmatmul.mubr.f32.gmra.mrb[0].mxu0 %v964
  %v2255 = vpop.f32.mrb[0].mxu0
  %v2256 = vadd.f32 %v279, %v2255
  %v2257 = vpop.f32.mrb[0].mxu0
  %2258 = vmatprep.mubr.f32.mxu0 0.0
  %2259 = vmatmul.mubr.f32.gmra.mrb[0].mxu0 %v967
  %v2260 = vpop.f32.mrb[0].mxu0
  %v2261 = vadd.f32 %v279, %v2260
  %v2262 = vpop.f32.mrb[0].mxu0
  %2263 = vmatprep.mubr.f32.mxu0 0.0
  %2264 = vmatmul.mubr.f32.gmra.mrb[0].mxu0 %v970
  %v2265 = vpop.f32.mrb[0].mxu0
  %v2266 = vadd.f32 %v279, %v2265
  %v2267 = vpop.f32.mrb[0].mxu0
  %2268 = vmatprep.mubr.f32.mxu0 0.0
  %2269 = vmatmul.mubr.f32.gmra.mrb[0].mxu0 %v973
  %v2270 = vpop.f32.mrb[0].mxu0
  %v2271 = vadd.f32 %v279, %v2270
  %v2272 = vpop.f32.mrb[0].mxu0
  %2273 = vmatprep.mubr.f32.mxu0 0.0
  %2274 = vmatmul.mubr.f32.gmra.mrb[0].mxu0 %v976
  %v2275 = vpop.f32.mrb[0].mxu0
  %v2276 = vadd.f32 %v279, %v2275
  %v2277 = vpop.f32.mrb[0].mxu0
  %2278 = vmatprep.mubr.f32.mxu0 0.0
  %2279 = vmatmul.mubr.f32.gmra.mrb[0].mxu0 %v979
  %v2280 = vpop.f32.mrb[0].mxu0
  %v2281 = vadd.f32 %v279, %v2280
  %v2282 = vpop.f32.mrb[0].mxu0
  %2283 = vmatprep.mubr.f32.mxu0 0.0
  %2284 = vmatmul.mubr.f32.gmra.mrb[0].mxu0 %v982
  %v2285 = vpop.f32.mrb[0].mxu0
  %v2286 = vadd.f32 %v279, %v2285
  %v2287 = vpop.f32.mrb[0].mxu0
  %2288 = vmatprep.mubr.f32.mxu0 0.0
  %2289 = vmatmul.mubr.f32.gmra.mrb[0].mxu0 %v985
  %v2290 = vpop.f32.mrb[0].mxu0
  %v2291 = vadd.f32 %v279, %v2290
  %v2292 = vpop.f32.mrb[0].mxu0
  %2293 = vmatprep.mubr.f32.mxu0 0.0
  %2294 = vmatmul.mubr.f32.gmra.mrb[0].mxu0 %v988
  %v2295 = vpop.f32.mrb[0].mxu0
  %v2296 = vadd.f32 %v279, %v2295
  %v2297 = vpop.f32.mrb[0].mxu0
  %2298 = vmatprep.mubr.f32.mxu0 0.0
  %2299 = vmatmul.mubr.f32.gmra.mrb[0].mxu0 %v991
  %v2300 = vpop.f32.mrb[0].mxu0
  %v2301 = vadd.f32 %v279, %v2300
  %v2302 = vpop.f32.mrb[0].mxu0
  %2303 = vmatprep.mubr.f32.mxu0 0.0
  %2304 = vmatmul.mubr.f32.gmra.mrb[0].mxu0 %v994
  %v2305 = vpop.f32.mrb[0].mxu0
  %v2306 = vadd.f32 %v279, %v2305
  %v2307 = vpop.f32.mrb[0].mxu0
  %2308 = vmatprep.mubr.f32.mxu0 0.0
  %2309 = vmatmul.mubr.f32.gmra.mrb[0].mxu0 %v997
  %v2310 = vpop.f32.mrb[0].mxu0
  %v2311 = vadd.f32 %v279, %v2310
  %v2312 = vpop.f32.mrb[0].mxu0
  %2313 = vmatprep.mubr.f32.mxu0 0.0
  %2314 = vmatmul.mubr.f32.gmra.mrb[0].mxu0 %v1000
  %v2315 = vpop.f32.mrb[0].mxu0
  %v2316 = vadd.f32 %v279, %v2315
  %v2317 = vpop.f32.mrb[0].mxu0
  %2318 = vmatprep.mubr.f32.mxu0 0.0
  %2319 = vmatmul.mubr.f32.gmra.mrb[0].mxu0 %v1003
  %v2320 = vpop.f32.mrb[0].mxu0
  %v2321 = vadd.f32 %v279, %v2320
  %v2322 = vpop.f32.mrb[0].mxu0
  %2323 = vmatprep.mubr.f32.mxu0 0.0
  %2324 = vmatmul.mubr.f32.gmra.mrb[0].mxu0 %v1006
  %v2325 = vpop.f32.mrb[0].mxu0
  %v2326 = vadd.f32 %v279, %v2325
  %v2327 = vpop.f32.mrb[0].mxu0
  %2328 = vmatprep.mubr.f32.mxu0 0.0
  %2329 = vmatmul.mubr.f32.gmra.mrb[0].mxu0 %v1009
  %v2330 = vpop.f32.mrb[0].mxu0
  %v2331 = vadd.f32 %v279, %v2330
  %v2332 = vpop.f32.mrb[0].mxu0
  %2333 = vmatprep.mubr.f32.mxu0 0.0
  %2334 = vmatmul.mubr.f32.gmra.mrb[0].mxu0 %v1012
  %v2335 = vpop.f32.mrb[0].mxu0
  %v2336 = vadd.f32 %v279, %v2335
  %v2337 = vpop.f32.mrb[0].mxu0
  %2338 = vmatprep.mubr.f32.mxu0 0.0
  %2339 = vmatmul.mubr.f32.gmra.mrb[0].mxu0 %v1015
  %v2340 = vpop.f32.mrb[0].mxu0
  %v2341 = vadd.f32 %v279, %v2340
  %v2342 = vpop.f32.mrb[0].mxu0
  %2343 = vmatprep.mubr.f32.mxu0 0.0
  %2344 = vmatmul.mubr.f32.gmra.mrb[0].mxu0 %v1018
  %v2345 = vpop.f32.mrb[0].mxu0
  %v2346 = vadd.f32 %v279, %v2345
  %v2347 = vpop.f32.mrb[0].mxu0
  %2348 = vmatprep.mubr.f32.mxu0 0.0
  %2349 = vmatmul.mubr.f32.gmra.mrb[0].mxu0 %v1021
  %v2350 = vpop.f32.mrb[0].mxu0
  %v2351 = vadd.f32 %v279, %v2350
  %v2352 = vpop.f32.mrb[0].mxu0
  %2353 = vmatprep.mubr.f32.mxu0 0.0
  %2354 = vmatmul.mubr.f32.gmra.mrb[0].mxu0 %v1024
  %v2355 = vpop.f32.mrb[0].mxu0
  %v2356 = vadd.f32 %v279, %v2355
  %v2357 = vpop.f32.mrb[0].mxu0
  %2358 = vmatprep.mubr.f32.mxu0 0.0
  %2359 = vmatmul.mubr.f32.gmra.mrb[0].mxu0 %v1027
  %v2360 = vpop.f32.mrb[0].mxu0
  %v2361 = vadd.f32 %v279, %v2360
  %v2362 = vpop.f32.mrb[0].mxu0
  %2363 = vmatprep.mubr.f32.mxu0 0.0
  %2364 = vmatmul.mubr.f32.gmra.mrb[0].mxu0 %v1030
  %v2365 = vpop.f32.mrb[0].mxu0
  %v2366 = vadd.f32 %v279, %v2365
  %v2367 = vpop.f32.mrb[0].mxu0
  %2368 = vmatprep.mubr.f32.mxu0 0.0
  %2369 = vmatmul.mubr.f32.gmra.mrb[0].mxu0 %v1033
  %v2370 = vpop.f32.mrb[0].mxu0
  %v2371 = vadd.f32 %v279, %v2370
  %v2372 = vpop.f32.mrb[0].mxu0
  %2373 = vmatprep.mubr.f32.mxu0 0.0
  %2374 = vmatmul.mubr.f32.gmra.mrb[0].mxu0 %v1036
  %v2375 = vpop.f32.mrb[0].mxu0
  %v2376 = vadd.f32 %v279, %v2375
  %v2377 = vpop.f32.mrb[0].mxu0
  %2378 = vmatprep.mubr.f32.mxu0 0.0
  %2379 = vmatmul.mubr.f32.gmra.mrb[0].mxu0 %v1039
  %v2380 = vpop.f32.mrb[0].mxu0
  %v2381 = vadd.f32 %v279, %v2380
  %v2382 = vpop.f32.mrb[0].mxu0
  %2383 = vmatprep.mubr.f32.mxu0 0.0
  %2384 = vmatmul.mubr.f32.gmra.mrb[0].mxu0 %v1042
  %v2385 = vpop.f32.mrb[0].mxu0
  %v2386 = vadd.f32 %v279, %v2385
  %v2387 = vpop.f32.mrb[0].mxu0
  %2388 = vmatprep.mubr.f32.mxu0 0.0
  %2389 = vmatmul.mubr.f32.gmra.mrb[0].mxu0 %v1045
  %v2390 = vpop.f32.mrb[0].mxu0
  %v2391 = vadd.f32 %v279, %v2390
  %v2392 = vpop.f32.mrb[0].mxu0
  %2393 = vmatprep.mubr.f32.mxu0 0.0
  %2394 = vmatmul.mubr.f32.gmra.mrb[0].mxu0 %v1048
  %v2395 = vpop.f32.mrb[0].mxu0
  %v2396 = vadd.f32 %v279, %v2395
  %v2397 = vpop.f32.mrb[0].mxu0
  %2398 = vdwg.mxu0
  %v2399 = vmax.f32 %v1121, %v1126
  %v2400 = vmax.f32 %v1131, %v1136
  %v2401 = vmax.f32 %v1141, %v1146
  %v2402 = vmax.f32 %v1151, %v1156
  %v2403 = vmax.f32 %v1161, %v1166
  %v2404 = vmax.f32 %v1171, %v1176
  %v2405 = vmax.f32 %v1181, %v1186
  %v2406 = vmax.f32 %v1191, %v1196
  %v2407 = vmax.f32 %v1201, %v1206
  %v2408 = vmax.f32 %v1211, %v1216
  %v2409 = vmax.f32 %v1221, %v1226
  %v2410 = vmax.f32 %v1231, %v1236
  %v2411 = vmax.f32 %v1241, %v1246
  %v2412 = vmax.f32 %v1251, %v1256
  %v2413 = vmax.f32 %v1261, %v1266
  %v2414 = vmax.f32 %v1271, %v1276
  %v2415 = vmax.f32 %v1281, %v1286
  %v2416 = vmax.f32 %v1291, %v1296
  %v2417 = vmax.f32 %v1301, %v1306
  %v2418 = vmax.f32 %v1311, %v1316
  %v2419 = vmax.f32 %v1321, %v1326
  %v2420 = vmax.f32 %v1331, %v1336
  %v2421 = vmax.f32 %v1341, %v1346
  %v2422 = vmax.f32 %v1351, %v1356
  %v2423 = vmax.f32 %v1361, %v1366
  %v2424 = vmax.f32 %v1371, %v1376
  %v2425 = vmax.f32 %v1381, %v1386
  %v2426 = vmax.f32 %v1391, %v1396
  %v2427 = vmax.f32 %v1401, %v1406
  %v2428 = vmax.f32 %v1411, %v1416
  %v2429 = vmax.f32 %v1421, %v1426
  %v2430 = vmax.f32 %v1431, %v1436
  %v2431 = vmax.f32 %v1441, %v1446
  %v2432 = vmax.f32 %v1451, %v1456
  %v2433 = vmax.f32 %v1461, %v1466
  %v2434 = vmax.f32 %v1471, %v1476
  %v2435 = vmax.f32 %v1481, %v1486
  %v2436 = vmax.f32 %v1491, %v1496
  %v2437 = vmax.f32 %v1501, %v1506
  %v2438 = vmax.f32 %v1511, %v1516
  %v2439 = vmax.f32 %v1521, %v1526
  %v2440 = vmax.f32 %v1531, %v1536
  %v2441 = vmax.f32 %v1541, %v1546
  %v2442 = vmax.f32 %v1551, %v1556
  %v2443 = vmax.f32 %v1561, %v1566
  %v2444 = vmax.f32 %v1571, %v1576
  %v2445 = vmax.f32 %v1581, %v1586
  %v2446 = vmax.f32 %v1591, %v1596
  %v2447 = vmax.f32 %v1601, %v1606
  %v2448 = vmax.f32 %v1611, %v1616
  %v2449 = vmax.f32 %v1621, %v1626
  %v2450 = vmax.f32 %v1631, %v1636
  %v2451 = vmax.f32 %v1641, %v1646
  %v2452 = vmax.f32 %v1651, %v1656
  %v2453 = vmax.f32 %v1661, %v1666
  %v2454 = vmax.f32 %v1671, %v1676
  %v2455 = vmax.f32 %v1681, %v1686
  %v2456 = vmax.f32 %v1691, %v1696
  %v2457 = vmax.f32 %v1701, %v1706
  %v2458 = vmax.f32 %v1711, %v1716
  %v2459 = vmax.f32 %v1721, %v1726
  %v2460 = vmax.f32 %v1731, %v1736
  %v2461 = vmax.f32 %v1741, %v1746
  %v2462 = vmax.f32 %v1751, %v1756
  %v2463 = vmax.f32 %v1761, %v1766
  %v2464 = vmax.f32 %v1771, %v1776
  %v2465 = vmax.f32 %v1781, %v1786
  %v2466 = vmax.f32 %v1791, %v1796
  %v2467 = vmax.f32 %v1801, %v1806
  %v2468 = vmax.f32 %v1811, %v1816
  %v2469 = vmax.f32 %v1821, %v1826
  %v2470 = vmax.f32 %v1831, %v1836
  %v2471 = vmax.f32 %v1841, %v1846
  %v2472 = vmax.f32 %v1851, %v1856
  %v2473 = vmax.f32 %v1861, %v1866
  %v2474 = vmax.f32 %v1871, %v1876
  %v2475 = vmax.f32 %v1881, %v1886
  %v2476 = vmax.f32 %v1891, %v1896
  %v2477 = vmax.f32 %v1901, %v1906
  %v2478 = vmax.f32 %v1911, %v1916
  %v2479 = vmax.f32 %v1921, %v1926
  %v2480 = vmax.f32 %v1931, %v1936
  %v2481 = vmax.f32 %v1941, %v1946
  %v2482 = vmax.f32 %v1951, %v1956
  %v2483 = vmax.f32 %v1961, %v1966
  %v2484 = vmax.f32 %v1971, %v1976
  %v2485 = vmax.f32 %v1981, %v1986
  %v2486 = vmax.f32 %v1991, %v1996
  %v2487 = vmax.f32 %v2001, %v2006
  %v2488 = vmax.f32 %v2011, %v2016
  %v2489 = vmax.f32 %v2021, %v2026
  %v2490 = vmax.f32 %v2031, %v2036
  %v2491 = vmax.f32 %v2041, %v2046
  %v2492 = vmax.f32 %v2051, %v2056
  %v2493 = vmax.f32 %v2061, %v2066
  %v2494 = vmax.f32 %v2071, %v2076
  %v2495 = vmax.f32 %v2081, %v2086
  %v2496 = vmax.f32 %v2091, %v2096
  %v2497 = vmax.f32 %v2101, %v2106
  %v2498 = vmax.f32 %v2111, %v2116
  %v2499 = vmax.f32 %v2121, %v2126
  %v2500 = vmax.f32 %v2131, %v2136
  %v2501 = vmax.f32 %v2141, %v2146
  %v2502 = vmax.f32 %v2151, %v2156
  %v2503 = vmax.f32 %v2161, %v2166
  %v2504 = vmax.f32 %v2171, %v2176
  %v2505 = vmax.f32 %v2181, %v2186
  %v2506 = vmax.f32 %v2191, %v2196
  %v2507 = vmax.f32 %v2201, %v2206
  %v2508 = vmax.f32 %v2211, %v2216
  %v2509 = vmax.f32 %v2221, %v2226
  %v2510 = vmax.f32 %v2231, %v2236
  %v2511 = vmax.f32 %v2241, %v2246
  %v2512 = vmax.f32 %v2251, %v2256
  %v2513 = vmax.f32 %v2261, %v2266
  %v2514 = vmax.f32 %v2271, %v2276
  %v2515 = vmax.f32 %v2281, %v2286
  %v2516 = vmax.f32 %v2291, %v2296
  %v2517 = vmax.f32 %v2301, %v2306
  %v2518 = vmax.f32 %v2311, %v2316
  %v2519 = vmax.f32 %v2321, %v2326
  %v2520 = vmax.f32 %v2331, %v2336
  %v2521 = vmax.f32 %v2341, %v2346
  %v2522 = vmax.f32 %v2351, %v2356
  %v2523 = vmax.f32 %v2361, %v2366
  %v2524 = vmax.f32 %v2371, %v2376
  %v2525 = vmax.f32 %v2381, %v2386
  %v2526 = vmax.f32 %v2391, %v2396
  %v2527 = vmax.f32 %v2399, %v2401
  %v2528 = vmax.f32 %v2400, %v2402
  %v2529 = vmax.f32 %v2403, %v2405
  %v2530 = vmax.f32 %v2404, %v2406
  %v2531 = vmax.f32 %v2407, %v2409
  %v2532 = vmax.f32 %v2408, %v2410
  %v2533 = vmax.f32 %v2411, %v2413
  %v2534 = vmax.f32 %v2412, %v2414
  %v2535 = vmax.f32 %v2415, %v2417
  %v2536 = vmax.f32 %v2416, %v2418
  %v2537 = vmax.f32 %v2419, %v2421
  %v2538 = vmax.f32 %v2420, %v2422
  %v2539 = vmax.f32 %v2423, %v2425
  %v2540 = vmax.f32 %v2424, %v2426
  %v2541 = vmax.f32 %v2427, %v2429
  %v2542 = vmax.f32 %v2428, %v2430
  %v2543 = vmax.f32 %v2431, %v2433
  %v2544 = vmax.f32 %v2432, %v2434
  %v2545 = vmax.f32 %v2435, %v2437
  %v2546 = vmax.f32 %v2436, %v2438
  %v2547 = vmax.f32 %v2439, %v2441
  %v2548 = vmax.f32 %v2440, %v2442
  %v2549 = vmax.f32 %v2443, %v2445
  %v2550 = vmax.f32 %v2444, %v2446
  %v2551 = vmax.f32 %v2447, %v2449
  %v2552 = vmax.f32 %v2448, %v2450
  %v2553 = vmax.f32 %v2451, %v2453
  %v2554 = vmax.f32 %v2452, %v2454
  %v2555 = vmax.f32 %v2455, %v2457
  %v2556 = vmax.f32 %v2456, %v2458
  %v2557 = vmax.f32 %v2459, %v2461
  %v2558 = vmax.f32 %v2460, %v2462
  %v2559 = vmax.f32 %v2463, %v2465
  %v2560 = vmax.f32 %v2464, %v2466
  %v2561 = vmax.f32 %v2467, %v2469
  %v2562 = vmax.f32 %v2468, %v2470
  %v2563 = vmax.f32 %v2471, %v2473
  %v2564 = vmax.f32 %v2472, %v2474
  %v2565 = vmax.f32 %v2475, %v2477
  %v2566 = vmax.f32 %v2476, %v2478
  %v2567 = vmax.f32 %v2479, %v2481
  %v2568 = vmax.f32 %v2480, %v2482
  %v2569 = vmax.f32 %v2483, %v2485
  %v2570 = vmax.f32 %v2484, %v2486
  %v2571 = vmax.f32 %v2487, %v2489
  %v2572 = vmax.f32 %v2488, %v2490
  %v2573 = vmax.f32 %v2491, %v2493
  %v2574 = vmax.f32 %v2492, %v2494
  %v2575 = vmax.f32 %v2495, %v2497
  %v2576 = vmax.f32 %v2496, %v2498
  %v2577 = vmax.f32 %v2499, %v2501
  %v2578 = vmax.f32 %v2500, %v2502
  %v2579 = vmax.f32 %v2503, %v2505
  %v2580 = vmax.f32 %v2504, %v2506
  %v2581 = vmax.f32 %v2507, %v2509
  %v2582 = vmax.f32 %v2508, %v2510
  %v2583 = vmax.f32 %v2511, %v2513
  %v2584 = vmax.f32 %v2512, %v2514
  %v2585 = vmax.f32 %v2515, %v2517
  %v2586 = vmax.f32 %v2516, %v2518
  %v2587 = vmax.f32 %v2519, %v2521
  %v2588 = vmax.f32 %v2520, %v2522
  %v2589 = vmax.f32 %v2523, %v2525
  %v2590 = vmax.f32 %v2524, %v2526
  %v2591 = vmax.f32 %v2527, 0.0
  %v2592 = vmax.f32 %v2528, 0.0
  %v2593 = vmax.f32 %v2529, 0.0
  %v2594 = vmax.f32 %v2530, 0.0
  %v2595 = vmax.f32 %v2531, 0.0
  %v2596 = vmax.f32 %v2532, 0.0
  %v2597 = vmax.f32 %v2533, 0.0
  %v2598 = vmax.f32 %v2534, 0.0
  %v2599 = vmax.f32 %v2535, 0.0
  %v2600 = vmax.f32 %v2536, 0.0
  %v2601 = vmax.f32 %v2537, 0.0
  %v2602 = vmax.f32 %v2538, 0.0
  %v2603 = vmax.f32 %v2539, 0.0
  %v2604 = vmax.f32 %v2540, 0.0
  %v2605 = vmax.f32 %v2541, 0.0
  %v2606 = vmax.f32 %v2542, 0.0
  %v2607 = vmax.f32 %v2543, 0.0
  %v2608 = vmax.f32 %v2544, 0.0
  %v2609 = vmax.f32 %v2545, 0.0
  %v2610 = vmax.f32 %v2546, 0.0
  %v2611 = vmax.f32 %v2547, 0.0
  %v2612 = vmax.f32 %v2548, 0.0
  %v2613 = vmax.f32 %v2549, 0.0
  %v2614 = vmax.f32 %v2550, 0.0
  %v2615 = vmax.f32 %v2551, 0.0
  %v2616 = vmax.f32 %v2552, 0.0
  %v2617 = vmax.f32 %v2553, 0.0
  %v2618 = vmax.f32 %v2554, 0.0
  %v2619 = vmax.f32 %v2555, 0.0
  %v2620 = vmax.f32 %v2556, 0.0
  %v2621 = vmax.f32 %v2557, 0.0
  %v2622 = vmax.f32 %v2558, 0.0
  %v2623 = vmax.f32 %v2559, 0.0
  %v2624 = vmax.f32 %v2560, 0.0
  %v2625 = vmax.f32 %v2561, 0.0
  %v2626 = vmax.f32 %v2562, 0.0
  %v2627 = vmax.f32 %v2563, 0.0
  %v2628 = vmax.f32 %v2564, 0.0
  %v2629 = vmax.f32 %v2565, 0.0
  %v2630 = vmax.f32 %v2566, 0.0
  %v2631 = vmax.f32 %v2567, 0.0
  %v2632 = vmax.f32 %v2568, 0.0
  %v2633 = vmax.f32 %v2569, 0.0
  %v2634 = vmax.f32 %v2570, 0.0
  %v2635 = vmax.f32 %v2571, 0.0
  %v2636 = vmax.f32 %v2572, 0.0
  %v2637 = vmax.f32 %v2573, 0.0
  %v2638 = vmax.f32 %v2574, 0.0
  %v2639 = vmax.f32 %v2575, 0.0
  %v2640 = vmax.f32 %v2576, 0.0
  %v2641 = vmax.f32 %v2577, 0.0
  %v2642 = vmax.f32 %v2578, 0.0
  %v2643 = vmax.f32 %v2579, 0.0
  %v2644 = vmax.f32 %v2580, 0.0
  %v2645 = vmax.f32 %v2581, 0.0
  %v2646 = vmax.f32 %v2582, 0.0
  %v2647 = vmax.f32 %v2583, 0.0
  %v2648 = vmax.f32 %v2584, 0.0
  %v2649 = vmax.f32 %v2585, 0.0
  %v2650 = vmax.f32 %v2586, 0.0
  %v2651 = vmax.f32 %v2587, 0.0
  %v2652 = vmax.f32 %v2588, 0.0
  %v2653 = vmax.f32 %v2589, 0.0
  %v2654 = vmax.f32 %v2590, 0.0
  %vm2655 = vcmask 261120
  %2656 = vst.msk [vmem:[%s4] sm:$0xff] %vm2655, 0.0
  %vm2657 = vcmask 253952
  %2658 = vst.msk [vmem:[%s4 + $0x8] sm:$0x1] %vm2657, 0.0
  %2659 = vst.msk [vmem:[%s4 + $0x10] sm:$0xff] %vm2655, 0.0
  %2660 = vst.msk [vmem:[%s4 + $0x18] sm:$0x1] %vm2657, 0.0
  %2661 = vst.msk [vmem:[%s4 + $0x20] sm:$0xff] %vm2655, 0.0
  %2662 = vst.msk [vmem:[%s4 + $0x28] sm:$0x1] %vm2657, 0.0
  %2663 = vst.msk [vmem:[%s4 + $0x30] sm:$0xff] %vm2655, 0.0
  %2664 = vst.msk [vmem:[%s4 + $0x38] sm:$0x1] %vm2657, 0.0
  %2665 = vst.msk [vmem:[%s4 + $0x40] sm:$0xff] %vm2655, 0.0
  %2666 = vst.msk [vmem:[%s4 + $0x48] sm:$0x1] %vm2657, 0.0
  %2667 = vst.msk [vmem:[%s4 + $0x50] sm:$0xff] %vm2655, 0.0
  %2668 = vst.msk [vmem:[%s4 + $0x58] sm:$0x1] %vm2657, 0.0
  %2669 = vst.msk [vmem:[%s4 + $0x60] sm:$0xff] %vm2655, 0.0
  %2670 = vst.msk [vmem:[%s4 + $0x68] sm:$0x1] %vm2657, 0.0
  %2671 = vst.msk [vmem:[%s4 + $0x70] sm:$0xff] %vm2655, 0.0
  %2672 = vst.msk [vmem:[%s4 + $0x78] sm:$0x1] %vm2657, 0.0
  %2673 = vst.msk [vmem:[%s4 + $0x80] sm:$0xff] %vm2655, 0.0
  %2674 = vst.msk [vmem:[%s4 + $0x88] sm:$0x1] %vm2657, 0.0
  %2675 = vst.msk [vmem:[%s4 + $0x90] sm:$0xff] %vm2655, 0.0
  %2676 = vst.msk [vmem:[%s4 + $0x98] sm:$0x1] %vm2657, 0.0
  %2677 = vst.msk [vmem:[%s4 + $0xa0] sm:$0xff] %vm2655, 0.0
  %2678 = vst.msk [vmem:[%s4 + $0xa8] sm:$0x1] %vm2657, 0.0
  %2679 = vst.msk [vmem:[%s4 + $0xb0] sm:$0xff] %vm2655, 0.0
  %2680 = vst.msk [vmem:[%s4 + $0xb8] sm:$0x1] %vm2657, 0.0
  %2681 = vst.msk [vmem:[%s4 + $0xc0] sm:$0xff] %vm2655, 0.0
  %2682 = vst.msk [vmem:[%s4 + $0xc8] sm:$0x1] %vm2657, 0.0
  %2683 = vst.msk [vmem:[%s4 + $0xd0] sm:$0xff] %vm2655, 0.0
  %2684 = vst.msk [vmem:[%s4 + $0xd8] sm:$0x1] %vm2657, 0.0
  %2685 = vst.msk [vmem:[%s4 + $0xe0] sm:$0xff] %vm2655, 0.0
  %2686 = vst.msk [vmem:[%s4 + $0xe8] sm:$0x1] %vm2657, 0.0
  %2687 = vst.msk [vmem:[%s4 + $0xf0] sm:$0xff] %vm2655, 0.0
  %2688 = vst.msk [vmem:[%s4 + $0xf8] sm:$0x1] %vm2657, 0.0
  %2689 = vst.msk [vmem:[%s4 + $0x100] sm:$0xff] %vm2655, 0.0
  %2690 = vst.msk [vmem:[%s4 + $0x108] sm:$0x1] %vm2657, 0.0
  %2691 = vst.msk [vmem:[%s4 + $0x110] sm:$0xff] %vm2655, 0.0
  %2692 = vst.msk [vmem:[%s4 + $0x118] sm:$0x1] %vm2657, 0.0
  %2693 = vst.msk [vmem:[%s4 + $0x120] sm:$0xff] %vm2655, 0.0
  %2694 = vst.msk [vmem:[%s4 + $0x128] sm:$0x1] %vm2657, 0.0
  %2695 = vst.msk [vmem:[%s4 + $0x130] sm:$0xff] %vm2655, 0.0
  %2696 = vst.msk [vmem:[%s4 + $0x138] sm:$0x1] %vm2657, 0.0
  %2697 = vst.msk [vmem:[%s4 + $0x140] sm:$0xff] %vm2655, 0.0
  %2698 = vst.msk [vmem:[%s4 + $0x148] sm:$0x1] %vm2657, 0.0
  %2699 = vst.msk [vmem:[%s4 + $0x150] sm:$0xff] %vm2655, 0.0
  %2700 = vst.msk [vmem:[%s4 + $0x158] sm:$0x1] %vm2657, 0.0
  %2701 = vst.msk [vmem:[%s4 + $0x160] sm:$0xff] %vm2655, 0.0
  %2702 = vst.msk [vmem:[%s4 + $0x168] sm:$0x1] %vm2657, 0.0
  %2703 = vst.msk [vmem:[%s4 + $0x170] sm:$0xff] %vm2655, 0.0
  %2704 = vst.msk [vmem:[%s4 + $0x178] sm:$0x1] %vm2657, 0.0
  %2705 = vst.msk [vmem:[%s4 + $0x180] sm:$0xff] %vm2655, 0.0
  %2706 = vst.msk [vmem:[%s4 + $0x188] sm:$0x1] %vm2657, 0.0
  %2707 = vst.msk [vmem:[%s4 + $0x190] sm:$0xff] %vm2655, 0.0
  %2708 = vst.msk [vmem:[%s4 + $0x198] sm:$0x1] %vm2657, 0.0
  %2709 = vst.msk [vmem:[%s4 + $0x1a0] sm:$0xff] %vm2655, 0.0
  %2710 = vst.msk [vmem:[%s4 + $0x1a8] sm:$0x1] %vm2657, 0.0
  %2711 = vst.msk [vmem:[%s4 + $0x1b0] sm:$0xff] %vm2655, 0.0
  %2712 = vst.msk [vmem:[%s4 + $0x1b8] sm:$0x1] %vm2657, 0.0
  %2713 = vst.msk [vmem:[%s4 + $0x1c0] sm:$0xff] %vm2655, 0.0
  %2714 = vst.msk [vmem:[%s4 + $0x1c8] sm:$0x1] %vm2657, 0.0
  %2715 = vst.msk [vmem:[%s4 + $0x1d0] sm:$0xff] %vm2655, 0.0
  %2716 = vst.msk [vmem:[%s4 + $0x1d8] sm:$0x1] %vm2657, 0.0
  %2717 = vst.msk [vmem:[%s4 + $0x1e0] sm:$0xff] %vm2655, 0.0
  %2718 = vst.msk [vmem:[%s4 + $0x1e8] sm:$0x1] %vm2657, 0.0
  %2719 = vst.msk [vmem:[%s4 + $0x1f0] sm:$0xff] %vm2655, 0.0
  %2720 = vst.msk [vmem:[%s4 + $0x1f8] sm:$0x1] %vm2657, 0.0
  %2721 = vst.msk [vmem:[%s4 + $0x200] sm:$0xff] %vm2655, 0.0
  %2722 = vst.msk [vmem:[%s4 + $0x208] sm:$0x1] %vm2657, 0.0
  %2723 = vst.msk [vmem:[%s4 + $0x210] sm:$0xff] %vm2655, 0.0
  %2724 = vst.msk [vmem:[%s4 + $0x218] sm:$0x1] %vm2657, 0.0
  %2725 = vst.msk [vmem:[%s4 + $0x220] sm:$0xff] %vm2655, 0.0
  %2726 = vst.msk [vmem:[%s4 + $0x228] sm:$0x1] %vm2657, 0.0
  %2727 = vst.msk [vmem:[%s4 + $0x230] sm:$0xff] %vm2655, 0.0
  %2728 = vst.msk [vmem:[%s4 + $0x238] sm:$0x1] %vm2657, 0.0
  %2729 = vst.msk [vmem:[%s3] sm:$0xff] %vm2655, 0.0
  %2730 = vst.msk [vmem:[%s3 + $0x8] sm:$0x1] %vm2657, 0.0
  %2731 = vst.msk [vmem:[%s3 + $0x10] sm:$0xff] %vm2655, 0.0
  %2732 = vst.msk [vmem:[%s3 + $0x18] sm:$0x1] %vm2657, 0.0
  %2733 = vst.msk [vmem:[%s3 + $0x20] sm:$0xff] %vm2655, 0.0
  %2734 = vst.msk [vmem:[%s3 + $0x28] sm:$0x1] %vm2657, 0.0
  %2735 = vst.msk [vmem:[%s3 + $0x30] sm:$0xff] %vm2655, 0.0
  %2736 = vst.msk [vmem:[%s3 + $0x38] sm:$0x1] %vm2657, 0.0
  %2737 = vst.msk [vmem:[%s3 + $0x40] sm:$0xff] %vm2655, 0.0
  %2738 = vst.msk [vmem:[%s3 + $0x48] sm:$0x1] %vm2657, 0.0
  %2739 = vst.msk [vmem:[%s3 + $0x50] sm:$0xff] %vm2655, 0.0
  %2740 = vst.msk [vmem:[%s3 + $0x58] sm:$0x1] %vm2657, 0.0
  %2741 = vst.msk [vmem:[%s3 + $0x60] sm:$0xff] %vm2655, 0.0
  %2742 = vst.msk [vmem:[%s3 + $0x68] sm:$0x1] %vm2657, 0.0
  %2743 = vst.msk [vmem:[%s3 + $0x70] sm:$0xff] %vm2655, 0.0
  %2744 = vst.msk [vmem:[%s3 + $0x78] sm:$0x1] %vm2657, 0.0
  %2745 = vst.msk [vmem:[%s3 + $0x80] sm:$0xff] %vm2655, 0.0
  %2746 = vst.msk [vmem:[%s3 + $0x88] sm:$0x1] %vm2657, 0.0
  %2747 = vst.msk [vmem:[%s3 + $0x90] sm:$0xff] %vm2655, 0.0
  %2748 = vst.msk [vmem:[%s3 + $0x98] sm:$0x1] %vm2657, 0.0
  %2749 = vst.msk [vmem:[%s3 + $0xa0] sm:$0xff] %vm2655, 0.0
  %2750 = vst.msk [vmem:[%s3 + $0xa8] sm:$0x1] %vm2657, 0.0
  %2751 = vst.msk [vmem:[%s3 + $0xb0] sm:$0xff] %vm2655, 0.0
  %2752 = vst.msk [vmem:[%s3 + $0xb8] sm:$0x1] %vm2657, 0.0
  %2753 = vst.msk [vmem:[%s3 + $0xc0] sm:$0xff] %vm2655, 0.0
  %2754 = vst.msk [vmem:[%s3 + $0xc8] sm:$0x1] %vm2657, 0.0
  %2755 = vst.msk [vmem:[%s3 + $0xd0] sm:$0xff] %vm2655, 0.0
  %2756 = vst.msk [vmem:[%s3 + $0xd8] sm:$0x1] %vm2657, 0.0
  %2757 = vst.msk [vmem:[%s3 + $0xe0] sm:$0xff] %vm2655, 0.0
  %2758 = vst.msk [vmem:[%s3 + $0xe8] sm:$0x1] %vm2657, 0.0
  %2759 = vst.msk [vmem:[%s3 + $0xf0] sm:$0xff] %vm2655, 0.0
  %2760 = vst.msk [vmem:[%s3 + $0xf8] sm:$0x1] %vm2657, 0.0
  %2761 = vst.msk [vmem:[%s3 + $0x100] sm:$0xff] %vm2655, 0.0
  %2762 = vst.msk [vmem:[%s3 + $0x108] sm:$0x1] %vm2657, 0.0
  %2763 = vst.msk [vmem:[%s3 + $0x110] sm:$0xff] %vm2655, 0.0
  %2764 = vst.msk [vmem:[%s3 + $0x118] sm:$0x1] %vm2657, 0.0
  %2765 = vst.msk [vmem:[%s3 + $0x120] sm:$0xff] %vm2655, 0.0
  %2766 = vst.msk [vmem:[%s3 + $0x128] sm:$0x1] %vm2657, 0.0
  %2767 = vst.msk [vmem:[%s3 + $0x130] sm:$0xff] %vm2655, 0.0
  %2768 = vst.msk [vmem:[%s3 + $0x138] sm:$0x1] %vm2657, 0.0
  %2769 = vst.msk [vmem:[%s3 + $0x140] sm:$0xff] %vm2655, 0.0
  %2770 = vst.msk [vmem:[%s3 + $0x148] sm:$0x1] %vm2657, 0.0
  %2771 = vst.msk [vmem:[%s3 + $0x150] sm:$0xff] %vm2655, 0.0
  %2772 = vst.msk [vmem:[%s3 + $0x158] sm:$0x1] %vm2657, 0.0
  %2773 = vst.msk [vmem:[%s3 + $0x160] sm:$0xff] %vm2655, 0.0
  %2774 = vst.msk [vmem:[%s3 + $0x168] sm:$0x1] %vm2657, 0.0
  %2775 = vst.msk [vmem:[%s3 + $0x170] sm:$0xff] %vm2655, 0.0
  %2776 = vst.msk [vmem:[%s3 + $0x178] sm:$0x1] %vm2657, 0.0
  %2777 = vst.msk [vmem:[%s3 + $0x180] sm:$0xff] %vm2655, 0.0
  %2778 = vst.msk [vmem:[%s3 + $0x188] sm:$0x1] %vm2657, 0.0
  %2779 = vst.msk [vmem:[%s3 + $0x190] sm:$0xff] %vm2655, 0.0
  %2780 = vst.msk [vmem:[%s3 + $0x198] sm:$0x1] %vm2657, 0.0
  %2781 = vst.msk [vmem:[%s3 + $0x1a0] sm:$0xff] %vm2655, 0.0
  %2782 = vst.msk [vmem:[%s3 + $0x1a8] sm:$0x1] %vm2657, 0.0
  %2783 = vst.msk [vmem:[%s3 + $0x1b0] sm:$0xff] %vm2655, 0.0
  %2784 = vst.msk [vmem:[%s3 + $0x1b8] sm:$0x1] %vm2657, 0.0
  %2785 = vst.msk [vmem:[%s3 + $0x1c0] sm:$0xff] %vm2655, 0.0
  %2786 = vst.msk [vmem:[%s3 + $0x1c8] sm:$0x1] %vm2657, 0.0
  %2787 = vst.msk [vmem:[%s3 + $0x1d0] sm:$0xff] %vm2655, 0.0
  %2788 = vst.msk [vmem:[%s3 + $0x1d8] sm:$0x1] %vm2657, 0.0
  %2789 = vst.msk [vmem:[%s3 + $0x1e0] sm:$0xff] %vm2655, 0.0
  %2790 = vst.msk [vmem:[%s3 + $0x1e8] sm:$0x1] %vm2657, 0.0
  %2791 = vst.msk [vmem:[%s3 + $0x1f0] sm:$0xff] %vm2655, 0.0
  %2792 = vst.msk [vmem:[%s3 + $0x1f8] sm:$0x1] %vm2657, 0.0
  %2793 = vst.msk [vmem:[%s3 + $0x200] sm:$0xff] %vm2655, 0.0
  %2794 = vst.msk [vmem:[%s3 + $0x208] sm:$0x1] %vm2657, 0.0
  %2795 = vst.msk [vmem:[%s3 + $0x210] sm:$0xff] %vm2655, 0.0
  %2796 = vst.msk [vmem:[%s3 + $0x218] sm:$0x1] %vm2657, 0.0
  %2797 = vst.msk [vmem:[%s3 + $0x220] sm:$0xff] %vm2655, 0.0
  %2798 = vst.msk [vmem:[%s3 + $0x228] sm:$0x1] %vm2657, 0.0
  %2799 = vst.msk [vmem:[%s3 + $0x230] sm:$0xff] %vm2655, 0.0
  %2800 = vst.msk [vmem:[%s3 + $0x238] sm:$0x1] %vm2657, 0.0
  %s2801 = scalar_lea.vmem %s4, 16
  %2802 = vst.msk [vmem:[%s2801] sm:$0xff] %vm2655, %v2591
  %2803 = vst.msk [vmem:[%s2801 + $0x10] sm:$0xff] %vm2655, %v2593
  %2804 = vst.msk [vmem:[%s2801 + $0x20] sm:$0xff] %vm2655, %v2595
  %2805 = vst.msk [vmem:[%s2801 + $0x30] sm:$0xff] %vm2655, %v2597
  %2806 = vst.msk [vmem:[%s2801 + $0x40] sm:$0xff] %vm2655, %v2599
  %2807 = vst.msk [vmem:[%s2801 + $0x50] sm:$0xff] %vm2655, %v2601
  %2808 = vst.msk [vmem:[%s2801 + $0x60] sm:$0xff] %vm2655, %v2603
  %2809 = vst.msk [vmem:[%s2801 + $0x70] sm:$0xff] %vm2655, %v2605
  %2810 = vst.msk [vmem:[%s2801 + $0x80] sm:$0xff] %vm2655, %v2607
  %2811 = vst.msk [vmem:[%s2801 + $0x90] sm:$0xff] %vm2655, %v2609
  %2812 = vst.msk [vmem:[%s2801 + $0xa0] sm:$0xff] %vm2655, %v2611
  %2813 = vst.msk [vmem:[%s2801 + $0xb0] sm:$0xff] %vm2655, %v2613
  %2814 = vst.msk [vmem:[%s2801 + $0xc0] sm:$0xff] %vm2655, %v2615
  %2815 = vst.msk [vmem:[%s2801 + $0xd0] sm:$0xff] %vm2655, %v2617
  %2816 = vst.msk [vmem:[%s2801 + $0xe0] sm:$0xff] %vm2655, %v2619
  %2817 = vst.msk [vmem:[%s2801 + $0xf0] sm:$0xff] %vm2655, %v2621
  %2818 = vst.msk [vmem:[%s2801 + $0x120] sm:$0xff] %vm2655, %v2623
  %2819 = vst.msk [vmem:[%s2801 + $0x130] sm:$0xff] %vm2655, %v2625
  %2820 = vst.msk [vmem:[%s2801 + $0x140] sm:$0xff] %vm2655, %v2627
  %2821 = vst.msk [vmem:[%s2801 + $0x150] sm:$0xff] %vm2655, %v2629
  %2822 = vst.msk [vmem:[%s2801 + $0x160] sm:$0xff] %vm2655, %v2631
  %2823 = vst.msk [vmem:[%s2801 + $0x170] sm:$0xff] %vm2655, %v2633
  %2824 = vst.msk [vmem:[%s2801 + $0x180] sm:$0xff] %vm2655, %v2635
  %2825 = vst.msk [vmem:[%s2801 + $0x190] sm:$0xff] %vm2655, %v2637
  %2826 = vst.msk [vmem:[%s2801 + $0x1a0] sm:$0xff] %vm2655, %v2639
  %2827 = vst.msk [vmem:[%s2801 + $0x1b0] sm:$0xff] %vm2655, %v2641
  %2828 = vst.msk [vmem:[%s2801 + $0x1c0] sm:$0xff] %vm2655, %v2643
  %2829 = vst.msk [vmem:[%s2801 + $0x1d0] sm:$0xff] %vm2655, %v2645
  %2830 = vst.msk [vmem:[%s2801 + $0x1e0] sm:$0xff] %vm2655, %v2647
  %2831 = vst.msk [vmem:[%s2801 + $0x1f0] sm:$0xff] %vm2655, %v2649
  %2832 = vst.msk [vmem:[%s2801 + $0x200] sm:$0xff] %vm2655, %v2651
  %2833 = vst.msk [vmem:[%s2801 + $0x210] sm:$0xff] %vm2655, %v2653
  %s2834 = scalar_lea.vmem %s3, 16
  %2835 = vst.msk [vmem:[%s2834 + $0x1] sm:$0xff] %vm2655, %v2592
  %2836 = vst.msk [vmem:[%s2834 + $0x11] sm:$0xff] %vm2655, %v2594
  %2837 = vst.msk [vmem:[%s2834 + $0x21] sm:$0xff] %vm2655, %v2596
  %2838 = vst.msk [vmem:[%s2834 + $0x31] sm:$0xff] %vm2655, %v2598
  %2839 = vst.msk [vmem:[%s2834 + $0x41] sm:$0xff] %vm2655, %v2600
  %2840 = vst.msk [vmem:[%s2834 + $0x51] sm:$0xff] %vm2655, %v2602
  %2841 = vst.msk [vmem:[%s2834 + $0x61] sm:$0xff] %vm2655, %v2604
  %2842 = vst.msk [vmem:[%s2834 + $0x71] sm:$0xff] %vm2655, %v2606
  %2843 = vst.msk [vmem:[%s2834 + $0x81] sm:$0xff] %vm2655, %v2608
  %2844 = vst.msk [vmem:[%s2834 + $0x91] sm:$0xff] %vm2655, %v2610
  %2845 = vst.msk [vmem:[%s2834 + $0xa1] sm:$0xff] %vm2655, %v2612
  %2846 = vst.msk [vmem:[%s2834 + $0xb1] sm:$0xff] %vm2655, %v2614
  %2847 = vst.msk [vmem:[%s2834 + $0xc1] sm:$0xff] %vm2655, %v2616
  %2848 = vst.msk [vmem:[%s2834 + $0xd1] sm:$0xff] %vm2655, %v2618
  %2849 = vst.msk [vmem:[%s2834 + $0xe1] sm:$0xff] %vm2655, %v2620
  %2850 = vst.msk [vmem:[%s2834 + $0xf1] sm:$0xff] %vm2655, %v2622
  %2851 = vst.msk [vmem:[%s2834 + $0x121] sm:$0xff] %vm2655, %v2624
  %2852 = vst.msk [vmem:[%s2834 + $0x131] sm:$0xff] %vm2655, %v2626
  %2853 = vst.msk [vmem:[%s2834 + $0x141] sm:$0xff] %vm2655, %v2628
  %2854 = vst.msk [vmem:[%s2834 + $0x151] sm:$0xff] %vm2655, %v2630
  %2855 = vst.msk [vmem:[%s2834 + $0x161] sm:$0xff] %vm2655, %v2632
  %2856 = vst.msk [vmem:[%s2834 + $0x171] sm:$0xff] %vm2655, %v2634
  %2857 = vst.msk [vmem:[%s2834 + $0x181] sm:$0xff] %vm2655, %v2636
  %2858 = vst.msk [vmem:[%s2834 + $0x191] sm:$0xff] %vm2655, %v2638
  %2859 = vst.msk [vmem:[%s2834 + $0x1a1] sm:$0xff] %vm2655, %v2640
  %2860 = vst.msk [vmem:[%s2834 + $0x1b1] sm:$0xff] %vm2655, %v2642
  %2861 = vst.msk [vmem:[%s2834 + $0x1c1] sm:$0xff] %vm2655, %v2644
  %2862 = vst.msk [vmem:[%s2834 + $0x1d1] sm:$0xff] %vm2655, %v2646
  %2863 = vst.msk [vmem:[%s2834 + $0x1e1] sm:$0xff] %vm2655, %v2648
  %2864 = vst.msk [vmem:[%s2834 + $0x1f1] sm:$0xff] %vm2655, %v2650
  %2865 = vst.msk [vmem:[%s2834 + $0x201] sm:$0xff] %vm2655, %v2652
  %2866 = vst.msk [vmem:[%s2834 + $0x211] sm:$0xff] %vm2655, %v2654
  // Predicated region
  $region14: #{simple_cnn_forward.3} parent=0 // pred_check
    _
  $region15: #{simple_cnn_forward.3} parent=0 // pred_check_branch
    %2868 = sbr.rel (0) target = $region17
  $region16: #{simple_cnn_forward.3} parent=0 // pred_region
    _
  $region17: #{simple_cnn_forward.3} parent=0 // pred_fallthru
    _
  // Predicated region
  $region18: #{simple_cnn_forward.3} parent=0 // pred_check
    _
  $region19: #{simple_cnn_forward.3} parent=0 // pred_check_branch
    %2870 = sbr.rel (0) target = $region21
  $region20: #{simple_cnn_forward.3} parent=0 // pred_region
    _
  $region21: #{simple_cnn_forward.3} parent=0 // pred_fallthru
    _
  // Predicated region
  $region22: #{simple_cnn_forward.3} parent=0 // pred_check
    _
  $region23: #{simple_cnn_forward.3} parent=0 // pred_check_branch
    %2872 = sbr.rel (0) target = $region25
  $region24: #{simple_cnn_forward.3} parent=0 // pred_region
    _
  $region25: #{simple_cnn_forward.3} parent=0 // pred_fallthru
    _
  // Predicated region
  $region26: #{simple_cnn_forward.3} parent=0 // pred_check
    _
  $region27: #{simple_cnn_forward.3} parent=0 // pred_check_branch
    %2874 = sbr.rel (0) target = $region29
  $region28: #{simple_cnn_forward.3} parent=0 // pred_region
    _
  $region29: #{simple_cnn_forward.3} parent=0 // pred_fallthru
    _

// kernel: simple_cnn_forward.4
$region0: #{simple_cnn_forward.4}
  #allocation0 [shape = 'u32[]', space=smem, size = 0x4, offset = 0x4, fixed_abs, tag = 'smem constant byte address 0x4 - core index']
  #allocation1 [shape = 'u32[144,128]{1,0:T(1,128)}', space=vmem, size = 0x12000, scoped, tag = 'internal scratch']
  #allocation2 [shape = 'f32[256,288]{1,0:T(8,128)}', space=vmem, size = 0x60000, scoped, tag = 'scratch operand']
  %s0 = inlined_call_operand.vmem [shape: f32[2,18,9,32], index: 0, kind: input, shape index: {}]
  %s1 = inlined_call_operand.vmem [shape: f32[2,18,9,32], index: 1, kind: input, shape index: {}]
  %s2 = inlined_call_operand.vmem [shape: f32[288,64], index: 2, kind: input, shape index: {}]
  %s3 = inlined_call_operand.vmem [shape: f32[1,64], index: 3, kind: input, shape index: {}]
  %s4 = inlined_call_operand.vmem [shape: f32[2,8,8,64], index: 4, kind: output, shape index: {}]
  %s5 = sld [smem:[#allocation0]]
  $region26: #{simple_cnn_forward.4} parent=0
    _
  %s7 = ssub.s32 1, %s5
  %s8 = scalar_select 0, %s7, %s5
  // Predicated region
  $region2: #{simple_cnn_forward.4} parent=0 // pred_check
    _
  $region3: #{simple_cnn_forward.4} parent=0 // pred_check_branch
    %10 = sbr.rel (0) target = $region5
  $region4: #{simple_cnn_forward.4} parent=0 // pred_region
    _
  $region5: #{simple_cnn_forward.4} parent=0 // pred_fallthru
    _
  // Predicated region
  $region6: #{simple_cnn_forward.4} parent=0 // pred_check
    _
  $region7: #{simple_cnn_forward.4} parent=0 // pred_check_branch
    %12 = sbr.rel (0) target = $region9
  $region8: #{simple_cnn_forward.4} parent=0 // pred_region
    _
  $region9: #{simple_cnn_forward.4} parent=0 // pred_fallthru
    _
  // Predicated region
  $region10: #{simple_cnn_forward.4} parent=0 // pred_check
    _
  $region11: #{simple_cnn_forward.4} parent=0 // pred_check_branch
    %14 = sbr.rel (0) target = $region13
  $region12: #{simple_cnn_forward.4} parent=0 // pred_region
    _
  $region13: #{simple_cnn_forward.4} parent=0 // pred_fallthru
    _
  // Predicated region
  $region14: #{simple_cnn_forward.4} parent=0 // pred_check
    _
  $region15: #{simple_cnn_forward.4} parent=0 // pred_check_branch
    %16 = sbr.rel (0) target = $region17
  $region16: #{simple_cnn_forward.4} parent=0 // pred_region
    _
  $region17: #{simple_cnn_forward.4} parent=0 // pred_fallthru
    _
  %v17 = vld [vmem:[%s0] sm:$0xff]
  %v18 = vld [vmem:[%s0 + $0x10] sm:$0xff]
  %v19 = vld [vmem:[%s0 + $0x20] sm:$0xff]
  %v20 = vld [vmem:[%s0 + $0x30] sm:$0xff]
  %v21 = vld [vmem:[%s0 + $0x40] sm:$0xff]
  %v22 = vld [vmem:[%s0 + $0x50] sm:$0xff]
  %v23 = vld [vmem:[%s0 + $0x60] sm:$0xff]
  %v24 = vld [vmem:[%s0 + $0x70] sm:$0xff]
  %v25 = vld [vmem:[%s0 + $0x80] sm:$0xff]
  %v26 = vld [vmem:[%s0 + $0x90] sm:$0xff]
  %v27 = vld [vmem:[%s0 + $0xa0] sm:$0xff]
  %v28 = vld [vmem:[%s0 + $0xb0] sm:$0xff]
  %v29 = vld [vmem:[%s0 + $0xc0] sm:$0xff]
  %v30 = vld [vmem:[%s0 + $0xd0] sm:$0xff]
  %v31 = vld [vmem:[%s0 + $0xe0] sm:$0xff]
  %v32 = vld [vmem:[%s0 + $0xf0] sm:$0xff]
  %v33 = vld [vmem:[%s0 + $0x120] sm:$0xff]
  %v34 = vld [vmem:[%s0 + $0x130] sm:$0xff]
  %v35 = vld [vmem:[%s0 + $0x140] sm:$0xff]
  %v36 = vld [vmem:[%s0 + $0x150] sm:$0xff]
  %v37 = vld [vmem:[%s0 + $0x160] sm:$0xff]
  %v38 = vld [vmem:[%s0 + $0x170] sm:$0xff]
  %v39 = vld [vmem:[%s0 + $0x180] sm:$0xff]
  %v40 = vld [vmem:[%s0 + $0x190] sm:$0xff]
  %v41 = vld [vmem:[%s0 + $0x1a0] sm:$0xff]
  %v42 = vld [vmem:[%s0 + $0x1b0] sm:$0xff]
  %v43 = vld [vmem:[%s0 + $0x1c0] sm:$0xff]
  %v44 = vld [vmem:[%s0 + $0x1d0] sm:$0xff]
  %v45 = vld [vmem:[%s0 + $0x1e0] sm:$0xff]
  %v46 = vld [vmem:[%s0 + $0x1f0] sm:$0xff]
  %v47 = vld [vmem:[%s0 + $0x200] sm:$0xff]
  %v48 = vld [vmem:[%s0 + $0x210] sm:$0xff]
  %vm49 = vcmask 261120
  %50 = vst.msk [vmem:[#allocation2] sm:$0xff] %vm49, %v17
  %51 = vst.msk [vmem:[#allocation2 + $0x18] sm:$0xff] %vm49, %v18
  %52 = vst.msk [vmem:[#allocation2 + $0x30] sm:$0xff] %vm49, %v19
  %53 = vst.msk [vmem:[#allocation2 + $0x48] sm:$0xff] %vm49, %v20
  %54 = vst.msk [vmem:[#allocation2 + $0x60] sm:$0xff] %vm49, %v21
  %55 = vst.msk [vmem:[#allocation2 + $0x78] sm:$0xff] %vm49, %v22
  %56 = vst.msk [vmem:[#allocation2 + $0x90] sm:$0xff] %vm49, %v23
  %57 = vst.msk [vmem:[#allocation2 + $0xa8] sm:$0xff] %vm49, %v24
  %58 = vst.msk [vmem:[#allocation2 + $0xc0] sm:$0xff] %vm49, %v25
  %59 = vst.msk [vmem:[#allocation2 + $0xd8] sm:$0xff] %vm49, %v26
  %60 = vst.msk [vmem:[#allocation2 + $0xf0] sm:$0xff] %vm49, %v27
  %61 = vst.msk [vmem:[#allocation2 + $0x108] sm:$0xff] %vm49, %v28
  %62 = vst.msk [vmem:[#allocation2 + $0x120] sm:$0xff] %vm49, %v29
  %63 = vst.msk [vmem:[#allocation2 + $0x138] sm:$0xff] %vm49, %v30
  %64 = vst.msk [vmem:[#allocation2 + $0x150] sm:$0xff] %vm49, %v31
  %65 = vst.msk [vmem:[#allocation2 + $0x168] sm:$0xff] %vm49, %v32
  %66 = vst.msk [vmem:[#allocation2 + $0x180] sm:$0xff] %vm49, %v33
  %67 = vst.msk [vmem:[#allocation2 + $0x198] sm:$0xff] %vm49, %v34
  %68 = vst.msk [vmem:[#allocation2 + $0x1b0] sm:$0xff] %vm49, %v35
  %69 = vst.msk [vmem:[#allocation2 + $0x1c8] sm:$0xff] %vm49, %v36
  %70 = vst.msk [vmem:[#allocation2 + $0x1e0] sm:$0xff] %vm49, %v37
  %71 = vst.msk [vmem:[#allocation2 + $0x1f8] sm:$0xff] %vm49, %v38
  %72 = vst.msk [vmem:[#allocation2 + $0x210] sm:$0xff] %vm49, %v39
  %73 = vst.msk [vmem:[#allocation2 + $0x228] sm:$0xff] %vm49, %v40
  %74 = vst.msk [vmem:[#allocation2 + $0x240] sm:$0xff] %vm49, %v41
  %75 = vst.msk [vmem:[#allocation2 + $0x258] sm:$0xff] %vm49, %v42
  %76 = vst.msk [vmem:[#allocation2 + $0x270] sm:$0xff] %vm49, %v43
  %77 = vst.msk [vmem:[#allocation2 + $0x288] sm:$0xff] %vm49, %v44
  %78 = vst.msk [vmem:[#allocation2 + $0x2a0] sm:$0xff] %vm49, %v45
  %79 = vst.msk [vmem:[#allocation2 + $0x2b8] sm:$0xff] %vm49, %v46
  %80 = vst.msk [vmem:[#allocation2 + $0x2d0] sm:$0xff] %vm49, %v47
  %81 = vst.msk [vmem:[#allocation2 + $0x2e8] sm:$0xff] %vm49, %v48
  %v82 = vld [vmem:[%s1] sm:$0xff]
  %v83 = vld [vmem:[%s1 + $0x10] sm:$0xff]
  %v84 = vld [vmem:[%s1 + $0x20] sm:$0xff]
  %v85 = vld [vmem:[%s1 + $0x30] sm:$0xff]
  %v86 = vld [vmem:[%s1 + $0x40] sm:$0xff]
  %v87 = vld [vmem:[%s1 + $0x50] sm:$0xff]
  %v88 = vld [vmem:[%s1 + $0x60] sm:$0xff]
  %v89 = vld [vmem:[%s1 + $0x70] sm:$0xff]
  %v90 = vld [vmem:[%s1 + $0x80] sm:$0xff]
  %v91 = vld [vmem:[%s1 + $0x90] sm:$0xff]
  %v92 = vld [vmem:[%s1 + $0xa0] sm:$0xff]
  %v93 = vld [vmem:[%s1 + $0xb0] sm:$0xff]
  %v94 = vld [vmem:[%s1 + $0xc0] sm:$0xff]
  %v95 = vld [vmem:[%s1 + $0xd0] sm:$0xff]
  %v96 = vld [vmem:[%s1 + $0xe0] sm:$0xff]
  %v97 = vld [vmem:[%s1 + $0xf0] sm:$0xff]
  %v98 = vld [vmem:[%s1 + $0x120] sm:$0xff]
  %v99 = vld [vmem:[%s1 + $0x130] sm:$0xff]
  %v100 = vld [vmem:[%s1 + $0x140] sm:$0xff]
  %v101 = vld [vmem:[%s1 + $0x150] sm:$0xff]
  %v102 = vld [vmem:[%s1 + $0x160] sm:$0xff]
  %v103 = vld [vmem:[%s1 + $0x170] sm:$0xff]
  %v104 = vld [vmem:[%s1 + $0x180] sm:$0xff]
  %v105 = vld [vmem:[%s1 + $0x190] sm:$0xff]
  %v106 = vld [vmem:[%s1 + $0x1a0] sm:$0xff]
  %v107 = vld [vmem:[%s1 + $0x1b0] sm:$0xff]
  %v108 = vld [vmem:[%s1 + $0x1c0] sm:$0xff]
  %v109 = vld [vmem:[%s1 + $0x1d0] sm:$0xff]
  %v110 = vld [vmem:[%s1 + $0x1e0] sm:$0xff]
  %v111 = vld [vmem:[%s1 + $0x1f0] sm:$0xff]
  %v112 = vld [vmem:[%s1 + $0x200] sm:$0xff]
  %v113 = vld [vmem:[%s1 + $0x210] sm:$0xff]
  %146 = vrot.lane.b32.xlu0 %v82, 32
  %v147 = vpop.permute.xlu0 %146
  %148 = vrot.lane.b32.xlu0 %v83, 32
  %v149 = vpop.permute.xlu0 %148
  %150 = vrot.lane.b32.xlu0 %v84, 32
  %v151 = vpop.permute.xlu0 %150
  %152 = vrot.lane.b32.xlu0 %v85, 32
  %v153 = vpop.permute.xlu0 %152
  %154 = vrot.lane.b32.xlu0 %v86, 32
  %v155 = vpop.permute.xlu0 %154
  %156 = vrot.lane.b32.xlu0 %v87, 32
  %v157 = vpop.permute.xlu0 %156
  %158 = vrot.lane.b32.xlu0 %v88, 32
  %v159 = vpop.permute.xlu0 %158
  %160 = vrot.lane.b32.xlu0 %v89, 32
  %v161 = vpop.permute.xlu0 %160
  %162 = vrot.lane.b32.xlu0 %v90, 32
  %v163 = vpop.permute.xlu0 %162
  %164 = vrot.lane.b32.xlu0 %v91, 32
  %v165 = vpop.permute.xlu0 %164
  %166 = vrot.lane.b32.xlu0 %v92, 32
  %v167 = vpop.permute.xlu0 %166
  %168 = vrot.lane.b32.xlu0 %v93, 32
  %v169 = vpop.permute.xlu0 %168
  %170 = vrot.lane.b32.xlu0 %v94, 32
  %v171 = vpop.permute.xlu0 %170
  %172 = vrot.lane.b32.xlu0 %v95, 32
  %v173 = vpop.permute.xlu0 %172
  %174 = vrot.lane.b32.xlu0 %v96, 32
  %v175 = vpop.permute.xlu0 %174
  %176 = vrot.lane.b32.xlu0 %v97, 32
  %v177 = vpop.permute.xlu0 %176
  %178 = vrot.lane.b32.xlu0 %v98, 32
  %v179 = vpop.permute.xlu0 %178
  %180 = vrot.lane.b32.xlu0 %v99, 32
  %v181 = vpop.permute.xlu0 %180
  %182 = vrot.lane.b32.xlu0 %v100, 32
  %v183 = vpop.permute.xlu0 %182
  %184 = vrot.lane.b32.xlu0 %v101, 32
  %v185 = vpop.permute.xlu0 %184
  %186 = vrot.lane.b32.xlu0 %v102, 32
  %v187 = vpop.permute.xlu0 %186
  %188 = vrot.lane.b32.xlu0 %v103, 32
  %v189 = vpop.permute.xlu0 %188
  %190 = vrot.lane.b32.xlu0 %v104, 32
  %v191 = vpop.permute.xlu0 %190
  %192 = vrot.lane.b32.xlu0 %v105, 32
  %v193 = vpop.permute.xlu0 %192
  %194 = vrot.lane.b32.xlu0 %v106, 32
  %v195 = vpop.permute.xlu0 %194
  %196 = vrot.lane.b32.xlu0 %v107, 32
  %v197 = vpop.permute.xlu0 %196
  %198 = vrot.lane.b32.xlu0 %v108, 32
  %v199 = vpop.permute.xlu0 %198
  %200 = vrot.lane.b32.xlu0 %v109, 32
  %v201 = vpop.permute.xlu0 %200
  %202 = vrot.lane.b32.xlu0 %v110, 32
  %v203 = vpop.permute.xlu0 %202
  %204 = vrot.lane.b32.xlu0 %v111, 32
  %v205 = vpop.permute.xlu0 %204
  %206 = vrot.lane.b32.xlu0 %v112, 32
  %v207 = vpop.permute.xlu0 %206
  %208 = vrot.lane.b32.xlu0 %v113, 32
  %v209 = vpop.permute.xlu0 %208
  %vm242 = vcmask 523520
  %243 = vst.msk [vmem:[#allocation2] sm:$0xff] %vm242, %v147
  %244 = vst.msk [vmem:[#allocation2 + $0x18] sm:$0xff] %vm242, %v149
  %245 = vst.msk [vmem:[#allocation2 + $0x30] sm:$0xff] %vm242, %v151
  %246 = vst.msk [vmem:[#allocation2 + $0x48] sm:$0xff] %vm242, %v153
  %247 = vst.msk [vmem:[#allocation2 + $0x60] sm:$0xff] %vm242, %v155
  %248 = vst.msk [vmem:[#allocation2 + $0x78] sm:$0xff] %vm242, %v157
  %249 = vst.msk [vmem:[#allocation2 + $0x90] sm:$0xff] %vm242, %v159
  %250 = vst.msk [vmem:[#allocation2 + $0xa8] sm:$0xff] %vm242, %v161
  %251 = vst.msk [vmem:[#allocation2 + $0xc0] sm:$0xff] %vm242, %v163
  %252 = vst.msk [vmem:[#allocation2 + $0xd8] sm:$0xff] %vm242, %v165
  %253 = vst.msk [vmem:[#allocation2 + $0xf0] sm:$0xff] %vm242, %v167
  %254 = vst.msk [vmem:[#allocation2 + $0x108] sm:$0xff] %vm242, %v169
  %255 = vst.msk [vmem:[#allocation2 + $0x120] sm:$0xff] %vm242, %v171
  %256 = vst.msk [vmem:[#allocation2 + $0x138] sm:$0xff] %vm242, %v173
  %257 = vst.msk [vmem:[#allocation2 + $0x150] sm:$0xff] %vm242, %v175
  %258 = vst.msk [vmem:[#allocation2 + $0x168] sm:$0xff] %vm242, %v177
  %259 = vst.msk [vmem:[#allocation2 + $0x180] sm:$0xff] %vm242, %v179
  %260 = vst.msk [vmem:[#allocation2 + $0x198] sm:$0xff] %vm242, %v181
  %261 = vst.msk [vmem:[#allocation2 + $0x1b0] sm:$0xff] %vm242, %v183
  %262 = vst.msk [vmem:[#allocation2 + $0x1c8] sm:$0xff] %vm242, %v185
  %263 = vst.msk [vmem:[#allocation2 + $0x1e0] sm:$0xff] %vm242, %v187
  %264 = vst.msk [vmem:[#allocation2 + $0x1f8] sm:$0xff] %vm242, %v189
  %265 = vst.msk [vmem:[#allocation2 + $0x210] sm:$0xff] %vm242, %v191
  %266 = vst.msk [vmem:[#allocation2 + $0x228] sm:$0xff] %vm242, %v193
  %267 = vst.msk [vmem:[#allocation2 + $0x240] sm:$0xff] %vm242, %v195
  %268 = vst.msk [vmem:[#allocation2 + $0x258] sm:$0xff] %vm242, %v197
  %269 = vst.msk [vmem:[#allocation2 + $0x270] sm:$0xff] %vm242, %v199
  %270 = vst.msk [vmem:[#allocation2 + $0x288] sm:$0xff] %vm242, %v201
  %271 = vst.msk [vmem:[#allocation2 + $0x2a0] sm:$0xff] %vm242, %v203
  %272 = vst.msk [vmem:[#allocation2 + $0x2b8] sm:$0xff] %vm242, %v205
  %273 = vst.msk [vmem:[#allocation2 + $0x2d0] sm:$0xff] %vm242, %v207
  %274 = vst.msk [vmem:[#allocation2 + $0x2e8] sm:$0xff] %vm242, %v209
  %v275 = vld [vmem:[%s0 + $0x1] sm:$0xff]
  %v276 = vld [vmem:[%s0 + $0x11] sm:$0xff]
  %v277 = vld [vmem:[%s0 + $0x21] sm:$0xff]
  %v278 = vld [vmem:[%s0 + $0x31] sm:$0xff]
  %v279 = vld [vmem:[%s0 + $0x41] sm:$0xff]
  %v280 = vld [vmem:[%s0 + $0x51] sm:$0xff]
  %v281 = vld [vmem:[%s0 + $0x61] sm:$0xff]
  %v282 = vld [vmem:[%s0 + $0x71] sm:$0xff]
  %v283 = vld [vmem:[%s0 + $0x81] sm:$0xff]
  %v284 = vld [vmem:[%s0 + $0x91] sm:$0xff]
  %v285 = vld [vmem:[%s0 + $0xa1] sm:$0xff]
  %v286 = vld [vmem:[%s0 + $0xb1] sm:$0xff]
  %v287 = vld [vmem:[%s0 + $0xc1] sm:$0xff]
  %v288 = vld [vmem:[%s0 + $0xd1] sm:$0xff]
  %v289 = vld [vmem:[%s0 + $0xe1] sm:$0xff]
  %v290 = vld [vmem:[%s0 + $0xf1] sm:$0xff]
  %v291 = vld [vmem:[%s0 + $0x121] sm:$0xff]
  %v292 = vld [vmem:[%s0 + $0x131] sm:$0xff]
  %v293 = vld [vmem:[%s0 + $0x141] sm:$0xff]
  %v294 = vld [vmem:[%s0 + $0x151] sm:$0xff]
  %v295 = vld [vmem:[%s0 + $0x161] sm:$0xff]
  %v296 = vld [vmem:[%s0 + $0x171] sm:$0xff]
  %v297 = vld [vmem:[%s0 + $0x181] sm:$0xff]
  %v298 = vld [vmem:[%s0 + $0x191] sm:$0xff]
  %v299 = vld [vmem:[%s0 + $0x1a1] sm:$0xff]
  %v300 = vld [vmem:[%s0 + $0x1b1] sm:$0xff]
  %v301 = vld [vmem:[%s0 + $0x1c1] sm:$0xff]
  %v302 = vld [vmem:[%s0 + $0x1d1] sm:$0xff]
  %v303 = vld [vmem:[%s0 + $0x1e1] sm:$0xff]
  %v304 = vld [vmem:[%s0 + $0x1f1] sm:$0xff]
  %v305 = vld [vmem:[%s0 + $0x201] sm:$0xff]
  %v306 = vld [vmem:[%s0 + $0x211] sm:$0xff]
  %339 = vrot.lane.b32.xlu0 %v275, 64
  %v340 = vpop.permute.xlu0 %339
  %341 = vrot.lane.b32.xlu0 %v276, 64
  %v342 = vpop.permute.xlu0 %341
  %343 = vrot.lane.b32.xlu0 %v277, 64
  %v344 = vpop.permute.xlu0 %343
  %345 = vrot.lane.b32.xlu0 %v278, 64
  %v346 = vpop.permute.xlu0 %345
  %347 = vrot.lane.b32.xlu0 %v279, 64
  %v348 = vpop.permute.xlu0 %347
  %349 = vrot.lane.b32.xlu0 %v280, 64
  %v350 = vpop.permute.xlu0 %349
  %351 = vrot.lane.b32.xlu0 %v281, 64
  %v352 = vpop.permute.xlu0 %351
  %353 = vrot.lane.b32.xlu0 %v282, 64
  %v354 = vpop.permute.xlu0 %353
  %355 = vrot.lane.b32.xlu0 %v283, 64
  %v356 = vpop.permute.xlu0 %355
  %357 = vrot.lane.b32.xlu0 %v284, 64
  %v358 = vpop.permute.xlu0 %357
  %359 = vrot.lane.b32.xlu0 %v285, 64
  %v360 = vpop.permute.xlu0 %359
  %361 = vrot.lane.b32.xlu0 %v286, 64
  %v362 = vpop.permute.xlu0 %361
  %363 = vrot.lane.b32.xlu0 %v287, 64
  %v364 = vpop.permute.xlu0 %363
  %365 = vrot.lane.b32.xlu0 %v288, 64
  %v366 = vpop.permute.xlu0 %365
  %367 = vrot.lane.b32.xlu0 %v289, 64
  %v368 = vpop.permute.xlu0 %367
  %369 = vrot.lane.b32.xlu0 %v290, 64
  %v370 = vpop.permute.xlu0 %369
  %371 = vrot.lane.b32.xlu0 %v291, 64
  %v372 = vpop.permute.xlu0 %371
  %373 = vrot.lane.b32.xlu0 %v292, 64
  %v374 = vpop.permute.xlu0 %373
  %375 = vrot.lane.b32.xlu0 %v293, 64
  %v376 = vpop.permute.xlu0 %375
  %377 = vrot.lane.b32.xlu0 %v294, 64
  %v378 = vpop.permute.xlu0 %377
  %379 = vrot.lane.b32.xlu0 %v295, 64
  %v380 = vpop.permute.xlu0 %379
  %381 = vrot.lane.b32.xlu0 %v296, 64
  %v382 = vpop.permute.xlu0 %381
  %383 = vrot.lane.b32.xlu0 %v297, 64
  %v384 = vpop.permute.xlu0 %383
  %385 = vrot.lane.b32.xlu0 %v298, 64
  %v386 = vpop.permute.xlu0 %385
  %387 = vrot.lane.b32.xlu0 %v299, 64
  %v388 = vpop.permute.xlu0 %387
  %389 = vrot.lane.b32.xlu0 %v300, 64
  %v390 = vpop.permute.xlu0 %389
  %391 = vrot.lane.b32.xlu0 %v301, 64
  %v392 = vpop.permute.xlu0 %391
  %393 = vrot.lane.b32.xlu0 %v302, 64
  %v394 = vpop.permute.xlu0 %393
  %395 = vrot.lane.b32.xlu0 %v303, 64
  %v396 = vpop.permute.xlu0 %395
  %397 = vrot.lane.b32.xlu0 %v304, 64
  %v398 = vpop.permute.xlu0 %397
  %399 = vrot.lane.b32.xlu0 %v305, 64
  %v400 = vpop.permute.xlu0 %399
  %401 = vrot.lane.b32.xlu0 %v306, 64
  %v402 = vpop.permute.xlu0 %401
  %vm435 = vcmask 785920
  %436 = vst.msk [vmem:[#allocation2] sm:$0xff] %vm435, %v340
  %437 = vst.msk [vmem:[#allocation2 + $0x18] sm:$0xff] %vm435, %v342
  %438 = vst.msk [vmem:[#allocation2 + $0x30] sm:$0xff] %vm435, %v344
  %439 = vst.msk [vmem:[#allocation2 + $0x48] sm:$0xff] %vm435, %v346
  %440 = vst.msk [vmem:[#allocation2 + $0x60] sm:$0xff] %vm435, %v348
  %441 = vst.msk [vmem:[#allocation2 + $0x78] sm:$0xff] %vm435, %v350
  %442 = vst.msk [vmem:[#allocation2 + $0x90] sm:$0xff] %vm435, %v352
  %443 = vst.msk [vmem:[#allocation2 + $0xa8] sm:$0xff] %vm435, %v354
  %444 = vst.msk [vmem:[#allocation2 + $0xc0] sm:$0xff] %vm435, %v356
  %445 = vst.msk [vmem:[#allocation2 + $0xd8] sm:$0xff] %vm435, %v358
  %446 = vst.msk [vmem:[#allocation2 + $0xf0] sm:$0xff] %vm435, %v360
  %447 = vst.msk [vmem:[#allocation2 + $0x108] sm:$0xff] %vm435, %v362
  %448 = vst.msk [vmem:[#allocation2 + $0x120] sm:$0xff] %vm435, %v364
  %449 = vst.msk [vmem:[#allocation2 + $0x138] sm:$0xff] %vm435, %v366
  %450 = vst.msk [vmem:[#allocation2 + $0x150] sm:$0xff] %vm435, %v368
  %451 = vst.msk [vmem:[#allocation2 + $0x168] sm:$0xff] %vm435, %v370
  %452 = vst.msk [vmem:[#allocation2 + $0x180] sm:$0xff] %vm435, %v372
  %453 = vst.msk [vmem:[#allocation2 + $0x198] sm:$0xff] %vm435, %v374
  %454 = vst.msk [vmem:[#allocation2 + $0x1b0] sm:$0xff] %vm435, %v376
  %455 = vst.msk [vmem:[#allocation2 + $0x1c8] sm:$0xff] %vm435, %v378
  %456 = vst.msk [vmem:[#allocation2 + $0x1e0] sm:$0xff] %vm435, %v380
  %457 = vst.msk [vmem:[#allocation2 + $0x1f8] sm:$0xff] %vm435, %v382
  %458 = vst.msk [vmem:[#allocation2 + $0x210] sm:$0xff] %vm435, %v384
  %459 = vst.msk [vmem:[#allocation2 + $0x228] sm:$0xff] %vm435, %v386
  %460 = vst.msk [vmem:[#allocation2 + $0x240] sm:$0xff] %vm435, %v388
  %461 = vst.msk [vmem:[#allocation2 + $0x258] sm:$0xff] %vm435, %v390
  %462 = vst.msk [vmem:[#allocation2 + $0x270] sm:$0xff] %vm435, %v392
  %463 = vst.msk [vmem:[#allocation2 + $0x288] sm:$0xff] %vm435, %v394
  %464 = vst.msk [vmem:[#allocation2 + $0x2a0] sm:$0xff] %vm435, %v396
  %465 = vst.msk [vmem:[#allocation2 + $0x2b8] sm:$0xff] %vm435, %v398
  %466 = vst.msk [vmem:[#allocation2 + $0x2d0] sm:$0xff] %vm435, %v400
  %467 = vst.msk [vmem:[#allocation2 + $0x2e8] sm:$0xff] %vm435, %v402
  %s468 = scalar_lea.vmem %s0, 16
  %v469 = vld [vmem:[%s468] sm:$0xff]
  %v470 = vld [vmem:[%s468 + $0x10] sm:$0xff]
  %v471 = vld [vmem:[%s468 + $0x20] sm:$0xff]
  %v472 = vld [vmem:[%s468 + $0x30] sm:$0xff]
  %v473 = vld [vmem:[%s468 + $0x40] sm:$0xff]
  %v474 = vld [vmem:[%s468 + $0x50] sm:$0xff]
  %v475 = vld [vmem:[%s468 + $0x60] sm:$0xff]
  %v476 = vld [vmem:[%s468 + $0x70] sm:$0xff]
  %v477 = vld [vmem:[%s468 + $0x80] sm:$0xff]
  %v478 = vld [vmem:[%s468 + $0x90] sm:$0xff]
  %v479 = vld [vmem:[%s468 + $0xa0] sm:$0xff]
  %v480 = vld [vmem:[%s468 + $0xb0] sm:$0xff]
  %v481 = vld [vmem:[%s468 + $0xc0] sm:$0xff]
  %v482 = vld [vmem:[%s468 + $0xd0] sm:$0xff]
  %v483 = vld [vmem:[%s468 + $0xe0] sm:$0xff]
  %v484 = vld [vmem:[%s468 + $0xf0] sm:$0xff]
  %v485 = vld [vmem:[%s468 + $0x120] sm:$0xff]
  %v486 = vld [vmem:[%s468 + $0x130] sm:$0xff]
  %v487 = vld [vmem:[%s468 + $0x140] sm:$0xff]
  %v488 = vld [vmem:[%s468 + $0x150] sm:$0xff]
  %v489 = vld [vmem:[%s468 + $0x160] sm:$0xff]
  %v490 = vld [vmem:[%s468 + $0x170] sm:$0xff]
  %v491 = vld [vmem:[%s468 + $0x180] sm:$0xff]
  %v492 = vld [vmem:[%s468 + $0x190] sm:$0xff]
  %v493 = vld [vmem:[%s468 + $0x1a0] sm:$0xff]
  %v494 = vld [vmem:[%s468 + $0x1b0] sm:$0xff]
  %v495 = vld [vmem:[%s468 + $0x1c0] sm:$0xff]
  %v496 = vld [vmem:[%s468 + $0x1d0] sm:$0xff]
  %v497 = vld [vmem:[%s468 + $0x1e0] sm:$0xff]
  %v498 = vld [vmem:[%s468 + $0x1f0] sm:$0xff]
  %v499 = vld [vmem:[%s468 + $0x200] sm:$0xff]
  %v500 = vld [vmem:[%s468 + $0x210] sm:$0xff]
  %533 = vrot.lane.b32.xlu0 %v469, 96
  %v534 = vpop.permute.xlu0 %533
  %535 = vrot.lane.b32.xlu0 %v470, 96
  %v536 = vpop.permute.xlu0 %535
  %537 = vrot.lane.b32.xlu0 %v471, 96
  %v538 = vpop.permute.xlu0 %537
  %539 = vrot.lane.b32.xlu0 %v472, 96
  %v540 = vpop.permute.xlu0 %539
  %541 = vrot.lane.b32.xlu0 %v473, 96
  %v542 = vpop.permute.xlu0 %541
  %543 = vrot.lane.b32.xlu0 %v474, 96
  %v544 = vpop.permute.xlu0 %543
  %545 = vrot.lane.b32.xlu0 %v475, 96
  %v546 = vpop.permute.xlu0 %545
  %547 = vrot.lane.b32.xlu0 %v476, 96
  %v548 = vpop.permute.xlu0 %547
  %549 = vrot.lane.b32.xlu0 %v477, 96
  %v550 = vpop.permute.xlu0 %549
  %551 = vrot.lane.b32.xlu0 %v478, 96
  %v552 = vpop.permute.xlu0 %551
  %553 = vrot.lane.b32.xlu0 %v479, 96
  %v554 = vpop.permute.xlu0 %553
  %555 = vrot.lane.b32.xlu0 %v480, 96
  %v556 = vpop.permute.xlu0 %555
  %557 = vrot.lane.b32.xlu0 %v481, 96
  %v558 = vpop.permute.xlu0 %557
  %559 = vrot.lane.b32.xlu0 %v482, 96
  %v560 = vpop.permute.xlu0 %559
  %561 = vrot.lane.b32.xlu0 %v483, 96
  %v562 = vpop.permute.xlu0 %561
  %563 = vrot.lane.b32.xlu0 %v484, 96
  %v564 = vpop.permute.xlu0 %563
  %565 = vrot.lane.b32.xlu0 %v485, 96
  %v566 = vpop.permute.xlu0 %565
  %567 = vrot.lane.b32.xlu0 %v486, 96
  %v568 = vpop.permute.xlu0 %567
  %569 = vrot.lane.b32.xlu0 %v487, 96
  %v570 = vpop.permute.xlu0 %569
  %571 = vrot.lane.b32.xlu0 %v488, 96
  %v572 = vpop.permute.xlu0 %571
  %573 = vrot.lane.b32.xlu0 %v489, 96
  %v574 = vpop.permute.xlu0 %573
  %575 = vrot.lane.b32.xlu0 %v490, 96
  %v576 = vpop.permute.xlu0 %575
  %577 = vrot.lane.b32.xlu0 %v491, 96
  %v578 = vpop.permute.xlu0 %577
  %579 = vrot.lane.b32.xlu0 %v492, 96
  %v580 = vpop.permute.xlu0 %579
  %581 = vrot.lane.b32.xlu0 %v493, 96
  %v582 = vpop.permute.xlu0 %581
  %583 = vrot.lane.b32.xlu0 %v494, 96
  %v584 = vpop.permute.xlu0 %583
  %585 = vrot.lane.b32.xlu0 %v495, 96
  %v586 = vpop.permute.xlu0 %585
  %587 = vrot.lane.b32.xlu0 %v496, 96
  %v588 = vpop.permute.xlu0 %587
  %589 = vrot.lane.b32.xlu0 %v497, 96
  %v590 = vpop.permute.xlu0 %589
  %591 = vrot.lane.b32.xlu0 %v498, 96
  %v592 = vpop.permute.xlu0 %591
  %593 = vrot.lane.b32.xlu0 %v499, 96
  %v594 = vpop.permute.xlu0 %593
  %595 = vrot.lane.b32.xlu0 %v500, 96
  %v596 = vpop.permute.xlu0 %595
  %vm629 = vcmask 1048320
  %630 = vst.msk [vmem:[#allocation2] sm:$0xff] %vm629, %v534
  %631 = vst.msk [vmem:[#allocation2 + $0x18] sm:$0xff] %vm629, %v536
  %632 = vst.msk [vmem:[#allocation2 + $0x30] sm:$0xff] %vm629, %v538
  %633 = vst.msk [vmem:[#allocation2 + $0x48] sm:$0xff] %vm629, %v540
  %634 = vst.msk [vmem:[#allocation2 + $0x60] sm:$0xff] %vm629, %v542
  %635 = vst.msk [vmem:[#allocation2 + $0x78] sm:$0xff] %vm629, %v544
  %636 = vst.msk [vmem:[#allocation2 + $0x90] sm:$0xff] %vm629, %v546
  %637 = vst.msk [vmem:[#allocation2 + $0xa8] sm:$0xff] %vm629, %v548
  %638 = vst.msk [vmem:[#allocation2 + $0xc0] sm:$0xff] %vm629, %v550
  %639 = vst.msk [vmem:[#allocation2 + $0xd8] sm:$0xff] %vm629, %v552
  %640 = vst.msk [vmem:[#allocation2 + $0xf0] sm:$0xff] %vm629, %v554
  %641 = vst.msk [vmem:[#allocation2 + $0x108] sm:$0xff] %vm629, %v556
  %642 = vst.msk [vmem:[#allocation2 + $0x120] sm:$0xff] %vm629, %v558
  %643 = vst.msk [vmem:[#allocation2 + $0x138] sm:$0xff] %vm629, %v560
  %644 = vst.msk [vmem:[#allocation2 + $0x150] sm:$0xff] %vm629, %v562
  %645 = vst.msk [vmem:[#allocation2 + $0x168] sm:$0xff] %vm629, %v564
  %646 = vst.msk [vmem:[#allocation2 + $0x180] sm:$0xff] %vm629, %v566
  %647 = vst.msk [vmem:[#allocation2 + $0x198] sm:$0xff] %vm629, %v568
  %648 = vst.msk [vmem:[#allocation2 + $0x1b0] sm:$0xff] %vm629, %v570
  %649 = vst.msk [vmem:[#allocation2 + $0x1c8] sm:$0xff] %vm629, %v572
  %650 = vst.msk [vmem:[#allocation2 + $0x1e0] sm:$0xff] %vm629, %v574
  %651 = vst.msk [vmem:[#allocation2 + $0x1f8] sm:$0xff] %vm629, %v576
  %652 = vst.msk [vmem:[#allocation2 + $0x210] sm:$0xff] %vm629, %v578
  %653 = vst.msk [vmem:[#allocation2 + $0x228] sm:$0xff] %vm629, %v580
  %654 = vst.msk [vmem:[#allocation2 + $0x240] sm:$0xff] %vm629, %v582
  %655 = vst.msk [vmem:[#allocation2 + $0x258] sm:$0xff] %vm629, %v584
  %656 = vst.msk [vmem:[#allocation2 + $0x270] sm:$0xff] %vm629, %v586
  %657 = vst.msk [vmem:[#allocation2 + $0x288] sm:$0xff] %vm629, %v588
  %658 = vst.msk [vmem:[#allocation2 + $0x2a0] sm:$0xff] %vm629, %v590
  %659 = vst.msk [vmem:[#allocation2 + $0x2b8] sm:$0xff] %vm629, %v592
  %660 = vst.msk [vmem:[#allocation2 + $0x2d0] sm:$0xff] %vm629, %v594
  %661 = vst.msk [vmem:[#allocation2 + $0x2e8] sm:$0xff] %vm629, %v596
  %s662 = scalar_lea.vmem %s1, 16
  %v663 = vld [vmem:[%s662] sm:$0xff]
  %v664 = vld [vmem:[%s662 + $0x10] sm:$0xff]
  %v665 = vld [vmem:[%s662 + $0x20] sm:$0xff]
  %v666 = vld [vmem:[%s662 + $0x30] sm:$0xff]
  %v667 = vld [vmem:[%s662 + $0x40] sm:$0xff]
  %v668 = vld [vmem:[%s662 + $0x50] sm:$0xff]
  %v669 = vld [vmem:[%s662 + $0x60] sm:$0xff]
  %v670 = vld [vmem:[%s662 + $0x70] sm:$0xff]
  %v671 = vld [vmem:[%s662 + $0x80] sm:$0xff]
  %v672 = vld [vmem:[%s662 + $0x90] sm:$0xff]
  %v673 = vld [vmem:[%s662 + $0xa0] sm:$0xff]
  %v674 = vld [vmem:[%s662 + $0xb0] sm:$0xff]
  %v675 = vld [vmem:[%s662 + $0xc0] sm:$0xff]
  %v676 = vld [vmem:[%s662 + $0xd0] sm:$0xff]
  %v677 = vld [vmem:[%s662 + $0xe0] sm:$0xff]
  %v678 = vld [vmem:[%s662 + $0xf0] sm:$0xff]
  %v679 = vld [vmem:[%s662 + $0x120] sm:$0xff]
  %v680 = vld [vmem:[%s662 + $0x130] sm:$0xff]
  %v681 = vld [vmem:[%s662 + $0x140] sm:$0xff]
  %v682 = vld [vmem:[%s662 + $0x150] sm:$0xff]
  %v683 = vld [vmem:[%s662 + $0x160] sm:$0xff]
  %v684 = vld [vmem:[%s662 + $0x170] sm:$0xff]
  %v685 = vld [vmem:[%s662 + $0x180] sm:$0xff]
  %v686 = vld [vmem:[%s662 + $0x190] sm:$0xff]
  %v687 = vld [vmem:[%s662 + $0x1a0] sm:$0xff]
  %v688 = vld [vmem:[%s662 + $0x1b0] sm:$0xff]
  %v689 = vld [vmem:[%s662 + $0x1c0] sm:$0xff]
  %v690 = vld [vmem:[%s662 + $0x1d0] sm:$0xff]
  %v691 = vld [vmem:[%s662 + $0x1e0] sm:$0xff]
  %v692 = vld [vmem:[%s662 + $0x1f0] sm:$0xff]
  %v693 = vld [vmem:[%s662 + $0x200] sm:$0xff]
  %v694 = vld [vmem:[%s662 + $0x210] sm:$0xff]
  %695 = vst.msk [vmem:[#allocation2 + $0x8] sm:$0xff] %vm49, %v663
  %696 = vst.msk [vmem:[#allocation2 + $0x20] sm:$0xff] %vm49, %v664
  %697 = vst.msk [vmem:[#allocation2 + $0x38] sm:$0xff] %vm49, %v665
  %698 = vst.msk [vmem:[#allocation2 + $0x50] sm:$0xff] %vm49, %v666
  %699 = vst.msk [vmem:[#allocation2 + $0x68] sm:$0xff] %vm49, %v667
  %700 = vst.msk [vmem:[#allocation2 + $0x80] sm:$0xff] %vm49, %v668
  %701 = vst.msk [vmem:[#allocation2 + $0x98] sm:$0xff] %vm49, %v669
  %702 = vst.msk [vmem:[#allocation2 + $0xb0] sm:$0xff] %vm49, %v670
  %703 = vst.msk [vmem:[#allocation2 + $0xc8] sm:$0xff] %vm49, %v671
  %704 = vst.msk [vmem:[#allocation2 + $0xe0] sm:$0xff] %vm49, %v672
  %705 = vst.msk [vmem:[#allocation2 + $0xf8] sm:$0xff] %vm49, %v673
  %706 = vst.msk [vmem:[#allocation2 + $0x110] sm:$0xff] %vm49, %v674
  %707 = vst.msk [vmem:[#allocation2 + $0x128] sm:$0xff] %vm49, %v675
  %708 = vst.msk [vmem:[#allocation2 + $0x140] sm:$0xff] %vm49, %v676
  %709 = vst.msk [vmem:[#allocation2 + $0x158] sm:$0xff] %vm49, %v677
  %710 = vst.msk [vmem:[#allocation2 + $0x170] sm:$0xff] %vm49, %v678
  %711 = vst.msk [vmem:[#allocation2 + $0x188] sm:$0xff] %vm49, %v679
  %712 = vst.msk [vmem:[#allocation2 + $0x1a0] sm:$0xff] %vm49, %v680
  %713 = vst.msk [vmem:[#allocation2 + $0x1b8] sm:$0xff] %vm49, %v681
  %714 = vst.msk [vmem:[#allocation2 + $0x1d0] sm:$0xff] %vm49, %v682
  %715 = vst.msk [vmem:[#allocation2 + $0x1e8] sm:$0xff] %vm49, %v683
  %716 = vst.msk [vmem:[#allocation2 + $0x200] sm:$0xff] %vm49, %v684
  %717 = vst.msk [vmem:[#allocation2 + $0x218] sm:$0xff] %vm49, %v685
  %718 = vst.msk [vmem:[#allocation2 + $0x230] sm:$0xff] %vm49, %v686
  %719 = vst.msk [vmem:[#allocation2 + $0x248] sm:$0xff] %vm49, %v687
  %720 = vst.msk [vmem:[#allocation2 + $0x260] sm:$0xff] %vm49, %v688
  %721 = vst.msk [vmem:[#allocation2 + $0x278] sm:$0xff] %vm49, %v689
  %722 = vst.msk [vmem:[#allocation2 + $0x290] sm:$0xff] %vm49, %v690
  %723 = vst.msk [vmem:[#allocation2 + $0x2a8] sm:$0xff] %vm49, %v691
  %724 = vst.msk [vmem:[#allocation2 + $0x2c0] sm:$0xff] %vm49, %v692
  %725 = vst.msk [vmem:[#allocation2 + $0x2d8] sm:$0xff] %vm49, %v693
  %726 = vst.msk [vmem:[#allocation2 + $0x2f0] sm:$0xff] %vm49, %v694
  %v727 = vld [vmem:[%s468 + $0x1] sm:$0xff]
  %v728 = vld [vmem:[%s468 + $0x11] sm:$0xff]
  %v729 = vld [vmem:[%s468 + $0x21] sm:$0xff]
  %v730 = vld [vmem:[%s468 + $0x31] sm:$0xff]
  %v731 = vld [vmem:[%s468 + $0x41] sm:$0xff]
  %v732 = vld [vmem:[%s468 + $0x51] sm:$0xff]
  %v733 = vld [vmem:[%s468 + $0x61] sm:$0xff]
  %v734 = vld [vmem:[%s468 + $0x71] sm:$0xff]
  %v735 = vld [vmem:[%s468 + $0x81] sm:$0xff]
  %v736 = vld [vmem:[%s468 + $0x91] sm:$0xff]
  %v737 = vld [vmem:[%s468 + $0xa1] sm:$0xff]
  %v738 = vld [vmem:[%s468 + $0xb1] sm:$0xff]
  %v739 = vld [vmem:[%s468 + $0xc1] sm:$0xff]
  %v740 = vld [vmem:[%s468 + $0xd1] sm:$0xff]
  %v741 = vld [vmem:[%s468 + $0xe1] sm:$0xff]
  %v742 = vld [vmem:[%s468 + $0xf1] sm:$0xff]
  %v743 = vld [vmem:[%s468 + $0x121] sm:$0xff]
  %v744 = vld [vmem:[%s468 + $0x131] sm:$0xff]
  %v745 = vld [vmem:[%s468 + $0x141] sm:$0xff]
  %v746 = vld [vmem:[%s468 + $0x151] sm:$0xff]
  %v747 = vld [vmem:[%s468 + $0x161] sm:$0xff]
  %v748 = vld [vmem:[%s468 + $0x171] sm:$0xff]
  %v749 = vld [vmem:[%s468 + $0x181] sm:$0xff]
  %v750 = vld [vmem:[%s468 + $0x191] sm:$0xff]
  %v751 = vld [vmem:[%s468 + $0x1a1] sm:$0xff]
  %v752 = vld [vmem:[%s468 + $0x1b1] sm:$0xff]
  %v753 = vld [vmem:[%s468 + $0x1c1] sm:$0xff]
  %v754 = vld [vmem:[%s468 + $0x1d1] sm:$0xff]
  %v755 = vld [vmem:[%s468 + $0x1e1] sm:$0xff]
  %v756 = vld [vmem:[%s468 + $0x1f1] sm:$0xff]
  %v757 = vld [vmem:[%s468 + $0x201] sm:$0xff]
  %v758 = vld [vmem:[%s468 + $0x211] sm:$0xff]
  %791 = vrot.lane.b32.xlu0 %v727, 32
  %v792 = vpop.permute.xlu0 %791
  %793 = vrot.lane.b32.xlu0 %v728, 32
  %v794 = vpop.permute.xlu0 %793
  %795 = vrot.lane.b32.xlu0 %v729, 32
  %v796 = vpop.permute.xlu0 %795
  %797 = vrot.lane.b32.xlu0 %v730, 32
  %v798 = vpop.permute.xlu0 %797
  %799 = vrot.lane.b32.xlu0 %v731, 32
  %v800 = vpop.permute.xlu0 %799
  %801 = vrot.lane.b32.xlu0 %v732, 32
  %v802 = vpop.permute.xlu0 %801
  %803 = vrot.lane.b32.xlu0 %v733, 32
  %v804 = vpop.permute.xlu0 %803
  %805 = vrot.lane.b32.xlu0 %v734, 32
  %v806 = vpop.permute.xlu0 %805
  %807 = vrot.lane.b32.xlu0 %v735, 32
  %v808 = vpop.permute.xlu0 %807
  %809 = vrot.lane.b32.xlu0 %v736, 32
  %v810 = vpop.permute.xlu0 %809
  %811 = vrot.lane.b32.xlu0 %v737, 32
  %v812 = vpop.permute.xlu0 %811
  %813 = vrot.lane.b32.xlu0 %v738, 32
  %v814 = vpop.permute.xlu0 %813
  %815 = vrot.lane.b32.xlu0 %v739, 32
  %v816 = vpop.permute.xlu0 %815
  %817 = vrot.lane.b32.xlu0 %v740, 32
  %v818 = vpop.permute.xlu0 %817
  %819 = vrot.lane.b32.xlu0 %v741, 32
  %v820 = vpop.permute.xlu0 %819
  %821 = vrot.lane.b32.xlu0 %v742, 32
  %v822 = vpop.permute.xlu0 %821
  %823 = vrot.lane.b32.xlu0 %v743, 32
  %v824 = vpop.permute.xlu0 %823
  %825 = vrot.lane.b32.xlu0 %v744, 32
  %v826 = vpop.permute.xlu0 %825
  %827 = vrot.lane.b32.xlu0 %v745, 32
  %v828 = vpop.permute.xlu0 %827
  %829 = vrot.lane.b32.xlu0 %v746, 32
  %v830 = vpop.permute.xlu0 %829
  %831 = vrot.lane.b32.xlu0 %v747, 32
  %v832 = vpop.permute.xlu0 %831
  %833 = vrot.lane.b32.xlu0 %v748, 32
  %v834 = vpop.permute.xlu0 %833
  %835 = vrot.lane.b32.xlu0 %v749, 32
  %v836 = vpop.permute.xlu0 %835
  %837 = vrot.lane.b32.xlu0 %v750, 32
  %v838 = vpop.permute.xlu0 %837
  %839 = vrot.lane.b32.xlu0 %v751, 32
  %v840 = vpop.permute.xlu0 %839
  %841 = vrot.lane.b32.xlu0 %v752, 32
  %v842 = vpop.permute.xlu0 %841
  %843 = vrot.lane.b32.xlu0 %v753, 32
  %v844 = vpop.permute.xlu0 %843
  %845 = vrot.lane.b32.xlu0 %v754, 32
  %v846 = vpop.permute.xlu0 %845
  %847 = vrot.lane.b32.xlu0 %v755, 32
  %v848 = vpop.permute.xlu0 %847
  %849 = vrot.lane.b32.xlu0 %v756, 32
  %v850 = vpop.permute.xlu0 %849
  %851 = vrot.lane.b32.xlu0 %v757, 32
  %v852 = vpop.permute.xlu0 %851
  %853 = vrot.lane.b32.xlu0 %v758, 32
  %v854 = vpop.permute.xlu0 %853
  %887 = vst.msk [vmem:[#allocation2 + $0x8] sm:$0xff] %vm242, %v792
  %888 = vst.msk [vmem:[#allocation2 + $0x20] sm:$0xff] %vm242, %v794
  %889 = vst.msk [vmem:[#allocation2 + $0x38] sm:$0xff] %vm242, %v796
  %890 = vst.msk [vmem:[#allocation2 + $0x50] sm:$0xff] %vm242, %v798
  %891 = vst.msk [vmem:[#allocation2 + $0x68] sm:$0xff] %vm242, %v800
  %892 = vst.msk [vmem:[#allocation2 + $0x80] sm:$0xff] %vm242, %v802
  %893 = vst.msk [vmem:[#allocation2 + $0x98] sm:$0xff] %vm242, %v804
  %894 = vst.msk [vmem:[#allocation2 + $0xb0] sm:$0xff] %vm242, %v806
  %895 = vst.msk [vmem:[#allocation2 + $0xc8] sm:$0xff] %vm242, %v808
  %896 = vst.msk [vmem:[#allocation2 + $0xe0] sm:$0xff] %vm242, %v810
  %897 = vst.msk [vmem:[#allocation2 + $0xf8] sm:$0xff] %vm242, %v812
  %898 = vst.msk [vmem:[#allocation2 + $0x110] sm:$0xff] %vm242, %v814
  %899 = vst.msk [vmem:[#allocation2 + $0x128] sm:$0xff] %vm242, %v816
  %900 = vst.msk [vmem:[#allocation2 + $0x140] sm:$0xff] %vm242, %v818
  %901 = vst.msk [vmem:[#allocation2 + $0x158] sm:$0xff] %vm242, %v820
  %902 = vst.msk [vmem:[#allocation2 + $0x170] sm:$0xff] %vm242, %v822
  %903 = vst.msk [vmem:[#allocation2 + $0x188] sm:$0xff] %vm242, %v824
  %904 = vst.msk [vmem:[#allocation2 + $0x1a0] sm:$0xff] %vm242, %v826
  %905 = vst.msk [vmem:[#allocation2 + $0x1b8] sm:$0xff] %vm242, %v828
  %906 = vst.msk [vmem:[#allocation2 + $0x1d0] sm:$0xff] %vm242, %v830
  %907 = vst.msk [vmem:[#allocation2 + $0x1e8] sm:$0xff] %vm242, %v832
  %908 = vst.msk [vmem:[#allocation2 + $0x200] sm:$0xff] %vm242, %v834
  %909 = vst.msk [vmem:[#allocation2 + $0x218] sm:$0xff] %vm242, %v836
  %910 = vst.msk [vmem:[#allocation2 + $0x230] sm:$0xff] %vm242, %v838
  %911 = vst.msk [vmem:[#allocation2 + $0x248] sm:$0xff] %vm242, %v840
  %912 = vst.msk [vmem:[#allocation2 + $0x260] sm:$0xff] %vm242, %v842
  %913 = vst.msk [vmem:[#allocation2 + $0x278] sm:$0xff] %vm242, %v844
  %914 = vst.msk [vmem:[#allocation2 + $0x290] sm:$0xff] %vm242, %v846
  %915 = vst.msk [vmem:[#allocation2 + $0x2a8] sm:$0xff] %vm242, %v848
  %916 = vst.msk [vmem:[#allocation2 + $0x2c0] sm:$0xff] %vm242, %v850
  %917 = vst.msk [vmem:[#allocation2 + $0x2d8] sm:$0xff] %vm242, %v852
  %918 = vst.msk [vmem:[#allocation2 + $0x2f0] sm:$0xff] %vm242, %v854
  %s919 = scalar_lea.vmem %s0, 32
  %v920 = vld [vmem:[%s919] sm:$0xff]
  %v921 = vld [vmem:[%s919 + $0x10] sm:$0xff]
  %v922 = vld [vmem:[%s919 + $0x20] sm:$0xff]
  %v923 = vld [vmem:[%s919 + $0x30] sm:$0xff]
  %v924 = vld [vmem:[%s919 + $0x40] sm:$0xff]
  %v925 = vld [vmem:[%s919 + $0x50] sm:$0xff]
  %v926 = vld [vmem:[%s919 + $0x60] sm:$0xff]
  %v927 = vld [vmem:[%s919 + $0x70] sm:$0xff]
  %v928 = vld [vmem:[%s919 + $0x80] sm:$0xff]
  %v929 = vld [vmem:[%s919 + $0x90] sm:$0xff]
  %v930 = vld [vmem:[%s919 + $0xa0] sm:$0xff]
  %v931 = vld [vmem:[%s919 + $0xb0] sm:$0xff]
  %v932 = vld [vmem:[%s919 + $0xc0] sm:$0xff]
  %v933 = vld [vmem:[%s919 + $0xd0] sm:$0xff]
  %v934 = vld [vmem:[%s919 + $0xe0] sm:$0xff]
  %v935 = vld [vmem:[%s919 + $0xf0] sm:$0xff]
  %v936 = vld [vmem:[%s919 + $0x120] sm:$0xff]
  %v937 = vld [vmem:[%s919 + $0x130] sm:$0xff]
  %v938 = vld [vmem:[%s919 + $0x140] sm:$0xff]
  %v939 = vld [vmem:[%s919 + $0x150] sm:$0xff]
  %v940 = vld [vmem:[%s919 + $0x160] sm:$0xff]
  %v941 = vld [vmem:[%s919 + $0x170] sm:$0xff]
  %v942 = vld [vmem:[%s919 + $0x180] sm:$0xff]
  %v943 = vld [vmem:[%s919 + $0x190] sm:$0xff]
  %v944 = vld [vmem:[%s919 + $0x1a0] sm:$0xff]
  %v945 = vld [vmem:[%s919 + $0x1b0] sm:$0xff]
  %v946 = vld [vmem:[%s919 + $0x1c0] sm:$0xff]
  %v947 = vld [vmem:[%s919 + $0x1d0] sm:$0xff]
  %v948 = vld [vmem:[%s919 + $0x1e0] sm:$0xff]
  %v949 = vld [vmem:[%s919 + $0x1f0] sm:$0xff]
  %v950 = vld [vmem:[%s919 + $0x200] sm:$0xff]
  %v951 = vld [vmem:[%s919 + $0x210] sm:$0xff]
  %984 = vrot.lane.b32.xlu0 %v920, 64
  %v985 = vpop.permute.xlu0 %984
  %986 = vrot.lane.b32.xlu0 %v921, 64
  %v987 = vpop.permute.xlu0 %986
  %988 = vrot.lane.b32.xlu0 %v922, 64
  %v989 = vpop.permute.xlu0 %988
  %990 = vrot.lane.b32.xlu0 %v923, 64
  %v991 = vpop.permute.xlu0 %990
  %992 = vrot.lane.b32.xlu0 %v924, 64
  %v993 = vpop.permute.xlu0 %992
  %994 = vrot.lane.b32.xlu0 %v925, 64
  %v995 = vpop.permute.xlu0 %994
  %996 = vrot.lane.b32.xlu0 %v926, 64
  %v997 = vpop.permute.xlu0 %996
  %998 = vrot.lane.b32.xlu0 %v927, 64
  %v999 = vpop.permute.xlu0 %998
  %1000 = vrot.lane.b32.xlu0 %v928, 64
  %v1001 = vpop.permute.xlu0 %1000
  %1002 = vrot.lane.b32.xlu0 %v929, 64
  %v1003 = vpop.permute.xlu0 %1002
  %1004 = vrot.lane.b32.xlu0 %v930, 64
  %v1005 = vpop.permute.xlu0 %1004
  %1006 = vrot.lane.b32.xlu0 %v931, 64
  %v1007 = vpop.permute.xlu0 %1006
  %1008 = vrot.lane.b32.xlu0 %v932, 64
  %v1009 = vpop.permute.xlu0 %1008
  %1010 = vrot.lane.b32.xlu0 %v933, 64
  %v1011 = vpop.permute.xlu0 %1010
  %1012 = vrot.lane.b32.xlu0 %v934, 64
  %v1013 = vpop.permute.xlu0 %1012
  %1014 = vrot.lane.b32.xlu0 %v935, 64
  %v1015 = vpop.permute.xlu0 %1014
  %1016 = vrot.lane.b32.xlu0 %v936, 64
  %v1017 = vpop.permute.xlu0 %1016
  %1018 = vrot.lane.b32.xlu0 %v937, 64
  %v1019 = vpop.permute.xlu0 %1018
  %1020 = vrot.lane.b32.xlu0 %v938, 64
  %v1021 = vpop.permute.xlu0 %1020
  %1022 = vrot.lane.b32.xlu0 %v939, 64
  %v1023 = vpop.permute.xlu0 %1022
  %1024 = vrot.lane.b32.xlu0 %v940, 64
  %v1025 = vpop.permute.xlu0 %1024
  %1026 = vrot.lane.b32.xlu0 %v941, 64
  %v1027 = vpop.permute.xlu0 %1026
  %1028 = vrot.lane.b32.xlu0 %v942, 64
  %v1029 = vpop.permute.xlu0 %1028
  %1030 = vrot.lane.b32.xlu0 %v943, 64
  %v1031 = vpop.permute.xlu0 %1030
  %1032 = vrot.lane.b32.xlu0 %v944, 64
  %v1033 = vpop.permute.xlu0 %1032
  %1034 = vrot.lane.b32.xlu0 %v945, 64
  %v1035 = vpop.permute.xlu0 %1034
  %1036 = vrot.lane.b32.xlu0 %v946, 64
  %v1037 = vpop.permute.xlu0 %1036
  %1038 = vrot.lane.b32.xlu0 %v947, 64
  %v1039 = vpop.permute.xlu0 %1038
  %1040 = vrot.lane.b32.xlu0 %v948, 64
  %v1041 = vpop.permute.xlu0 %1040
  %1042 = vrot.lane.b32.xlu0 %v949, 64
  %v1043 = vpop.permute.xlu0 %1042
  %1044 = vrot.lane.b32.xlu0 %v950, 64
  %v1045 = vpop.permute.xlu0 %1044
  %1046 = vrot.lane.b32.xlu0 %v951, 64
  %v1047 = vpop.permute.xlu0 %1046
  %1080 = vst.msk [vmem:[#allocation2 + $0x8] sm:$0xff] %vm435, %v985
  %1081 = vst.msk [vmem:[#allocation2 + $0x20] sm:$0xff] %vm435, %v987
  %1082 = vst.msk [vmem:[#allocation2 + $0x38] sm:$0xff] %vm435, %v989
  %1083 = vst.msk [vmem:[#allocation2 + $0x50] sm:$0xff] %vm435, %v991
  %1084 = vst.msk [vmem:[#allocation2 + $0x68] sm:$0xff] %vm435, %v993
  %1085 = vst.msk [vmem:[#allocation2 + $0x80] sm:$0xff] %vm435, %v995
  %1086 = vst.msk [vmem:[#allocation2 + $0x98] sm:$0xff] %vm435, %v997
  %1087 = vst.msk [vmem:[#allocation2 + $0xb0] sm:$0xff] %vm435, %v999
  %1088 = vst.msk [vmem:[#allocation2 + $0xc8] sm:$0xff] %vm435, %v1001
  %1089 = vst.msk [vmem:[#allocation2 + $0xe0] sm:$0xff] %vm435, %v1003
  %1090 = vst.msk [vmem:[#allocation2 + $0xf8] sm:$0xff] %vm435, %v1005
  %1091 = vst.msk [vmem:[#allocation2 + $0x110] sm:$0xff] %vm435, %v1007
  %1092 = vst.msk [vmem:[#allocation2 + $0x128] sm:$0xff] %vm435, %v1009
  %1093 = vst.msk [vmem:[#allocation2 + $0x140] sm:$0xff] %vm435, %v1011
  %1094 = vst.msk [vmem:[#allocation2 + $0x158] sm:$0xff] %vm435, %v1013
  %1095 = vst.msk [vmem:[#allocation2 + $0x170] sm:$0xff] %vm435, %v1015
  %1096 = vst.msk [vmem:[#allocation2 + $0x188] sm:$0xff] %vm435, %v1017
  %1097 = vst.msk [vmem:[#allocation2 + $0x1a0] sm:$0xff] %vm435, %v1019
  %1098 = vst.msk [vmem:[#allocation2 + $0x1b8] sm:$0xff] %vm435, %v1021
  %1099 = vst.msk [vmem:[#allocation2 + $0x1d0] sm:$0xff] %vm435, %v1023
  %1100 = vst.msk [vmem:[#allocation2 + $0x1e8] sm:$0xff] %vm435, %v1025
  %1101 = vst.msk [vmem:[#allocation2 + $0x200] sm:$0xff] %vm435, %v1027
  %1102 = vst.msk [vmem:[#allocation2 + $0x218] sm:$0xff] %vm435, %v1029
  %1103 = vst.msk [vmem:[#allocation2 + $0x230] sm:$0xff] %vm435, %v1031
  %1104 = vst.msk [vmem:[#allocation2 + $0x248] sm:$0xff] %vm435, %v1033
  %1105 = vst.msk [vmem:[#allocation2 + $0x260] sm:$0xff] %vm435, %v1035
  %1106 = vst.msk [vmem:[#allocation2 + $0x278] sm:$0xff] %vm435, %v1037
  %1107 = vst.msk [vmem:[#allocation2 + $0x290] sm:$0xff] %vm435, %v1039
  %1108 = vst.msk [vmem:[#allocation2 + $0x2a8] sm:$0xff] %vm435, %v1041
  %1109 = vst.msk [vmem:[#allocation2 + $0x2c0] sm:$0xff] %vm435, %v1043
  %1110 = vst.msk [vmem:[#allocation2 + $0x2d8] sm:$0xff] %vm435, %v1045
  %1111 = vst.msk [vmem:[#allocation2 + $0x2f0] sm:$0xff] %vm435, %v1047
  %s1112 = scalar_lea.vmem %s1, 32
  %v1113 = vld [vmem:[%s1112] sm:$0xff]
  %v1114 = vld [vmem:[%s1112 + $0x10] sm:$0xff]
  %v1115 = vld [vmem:[%s1112 + $0x20] sm:$0xff]
  %v1116 = vld [vmem:[%s1112 + $0x30] sm:$0xff]
  %v1117 = vld [vmem:[%s1112 + $0x40] sm:$0xff]
  %v1118 = vld [vmem:[%s1112 + $0x50] sm:$0xff]
  %v1119 = vld [vmem:[%s1112 + $0x60] sm:$0xff]
  %v1120 = vld [vmem:[%s1112 + $0x70] sm:$0xff]
  %v1121 = vld [vmem:[%s1112 + $0x80] sm:$0xff]
  %v1122 = vld [vmem:[%s1112 + $0x90] sm:$0xff]
  %v1123 = vld [vmem:[%s1112 + $0xa0] sm:$0xff]
  %v1124 = vld [vmem:[%s1112 + $0xb0] sm:$0xff]
  %v1125 = vld [vmem:[%s1112 + $0xc0] sm:$0xff]
  %v1126 = vld [vmem:[%s1112 + $0xd0] sm:$0xff]
  %v1127 = vld [vmem:[%s1112 + $0xe0] sm:$0xff]
  %v1128 = vld [vmem:[%s1112 + $0xf0] sm:$0xff]
  %v1129 = vld [vmem:[%s1112 + $0x120] sm:$0xff]
  %v1130 = vld [vmem:[%s1112 + $0x130] sm:$0xff]
  %v1131 = vld [vmem:[%s1112 + $0x140] sm:$0xff]
  %v1132 = vld [vmem:[%s1112 + $0x150] sm:$0xff]
  %v1133 = vld [vmem:[%s1112 + $0x160] sm:$0xff]
  %v1134 = vld [vmem:[%s1112 + $0x170] sm:$0xff]
  %v1135 = vld [vmem:[%s1112 + $0x180] sm:$0xff]
  %v1136 = vld [vmem:[%s1112 + $0x190] sm:$0xff]
  %v1137 = vld [vmem:[%s1112 + $0x1a0] sm:$0xff]
  %v1138 = vld [vmem:[%s1112 + $0x1b0] sm:$0xff]
  %v1139 = vld [vmem:[%s1112 + $0x1c0] sm:$0xff]
  %v1140 = vld [vmem:[%s1112 + $0x1d0] sm:$0xff]
  %v1141 = vld [vmem:[%s1112 + $0x1e0] sm:$0xff]
  %v1142 = vld [vmem:[%s1112 + $0x1f0] sm:$0xff]
  %v1143 = vld [vmem:[%s1112 + $0x200] sm:$0xff]
  %v1144 = vld [vmem:[%s1112 + $0x210] sm:$0xff]
  %1177 = vrot.lane.b32.xlu0 %v1113, 96
  %v1178 = vpop.permute.xlu0 %1177
  %1179 = vrot.lane.b32.xlu0 %v1114, 96
  %v1180 = vpop.permute.xlu0 %1179
  %1181 = vrot.lane.b32.xlu0 %v1115, 96
  %v1182 = vpop.permute.xlu0 %1181
  %1183 = vrot.lane.b32.xlu0 %v1116, 96
  %v1184 = vpop.permute.xlu0 %1183
  %1185 = vrot.lane.b32.xlu0 %v1117, 96
  %v1186 = vpop.permute.xlu0 %1185
  %1187 = vrot.lane.b32.xlu0 %v1118, 96
  %v1188 = vpop.permute.xlu0 %1187
  %1189 = vrot.lane.b32.xlu0 %v1119, 96
  %v1190 = vpop.permute.xlu0 %1189
  %1191 = vrot.lane.b32.xlu0 %v1120, 96
  %v1192 = vpop.permute.xlu0 %1191
  %1193 = vrot.lane.b32.xlu0 %v1121, 96
  %v1194 = vpop.permute.xlu0 %1193
  %1195 = vrot.lane.b32.xlu0 %v1122, 96
  %v1196 = vpop.permute.xlu0 %1195
  %1197 = vrot.lane.b32.xlu0 %v1123, 96
  %v1198 = vpop.permute.xlu0 %1197
  %1199 = vrot.lane.b32.xlu0 %v1124, 96
  %v1200 = vpop.permute.xlu0 %1199
  %1201 = vrot.lane.b32.xlu0 %v1125, 96
  %v1202 = vpop.permute.xlu0 %1201
  %1203 = vrot.lane.b32.xlu0 %v1126, 96
  %v1204 = vpop.permute.xlu0 %1203
  %1205 = vrot.lane.b32.xlu0 %v1127, 96
  %v1206 = vpop.permute.xlu0 %1205
  %1207 = vrot.lane.b32.xlu0 %v1128, 96
  %v1208 = vpop.permute.xlu0 %1207
  %1209 = vrot.lane.b32.xlu0 %v1129, 96
  %v1210 = vpop.permute.xlu0 %1209
  %1211 = vrot.lane.b32.xlu0 %v1130, 96
  %v1212 = vpop.permute.xlu0 %1211
  %1213 = vrot.lane.b32.xlu0 %v1131, 96
  %v1214 = vpop.permute.xlu0 %1213
  %1215 = vrot.lane.b32.xlu0 %v1132, 96
  %v1216 = vpop.permute.xlu0 %1215
  %1217 = vrot.lane.b32.xlu0 %v1133, 96
  %v1218 = vpop.permute.xlu0 %1217
  %1219 = vrot.lane.b32.xlu0 %v1134, 96
  %v1220 = vpop.permute.xlu0 %1219
  %1221 = vrot.lane.b32.xlu0 %v1135, 96
  %v1222 = vpop.permute.xlu0 %1221
  %1223 = vrot.lane.b32.xlu0 %v1136, 96
  %v1224 = vpop.permute.xlu0 %1223
  %1225 = vrot.lane.b32.xlu0 %v1137, 96
  %v1226 = vpop.permute.xlu0 %1225
  %1227 = vrot.lane.b32.xlu0 %v1138, 96
  %v1228 = vpop.permute.xlu0 %1227
  %1229 = vrot.lane.b32.xlu0 %v1139, 96
  %v1230 = vpop.permute.xlu0 %1229
  %1231 = vrot.lane.b32.xlu0 %v1140, 96
  %v1232 = vpop.permute.xlu0 %1231
  %1233 = vrot.lane.b32.xlu0 %v1141, 96
  %v1234 = vpop.permute.xlu0 %1233
  %1235 = vrot.lane.b32.xlu0 %v1142, 96
  %v1236 = vpop.permute.xlu0 %1235
  %1237 = vrot.lane.b32.xlu0 %v1143, 96
  %v1238 = vpop.permute.xlu0 %1237
  %1239 = vrot.lane.b32.xlu0 %v1144, 96
  %v1240 = vpop.permute.xlu0 %1239
  %1273 = vst.msk [vmem:[#allocation2 + $0x8] sm:$0xff] %vm629, %v1178
  %1274 = vst.msk [vmem:[#allocation2 + $0x20] sm:$0xff] %vm629, %v1180
  %1275 = vst.msk [vmem:[#allocation2 + $0x38] sm:$0xff] %vm629, %v1182
  %1276 = vst.msk [vmem:[#allocation2 + $0x50] sm:$0xff] %vm629, %v1184
  %1277 = vst.msk [vmem:[#allocation2 + $0x68] sm:$0xff] %vm629, %v1186
  %1278 = vst.msk [vmem:[#allocation2 + $0x80] sm:$0xff] %vm629, %v1188
  %1279 = vst.msk [vmem:[#allocation2 + $0x98] sm:$0xff] %vm629, %v1190
  %1280 = vst.msk [vmem:[#allocation2 + $0xb0] sm:$0xff] %vm629, %v1192
  %1281 = vst.msk [vmem:[#allocation2 + $0xc8] sm:$0xff] %vm629, %v1194
  %1282 = vst.msk [vmem:[#allocation2 + $0xe0] sm:$0xff] %vm629, %v1196
  %1283 = vst.msk [vmem:[#allocation2 + $0xf8] sm:$0xff] %vm629, %v1198
  %1284 = vst.msk [vmem:[#allocation2 + $0x110] sm:$0xff] %vm629, %v1200
  %1285 = vst.msk [vmem:[#allocation2 + $0x128] sm:$0xff] %vm629, %v1202
  %1286 = vst.msk [vmem:[#allocation2 + $0x140] sm:$0xff] %vm629, %v1204
  %1287 = vst.msk [vmem:[#allocation2 + $0x158] sm:$0xff] %vm629, %v1206
  %1288 = vst.msk [vmem:[#allocation2 + $0x170] sm:$0xff] %vm629, %v1208
  %1289 = vst.msk [vmem:[#allocation2 + $0x188] sm:$0xff] %vm629, %v1210
  %1290 = vst.msk [vmem:[#allocation2 + $0x1a0] sm:$0xff] %vm629, %v1212
  %1291 = vst.msk [vmem:[#allocation2 + $0x1b8] sm:$0xff] %vm629, %v1214
  %1292 = vst.msk [vmem:[#allocation2 + $0x1d0] sm:$0xff] %vm629, %v1216
  %1293 = vst.msk [vmem:[#allocation2 + $0x1e8] sm:$0xff] %vm629, %v1218
  %1294 = vst.msk [vmem:[#allocation2 + $0x200] sm:$0xff] %vm629, %v1220
  %1295 = vst.msk [vmem:[#allocation2 + $0x218] sm:$0xff] %vm629, %v1222
  %1296 = vst.msk [vmem:[#allocation2 + $0x230] sm:$0xff] %vm629, %v1224
  %1297 = vst.msk [vmem:[#allocation2 + $0x248] sm:$0xff] %vm629, %v1226
  %1298 = vst.msk [vmem:[#allocation2 + $0x260] sm:$0xff] %vm629, %v1228
  %1299 = vst.msk [vmem:[#allocation2 + $0x278] sm:$0xff] %vm629, %v1230
  %1300 = vst.msk [vmem:[#allocation2 + $0x290] sm:$0xff] %vm629, %v1232
  %1301 = vst.msk [vmem:[#allocation2 + $0x2a8] sm:$0xff] %vm629, %v1234
  %1302 = vst.msk [vmem:[#allocation2 + $0x2c0] sm:$0xff] %vm629, %v1236
  %1303 = vst.msk [vmem:[#allocation2 + $0x2d8] sm:$0xff] %vm629, %v1238
  %1304 = vst.msk [vmem:[#allocation2 + $0x2f0] sm:$0xff] %vm629, %v1240
  %v1305 = vld [vmem:[%s919 + $0x1] sm:$0xff]
  %v1306 = vld [vmem:[%s919 + $0x11] sm:$0xff]
  %v1307 = vld [vmem:[%s919 + $0x21] sm:$0xff]
  %v1308 = vld [vmem:[%s919 + $0x31] sm:$0xff]
  %v1309 = vld [vmem:[%s919 + $0x41] sm:$0xff]
  %v1310 = vld [vmem:[%s919 + $0x51] sm:$0xff]
  %v1311 = vld [vmem:[%s919 + $0x61] sm:$0xff]
  %v1312 = vld [vmem:[%s919 + $0x71] sm:$0xff]
  %v1313 = vld [vmem:[%s919 + $0x81] sm:$0xff]
  %v1314 = vld [vmem:[%s919 + $0x91] sm:$0xff]
  %v1315 = vld [vmem:[%s919 + $0xa1] sm:$0xff]
  %v1316 = vld [vmem:[%s919 + $0xb1] sm:$0xff]
  %v1317 = vld [vmem:[%s919 + $0xc1] sm:$0xff]
  %v1318 = vld [vmem:[%s919 + $0xd1] sm:$0xff]
  %v1319 = vld [vmem:[%s919 + $0xe1] sm:$0xff]
  %v1320 = vld [vmem:[%s919 + $0xf1] sm:$0xff]
  %v1321 = vld [vmem:[%s919 + $0x121] sm:$0xff]
  %v1322 = vld [vmem:[%s919 + $0x131] sm:$0xff]
  %v1323 = vld [vmem:[%s919 + $0x141] sm:$0xff]
  %v1324 = vld [vmem:[%s919 + $0x151] sm:$0xff]
  %v1325 = vld [vmem:[%s919 + $0x161] sm:$0xff]
  %v1326 = vld [vmem:[%s919 + $0x171] sm:$0xff]
  %v1327 = vld [vmem:[%s919 + $0x181] sm:$0xff]
  %v1328 = vld [vmem:[%s919 + $0x191] sm:$0xff]
  %v1329 = vld [vmem:[%s919 + $0x1a1] sm:$0xff]
  %v1330 = vld [vmem:[%s919 + $0x1b1] sm:$0xff]
  %v1331 = vld [vmem:[%s919 + $0x1c1] sm:$0xff]
  %v1332 = vld [vmem:[%s919 + $0x1d1] sm:$0xff]
  %v1333 = vld [vmem:[%s919 + $0x1e1] sm:$0xff]
  %v1334 = vld [vmem:[%s919 + $0x1f1] sm:$0xff]
  %v1335 = vld [vmem:[%s919 + $0x201] sm:$0xff]
  %v1336 = vld [vmem:[%s919 + $0x211] sm:$0xff]
  %1337 = vst.msk [vmem:[#allocation2 + $0x10] sm:$0xff] %vm49, %v1305
  %1338 = vst.msk [vmem:[#allocation2 + $0x28] sm:$0xff] %vm49, %v1306
  %1339 = vst.msk [vmem:[#allocation2 + $0x40] sm:$0xff] %vm49, %v1307
  %1340 = vst.msk [vmem:[#allocation2 + $0x58] sm:$0xff] %vm49, %v1308
  %1341 = vst.msk [vmem:[#allocation2 + $0x70] sm:$0xff] %vm49, %v1309
  %1342 = vst.msk [vmem:[#allocation2 + $0x88] sm:$0xff] %vm49, %v1310
  %1343 = vst.msk [vmem:[#allocation2 + $0xa0] sm:$0xff] %vm49, %v1311
  %1344 = vst.msk [vmem:[#allocation2 + $0xb8] sm:$0xff] %vm49, %v1312
  %1345 = vst.msk [vmem:[#allocation2 + $0xd0] sm:$0xff] %vm49, %v1313
  %1346 = vst.msk [vmem:[#allocation2 + $0xe8] sm:$0xff] %vm49, %v1314
  %1347 = vst.msk [vmem:[#allocation2 + $0x100] sm:$0xff] %vm49, %v1315
  %1348 = vst.msk [vmem:[#allocation2 + $0x118] sm:$0xff] %vm49, %v1316
  %1349 = vst.msk [vmem:[#allocation2 + $0x130] sm:$0xff] %vm49, %v1317
  %1350 = vst.msk [vmem:[#allocation2 + $0x148] sm:$0xff] %vm49, %v1318
  %1351 = vst.msk [vmem:[#allocation2 + $0x160] sm:$0xff] %vm49, %v1319
  %1352 = vst.msk [vmem:[#allocation2 + $0x178] sm:$0xff] %vm49, %v1320
  %1353 = vst.msk [vmem:[#allocation2 + $0x190] sm:$0xff] %vm49, %v1321
  %1354 = vst.msk [vmem:[#allocation2 + $0x1a8] sm:$0xff] %vm49, %v1322
  %1355 = vst.msk [vmem:[#allocation2 + $0x1c0] sm:$0xff] %vm49, %v1323
  %1356 = vst.msk [vmem:[#allocation2 + $0x1d8] sm:$0xff] %vm49, %v1324
  %1357 = vst.msk [vmem:[#allocation2 + $0x1f0] sm:$0xff] %vm49, %v1325
  %1358 = vst.msk [vmem:[#allocation2 + $0x208] sm:$0xff] %vm49, %v1326
  %1359 = vst.msk [vmem:[#allocation2 + $0x220] sm:$0xff] %vm49, %v1327
  %1360 = vst.msk [vmem:[#allocation2 + $0x238] sm:$0xff] %vm49, %v1328
  %1361 = vst.msk [vmem:[#allocation2 + $0x250] sm:$0xff] %vm49, %v1329
  %1362 = vst.msk [vmem:[#allocation2 + $0x268] sm:$0xff] %vm49, %v1330
  %1363 = vst.msk [vmem:[#allocation2 + $0x280] sm:$0xff] %vm49, %v1331
  %1364 = vst.msk [vmem:[#allocation2 + $0x298] sm:$0xff] %vm49, %v1332
  %1365 = vst.msk [vmem:[#allocation2 + $0x2b0] sm:$0xff] %vm49, %v1333
  %1366 = vst.msk [vmem:[#allocation2 + $0x2c8] sm:$0xff] %vm49, %v1334
  %1367 = vst.msk [vmem:[#allocation2 + $0x2e0] sm:$0xff] %vm49, %v1335
  %1368 = vst.msk [vmem:[#allocation2 + $0x2f8] sm:$0xff] %vm49, %v1336
  %v1369 = vld [vmem:[#allocation2] sm:$0xff]
  %v1370 = vld [vmem:[#allocation2 + $0x8] sm:$0xff]
  %v1371 = vld [vmem:[#allocation2 + $0x10] sm:$0xff]
  %v1372 = vld [vmem:[#allocation2 + $0x18] sm:$0xff]
  %v1373 = vld [vmem:[#allocation2 + $0x20] sm:$0xff]
  %v1374 = vld [vmem:[#allocation2 + $0x28] sm:$0xff]
  %v1375 = vld [vmem:[#allocation2 + $0x30] sm:$0xff]
  %v1376 = vld [vmem:[#allocation2 + $0x38] sm:$0xff]
  %v1377 = vld [vmem:[#allocation2 + $0x40] sm:$0xff]
  %v1378 = vld [vmem:[#allocation2 + $0x48] sm:$0xff]
  %v1379 = vld [vmem:[#allocation2 + $0x50] sm:$0xff]
  %v1380 = vld [vmem:[#allocation2 + $0x58] sm:$0xff]
  %v1381 = vld [vmem:[#allocation2 + $0x60] sm:$0xff]
  %v1382 = vld [vmem:[#allocation2 + $0x68] sm:$0xff]
  %v1383 = vld [vmem:[#allocation2 + $0x70] sm:$0xff]
  %v1384 = vld [vmem:[#allocation2 + $0x78] sm:$0xff]
  %v1385 = vld [vmem:[#allocation2 + $0x80] sm:$0xff]
  %v1386 = vld [vmem:[#allocation2 + $0x88] sm:$0xff]
  %v1387 = vld [vmem:[#allocation2 + $0x90] sm:$0xff]
  %v1388 = vld [vmem:[#allocation2 + $0x98] sm:$0xff]
  %v1389 = vld [vmem:[#allocation2 + $0xa0] sm:$0xff]
  %v1390 = vld [vmem:[#allocation2 + $0xa8] sm:$0xff]
  %v1391 = vld [vmem:[#allocation2 + $0xb0] sm:$0xff]
  %v1392 = vld [vmem:[#allocation2 + $0xb8] sm:$0xff]
  %v1393 = vld [vmem:[#allocation2 + $0xc0] sm:$0xff]
  %v1394 = vld [vmem:[#allocation2 + $0xc8] sm:$0xff]
  %v1395 = vld [vmem:[#allocation2 + $0xd0] sm:$0xff]
  %v1396 = vld [vmem:[#allocation2 + $0xd8] sm:$0xff]
  %v1397 = vld [vmem:[#allocation2 + $0xe0] sm:$0xff]
  %v1398 = vld [vmem:[#allocation2 + $0xe8] sm:$0xff]
  %v1399 = vld [vmem:[#allocation2 + $0xf0] sm:$0xff]
  %v1400 = vld [vmem:[#allocation2 + $0xf8] sm:$0xff]
  %v1401 = vld [vmem:[#allocation2 + $0x100] sm:$0xff]
  %v1402 = vld [vmem:[#allocation2 + $0x108] sm:$0xff]
  %v1403 = vld [vmem:[#allocation2 + $0x110] sm:$0xff]
  %v1404 = vld [vmem:[#allocation2 + $0x118] sm:$0xff]
  %v1405 = vld [vmem:[#allocation2 + $0x120] sm:$0xff]
  %v1406 = vld [vmem:[#allocation2 + $0x128] sm:$0xff]
  %v1407 = vld [vmem:[#allocation2 + $0x130] sm:$0xff]
  %v1408 = vld [vmem:[#allocation2 + $0x138] sm:$0xff]
  %v1409 = vld [vmem:[#allocation2 + $0x140] sm:$0xff]
  %v1410 = vld [vmem:[#allocation2 + $0x148] sm:$0xff]
  %v1411 = vld [vmem:[#allocation2 + $0x150] sm:$0xff]
  %v1412 = vld [vmem:[#allocation2 + $0x158] sm:$0xff]
  %v1413 = vld [vmem:[#allocation2 + $0x160] sm:$0xff]
  %v1414 = vld [vmem:[#allocation2 + $0x168] sm:$0xff]
  %v1415 = vld [vmem:[#allocation2 + $0x170] sm:$0xff]
  %v1416 = vld [vmem:[#allocation2 + $0x178] sm:$0xff]
  %v1417 = vld [vmem:[#allocation2 + $0x180] sm:$0xff]
  %v1418 = vld [vmem:[#allocation2 + $0x188] sm:$0xff]
  %v1419 = vld [vmem:[#allocation2 + $0x190] sm:$0xff]
  %v1420 = vld [vmem:[#allocation2 + $0x198] sm:$0xff]
  %v1421 = vld [vmem:[#allocation2 + $0x1a0] sm:$0xff]
  %v1422 = vld [vmem:[#allocation2 + $0x1a8] sm:$0xff]
  %v1423 = vld [vmem:[#allocation2 + $0x1b0] sm:$0xff]
  %v1424 = vld [vmem:[#allocation2 + $0x1b8] sm:$0xff]
  %v1425 = vld [vmem:[#allocation2 + $0x1c0] sm:$0xff]
  %v1426 = vld [vmem:[#allocation2 + $0x1c8] sm:$0xff]
  %v1427 = vld [vmem:[#allocation2 + $0x1d0] sm:$0xff]
  %v1428 = vld [vmem:[#allocation2 + $0x1d8] sm:$0xff]
  %v1429 = vld [vmem:[#allocation2 + $0x1e0] sm:$0xff]
  %v1430 = vld [vmem:[#allocation2 + $0x1e8] sm:$0xff]
  %v1431 = vld [vmem:[#allocation2 + $0x1f0] sm:$0xff]
  %v1432 = vld [vmem:[#allocation2 + $0x1f8] sm:$0xff]
  %v1433 = vld [vmem:[#allocation2 + $0x200] sm:$0xff]
  %v1434 = vld [vmem:[#allocation2 + $0x208] sm:$0xff]
  %v1435 = vld [vmem:[#allocation2 + $0x210] sm:$0xff]
  %v1436 = vld [vmem:[#allocation2 + $0x218] sm:$0xff]
  %v1437 = vld [vmem:[#allocation2 + $0x220] sm:$0xff]
  %v1438 = vld [vmem:[#allocation2 + $0x228] sm:$0xff]
  %v1439 = vld [vmem:[#allocation2 + $0x230] sm:$0xff]
  %v1440 = vld [vmem:[#allocation2 + $0x238] sm:$0xff]
  %v1441 = vld [vmem:[#allocation2 + $0x240] sm:$0xff]
  %v1442 = vld [vmem:[#allocation2 + $0x248] sm:$0xff]
  %v1443 = vld [vmem:[#allocation2 + $0x250] sm:$0xff]
  %v1444 = vld [vmem:[#allocation2 + $0x258] sm:$0xff]
  %v1445 = vld [vmem:[#allocation2 + $0x260] sm:$0xff]
  %v1446 = vld [vmem:[#allocation2 + $0x268] sm:$0xff]
  %v1447 = vld [vmem:[#allocation2 + $0x270] sm:$0xff]
  %v1448 = vld [vmem:[#allocation2 + $0x278] sm:$0xff]
  %v1449 = vld [vmem:[#allocation2 + $0x280] sm:$0xff]
  %v1450 = vld [vmem:[#allocation2 + $0x288] sm:$0xff]
  %v1451 = vld [vmem:[#allocation2 + $0x290] sm:$0xff]
  %v1452 = vld [vmem:[#allocation2 + $0x298] sm:$0xff]
  %v1453 = vld [vmem:[#allocation2 + $0x2a0] sm:$0xff]
  %v1454 = vld [vmem:[#allocation2 + $0x2a8] sm:$0xff]
  %v1455 = vld [vmem:[#allocation2 + $0x2b0] sm:$0xff]
  %v1456 = vld [vmem:[#allocation2 + $0x2b8] sm:$0xff]
  %v1457 = vld [vmem:[#allocation2 + $0x2c0] sm:$0xff]
  %v1458 = vld [vmem:[#allocation2 + $0x2c8] sm:$0xff]
  %v1459 = vld [vmem:[#allocation2 + $0x2d0] sm:$0xff]
  %v1460 = vld [vmem:[#allocation2 + $0x2d8] sm:$0xff]
  %v1461 = vld [vmem:[#allocation2 + $0x2e0] sm:$0xff]
  %v1462 = vld [vmem:[#allocation2 + $0x2e8] sm:$0xff]
  %v1463 = vld [vmem:[#allocation2 + $0x2f0] sm:$0xff]
  %v1464 = vld [vmem:[#allocation2 + $0x2f8] sm:$0xff]
  %v1465 = vld [vmem:[%s2] sm:$0xff]
  %v1466 = vld [vmem:[%s2 + $0x8] sm:$0xff]
  %v1467 = vld [vmem:[%s2 + $0x10] sm:$0xff]
  %v1468 = vld [vmem:[%s2 + $0x18] sm:$0xff]
  %v1469 = vld [vmem:[%s2 + $0x20] sm:$0xff]
  %v1470 = vld [vmem:[%s2 + $0x28] sm:$0xff]
  %v1471 = vld [vmem:[%s2 + $0x30] sm:$0xff]
  %v1472 = vld [vmem:[%s2 + $0x38] sm:$0xff]
  %v1473 = vld [vmem:[%s2 + $0x40] sm:$0xff]
  %v1474 = vld [vmem:[%s2 + $0x48] sm:$0xff]
  %v1475 = vld [vmem:[%s2 + $0x50] sm:$0xff]
  %v1476 = vld [vmem:[%s2 + $0x58] sm:$0xff]
  %v1477 = vld [vmem:[%s2 + $0x60] sm:$0xff]
  %v1478 = vld [vmem:[%s2 + $0x68] sm:$0xff]
  %v1479 = vld [vmem:[%s2 + $0x70] sm:$0xff]
  %v1480 = vld [vmem:[%s2 + $0x78] sm:$0xff]
  %v1481 = vld [vmem:[%s2 + $0x80] sm:$0xff]
  %v1482 = vld [vmem:[%s2 + $0x88] sm:$0xff]
  %v1483 = vld [vmem:[%s2 + $0x90] sm:$0xff]
  %v1484 = vld [vmem:[%s2 + $0x98] sm:$0xff]
  %v1485 = vld [vmem:[%s2 + $0xa0] sm:$0xff]
  %v1486 = vld [vmem:[%s2 + $0xa8] sm:$0xff]
  %v1487 = vld [vmem:[%s2 + $0xb0] sm:$0xff]
  %v1488 = vld [vmem:[%s2 + $0xb8] sm:$0xff]
  %v1489 = vld [vmem:[%s2 + $0xc0] sm:$0xff]
  %v1490 = vld [vmem:[%s2 + $0xc8] sm:$0xff]
  %v1491 = vld [vmem:[%s2 + $0xd0] sm:$0xff]
  %v1492 = vld [vmem:[%s2 + $0xd8] sm:$0xff]
  %v1493 = vld [vmem:[%s2 + $0xe0] sm:$0xff]
  %v1494 = vld [vmem:[%s2 + $0xe8] sm:$0xff]
  %v1495 = vld [vmem:[%s2 + $0xf0] sm:$0xff]
  %v1496 = vld [vmem:[%s2 + $0xf8] sm:$0xff]
  %v1497 = vld [vmem:[%s2 + $0x100] sm:$0xff]
  %v1498 = vld [vmem:[%s2 + $0x108] sm:$0xff]
  %v1499 = vld [vmem:[%s2 + $0x110] sm:$0xff]
  %v1500 = vld [vmem:[%s2 + $0x118] sm:$0xff]
  %v1501 = vld [vmem:[%s3] sm:$0x1]
  %v1503 = vlaneseq
  %v1504 = vshrl.u32 %v1503, 7
  %v1505 = vsub.s32 0, %v1504
  %v1506 = vrot.slane %v1501, %v1505
  %v1509 = vsel %vm49, %v1371, 0
  %v1512 = vsel %vm49, %v1374, 0
  %v1515 = vsel %vm49, %v1377, 0
  %v1518 = vsel %vm49, %v1380, 0
  %v1521 = vsel %vm49, %v1383, 0
  %v1524 = vsel %vm49, %v1386, 0
  %v1527 = vsel %vm49, %v1389, 0
  %v1530 = vsel %vm49, %v1392, 0
  %v1533 = vsel %vm49, %v1395, 0
  %v1536 = vsel %vm49, %v1398, 0
  %v1539 = vsel %vm49, %v1401, 0
  %v1542 = vsel %vm49, %v1404, 0
  %v1545 = vsel %vm49, %v1407, 0
  %v1548 = vsel %vm49, %v1410, 0
  %v1551 = vsel %vm49, %v1413, 0
  %v1554 = vsel %vm49, %v1416, 0
  %v1557 = vsel %vm49, %v1419, 0
  %v1560 = vsel %vm49, %v1422, 0
  %v1563 = vsel %vm49, %v1425, 0
  %v1566 = vsel %vm49, %v1428, 0
  %v1569 = vsel %vm49, %v1431, 0
  %v1572 = vsel %vm49, %v1434, 0
  %v1575 = vsel %vm49, %v1437, 0
  %v1578 = vsel %vm49, %v1440, 0
  %v1581 = vsel %vm49, %v1443, 0
  %v1584 = vsel %vm49, %v1446, 0
  %v1587 = vsel %vm49, %v1449, 0
  %v1590 = vsel %vm49, %v1452, 0
  %v1593 = vsel %vm49, %v1455, 0
  %v1596 = vsel %vm49, %v1458, 0
  %v1599 = vsel %vm49, %v1461, 0
  %v1602 = vsel %vm49, %v1464, 0
  %1604 = vmatprep.subr.mxu0 0.0
  %1605 = vmatpush1.msra.mxu0 %v1465
  %1606 = vmatprep.subr.mxu0 0.0
  %1607 = vmatpush1.msra.mxu0 %v1466
  %1608 = vmatprep.subr.mxu0 0.0
  %1609 = vmatpush1.msra.mxu0 %v1467
  %1610 = vmatprep.subr.mxu0 0.0
  %1611 = vmatpush1.msra.mxu0 %v1468
  %1612 = vmatprep.subr.mxu0 0.0
  %1613 = vmatpush1.msra.mxu0 %v1469
  %1614 = vmatprep.subr.mxu0 0.0
  %1615 = vmatpush1.msra.mxu0 %v1470
  %1616 = vmatprep.subr.mxu0 0.0
  %1617 = vmatpush1.msra.mxu0 %v1471
  %1618 = vmatprep.subr.mxu0 0.0
  %1619 = vmatpush1.msra.mxu0 %v1472
  %1620 = vmatprep.subr.mxu0 0.0
  %1621 = vmatpush1.msra.mxu0 %v1473
  %1622 = vmatprep.subr.mxu0 0.0
  %1623 = vmatpush1.msra.mxu0 %v1474
  %1624 = vmatprep.subr.mxu0 0.0
  %1625 = vmatpush1.msra.mxu0 %v1475
  %1626 = vmatprep.subr.mxu0 0.0
  %1627 = vmatpush1.msra.mxu0 %v1476
  %1628 = vmatprep.subr.mxu0 0.0
  %1629 = vmatpush1.msra.mxu0 %v1477
  %1630 = vmatprep.subr.mxu0 0.0
  %1631 = vmatpush1.msra.mxu0 %v1478
  %1632 = vmatprep.subr.mxu0 0.0
  %1633 = vmatpush1.msra.mxu0 %v1479
  %1634 = vmatprep.subr.mxu0 0.0
  %1635 = vmatpush1.msra.mxu0 %v1480
  %1636 = vmatprep.subr.mxu0 0.0
  %1637 = vmatpush1.msra.mxu0 %v1481
  %1638 = vmatprep.subr.mxu0 0.0
  %1639 = vmatpush1.msra.mxu0 %v1482
  %1640 = vmatprep.subr.mxu0 0.0
  %1641 = vmatpush1.msra.mxu0 %v1483
  %1642 = vmatprep.subr.mxu0 0.0
  %1643 = vmatpush1.msra.mxu0 %v1484
  %1644 = vmatprep.subr.mxu0 0.0
  %1645 = vmatpush1.msra.mxu0 %v1485
  %1646 = vmatprep.subr.mxu0 0.0
  %1647 = vmatpush1.msra.mxu0 %v1486
  %1648 = vmatprep.subr.mxu0 0.0
  %1649 = vmatpush1.msra.mxu0 %v1487
  %1650 = vmatprep.subr.mxu0 0.0
  %1651 = vmatpush1.msra.mxu0 %v1488
  %1652 = vmatprep.subr.mxu0 0.0
  %1653 = vmatpush1.msra.mxu0 %v1489
  %1654 = vmatprep.subr.mxu0 0.0
  %1655 = vmatpush1.msra.mxu0 %v1490
  %1656 = vmatprep.subr.mxu0 0.0
  %1657 = vmatpush1.msra.mxu0 %v1491
  %1658 = vmatprep.subr.mxu0 0.0
  %1659 = vmatpush1.msra.mxu0 %v1492
  %1660 = vmatprep.subr.mxu0 0.0
  %1661 = vmatpush1.msra.mxu0 %v1493
  %1662 = vmatprep.subr.mxu0 0.0
  %1663 = vmatpush1.msra.mxu0 %v1494
  %1664 = vmatprep.subr.mxu0 0.0
  %1665 = vmatpush1.msra.mxu0 %v1495
  %1666 = vmatprep.subr.mxu0 0.0
  %1667 = vmatpush1.msra.mxu0 %v1496
  %1668 = vmatprep.mubr.f32.mxu0 %v1370
  %1669 = vmatmul.mubr.f32.gmra.mrb[0].mxu0 %v1369
  %v1670 = vpop.f32.mrb[0].mxu0
  %v1671 = vadd.f32 %v1506, %v1670
  %v1672 = vpop.f32.mrb[0].mxu0
  %1673 = vmatprep.mubr.f32.mxu0 %v1373
  %1674 = vmatmul.mubr.f32.gmra.mrb[0].mxu0 %v1372
  %v1675 = vpop.f32.mrb[0].mxu0
  %v1676 = vadd.f32 %v1506, %v1675
  %v1677 = vpop.f32.mrb[0].mxu0
  %1678 = vmatprep.mubr.f32.mxu0 %v1376
  %1679 = vmatmul.mubr.f32.gmra.mrb[0].mxu0 %v1375
  %v1680 = vpop.f32.mrb[0].mxu0
  %v1681 = vadd.f32 %v1506, %v1680
  %v1682 = vpop.f32.mrb[0].mxu0
  %1683 = vmatprep.mubr.f32.mxu0 %v1379
  %1684 = vmatmul.mubr.f32.gmra.mrb[0].mxu0 %v1378
  %v1685 = vpop.f32.mrb[0].mxu0
  %v1686 = vadd.f32 %v1506, %v1685
  %v1687 = vpop.f32.mrb[0].mxu0
  %1688 = vmatprep.mubr.f32.mxu0 %v1382
  %1689 = vmatmul.mubr.f32.gmra.mrb[0].mxu0 %v1381
  %v1690 = vpop.f32.mrb[0].mxu0
  %v1691 = vadd.f32 %v1506, %v1690
  %v1692 = vpop.f32.mrb[0].mxu0
  %1693 = vmatprep.mubr.f32.mxu0 %v1385
  %1694 = vmatmul.mubr.f32.gmra.mrb[0].mxu0 %v1384
  %v1695 = vpop.f32.mrb[0].mxu0
  %v1696 = vadd.f32 %v1506, %v1695
  %v1697 = vpop.f32.mrb[0].mxu0
  %1698 = vmatprep.mubr.f32.mxu0 %v1388
  %1699 = vmatmul.mubr.f32.gmra.mrb[0].mxu0 %v1387
  %v1700 = vpop.f32.mrb[0].mxu0
  %v1701 = vadd.f32 %v1506, %v1700
  %v1702 = vpop.f32.mrb[0].mxu0
  %1703 = vmatprep.mubr.f32.mxu0 %v1391
  %1704 = vmatmul.mubr.f32.gmra.mrb[0].mxu0 %v1390
  %v1705 = vpop.f32.mrb[0].mxu0
  %v1706 = vadd.f32 %v1506, %v1705
  %v1707 = vpop.f32.mrb[0].mxu0
  %1708 = vmatprep.mubr.f32.mxu0 %v1394
  %1709 = vmatmul.mubr.f32.gmra.mrb[0].mxu0 %v1393
  %v1710 = vpop.f32.mrb[0].mxu0
  %v1711 = vadd.f32 %v1506, %v1710
  %v1712 = vpop.f32.mrb[0].mxu0
  %1713 = vmatprep.mubr.f32.mxu0 %v1397
  %1714 = vmatmul.mubr.f32.gmra.mrb[0].mxu0 %v1396
  %v1715 = vpop.f32.mrb[0].mxu0
  %v1716 = vadd.f32 %v1506, %v1715
  %v1717 = vpop.f32.mrb[0].mxu0
  %1718 = vmatprep.mubr.f32.mxu0 %v1400
  %1719 = vmatmul.mubr.f32.gmra.mrb[0].mxu0 %v1399
  %v1720 = vpop.f32.mrb[0].mxu0
  %v1721 = vadd.f32 %v1506, %v1720
  %v1722 = vpop.f32.mrb[0].mxu0
  %1723 = vmatprep.mubr.f32.mxu0 %v1403
  %1724 = vmatmul.mubr.f32.gmra.mrb[0].mxu0 %v1402
  %v1725 = vpop.f32.mrb[0].mxu0
  %v1726 = vadd.f32 %v1506, %v1725
  %v1727 = vpop.f32.mrb[0].mxu0
  %1728 = vmatprep.mubr.f32.mxu0 %v1406
  %1729 = vmatmul.mubr.f32.gmra.mrb[0].mxu0 %v1405
  %v1730 = vpop.f32.mrb[0].mxu0
  %v1731 = vadd.f32 %v1506, %v1730
  %v1732 = vpop.f32.mrb[0].mxu0
  %1733 = vmatprep.mubr.f32.mxu0 %v1409
  %1734 = vmatmul.mubr.f32.gmra.mrb[0].mxu0 %v1408
  %v1735 = vpop.f32.mrb[0].mxu0
  %v1736 = vadd.f32 %v1506, %v1735
  %v1737 = vpop.f32.mrb[0].mxu0
  %1738 = vmatprep.mubr.f32.mxu0 %v1412
  %1739 = vmatmul.mubr.f32.gmra.mrb[0].mxu0 %v1411
  %v1740 = vpop.f32.mrb[0].mxu0
  %v1741 = vadd.f32 %v1506, %v1740
  %v1742 = vpop.f32.mrb[0].mxu0
  %1743 = vmatprep.mubr.f32.mxu0 %v1415
  %1744 = vmatmul.mubr.f32.gmra.mrb[0].mxu0 %v1414
  %v1745 = vpop.f32.mrb[0].mxu0
  %v1746 = vadd.f32 %v1506, %v1745
  %v1747 = vpop.f32.mrb[0].mxu0
  %1748 = vmatprep.mubr.f32.mxu0 %v1418
  %1749 = vmatmul.mubr.f32.gmra.mrb[0].mxu0 %v1417
  %v1750 = vpop.f32.mrb[0].mxu0
  %v1751 = vadd.f32 %v1506, %v1750
  %v1752 = vpop.f32.mrb[0].mxu0
  %1753 = vmatprep.mubr.f32.mxu0 %v1421
  %1754 = vmatmul.mubr.f32.gmra.mrb[0].mxu0 %v1420
  %v1755 = vpop.f32.mrb[0].mxu0
  %v1756 = vadd.f32 %v1506, %v1755
  %v1757 = vpop.f32.mrb[0].mxu0
  %1758 = vmatprep.mubr.f32.mxu0 %v1424
  %1759 = vmatmul.mubr.f32.gmra.mrb[0].mxu0 %v1423
  %v1760 = vpop.f32.mrb[0].mxu0
  %v1761 = vadd.f32 %v1506, %v1760
  %v1762 = vpop.f32.mrb[0].mxu0
  %1763 = vmatprep.mubr.f32.mxu0 %v1427
  %1764 = vmatmul.mubr.f32.gmra.mrb[0].mxu0 %v1426
  %v1765 = vpop.f32.mrb[0].mxu0
  %v1766 = vadd.f32 %v1506, %v1765
  %v1767 = vpop.f32.mrb[0].mxu0
  %1768 = vmatprep.mubr.f32.mxu0 %v1430
  %1769 = vmatmul.mubr.f32.gmra.mrb[0].mxu0 %v1429
  %v1770 = vpop.f32.mrb[0].mxu0
  %v1771 = vadd.f32 %v1506, %v1770
  %v1772 = vpop.f32.mrb[0].mxu0
  %1773 = vmatprep.mubr.f32.mxu0 %v1433
  %1774 = vmatmul.mubr.f32.gmra.mrb[0].mxu0 %v1432
  %v1775 = vpop.f32.mrb[0].mxu0
  %v1776 = vadd.f32 %v1506, %v1775
  %v1777 = vpop.f32.mrb[0].mxu0
  %1778 = vmatprep.mubr.f32.mxu0 %v1436
  %1779 = vmatmul.mubr.f32.gmra.mrb[0].mxu0 %v1435
  %v1780 = vpop.f32.mrb[0].mxu0
  %v1781 = vadd.f32 %v1506, %v1780
  %v1782 = vpop.f32.mrb[0].mxu0
  %1783 = vmatprep.mubr.f32.mxu0 %v1439
  %1784 = vmatmul.mubr.f32.gmra.mrb[0].mxu0 %v1438
  %v1785 = vpop.f32.mrb[0].mxu0
  %v1786 = vadd.f32 %v1506, %v1785
  %v1787 = vpop.f32.mrb[0].mxu0
  %1788 = vmatprep.mubr.f32.mxu0 %v1442
  %1789 = vmatmul.mubr.f32.gmra.mrb[0].mxu0 %v1441
  %v1790 = vpop.f32.mrb[0].mxu0
  %v1791 = vadd.f32 %v1506, %v1790
  %v1792 = vpop.f32.mrb[0].mxu0
  %1793 = vmatprep.mubr.f32.mxu0 %v1445
  %1794 = vmatmul.mubr.f32.gmra.mrb[0].mxu0 %v1444
  %v1795 = vpop.f32.mrb[0].mxu0
  %v1796 = vadd.f32 %v1506, %v1795
  %v1797 = vpop.f32.mrb[0].mxu0
  %1798 = vmatprep.mubr.f32.mxu0 %v1448
  %1799 = vmatmul.mubr.f32.gmra.mrb[0].mxu0 %v1447
  %v1800 = vpop.f32.mrb[0].mxu0
  %v1801 = vadd.f32 %v1506, %v1800
  %v1802 = vpop.f32.mrb[0].mxu0
  %1803 = vmatprep.mubr.f32.mxu0 %v1451
  %1804 = vmatmul.mubr.f32.gmra.mrb[0].mxu0 %v1450
  %v1805 = vpop.f32.mrb[0].mxu0
  %v1806 = vadd.f32 %v1506, %v1805
  %v1807 = vpop.f32.mrb[0].mxu0
  %1808 = vmatprep.mubr.f32.mxu0 %v1454
  %1809 = vmatmul.mubr.f32.gmra.mrb[0].mxu0 %v1453
  %v1810 = vpop.f32.mrb[0].mxu0
  %v1811 = vadd.f32 %v1506, %v1810
  %v1812 = vpop.f32.mrb[0].mxu0
  %1813 = vmatprep.mubr.f32.mxu0 %v1457
  %1814 = vmatmul.mubr.f32.gmra.mrb[0].mxu0 %v1456
  %v1815 = vpop.f32.mrb[0].mxu0
  %v1816 = vadd.f32 %v1506, %v1815
  %v1817 = vpop.f32.mrb[0].mxu0
  %1818 = vmatprep.mubr.f32.mxu0 %v1460
  %1819 = vmatmul.mubr.f32.gmra.mrb[0].mxu0 %v1459
  %v1820 = vpop.f32.mrb[0].mxu0
  %v1821 = vadd.f32 %v1506, %v1820
  %v1822 = vpop.f32.mrb[0].mxu0
  %1823 = vmatprep.mubr.f32.mxu0 %v1463
  %1824 = vmatmul.mubr.f32.gmra.mrb[0].mxu0 %v1462
  %v1825 = vpop.f32.mrb[0].mxu0
  %v1826 = vadd.f32 %v1506, %v1825
  %v1827 = vpop.f32.mrb[0].mxu0
  %1828 = vdwg.mxu0
  %1829 = vmatprep.subr.mxu0 0.0
  %1830 = vmatpush1.msra.mxu0 %v1497
  %1831 = vmatprep.subr.mxu0 0.0
  %1832 = vmatpush1.msra.mxu0 %v1498
  %1833 = vmatprep.subr.mxu0 0.0
  %1834 = vmatpush1.msra.mxu0 %v1499
  %1835 = vmatprep.subr.mxu0 0.0
  %1836 = vmatpush1.msra.mxu0 %v1500
  %1837 = vmatprep.subr.mxu0 0.0
  %1838 = vmatpush1.msra.mxu0 0.0
  %1839 = vmatprep.subr.mxu0 0.0
  %1840 = vmatpush1.msra.mxu0 0.0
  %1841 = vmatprep.subr.mxu0 0.0
  %1842 = vmatpush1.msra.mxu0 0.0
  %1843 = vmatprep.subr.mxu0 0.0
  %1844 = vmatpush1.msra.mxu0 0.0
  %1845 = vmatprep.subr.mxu0 0.0
  %1846 = vmatpush1.msra.mxu0 0.0
  %1847 = vmatprep.subr.mxu0 0.0
  %1848 = vmatpush1.msra.mxu0 0.0
  %1849 = vmatprep.subr.mxu0 0.0
  %1850 = vmatpush1.msra.mxu0 0.0
  %1851 = vmatprep.subr.mxu0 0.0
  %1852 = vmatpush1.msra.mxu0 0.0
  %1853 = vmatprep.subr.mxu0 0.0
  %1854 = vmatpush1.msra.mxu0 0.0
  %1855 = vmatprep.subr.mxu0 0.0
  %1856 = vmatpush1.msra.mxu0 0.0
  %1857 = vmatprep.subr.mxu0 0.0
  %1858 = vmatpush1.msra.mxu0 0.0
  %1859 = vmatprep.subr.mxu0 0.0
  %1860 = vmatpush1.msra.mxu0 0.0
  %1861 = vmatprep.subr.mxu0 0.0
  %1862 = vmatpush1.msra.mxu0 0.0
  %1863 = vmatprep.subr.mxu0 0.0
  %1864 = vmatpush1.msra.mxu0 0.0
  %1865 = vmatprep.subr.mxu0 0.0
  %1866 = vmatpush1.msra.mxu0 0.0
  %1867 = vmatprep.subr.mxu0 0.0
  %1868 = vmatpush1.msra.mxu0 0.0
  %1869 = vmatprep.subr.mxu0 0.0
  %1870 = vmatpush1.msra.mxu0 0.0
  %1871 = vmatprep.subr.mxu0 0.0
  %1872 = vmatpush1.msra.mxu0 0.0
  %1873 = vmatprep.subr.mxu0 0.0
  %1874 = vmatpush1.msra.mxu0 0.0
  %1875 = vmatprep.subr.mxu0 0.0
  %1876 = vmatpush1.msra.mxu0 0.0
  %1877 = vmatprep.subr.mxu0 0.0
  %1878 = vmatpush1.msra.mxu0 0.0
  %1879 = vmatprep.subr.mxu0 0.0
  %1880 = vmatpush1.msra.mxu0 0.0
  %1881 = vmatprep.subr.mxu0 0.0
  %1882 = vmatpush1.msra.mxu0 0.0
  %1883 = vmatprep.subr.mxu0 0.0
  %1884 = vmatpush1.msra.mxu0 0.0
  %1885 = vmatprep.subr.mxu0 0.0
  %1886 = vmatpush1.msra.mxu0 0.0
  %1887 = vmatprep.subr.mxu0 0.0
  %1888 = vmatpush1.msra.mxu0 0.0
  %1889 = vmatprep.subr.mxu0 0.0
  %1890 = vmatpush1.msra.mxu0 0.0
  %1891 = vmatprep.subr.mxu0 0.0
  %1892 = vmatpush1.msra.mxu0 0.0
  %1893 = vmatprep.mubr.f32.mxu0 0.0
  %1894 = vmatmul.mubr.f32.gmra.mrb[0].mxu0 %v1509
  %v1895 = vpop.f32.mrb[0].mxu0
  %v1896 = vadd.f32 %v1671, %v1895
  %v1897 = vpop.f32.mrb[0].mxu0
  %1898 = vmatprep.mubr.f32.mxu0 0.0
  %1899 = vmatmul.mubr.f32.gmra.mrb[0].mxu0 %v1512
  %v1900 = vpop.f32.mrb[0].mxu0
  %v1901 = vadd.f32 %v1676, %v1900
  %v1902 = vpop.f32.mrb[0].mxu0
  %1903 = vmatprep.mubr.f32.mxu0 0.0
  %1904 = vmatmul.mubr.f32.gmra.mrb[0].mxu0 %v1515
  %v1905 = vpop.f32.mrb[0].mxu0
  %v1906 = vadd.f32 %v1681, %v1905
  %v1907 = vpop.f32.mrb[0].mxu0
  %1908 = vmatprep.mubr.f32.mxu0 0.0
  %1909 = vmatmul.mubr.f32.gmra.mrb[0].mxu0 %v1518
  %v1910 = vpop.f32.mrb[0].mxu0
  %v1911 = vadd.f32 %v1686, %v1910
  %v1912 = vpop.f32.mrb[0].mxu0
  %1913 = vmatprep.mubr.f32.mxu0 0.0
  %1914 = vmatmul.mubr.f32.gmra.mrb[0].mxu0 %v1521
  %v1915 = vpop.f32.mrb[0].mxu0
  %v1916 = vadd.f32 %v1691, %v1915
  %v1917 = vpop.f32.mrb[0].mxu0
  %1918 = vmatprep.mubr.f32.mxu0 0.0
  %1919 = vmatmul.mubr.f32.gmra.mrb[0].mxu0 %v1524
  %v1920 = vpop.f32.mrb[0].mxu0
  %v1921 = vadd.f32 %v1696, %v1920
  %v1922 = vpop.f32.mrb[0].mxu0
  %1923 = vmatprep.mubr.f32.mxu0 0.0
  %1924 = vmatmul.mubr.f32.gmra.mrb[0].mxu0 %v1527
  %v1925 = vpop.f32.mrb[0].mxu0
  %v1926 = vadd.f32 %v1701, %v1925
  %v1927 = vpop.f32.mrb[0].mxu0
  %1928 = vmatprep.mubr.f32.mxu0 0.0
  %1929 = vmatmul.mubr.f32.gmra.mrb[0].mxu0 %v1530
  %v1930 = vpop.f32.mrb[0].mxu0
  %v1931 = vadd.f32 %v1706, %v1930
  %v1932 = vpop.f32.mrb[0].mxu0
  %1933 = vmatprep.mubr.f32.mxu0 0.0
  %1934 = vmatmul.mubr.f32.gmra.mrb[0].mxu0 %v1533
  %v1935 = vpop.f32.mrb[0].mxu0
  %v1936 = vadd.f32 %v1711, %v1935
  %v1937 = vpop.f32.mrb[0].mxu0
  %1938 = vmatprep.mubr.f32.mxu0 0.0
  %1939 = vmatmul.mubr.f32.gmra.mrb[0].mxu0 %v1536
  %v1940 = vpop.f32.mrb[0].mxu0
  %v1941 = vadd.f32 %v1716, %v1940
  %v1942 = vpop.f32.mrb[0].mxu0
  %1943 = vmatprep.mubr.f32.mxu0 0.0
  %1944 = vmatmul.mubr.f32.gmra.mrb[0].mxu0 %v1539
  %v1945 = vpop.f32.mrb[0].mxu0
  %v1946 = vadd.f32 %v1721, %v1945
  %v1947 = vpop.f32.mrb[0].mxu0
  %1948 = vmatprep.mubr.f32.mxu0 0.0
  %1949 = vmatmul.mubr.f32.gmra.mrb[0].mxu0 %v1542
  %v1950 = vpop.f32.mrb[0].mxu0
  %v1951 = vadd.f32 %v1726, %v1950
  %v1952 = vpop.f32.mrb[0].mxu0
  %1953 = vmatprep.mubr.f32.mxu0 0.0
  %1954 = vmatmul.mubr.f32.gmra.mrb[0].mxu0 %v1545
  %v1955 = vpop.f32.mrb[0].mxu0
  %v1956 = vadd.f32 %v1731, %v1955
  %v1957 = vpop.f32.mrb[0].mxu0
  %1958 = vmatprep.mubr.f32.mxu0 0.0
  %1959 = vmatmul.mubr.f32.gmra.mrb[0].mxu0 %v1548
  %v1960 = vpop.f32.mrb[0].mxu0
  %v1961 = vadd.f32 %v1736, %v1960
  %v1962 = vpop.f32.mrb[0].mxu0
  %1963 = vmatprep.mubr.f32.mxu0 0.0
  %1964 = vmatmul.mubr.f32.gmra.mrb[0].mxu0 %v1551
  %v1965 = vpop.f32.mrb[0].mxu0
  %v1966 = vadd.f32 %v1741, %v1965
  %v1967 = vpop.f32.mrb[0].mxu0
  %1968 = vmatprep.mubr.f32.mxu0 0.0
  %1969 = vmatmul.mubr.f32.gmra.mrb[0].mxu0 %v1554
  %v1970 = vpop.f32.mrb[0].mxu0
  %v1971 = vadd.f32 %v1746, %v1970
  %v1972 = vpop.f32.mrb[0].mxu0
  %1973 = vmatprep.mubr.f32.mxu0 0.0
  %1974 = vmatmul.mubr.f32.gmra.mrb[0].mxu0 %v1557
  %v1975 = vpop.f32.mrb[0].mxu0
  %v1976 = vadd.f32 %v1751, %v1975
  %v1977 = vpop.f32.mrb[0].mxu0
  %1978 = vmatprep.mubr.f32.mxu0 0.0
  %1979 = vmatmul.mubr.f32.gmra.mrb[0].mxu0 %v1560
  %v1980 = vpop.f32.mrb[0].mxu0
  %v1981 = vadd.f32 %v1756, %v1980
  %v1982 = vpop.f32.mrb[0].mxu0
  %1983 = vmatprep.mubr.f32.mxu0 0.0
  %1984 = vmatmul.mubr.f32.gmra.mrb[0].mxu0 %v1563
  %v1985 = vpop.f32.mrb[0].mxu0
  %v1986 = vadd.f32 %v1761, %v1985
  %v1987 = vpop.f32.mrb[0].mxu0
  %1988 = vmatprep.mubr.f32.mxu0 0.0
  %1989 = vmatmul.mubr.f32.gmra.mrb[0].mxu0 %v1566
  %v1990 = vpop.f32.mrb[0].mxu0
  %v1991 = vadd.f32 %v1766, %v1990
  %v1992 = vpop.f32.mrb[0].mxu0
  %1993 = vmatprep.mubr.f32.mxu0 0.0
  %1994 = vmatmul.mubr.f32.gmra.mrb[0].mxu0 %v1569
  %v1995 = vpop.f32.mrb[0].mxu0
  %v1996 = vadd.f32 %v1771, %v1995
  %v1997 = vpop.f32.mrb[0].mxu0
  %1998 = vmatprep.mubr.f32.mxu0 0.0
  %1999 = vmatmul.mubr.f32.gmra.mrb[0].mxu0 %v1572
  %v2000 = vpop.f32.mrb[0].mxu0
  %v2001 = vadd.f32 %v1776, %v2000
  %v2002 = vpop.f32.mrb[0].mxu0
  %2003 = vmatprep.mubr.f32.mxu0 0.0
  %2004 = vmatmul.mubr.f32.gmra.mrb[0].mxu0 %v1575
  %v2005 = vpop.f32.mrb[0].mxu0
  %v2006 = vadd.f32 %v1781, %v2005
  %v2007 = vpop.f32.mrb[0].mxu0
  %2008 = vmatprep.mubr.f32.mxu0 0.0
  %2009 = vmatmul.mubr.f32.gmra.mrb[0].mxu0 %v1578
  %v2010 = vpop.f32.mrb[0].mxu0
  %v2011 = vadd.f32 %v1786, %v2010
  %v2012 = vpop.f32.mrb[0].mxu0
  %2013 = vmatprep.mubr.f32.mxu0 0.0
  %2014 = vmatmul.mubr.f32.gmra.mrb[0].mxu0 %v1581
  %v2015 = vpop.f32.mrb[0].mxu0
  %v2016 = vadd.f32 %v1791, %v2015
  %v2017 = vpop.f32.mrb[0].mxu0
  %2018 = vmatprep.mubr.f32.mxu0 0.0
  %2019 = vmatmul.mubr.f32.gmra.mrb[0].mxu0 %v1584
  %v2020 = vpop.f32.mrb[0].mxu0
  %v2021 = vadd.f32 %v1796, %v2020
  %v2022 = vpop.f32.mrb[0].mxu0
  %2023 = vmatprep.mubr.f32.mxu0 0.0
  %2024 = vmatmul.mubr.f32.gmra.mrb[0].mxu0 %v1587
  %v2025 = vpop.f32.mrb[0].mxu0
  %v2026 = vadd.f32 %v1801, %v2025
  %v2027 = vpop.f32.mrb[0].mxu0
  %2028 = vmatprep.mubr.f32.mxu0 0.0
  %2029 = vmatmul.mubr.f32.gmra.mrb[0].mxu0 %v1590
  %v2030 = vpop.f32.mrb[0].mxu0
  %v2031 = vadd.f32 %v1806, %v2030
  %v2032 = vpop.f32.mrb[0].mxu0
  %2033 = vmatprep.mubr.f32.mxu0 0.0
  %2034 = vmatmul.mubr.f32.gmra.mrb[0].mxu0 %v1593
  %v2035 = vpop.f32.mrb[0].mxu0
  %v2036 = vadd.f32 %v1811, %v2035
  %v2037 = vpop.f32.mrb[0].mxu0
  %2038 = vmatprep.mubr.f32.mxu0 0.0
  %2039 = vmatmul.mubr.f32.gmra.mrb[0].mxu0 %v1596
  %v2040 = vpop.f32.mrb[0].mxu0
  %v2041 = vadd.f32 %v1816, %v2040
  %v2042 = vpop.f32.mrb[0].mxu0
  %2043 = vmatprep.mubr.f32.mxu0 0.0
  %2044 = vmatmul.mubr.f32.gmra.mrb[0].mxu0 %v1599
  %v2045 = vpop.f32.mrb[0].mxu0
  %v2046 = vadd.f32 %v1821, %v2045
  %v2047 = vpop.f32.mrb[0].mxu0
  %2048 = vmatprep.mubr.f32.mxu0 0.0
  %2049 = vmatmul.mubr.f32.gmra.mrb[0].mxu0 %v1602
  %v2050 = vpop.f32.mrb[0].mxu0
  %v2051 = vadd.f32 %v1826, %v2050
  %v2052 = vpop.f32.mrb[0].mxu0
  %2053 = vdwg.mxu0
  %v2054 = vld [vmem:[%s1] sm:$0xff]
  %v2055 = vld [vmem:[%s1 + $0x10] sm:$0xff]
  %v2056 = vld [vmem:[%s1 + $0x20] sm:$0xff]
  %v2057 = vld [vmem:[%s1 + $0x30] sm:$0xff]
  %v2058 = vld [vmem:[%s1 + $0x40] sm:$0xff]
  %v2059 = vld [vmem:[%s1 + $0x50] sm:$0xff]
  %v2060 = vld [vmem:[%s1 + $0x60] sm:$0xff]
  %v2061 = vld [vmem:[%s1 + $0x70] sm:$0xff]
  %v2062 = vld [vmem:[%s1 + $0x80] sm:$0xff]
  %v2063 = vld [vmem:[%s1 + $0x90] sm:$0xff]
  %v2064 = vld [vmem:[%s1 + $0xa0] sm:$0xff]
  %v2065 = vld [vmem:[%s1 + $0xb0] sm:$0xff]
  %v2066 = vld [vmem:[%s1 + $0xc0] sm:$0xff]
  %v2067 = vld [vmem:[%s1 + $0xd0] sm:$0xff]
  %v2068 = vld [vmem:[%s1 + $0xe0] sm:$0xff]
  %v2069 = vld [vmem:[%s1 + $0xf0] sm:$0xff]
  %v2070 = vld [vmem:[%s1 + $0x120] sm:$0xff]
  %v2071 = vld [vmem:[%s1 + $0x130] sm:$0xff]
  %v2072 = vld [vmem:[%s1 + $0x140] sm:$0xff]
  %v2073 = vld [vmem:[%s1 + $0x150] sm:$0xff]
  %v2074 = vld [vmem:[%s1 + $0x160] sm:$0xff]
  %v2075 = vld [vmem:[%s1 + $0x170] sm:$0xff]
  %v2076 = vld [vmem:[%s1 + $0x180] sm:$0xff]
  %v2077 = vld [vmem:[%s1 + $0x190] sm:$0xff]
  %v2078 = vld [vmem:[%s1 + $0x1a0] sm:$0xff]
  %v2079 = vld [vmem:[%s1 + $0x1b0] sm:$0xff]
  %v2080 = vld [vmem:[%s1 + $0x1c0] sm:$0xff]
  %v2081 = vld [vmem:[%s1 + $0x1d0] sm:$0xff]
  %v2082 = vld [vmem:[%s1 + $0x1e0] sm:$0xff]
  %v2083 = vld [vmem:[%s1 + $0x1f0] sm:$0xff]
  %v2084 = vld [vmem:[%s1 + $0x200] sm:$0xff]
  %v2085 = vld [vmem:[%s1 + $0x210] sm:$0xff]
  %2086 = vst.msk [vmem:[#allocation2] sm:$0xff] %vm49, %v2054
  %2087 = vst.msk [vmem:[#allocation2 + $0x18] sm:$0xff] %vm49, %v2055
  %2088 = vst.msk [vmem:[#allocation2 + $0x30] sm:$0xff] %vm49, %v2056
  %2089 = vst.msk [vmem:[#allocation2 + $0x48] sm:$0xff] %vm49, %v2057
  %2090 = vst.msk [vmem:[#allocation2 + $0x60] sm:$0xff] %vm49, %v2058
  %2091 = vst.msk [vmem:[#allocation2 + $0x78] sm:$0xff] %vm49, %v2059
  %2092 = vst.msk [vmem:[#allocation2 + $0x90] sm:$0xff] %vm49, %v2060
  %2093 = vst.msk [vmem:[#allocation2 + $0xa8] sm:$0xff] %vm49, %v2061
  %2094 = vst.msk [vmem:[#allocation2 + $0xc0] sm:$0xff] %vm49, %v2062
  %2095 = vst.msk [vmem:[#allocation2 + $0xd8] sm:$0xff] %vm49, %v2063
  %2096 = vst.msk [vmem:[#allocation2 + $0xf0] sm:$0xff] %vm49, %v2064
  %2097 = vst.msk [vmem:[#allocation2 + $0x108] sm:$0xff] %vm49, %v2065
  %2098 = vst.msk [vmem:[#allocation2 + $0x120] sm:$0xff] %vm49, %v2066
  %2099 = vst.msk [vmem:[#allocation2 + $0x138] sm:$0xff] %vm49, %v2067
  %2100 = vst.msk [vmem:[#allocation2 + $0x150] sm:$0xff] %vm49, %v2068
  %2101 = vst.msk [vmem:[#allocation2 + $0x168] sm:$0xff] %vm49, %v2069
  %2102 = vst.msk [vmem:[#allocation2 + $0x180] sm:$0xff] %vm49, %v2070
  %2103 = vst.msk [vmem:[#allocation2 + $0x198] sm:$0xff] %vm49, %v2071
  %2104 = vst.msk [vmem:[#allocation2 + $0x1b0] sm:$0xff] %vm49, %v2072
  %2105 = vst.msk [vmem:[#allocation2 + $0x1c8] sm:$0xff] %vm49, %v2073
  %2106 = vst.msk [vmem:[#allocation2 + $0x1e0] sm:$0xff] %vm49, %v2074
  %2107 = vst.msk [vmem:[#allocation2 + $0x1f8] sm:$0xff] %vm49, %v2075
  %2108 = vst.msk [vmem:[#allocation2 + $0x210] sm:$0xff] %vm49, %v2076
  %2109 = vst.msk [vmem:[#allocation2 + $0x228] sm:$0xff] %vm49, %v2077
  %2110 = vst.msk [vmem:[#allocation2 + $0x240] sm:$0xff] %vm49, %v2078
  %2111 = vst.msk [vmem:[#allocation2 + $0x258] sm:$0xff] %vm49, %v2079
  %2112 = vst.msk [vmem:[#allocation2 + $0x270] sm:$0xff] %vm49, %v2080
  %2113 = vst.msk [vmem:[#allocation2 + $0x288] sm:$0xff] %vm49, %v2081
  %2114 = vst.msk [vmem:[#allocation2 + $0x2a0] sm:$0xff] %vm49, %v2082
  %2115 = vst.msk [vmem:[#allocation2 + $0x2b8] sm:$0xff] %vm49, %v2083
  %2116 = vst.msk [vmem:[#allocation2 + $0x2d0] sm:$0xff] %vm49, %v2084
  %2117 = vst.msk [vmem:[#allocation2 + $0x2e8] sm:$0xff] %vm49, %v2085
  %v2118 = vld [vmem:[%s0 + $0x1] sm:$0xff]
  %v2119 = vld [vmem:[%s0 + $0x11] sm:$0xff]
  %v2120 = vld [vmem:[%s0 + $0x21] sm:$0xff]
  %v2121 = vld [vmem:[%s0 + $0x31] sm:$0xff]
  %v2122 = vld [vmem:[%s0 + $0x41] sm:$0xff]
  %v2123 = vld [vmem:[%s0 + $0x51] sm:$0xff]
  %v2124 = vld [vmem:[%s0 + $0x61] sm:$0xff]
  %v2125 = vld [vmem:[%s0 + $0x71] sm:$0xff]
  %v2126 = vld [vmem:[%s0 + $0x81] sm:$0xff]
  %v2127 = vld [vmem:[%s0 + $0x91] sm:$0xff]
  %v2128 = vld [vmem:[%s0 + $0xa1] sm:$0xff]
  %v2129 = vld [vmem:[%s0 + $0xb1] sm:$0xff]
  %v2130 = vld [vmem:[%s0 + $0xc1] sm:$0xff]
  %v2131 = vld [vmem:[%s0 + $0xd1] sm:$0xff]
  %v2132 = vld [vmem:[%s0 + $0xe1] sm:$0xff]
  %v2133 = vld [vmem:[%s0 + $0xf1] sm:$0xff]
  %v2134 = vld [vmem:[%s0 + $0x121] sm:$0xff]
  %v2135 = vld [vmem:[%s0 + $0x131] sm:$0xff]
  %v2136 = vld [vmem:[%s0 + $0x141] sm:$0xff]
  %v2137 = vld [vmem:[%s0 + $0x151] sm:$0xff]
  %v2138 = vld [vmem:[%s0 + $0x161] sm:$0xff]
  %v2139 = vld [vmem:[%s0 + $0x171] sm:$0xff]
  %v2140 = vld [vmem:[%s0 + $0x181] sm:$0xff]
  %v2141 = vld [vmem:[%s0 + $0x191] sm:$0xff]
  %v2142 = vld [vmem:[%s0 + $0x1a1] sm:$0xff]
  %v2143 = vld [vmem:[%s0 + $0x1b1] sm:$0xff]
  %v2144 = vld [vmem:[%s0 + $0x1c1] sm:$0xff]
  %v2145 = vld [vmem:[%s0 + $0x1d1] sm:$0xff]
  %v2146 = vld [vmem:[%s0 + $0x1e1] sm:$0xff]
  %v2147 = vld [vmem:[%s0 + $0x1f1] sm:$0xff]
  %v2148 = vld [vmem:[%s0 + $0x201] sm:$0xff]
  %v2149 = vld [vmem:[%s0 + $0x211] sm:$0xff]
  %2182 = vrot.lane.b32.xlu0 %v2118, 32
  %v2183 = vpop.permute.xlu0 %2182
  %2184 = vrot.lane.b32.xlu0 %v2119, 32
  %v2185 = vpop.permute.xlu0 %2184
  %2186 = vrot.lane.b32.xlu0 %v2120, 32
  %v2187 = vpop.permute.xlu0 %2186
  %2188 = vrot.lane.b32.xlu0 %v2121, 32
  %v2189 = vpop.permute.xlu0 %2188
  %2190 = vrot.lane.b32.xlu0 %v2122, 32
  %v2191 = vpop.permute.xlu0 %2190
  %2192 = vrot.lane.b32.xlu0 %v2123, 32
  %v2193 = vpop.permute.xlu0 %2192
  %2194 = vrot.lane.b32.xlu0 %v2124, 32
  %v2195 = vpop.permute.xlu0 %2194
  %2196 = vrot.lane.b32.xlu0 %v2125, 32
  %v2197 = vpop.permute.xlu0 %2196
  %2198 = vrot.lane.b32.xlu0 %v2126, 32
  %v2199 = vpop.permute.xlu0 %2198
  %2200 = vrot.lane.b32.xlu0 %v2127, 32
  %v2201 = vpop.permute.xlu0 %2200
  %2202 = vrot.lane.b32.xlu0 %v2128, 32
  %v2203 = vpop.permute.xlu0 %2202
  %2204 = vrot.lane.b32.xlu0 %v2129, 32
  %v2205 = vpop.permute.xlu0 %2204
  %2206 = vrot.lane.b32.xlu0 %v2130, 32
  %v2207 = vpop.permute.xlu0 %2206
  %2208 = vrot.lane.b32.xlu0 %v2131, 32
  %v2209 = vpop.permute.xlu0 %2208
  %2210 = vrot.lane.b32.xlu0 %v2132, 32
  %v2211 = vpop.permute.xlu0 %2210
  %2212 = vrot.lane.b32.xlu0 %v2133, 32
  %v2213 = vpop.permute.xlu0 %2212
  %2214 = vrot.lane.b32.xlu0 %v2134, 32
  %v2215 = vpop.permute.xlu0 %2214
  %2216 = vrot.lane.b32.xlu0 %v2135, 32
  %v2217 = vpop.permute.xlu0 %2216
  %2218 = vrot.lane.b32.xlu0 %v2136, 32
  %v2219 = vpop.permute.xlu0 %2218
  %2220 = vrot.lane.b32.xlu0 %v2137, 32
  %v2221 = vpop.permute.xlu0 %2220
  %2222 = vrot.lane.b32.xlu0 %v2138, 32
  %v2223 = vpop.permute.xlu0 %2222
  %2224 = vrot.lane.b32.xlu0 %v2139, 32
  %v2225 = vpop.permute.xlu0 %2224
  %2226 = vrot.lane.b32.xlu0 %v2140, 32
  %v2227 = vpop.permute.xlu0 %2226
  %2228 = vrot.lane.b32.xlu0 %v2141, 32
  %v2229 = vpop.permute.xlu0 %2228
  %2230 = vrot.lane.b32.xlu0 %v2142, 32
  %v2231 = vpop.permute.xlu0 %2230
  %2232 = vrot.lane.b32.xlu0 %v2143, 32
  %v2233 = vpop.permute.xlu0 %2232
  %2234 = vrot.lane.b32.xlu0 %v2144, 32
  %v2235 = vpop.permute.xlu0 %2234
  %2236 = vrot.lane.b32.xlu0 %v2145, 32
  %v2237 = vpop.permute.xlu0 %2236
  %2238 = vrot.lane.b32.xlu0 %v2146, 32
  %v2239 = vpop.permute.xlu0 %2238
  %2240 = vrot.lane.b32.xlu0 %v2147, 32
  %v2241 = vpop.permute.xlu0 %2240
  %2242 = vrot.lane.b32.xlu0 %v2148, 32
  %v2243 = vpop.permute.xlu0 %2242
  %2244 = vrot.lane.b32.xlu0 %v2149, 32
  %v2245 = vpop.permute.xlu0 %2244
  %2278 = vst.msk [vmem:[#allocation2] sm:$0xff] %vm242, %v2183
  %2279 = vst.msk [vmem:[#allocation2 + $0x18] sm:$0xff] %vm242, %v2185
  %2280 = vst.msk [vmem:[#allocation2 + $0x30] sm:$0xff] %vm242, %v2187
  %2281 = vst.msk [vmem:[#allocation2 + $0x48] sm:$0xff] %vm242, %v2189
  %2282 = vst.msk [vmem:[#allocation2 + $0x60] sm:$0xff] %vm242, %v2191
  %2283 = vst.msk [vmem:[#allocation2 + $0x78] sm:$0xff] %vm242, %v2193
  %2284 = vst.msk [vmem:[#allocation2 + $0x90] sm:$0xff] %vm242, %v2195
  %2285 = vst.msk [vmem:[#allocation2 + $0xa8] sm:$0xff] %vm242, %v2197
  %2286 = vst.msk [vmem:[#allocation2 + $0xc0] sm:$0xff] %vm242, %v2199
  %2287 = vst.msk [vmem:[#allocation2 + $0xd8] sm:$0xff] %vm242, %v2201
  %2288 = vst.msk [vmem:[#allocation2 + $0xf0] sm:$0xff] %vm242, %v2203
  %2289 = vst.msk [vmem:[#allocation2 + $0x108] sm:$0xff] %vm242, %v2205
  %2290 = vst.msk [vmem:[#allocation2 + $0x120] sm:$0xff] %vm242, %v2207
  %2291 = vst.msk [vmem:[#allocation2 + $0x138] sm:$0xff] %vm242, %v2209
  %2292 = vst.msk [vmem:[#allocation2 + $0x150] sm:$0xff] %vm242, %v2211
  %2293 = vst.msk [vmem:[#allocation2 + $0x168] sm:$0xff] %vm242, %v2213
  %2294 = vst.msk [vmem:[#allocation2 + $0x180] sm:$0xff] %vm242, %v2215
  %2295 = vst.msk [vmem:[#allocation2 + $0x198] sm:$0xff] %vm242, %v2217
  %2296 = vst.msk [vmem:[#allocation2 + $0x1b0] sm:$0xff] %vm242, %v2219
  %2297 = vst.msk [vmem:[#allocation2 + $0x1c8] sm:$0xff] %vm242, %v2221
  %2298 = vst.msk [vmem:[#allocation2 + $0x1e0] sm:$0xff] %vm242, %v2223
  %2299 = vst.msk [vmem:[#allocation2 + $0x1f8] sm:$0xff] %vm242, %v2225
  %2300 = vst.msk [vmem:[#allocation2 + $0x210] sm:$0xff] %vm242, %v2227
  %2301 = vst.msk [vmem:[#allocation2 + $0x228] sm:$0xff] %vm242, %v2229
  %2302 = vst.msk [vmem:[#allocation2 + $0x240] sm:$0xff] %vm242, %v2231
  %2303 = vst.msk [vmem:[#allocation2 + $0x258] sm:$0xff] %vm242, %v2233
  %2304 = vst.msk [vmem:[#allocation2 + $0x270] sm:$0xff] %vm242, %v2235
  %2305 = vst.msk [vmem:[#allocation2 + $0x288] sm:$0xff] %vm242, %v2237
  %2306 = vst.msk [vmem:[#allocation2 + $0x2a0] sm:$0xff] %vm242, %v2239
  %2307 = vst.msk [vmem:[#allocation2 + $0x2b8] sm:$0xff] %vm242, %v2241
  %2308 = vst.msk [vmem:[#allocation2 + $0x2d0] sm:$0xff] %vm242, %v2243
  %2309 = vst.msk [vmem:[#allocation2 + $0x2e8] sm:$0xff] %vm242, %v2245
  %v2310 = vld [vmem:[%s1 + $0x1] sm:$0xff]
  %v2311 = vld [vmem:[%s1 + $0x11] sm:$0xff]
  %v2312 = vld [vmem:[%s1 + $0x21] sm:$0xff]
  %v2313 = vld [vmem:[%s1 + $0x31] sm:$0xff]
  %v2314 = vld [vmem:[%s1 + $0x41] sm:$0xff]
  %v2315 = vld [vmem:[%s1 + $0x51] sm:$0xff]
  %v2316 = vld [vmem:[%s1 + $0x61] sm:$0xff]
  %v2317 = vld [vmem:[%s1 + $0x71] sm:$0xff]
  %v2318 = vld [vmem:[%s1 + $0x81] sm:$0xff]
  %v2319 = vld [vmem:[%s1 + $0x91] sm:$0xff]
  %v2320 = vld [vmem:[%s1 + $0xa1] sm:$0xff]
  %v2321 = vld [vmem:[%s1 + $0xb1] sm:$0xff]
  %v2322 = vld [vmem:[%s1 + $0xc1] sm:$0xff]
  %v2323 = vld [vmem:[%s1 + $0xd1] sm:$0xff]
  %v2324 = vld [vmem:[%s1 + $0xe1] sm:$0xff]
  %v2325 = vld [vmem:[%s1 + $0xf1] sm:$0xff]
  %v2326 = vld [vmem:[%s1 + $0x121] sm:$0xff]
  %v2327 = vld [vmem:[%s1 + $0x131] sm:$0xff]
  %v2328 = vld [vmem:[%s1 + $0x141] sm:$0xff]
  %v2329 = vld [vmem:[%s1 + $0x151] sm:$0xff]
  %v2330 = vld [vmem:[%s1 + $0x161] sm:$0xff]
  %v2331 = vld [vmem:[%s1 + $0x171] sm:$0xff]
  %v2332 = vld [vmem:[%s1 + $0x181] sm:$0xff]
  %v2333 = vld [vmem:[%s1 + $0x191] sm:$0xff]
  %v2334 = vld [vmem:[%s1 + $0x1a1] sm:$0xff]
  %v2335 = vld [vmem:[%s1 + $0x1b1] sm:$0xff]
  %v2336 = vld [vmem:[%s1 + $0x1c1] sm:$0xff]
  %v2337 = vld [vmem:[%s1 + $0x1d1] sm:$0xff]
  %v2338 = vld [vmem:[%s1 + $0x1e1] sm:$0xff]
  %v2339 = vld [vmem:[%s1 + $0x1f1] sm:$0xff]
  %v2340 = vld [vmem:[%s1 + $0x201] sm:$0xff]
  %v2341 = vld [vmem:[%s1 + $0x211] sm:$0xff]
  %2374 = vrot.lane.b32.xlu0 %v2310, 64
  %v2375 = vpop.permute.xlu0 %2374
  %2376 = vrot.lane.b32.xlu0 %v2311, 64
  %v2377 = vpop.permute.xlu0 %2376
  %2378 = vrot.lane.b32.xlu0 %v2312, 64
  %v2379 = vpop.permute.xlu0 %2378
  %2380 = vrot.lane.b32.xlu0 %v2313, 64
  %v2381 = vpop.permute.xlu0 %2380
  %2382 = vrot.lane.b32.xlu0 %v2314, 64
  %v2383 = vpop.permute.xlu0 %2382
  %2384 = vrot.lane.b32.xlu0 %v2315, 64
  %v2385 = vpop.permute.xlu0 %2384
  %2386 = vrot.lane.b32.xlu0 %v2316, 64
  %v2387 = vpop.permute.xlu0 %2386
  %2388 = vrot.lane.b32.xlu0 %v2317, 64
  %v2389 = vpop.permute.xlu0 %2388
  %2390 = vrot.lane.b32.xlu0 %v2318, 64
  %v2391 = vpop.permute.xlu0 %2390
  %2392 = vrot.lane.b32.xlu0 %v2319, 64
  %v2393 = vpop.permute.xlu0 %2392
  %2394 = vrot.lane.b32.xlu0 %v2320, 64
  %v2395 = vpop.permute.xlu0 %2394
  %2396 = vrot.lane.b32.xlu0 %v2321, 64
  %v2397 = vpop.permute.xlu0 %2396
  %2398 = vrot.lane.b32.xlu0 %v2322, 64
  %v2399 = vpop.permute.xlu0 %2398
  %2400 = vrot.lane.b32.xlu0 %v2323, 64
  %v2401 = vpop.permute.xlu0 %2400
  %2402 = vrot.lane.b32.xlu0 %v2324, 64
  %v2403 = vpop.permute.xlu0 %2402
  %2404 = vrot.lane.b32.xlu0 %v2325, 64
  %v2405 = vpop.permute.xlu0 %2404
  %2406 = vrot.lane.b32.xlu0 %v2326, 64
  %v2407 = vpop.permute.xlu0 %2406
  %2408 = vrot.lane.b32.xlu0 %v2327, 64
  %v2409 = vpop.permute.xlu0 %2408
  %2410 = vrot.lane.b32.xlu0 %v2328, 64
  %v2411 = vpop.permute.xlu0 %2410
  %2412 = vrot.lane.b32.xlu0 %v2329, 64
  %v2413 = vpop.permute.xlu0 %2412
  %2414 = vrot.lane.b32.xlu0 %v2330, 64
  %v2415 = vpop.permute.xlu0 %2414
  %2416 = vrot.lane.b32.xlu0 %v2331, 64
  %v2417 = vpop.permute.xlu0 %2416
  %2418 = vrot.lane.b32.xlu0 %v2332, 64
  %v2419 = vpop.permute.xlu0 %2418
  %2420 = vrot.lane.b32.xlu0 %v2333, 64
  %v2421 = vpop.permute.xlu0 %2420
  %2422 = vrot.lane.b32.xlu0 %v2334, 64
  %v2423 = vpop.permute.xlu0 %2422
  %2424 = vrot.lane.b32.xlu0 %v2335, 64
  %v2425 = vpop.permute.xlu0 %2424
  %2426 = vrot.lane.b32.xlu0 %v2336, 64
  %v2427 = vpop.permute.xlu0 %2426
  %2428 = vrot.lane.b32.xlu0 %v2337, 64
  %v2429 = vpop.permute.xlu0 %2428
  %2430 = vrot.lane.b32.xlu0 %v2338, 64
  %v2431 = vpop.permute.xlu0 %2430
  %2432 = vrot.lane.b32.xlu0 %v2339, 64
  %v2433 = vpop.permute.xlu0 %2432
  %2434 = vrot.lane.b32.xlu0 %v2340, 64
  %v2435 = vpop.permute.xlu0 %2434
  %2436 = vrot.lane.b32.xlu0 %v2341, 64
  %v2437 = vpop.permute.xlu0 %2436
  %2470 = vst.msk [vmem:[#allocation2] sm:$0xff] %vm435, %v2375
  %2471 = vst.msk [vmem:[#allocation2 + $0x18] sm:$0xff] %vm435, %v2377
  %2472 = vst.msk [vmem:[#allocation2 + $0x30] sm:$0xff] %vm435, %v2379
  %2473 = vst.msk [vmem:[#allocation2 + $0x48] sm:$0xff] %vm435, %v2381
  %2474 = vst.msk [vmem:[#allocation2 + $0x60] sm:$0xff] %vm435, %v2383
  %2475 = vst.msk [vmem:[#allocation2 + $0x78] sm:$0xff] %vm435, %v2385
  %2476 = vst.msk [vmem:[#allocation2 + $0x90] sm:$0xff] %vm435, %v2387
  %2477 = vst.msk [vmem:[#allocation2 + $0xa8] sm:$0xff] %vm435, %v2389
  %2478 = vst.msk [vmem:[#allocation2 + $0xc0] sm:$0xff] %vm435, %v2391
  %2479 = vst.msk [vmem:[#allocation2 + $0xd8] sm:$0xff] %vm435, %v2393
  %2480 = vst.msk [vmem:[#allocation2 + $0xf0] sm:$0xff] %vm435, %v2395
  %2481 = vst.msk [vmem:[#allocation2 + $0x108] sm:$0xff] %vm435, %v2397
  %2482 = vst.msk [vmem:[#allocation2 + $0x120] sm:$0xff] %vm435, %v2399
  %2483 = vst.msk [vmem:[#allocation2 + $0x138] sm:$0xff] %vm435, %v2401
  %2484 = vst.msk [vmem:[#allocation2 + $0x150] sm:$0xff] %vm435, %v2403
  %2485 = vst.msk [vmem:[#allocation2 + $0x168] sm:$0xff] %vm435, %v2405
  %2486 = vst.msk [vmem:[#allocation2 + $0x180] sm:$0xff] %vm435, %v2407
  %2487 = vst.msk [vmem:[#allocation2 + $0x198] sm:$0xff] %vm435, %v2409
  %2488 = vst.msk [vmem:[#allocation2 + $0x1b0] sm:$0xff] %vm435, %v2411
  %2489 = vst.msk [vmem:[#allocation2 + $0x1c8] sm:$0xff] %vm435, %v2413
  %2490 = vst.msk [vmem:[#allocation2 + $0x1e0] sm:$0xff] %vm435, %v2415
  %2491 = vst.msk [vmem:[#allocation2 + $0x1f8] sm:$0xff] %vm435, %v2417
  %2492 = vst.msk [vmem:[#allocation2 + $0x210] sm:$0xff] %vm435, %v2419
  %2493 = vst.msk [vmem:[#allocation2 + $0x228] sm:$0xff] %vm435, %v2421
  %2494 = vst.msk [vmem:[#allocation2 + $0x240] sm:$0xff] %vm435, %v2423
  %2495 = vst.msk [vmem:[#allocation2 + $0x258] sm:$0xff] %vm435, %v2425
  %2496 = vst.msk [vmem:[#allocation2 + $0x270] sm:$0xff] %vm435, %v2427
  %2497 = vst.msk [vmem:[#allocation2 + $0x288] sm:$0xff] %vm435, %v2429
  %2498 = vst.msk [vmem:[#allocation2 + $0x2a0] sm:$0xff] %vm435, %v2431
  %2499 = vst.msk [vmem:[#allocation2 + $0x2b8] sm:$0xff] %vm435, %v2433
  %2500 = vst.msk [vmem:[#allocation2 + $0x2d0] sm:$0xff] %vm435, %v2435
  %2501 = vst.msk [vmem:[#allocation2 + $0x2e8] sm:$0xff] %vm435, %v2437
  %v2502 = vld [vmem:[%s662] sm:$0xff]
  %v2503 = vld [vmem:[%s662 + $0x10] sm:$0xff]
  %v2504 = vld [vmem:[%s662 + $0x20] sm:$0xff]
  %v2505 = vld [vmem:[%s662 + $0x30] sm:$0xff]
  %v2506 = vld [vmem:[%s662 + $0x40] sm:$0xff]
  %v2507 = vld [vmem:[%s662 + $0x50] sm:$0xff]
  %v2508 = vld [vmem:[%s662 + $0x60] sm:$0xff]
  %v2509 = vld [vmem:[%s662 + $0x70] sm:$0xff]
  %v2510 = vld [vmem:[%s662 + $0x80] sm:$0xff]
  %v2511 = vld [vmem:[%s662 + $0x90] sm:$0xff]
  %v2512 = vld [vmem:[%s662 + $0xa0] sm:$0xff]
  %v2513 = vld [vmem:[%s662 + $0xb0] sm:$0xff]
  %v2514 = vld [vmem:[%s662 + $0xc0] sm:$0xff]
  %v2515 = vld [vmem:[%s662 + $0xd0] sm:$0xff]
  %v2516 = vld [vmem:[%s662 + $0xe0] sm:$0xff]
  %v2517 = vld [vmem:[%s662 + $0xf0] sm:$0xff]
  %v2518 = vld [vmem:[%s662 + $0x120] sm:$0xff]
  %v2519 = vld [vmem:[%s662 + $0x130] sm:$0xff]
  %v2520 = vld [vmem:[%s662 + $0x140] sm:$0xff]
  %v2521 = vld [vmem:[%s662 + $0x150] sm:$0xff]
  %v2522 = vld [vmem:[%s662 + $0x160] sm:$0xff]
  %v2523 = vld [vmem:[%s662 + $0x170] sm:$0xff]
  %v2524 = vld [vmem:[%s662 + $0x180] sm:$0xff]
  %v2525 = vld [vmem:[%s662 + $0x190] sm:$0xff]
  %v2526 = vld [vmem:[%s662 + $0x1a0] sm:$0xff]
  %v2527 = vld [vmem:[%s662 + $0x1b0] sm:$0xff]
  %v2528 = vld [vmem:[%s662 + $0x1c0] sm:$0xff]
  %v2529 = vld [vmem:[%s662 + $0x1d0] sm:$0xff]
  %v2530 = vld [vmem:[%s662 + $0x1e0] sm:$0xff]
  %v2531 = vld [vmem:[%s662 + $0x1f0] sm:$0xff]
  %v2532 = vld [vmem:[%s662 + $0x200] sm:$0xff]
  %v2533 = vld [vmem:[%s662 + $0x210] sm:$0xff]
  %2566 = vrot.lane.b32.xlu0 %v2502, 96
  %v2567 = vpop.permute.xlu0 %2566
  %2568 = vrot.lane.b32.xlu0 %v2503, 96
  %v2569 = vpop.permute.xlu0 %2568
  %2570 = vrot.lane.b32.xlu0 %v2504, 96
  %v2571 = vpop.permute.xlu0 %2570
  %2572 = vrot.lane.b32.xlu0 %v2505, 96
  %v2573 = vpop.permute.xlu0 %2572
  %2574 = vrot.lane.b32.xlu0 %v2506, 96
  %v2575 = vpop.permute.xlu0 %2574
  %2576 = vrot.lane.b32.xlu0 %v2507, 96
  %v2577 = vpop.permute.xlu0 %2576
  %2578 = vrot.lane.b32.xlu0 %v2508, 96
  %v2579 = vpop.permute.xlu0 %2578
  %2580 = vrot.lane.b32.xlu0 %v2509, 96
  %v2581 = vpop.permute.xlu0 %2580
  %2582 = vrot.lane.b32.xlu0 %v2510, 96
  %v2583 = vpop.permute.xlu0 %2582
  %2584 = vrot.lane.b32.xlu0 %v2511, 96
  %v2585 = vpop.permute.xlu0 %2584
  %2586 = vrot.lane.b32.xlu0 %v2512, 96
  %v2587 = vpop.permute.xlu0 %2586
  %2588 = vrot.lane.b32.xlu0 %v2513, 96
  %v2589 = vpop.permute.xlu0 %2588
  %2590 = vrot.lane.b32.xlu0 %v2514, 96
  %v2591 = vpop.permute.xlu0 %2590
  %2592 = vrot.lane.b32.xlu0 %v2515, 96
  %v2593 = vpop.permute.xlu0 %2592
  %2594 = vrot.lane.b32.xlu0 %v2516, 96
  %v2595 = vpop.permute.xlu0 %2594
  %2596 = vrot.lane.b32.xlu0 %v2517, 96
  %v2597 = vpop.permute.xlu0 %2596
  %2598 = vrot.lane.b32.xlu0 %v2518, 96
  %v2599 = vpop.permute.xlu0 %2598
  %2600 = vrot.lane.b32.xlu0 %v2519, 96
  %v2601 = vpop.permute.xlu0 %2600
  %2602 = vrot.lane.b32.xlu0 %v2520, 96
  %v2603 = vpop.permute.xlu0 %2602
  %2604 = vrot.lane.b32.xlu0 %v2521, 96
  %v2605 = vpop.permute.xlu0 %2604
  %2606 = vrot.lane.b32.xlu0 %v2522, 96
  %v2607 = vpop.permute.xlu0 %2606
  %2608 = vrot.lane.b32.xlu0 %v2523, 96
  %v2609 = vpop.permute.xlu0 %2608
  %2610 = vrot.lane.b32.xlu0 %v2524, 96
  %v2611 = vpop.permute.xlu0 %2610
  %2612 = vrot.lane.b32.xlu0 %v2525, 96
  %v2613 = vpop.permute.xlu0 %2612
  %2614 = vrot.lane.b32.xlu0 %v2526, 96
  %v2615 = vpop.permute.xlu0 %2614
  %2616 = vrot.lane.b32.xlu0 %v2527, 96
  %v2617 = vpop.permute.xlu0 %2616
  %2618 = vrot.lane.b32.xlu0 %v2528, 96
  %v2619 = vpop.permute.xlu0 %2618
  %2620 = vrot.lane.b32.xlu0 %v2529, 96
  %v2621 = vpop.permute.xlu0 %2620
  %2622 = vrot.lane.b32.xlu0 %v2530, 96
  %v2623 = vpop.permute.xlu0 %2622
  %2624 = vrot.lane.b32.xlu0 %v2531, 96
  %v2625 = vpop.permute.xlu0 %2624
  %2626 = vrot.lane.b32.xlu0 %v2532, 96
  %v2627 = vpop.permute.xlu0 %2626
  %2628 = vrot.lane.b32.xlu0 %v2533, 96
  %v2629 = vpop.permute.xlu0 %2628
  %2662 = vst.msk [vmem:[#allocation2] sm:$0xff] %vm629, %v2567
  %2663 = vst.msk [vmem:[#allocation2 + $0x18] sm:$0xff] %vm629, %v2569
  %2664 = vst.msk [vmem:[#allocation2 + $0x30] sm:$0xff] %vm629, %v2571
  %2665 = vst.msk [vmem:[#allocation2 + $0x48] sm:$0xff] %vm629, %v2573
  %2666 = vst.msk [vmem:[#allocation2 + $0x60] sm:$0xff] %vm629, %v2575
  %2667 = vst.msk [vmem:[#allocation2 + $0x78] sm:$0xff] %vm629, %v2577
  %2668 = vst.msk [vmem:[#allocation2 + $0x90] sm:$0xff] %vm629, %v2579
  %2669 = vst.msk [vmem:[#allocation2 + $0xa8] sm:$0xff] %vm629, %v2581
  %2670 = vst.msk [vmem:[#allocation2 + $0xc0] sm:$0xff] %vm629, %v2583
  %2671 = vst.msk [vmem:[#allocation2 + $0xd8] sm:$0xff] %vm629, %v2585
  %2672 = vst.msk [vmem:[#allocation2 + $0xf0] sm:$0xff] %vm629, %v2587
  %2673 = vst.msk [vmem:[#allocation2 + $0x108] sm:$0xff] %vm629, %v2589
  %2674 = vst.msk [vmem:[#allocation2 + $0x120] sm:$0xff] %vm629, %v2591
  %2675 = vst.msk [vmem:[#allocation2 + $0x138] sm:$0xff] %vm629, %v2593
  %2676 = vst.msk [vmem:[#allocation2 + $0x150] sm:$0xff] %vm629, %v2595
  %2677 = vst.msk [vmem:[#allocation2 + $0x168] sm:$0xff] %vm629, %v2597
  %2678 = vst.msk [vmem:[#allocation2 + $0x180] sm:$0xff] %vm629, %v2599
  %2679 = vst.msk [vmem:[#allocation2 + $0x198] sm:$0xff] %vm629, %v2601
  %2680 = vst.msk [vmem:[#allocation2 + $0x1b0] sm:$0xff] %vm629, %v2603
  %2681 = vst.msk [vmem:[#allocation2 + $0x1c8] sm:$0xff] %vm629, %v2605
  %2682 = vst.msk [vmem:[#allocation2 + $0x1e0] sm:$0xff] %vm629, %v2607
  %2683 = vst.msk [vmem:[#allocation2 + $0x1f8] sm:$0xff] %vm629, %v2609
  %2684 = vst.msk [vmem:[#allocation2 + $0x210] sm:$0xff] %vm629, %v2611
  %2685 = vst.msk [vmem:[#allocation2 + $0x228] sm:$0xff] %vm629, %v2613
  %2686 = vst.msk [vmem:[#allocation2 + $0x240] sm:$0xff] %vm629, %v2615
  %2687 = vst.msk [vmem:[#allocation2 + $0x258] sm:$0xff] %vm629, %v2617
  %2688 = vst.msk [vmem:[#allocation2 + $0x270] sm:$0xff] %vm629, %v2619
  %2689 = vst.msk [vmem:[#allocation2 + $0x288] sm:$0xff] %vm629, %v2621
  %2690 = vst.msk [vmem:[#allocation2 + $0x2a0] sm:$0xff] %vm629, %v2623
  %2691 = vst.msk [vmem:[#allocation2 + $0x2b8] sm:$0xff] %vm629, %v2625
  %2692 = vst.msk [vmem:[#allocation2 + $0x2d0] sm:$0xff] %vm629, %v2627
  %2693 = vst.msk [vmem:[#allocation2 + $0x2e8] sm:$0xff] %vm629, %v2629
  %v2694 = vld [vmem:[%s468 + $0x1] sm:$0xff]
  %v2695 = vld [vmem:[%s468 + $0x11] sm:$0xff]
  %v2696 = vld [vmem:[%s468 + $0x21] sm:$0xff]
  %v2697 = vld [vmem:[%s468 + $0x31] sm:$0xff]
  %v2698 = vld [vmem:[%s468 + $0x41] sm:$0xff]
  %v2699 = vld [vmem:[%s468 + $0x51] sm:$0xff]
  %v2700 = vld [vmem:[%s468 + $0x61] sm:$0xff]
  %v2701 = vld [vmem:[%s468 + $0x71] sm:$0xff]
  %v2702 = vld [vmem:[%s468 + $0x81] sm:$0xff]
  %v2703 = vld [vmem:[%s468 + $0x91] sm:$0xff]
  %v2704 = vld [vmem:[%s468 + $0xa1] sm:$0xff]
  %v2705 = vld [vmem:[%s468 + $0xb1] sm:$0xff]
  %v2706 = vld [vmem:[%s468 + $0xc1] sm:$0xff]
  %v2707 = vld [vmem:[%s468 + $0xd1] sm:$0xff]
  %v2708 = vld [vmem:[%s468 + $0xe1] sm:$0xff]
  %v2709 = vld [vmem:[%s468 + $0xf1] sm:$0xff]
  %v2710 = vld [vmem:[%s468 + $0x121] sm:$0xff]
  %v2711 = vld [vmem:[%s468 + $0x131] sm:$0xff]
  %v2712 = vld [vmem:[%s468 + $0x141] sm:$0xff]
  %v2713 = vld [vmem:[%s468 + $0x151] sm:$0xff]
  %v2714 = vld [vmem:[%s468 + $0x161] sm:$0xff]
  %v2715 = vld [vmem:[%s468 + $0x171] sm:$0xff]
  %v2716 = vld [vmem:[%s468 + $0x181] sm:$0xff]
  %v2717 = vld [vmem:[%s468 + $0x191] sm:$0xff]
  %v2718 = vld [vmem:[%s468 + $0x1a1] sm:$0xff]
  %v2719 = vld [vmem:[%s468 + $0x1b1] sm:$0xff]
  %v2720 = vld [vmem:[%s468 + $0x1c1] sm:$0xff]
  %v2721 = vld [vmem:[%s468 + $0x1d1] sm:$0xff]
  %v2722 = vld [vmem:[%s468 + $0x1e1] sm:$0xff]
  %v2723 = vld [vmem:[%s468 + $0x1f1] sm:$0xff]
  %v2724 = vld [vmem:[%s468 + $0x201] sm:$0xff]
  %v2725 = vld [vmem:[%s468 + $0x211] sm:$0xff]
  %2726 = vst.msk [vmem:[#allocation2 + $0x8] sm:$0xff] %vm49, %v2694
  %2727 = vst.msk [vmem:[#allocation2 + $0x20] sm:$0xff] %vm49, %v2695
  %2728 = vst.msk [vmem:[#allocation2 + $0x38] sm:$0xff] %vm49, %v2696
  %2729 = vst.msk [vmem:[#allocation2 + $0x50] sm:$0xff] %vm49, %v2697
  %2730 = vst.msk [vmem:[#allocation2 + $0x68] sm:$0xff] %vm49, %v2698
  %2731 = vst.msk [vmem:[#allocation2 + $0x80] sm:$0xff] %vm49, %v2699
  %2732 = vst.msk [vmem:[#allocation2 + $0x98] sm:$0xff] %vm49, %v2700
  %2733 = vst.msk [vmem:[#allocation2 + $0xb0] sm:$0xff] %vm49, %v2701
  %2734 = vst.msk [vmem:[#allocation2 + $0xc8] sm:$0xff] %vm49, %v2702
  %2735 = vst.msk [vmem:[#allocation2 + $0xe0] sm:$0xff] %vm49, %v2703
  %2736 = vst.msk [vmem:[#allocation2 + $0xf8] sm:$0xff] %vm49, %v2704
  %2737 = vst.msk [vmem:[#allocation2 + $0x110] sm:$0xff] %vm49, %v2705
  %2738 = vst.msk [vmem:[#allocation2 + $0x128] sm:$0xff] %vm49, %v2706
  %2739 = vst.msk [vmem:[#allocation2 + $0x140] sm:$0xff] %vm49, %v2707
  %2740 = vst.msk [vmem:[#allocation2 + $0x158] sm:$0xff] %vm49, %v2708
  %2741 = vst.msk [vmem:[#allocation2 + $0x170] sm:$0xff] %vm49, %v2709
  %2742 = vst.msk [vmem:[#allocation2 + $0x188] sm:$0xff] %vm49, %v2710
  %2743 = vst.msk [vmem:[#allocation2 + $0x1a0] sm:$0xff] %vm49, %v2711
  %2744 = vst.msk [vmem:[#allocation2 + $0x1b8] sm:$0xff] %vm49, %v2712
  %2745 = vst.msk [vmem:[#allocation2 + $0x1d0] sm:$0xff] %vm49, %v2713
  %2746 = vst.msk [vmem:[#allocation2 + $0x1e8] sm:$0xff] %vm49, %v2714
  %2747 = vst.msk [vmem:[#allocation2 + $0x200] sm:$0xff] %vm49, %v2715
  %2748 = vst.msk [vmem:[#allocation2 + $0x218] sm:$0xff] %vm49, %v2716
  %2749 = vst.msk [vmem:[#allocation2 + $0x230] sm:$0xff] %vm49, %v2717
  %2750 = vst.msk [vmem:[#allocation2 + $0x248] sm:$0xff] %vm49, %v2718
  %2751 = vst.msk [vmem:[#allocation2 + $0x260] sm:$0xff] %vm49, %v2719
  %2752 = vst.msk [vmem:[#allocation2 + $0x278] sm:$0xff] %vm49, %v2720
  %2753 = vst.msk [vmem:[#allocation2 + $0x290] sm:$0xff] %vm49, %v2721
  %2754 = vst.msk [vmem:[#allocation2 + $0x2a8] sm:$0xff] %vm49, %v2722
  %2755 = vst.msk [vmem:[#allocation2 + $0x2c0] sm:$0xff] %vm49, %v2723
  %2756 = vst.msk [vmem:[#allocation2 + $0x2d8] sm:$0xff] %vm49, %v2724
  %2757 = vst.msk [vmem:[#allocation2 + $0x2f0] sm:$0xff] %vm49, %v2725
  %v2758 = vld [vmem:[%s662 + $0x1] sm:$0xff]
  %v2759 = vld [vmem:[%s662 + $0x11] sm:$0xff]
  %v2760 = vld [vmem:[%s662 + $0x21] sm:$0xff]
  %v2761 = vld [vmem:[%s662 + $0x31] sm:$0xff]
  %v2762 = vld [vmem:[%s662 + $0x41] sm:$0xff]
  %v2763 = vld [vmem:[%s662 + $0x51] sm:$0xff]
  %v2764 = vld [vmem:[%s662 + $0x61] sm:$0xff]
  %v2765 = vld [vmem:[%s662 + $0x71] sm:$0xff]
  %v2766 = vld [vmem:[%s662 + $0x81] sm:$0xff]
  %v2767 = vld [vmem:[%s662 + $0x91] sm:$0xff]
  %v2768 = vld [vmem:[%s662 + $0xa1] sm:$0xff]
  %v2769 = vld [vmem:[%s662 + $0xb1] sm:$0xff]
  %v2770 = vld [vmem:[%s662 + $0xc1] sm:$0xff]
  %v2771 = vld [vmem:[%s662 + $0xd1] sm:$0xff]
  %v2772 = vld [vmem:[%s662 + $0xe1] sm:$0xff]
  %v2773 = vld [vmem:[%s662 + $0xf1] sm:$0xff]
  %v2774 = vld [vmem:[%s662 + $0x121] sm:$0xff]
  %v2775 = vld [vmem:[%s662 + $0x131] sm:$0xff]
  %v2776 = vld [vmem:[%s662 + $0x141] sm:$0xff]
  %v2777 = vld [vmem:[%s662 + $0x151] sm:$0xff]
  %v2778 = vld [vmem:[%s662 + $0x161] sm:$0xff]
  %v2779 = vld [vmem:[%s662 + $0x171] sm:$0xff]
  %v2780 = vld [vmem:[%s662 + $0x181] sm:$0xff]
  %v2781 = vld [vmem:[%s662 + $0x191] sm:$0xff]
  %v2782 = vld [vmem:[%s662 + $0x1a1] sm:$0xff]
  %v2783 = vld [vmem:[%s662 + $0x1b1] sm:$0xff]
  %v2784 = vld [vmem:[%s662 + $0x1c1] sm:$0xff]
  %v2785 = vld [vmem:[%s662 + $0x1d1] sm:$0xff]
  %v2786 = vld [vmem:[%s662 + $0x1e1] sm:$0xff]
  %v2787 = vld [vmem:[%s662 + $0x1f1] sm:$0xff]
  %v2788 = vld [vmem:[%s662 + $0x201] sm:$0xff]
  %v2789 = vld [vmem:[%s662 + $0x211] sm:$0xff]
  %2822 = vrot.lane.b32.xlu0 %v2758, 32
  %v2823 = vpop.permute.xlu0 %2822
  %2824 = vrot.lane.b32.xlu0 %v2759, 32
  %v2825 = vpop.permute.xlu0 %2824
  %2826 = vrot.lane.b32.xlu0 %v2760, 32
  %v2827 = vpop.permute.xlu0 %2826
  %2828 = vrot.lane.b32.xlu0 %v2761, 32
  %v2829 = vpop.permute.xlu0 %2828
  %2830 = vrot.lane.b32.xlu0 %v2762, 32
  %v2831 = vpop.permute.xlu0 %2830
  %2832 = vrot.lane.b32.xlu0 %v2763, 32
  %v2833 = vpop.permute.xlu0 %2832
  %2834 = vrot.lane.b32.xlu0 %v2764, 32
  %v2835 = vpop.permute.xlu0 %2834
  %2836 = vrot.lane.b32.xlu0 %v2765, 32
  %v2837 = vpop.permute.xlu0 %2836
  %2838 = vrot.lane.b32.xlu0 %v2766, 32
  %v2839 = vpop.permute.xlu0 %2838
  %2840 = vrot.lane.b32.xlu0 %v2767, 32
  %v2841 = vpop.permute.xlu0 %2840
  %2842 = vrot.lane.b32.xlu0 %v2768, 32
  %v2843 = vpop.permute.xlu0 %2842
  %2844 = vrot.lane.b32.xlu0 %v2769, 32
  %v2845 = vpop.permute.xlu0 %2844
  %2846 = vrot.lane.b32.xlu0 %v2770, 32
  %v2847 = vpop.permute.xlu0 %2846
  %2848 = vrot.lane.b32.xlu0 %v2771, 32
  %v2849 = vpop.permute.xlu0 %2848
  %2850 = vrot.lane.b32.xlu0 %v2772, 32
  %v2851 = vpop.permute.xlu0 %2850
  %2852 = vrot.lane.b32.xlu0 %v2773, 32
  %v2853 = vpop.permute.xlu0 %2852
  %2854 = vrot.lane.b32.xlu0 %v2774, 32
  %v2855 = vpop.permute.xlu0 %2854
  %2856 = vrot.lane.b32.xlu0 %v2775, 32
  %v2857 = vpop.permute.xlu0 %2856
  %2858 = vrot.lane.b32.xlu0 %v2776, 32
  %v2859 = vpop.permute.xlu0 %2858
  %2860 = vrot.lane.b32.xlu0 %v2777, 32
  %v2861 = vpop.permute.xlu0 %2860
  %2862 = vrot.lane.b32.xlu0 %v2778, 32
  %v2863 = vpop.permute.xlu0 %2862
  %2864 = vrot.lane.b32.xlu0 %v2779, 32
  %v2865 = vpop.permute.xlu0 %2864
  %2866 = vrot.lane.b32.xlu0 %v2780, 32
  %v2867 = vpop.permute.xlu0 %2866
  %2868 = vrot.lane.b32.xlu0 %v2781, 32
  %v2869 = vpop.permute.xlu0 %2868
  %2870 = vrot.lane.b32.xlu0 %v2782, 32
  %v2871 = vpop.permute.xlu0 %2870
  %2872 = vrot.lane.b32.xlu0 %v2783, 32
  %v2873 = vpop.permute.xlu0 %2872
  %2874 = vrot.lane.b32.xlu0 %v2784, 32
  %v2875 = vpop.permute.xlu0 %2874
  %2876 = vrot.lane.b32.xlu0 %v2785, 32
  %v2877 = vpop.permute.xlu0 %2876
  %2878 = vrot.lane.b32.xlu0 %v2786, 32
  %v2879 = vpop.permute.xlu0 %2878
  %2880 = vrot.lane.b32.xlu0 %v2787, 32
  %v2881 = vpop.permute.xlu0 %2880
  %2882 = vrot.lane.b32.xlu0 %v2788, 32
  %v2883 = vpop.permute.xlu0 %2882
  %2884 = vrot.lane.b32.xlu0 %v2789, 32
  %v2885 = vpop.permute.xlu0 %2884
  %2918 = vst.msk [vmem:[#allocation2 + $0x8] sm:$0xff] %vm242, %v2823
  %2919 = vst.msk [vmem:[#allocation2 + $0x20] sm:$0xff] %vm242, %v2825
  %2920 = vst.msk [vmem:[#allocation2 + $0x38] sm:$0xff] %vm242, %v2827
  %2921 = vst.msk [vmem:[#allocation2 + $0x50] sm:$0xff] %vm242, %v2829
  %2922 = vst.msk [vmem:[#allocation2 + $0x68] sm:$0xff] %vm242, %v2831
  %2923 = vst.msk [vmem:[#allocation2 + $0x80] sm:$0xff] %vm242, %v2833
  %2924 = vst.msk [vmem:[#allocation2 + $0x98] sm:$0xff] %vm242, %v2835
  %2925 = vst.msk [vmem:[#allocation2 + $0xb0] sm:$0xff] %vm242, %v2837
  %2926 = vst.msk [vmem:[#allocation2 + $0xc8] sm:$0xff] %vm242, %v2839
  %2927 = vst.msk [vmem:[#allocation2 + $0xe0] sm:$0xff] %vm242, %v2841
  %2928 = vst.msk [vmem:[#allocation2 + $0xf8] sm:$0xff] %vm242, %v2843
  %2929 = vst.msk [vmem:[#allocation2 + $0x110] sm:$0xff] %vm242, %v2845
  %2930 = vst.msk [vmem:[#allocation2 + $0x128] sm:$0xff] %vm242, %v2847
  %2931 = vst.msk [vmem:[#allocation2 + $0x140] sm:$0xff] %vm242, %v2849
  %2932 = vst.msk [vmem:[#allocation2 + $0x158] sm:$0xff] %vm242, %v2851
  %2933 = vst.msk [vmem:[#allocation2 + $0x170] sm:$0xff] %vm242, %v2853
  %2934 = vst.msk [vmem:[#allocation2 + $0x188] sm:$0xff] %vm242, %v2855
  %2935 = vst.msk [vmem:[#allocation2 + $0x1a0] sm:$0xff] %vm242, %v2857
  %2936 = vst.msk [vmem:[#allocation2 + $0x1b8] sm:$0xff] %vm242, %v2859
  %2937 = vst.msk [vmem:[#allocation2 + $0x1d0] sm:$0xff] %vm242, %v2861
  %2938 = vst.msk [vmem:[#allocation2 + $0x1e8] sm:$0xff] %vm242, %v2863
  %2939 = vst.msk [vmem:[#allocation2 + $0x200] sm:$0xff] %vm242, %v2865
  %2940 = vst.msk [vmem:[#allocation2 + $0x218] sm:$0xff] %vm242, %v2867
  %2941 = vst.msk [vmem:[#allocation2 + $0x230] sm:$0xff] %vm242, %v2869
  %2942 = vst.msk [vmem:[#allocation2 + $0x248] sm:$0xff] %vm242, %v2871
  %2943 = vst.msk [vmem:[#allocation2 + $0x260] sm:$0xff] %vm242, %v2873
  %2944 = vst.msk [vmem:[#allocation2 + $0x278] sm:$0xff] %vm242, %v2875
  %2945 = vst.msk [vmem:[#allocation2 + $0x290] sm:$0xff] %vm242, %v2877
  %2946 = vst.msk [vmem:[#allocation2 + $0x2a8] sm:$0xff] %vm242, %v2879
  %2947 = vst.msk [vmem:[#allocation2 + $0x2c0] sm:$0xff] %vm242, %v2881
  %2948 = vst.msk [vmem:[#allocation2 + $0x2d8] sm:$0xff] %vm242, %v2883
  %2949 = vst.msk [vmem:[#allocation2 + $0x2f0] sm:$0xff] %vm242, %v2885
  %v2950 = vld [vmem:[%s1112] sm:$0xff]
  %v2951 = vld [vmem:[%s1112 + $0x10] sm:$0xff]
  %v2952 = vld [vmem:[%s1112 + $0x20] sm:$0xff]
  %v2953 = vld [vmem:[%s1112 + $0x30] sm:$0xff]
  %v2954 = vld [vmem:[%s1112 + $0x40] sm:$0xff]
  %v2955 = vld [vmem:[%s1112 + $0x50] sm:$0xff]
  %v2956 = vld [vmem:[%s1112 + $0x60] sm:$0xff]
  %v2957 = vld [vmem:[%s1112 + $0x70] sm:$0xff]
  %v2958 = vld [vmem:[%s1112 + $0x80] sm:$0xff]
  %v2959 = vld [vmem:[%s1112 + $0x90] sm:$0xff]
  %v2960 = vld [vmem:[%s1112 + $0xa0] sm:$0xff]
  %v2961 = vld [vmem:[%s1112 + $0xb0] sm:$0xff]
  %v2962 = vld [vmem:[%s1112 + $0xc0] sm:$0xff]
  %v2963 = vld [vmem:[%s1112 + $0xd0] sm:$0xff]
  %v2964 = vld [vmem:[%s1112 + $0xe0] sm:$0xff]
  %v2965 = vld [vmem:[%s1112 + $0xf0] sm:$0xff]
  %v2966 = vld [vmem:[%s1112 + $0x120] sm:$0xff]
  %v2967 = vld [vmem:[%s1112 + $0x130] sm:$0xff]
  %v2968 = vld [vmem:[%s1112 + $0x140] sm:$0xff]
  %v2969 = vld [vmem:[%s1112 + $0x150] sm:$0xff]
  %v2970 = vld [vmem:[%s1112 + $0x160] sm:$0xff]
  %v2971 = vld [vmem:[%s1112 + $0x170] sm:$0xff]
  %v2972 = vld [vmem:[%s1112 + $0x180] sm:$0xff]
  %v2973 = vld [vmem:[%s1112 + $0x190] sm:$0xff]
  %v2974 = vld [vmem:[%s1112 + $0x1a0] sm:$0xff]
  %v2975 = vld [vmem:[%s1112 + $0x1b0] sm:$0xff]
  %v2976 = vld [vmem:[%s1112 + $0x1c0] sm:$0xff]
  %v2977 = vld [vmem:[%s1112 + $0x1d0] sm:$0xff]
  %v2978 = vld [vmem:[%s1112 + $0x1e0] sm:$0xff]
  %v2979 = vld [vmem:[%s1112 + $0x1f0] sm:$0xff]
  %v2980 = vld [vmem:[%s1112 + $0x200] sm:$0xff]
  %v2981 = vld [vmem:[%s1112 + $0x210] sm:$0xff]
  %3014 = vrot.lane.b32.xlu0 %v2950, 64
  %v3015 = vpop.permute.xlu0 %3014
  %3016 = vrot.lane.b32.xlu0 %v2951, 64
  %v3017 = vpop.permute.xlu0 %3016
  %3018 = vrot.lane.b32.xlu0 %v2952, 64
  %v3019 = vpop.permute.xlu0 %3018
  %3020 = vrot.lane.b32.xlu0 %v2953, 64
  %v3021 = vpop.permute.xlu0 %3020
  %3022 = vrot.lane.b32.xlu0 %v2954, 64
  %v3023 = vpop.permute.xlu0 %3022
  %3024 = vrot.lane.b32.xlu0 %v2955, 64
  %v3025 = vpop.permute.xlu0 %3024
  %3026 = vrot.lane.b32.xlu0 %v2956, 64
  %v3027 = vpop.permute.xlu0 %3026
  %3028 = vrot.lane.b32.xlu0 %v2957, 64
  %v3029 = vpop.permute.xlu0 %3028
  %3030 = vrot.lane.b32.xlu0 %v2958, 64
  %v3031 = vpop.permute.xlu0 %3030
  %3032 = vrot.lane.b32.xlu0 %v2959, 64
  %v3033 = vpop.permute.xlu0 %3032
  %3034 = vrot.lane.b32.xlu0 %v2960, 64
  %v3035 = vpop.permute.xlu0 %3034
  %3036 = vrot.lane.b32.xlu0 %v2961, 64
  %v3037 = vpop.permute.xlu0 %3036
  %3038 = vrot.lane.b32.xlu0 %v2962, 64
  %v3039 = vpop.permute.xlu0 %3038
  %3040 = vrot.lane.b32.xlu0 %v2963, 64
  %v3041 = vpop.permute.xlu0 %3040
  %3042 = vrot.lane.b32.xlu0 %v2964, 64
  %v3043 = vpop.permute.xlu0 %3042
  %3044 = vrot.lane.b32.xlu0 %v2965, 64
  %v3045 = vpop.permute.xlu0 %3044
  %3046 = vrot.lane.b32.xlu0 %v2966, 64
  %v3047 = vpop.permute.xlu0 %3046
  %3048 = vrot.lane.b32.xlu0 %v2967, 64
  %v3049 = vpop.permute.xlu0 %3048
  %3050 = vrot.lane.b32.xlu0 %v2968, 64
  %v3051 = vpop.permute.xlu0 %3050
  %3052 = vrot.lane.b32.xlu0 %v2969, 64
  %v3053 = vpop.permute.xlu0 %3052
  %3054 = vrot.lane.b32.xlu0 %v2970, 64
  %v3055 = vpop.permute.xlu0 %3054
  %3056 = vrot.lane.b32.xlu0 %v2971, 64
  %v3057 = vpop.permute.xlu0 %3056
  %3058 = vrot.lane.b32.xlu0 %v2972, 64
  %v3059 = vpop.permute.xlu0 %3058
  %3060 = vrot.lane.b32.xlu0 %v2973, 64
  %v3061 = vpop.permute.xlu0 %3060
  %3062 = vrot.lane.b32.xlu0 %v2974, 64
  %v3063 = vpop.permute.xlu0 %3062
  %3064 = vrot.lane.b32.xlu0 %v2975, 64
  %v3065 = vpop.permute.xlu0 %3064
  %3066 = vrot.lane.b32.xlu0 %v2976, 64
  %v3067 = vpop.permute.xlu0 %3066
  %3068 = vrot.lane.b32.xlu0 %v2977, 64
  %v3069 = vpop.permute.xlu0 %3068
  %3070 = vrot.lane.b32.xlu0 %v2978, 64
  %v3071 = vpop.permute.xlu0 %3070
  %3072 = vrot.lane.b32.xlu0 %v2979, 64
  %v3073 = vpop.permute.xlu0 %3072
  %3074 = vrot.lane.b32.xlu0 %v2980, 64
  %v3075 = vpop.permute.xlu0 %3074
  %3076 = vrot.lane.b32.xlu0 %v2981, 64
  %v3077 = vpop.permute.xlu0 %3076
  %3110 = vst.msk [vmem:[#allocation2 + $0x8] sm:$0xff] %vm435, %v3015
  %3111 = vst.msk [vmem:[#allocation2 + $0x20] sm:$0xff] %vm435, %v3017
  %3112 = vst.msk [vmem:[#allocation2 + $0x38] sm:$0xff] %vm435, %v3019
  %3113 = vst.msk [vmem:[#allocation2 + $0x50] sm:$0xff] %vm435, %v3021
  %3114 = vst.msk [vmem:[#allocation2 + $0x68] sm:$0xff] %vm435, %v3023
  %3115 = vst.msk [vmem:[#allocation2 + $0x80] sm:$0xff] %vm435, %v3025
  %3116 = vst.msk [vmem:[#allocation2 + $0x98] sm:$0xff] %vm435, %v3027
  %3117 = vst.msk [vmem:[#allocation2 + $0xb0] sm:$0xff] %vm435, %v3029
  %3118 = vst.msk [vmem:[#allocation2 + $0xc8] sm:$0xff] %vm435, %v3031
  %3119 = vst.msk [vmem:[#allocation2 + $0xe0] sm:$0xff] %vm435, %v3033
  %3120 = vst.msk [vmem:[#allocation2 + $0xf8] sm:$0xff] %vm435, %v3035
  %3121 = vst.msk [vmem:[#allocation2 + $0x110] sm:$0xff] %vm435, %v3037
  %3122 = vst.msk [vmem:[#allocation2 + $0x128] sm:$0xff] %vm435, %v3039
  %3123 = vst.msk [vmem:[#allocation2 + $0x140] sm:$0xff] %vm435, %v3041
  %3124 = vst.msk [vmem:[#allocation2 + $0x158] sm:$0xff] %vm435, %v3043
  %3125 = vst.msk [vmem:[#allocation2 + $0x170] sm:$0xff] %vm435, %v3045
  %3126 = vst.msk [vmem:[#allocation2 + $0x188] sm:$0xff] %vm435, %v3047
  %3127 = vst.msk [vmem:[#allocation2 + $0x1a0] sm:$0xff] %vm435, %v3049
  %3128 = vst.msk [vmem:[#allocation2 + $0x1b8] sm:$0xff] %vm435, %v3051
  %3129 = vst.msk [vmem:[#allocation2 + $0x1d0] sm:$0xff] %vm435, %v3053
  %3130 = vst.msk [vmem:[#allocation2 + $0x1e8] sm:$0xff] %vm435, %v3055
  %3131 = vst.msk [vmem:[#allocation2 + $0x200] sm:$0xff] %vm435, %v3057
  %3132 = vst.msk [vmem:[#allocation2 + $0x218] sm:$0xff] %vm435, %v3059
  %3133 = vst.msk [vmem:[#allocation2 + $0x230] sm:$0xff] %vm435, %v3061
  %3134 = vst.msk [vmem:[#allocation2 + $0x248] sm:$0xff] %vm435, %v3063
  %3135 = vst.msk [vmem:[#allocation2 + $0x260] sm:$0xff] %vm435, %v3065
  %3136 = vst.msk [vmem:[#allocation2 + $0x278] sm:$0xff] %vm435, %v3067
  %3137 = vst.msk [vmem:[#allocation2 + $0x290] sm:$0xff] %vm435, %v3069
  %3138 = vst.msk [vmem:[#allocation2 + $0x2a8] sm:$0xff] %vm435, %v3071
  %3139 = vst.msk [vmem:[#allocation2 + $0x2c0] sm:$0xff] %vm435, %v3073
  %3140 = vst.msk [vmem:[#allocation2 + $0x2d8] sm:$0xff] %vm435, %v3075
  %3141 = vst.msk [vmem:[#allocation2 + $0x2f0] sm:$0xff] %vm435, %v3077
  %v3142 = vld [vmem:[%s919 + $0x1] sm:$0xff]
  %v3143 = vld [vmem:[%s919 + $0x11] sm:$0xff]
  %v3144 = vld [vmem:[%s919 + $0x21] sm:$0xff]
  %v3145 = vld [vmem:[%s919 + $0x31] sm:$0xff]
  %v3146 = vld [vmem:[%s919 + $0x41] sm:$0xff]
  %v3147 = vld [vmem:[%s919 + $0x51] sm:$0xff]
  %v3148 = vld [vmem:[%s919 + $0x61] sm:$0xff]
  %v3149 = vld [vmem:[%s919 + $0x71] sm:$0xff]
  %v3150 = vld [vmem:[%s919 + $0x81] sm:$0xff]
  %v3151 = vld [vmem:[%s919 + $0x91] sm:$0xff]
  %v3152 = vld [vmem:[%s919 + $0xa1] sm:$0xff]
  %v3153 = vld [vmem:[%s919 + $0xb1] sm:$0xff]
  %v3154 = vld [vmem:[%s919 + $0xc1] sm:$0xff]
  %v3155 = vld [vmem:[%s919 + $0xd1] sm:$0xff]
  %v3156 = vld [vmem:[%s919 + $0xe1] sm:$0xff]
  %v3157 = vld [vmem:[%s919 + $0xf1] sm:$0xff]
  %v3158 = vld [vmem:[%s919 + $0x121] sm:$0xff]
  %v3159 = vld [vmem:[%s919 + $0x131] sm:$0xff]
  %v3160 = vld [vmem:[%s919 + $0x141] sm:$0xff]
  %v3161 = vld [vmem:[%s919 + $0x151] sm:$0xff]
  %v3162 = vld [vmem:[%s919 + $0x161] sm:$0xff]
  %v3163 = vld [vmem:[%s919 + $0x171] sm:$0xff]
  %v3164 = vld [vmem:[%s919 + $0x181] sm:$0xff]
  %v3165 = vld [vmem:[%s919 + $0x191] sm:$0xff]
  %v3166 = vld [vmem:[%s919 + $0x1a1] sm:$0xff]
  %v3167 = vld [vmem:[%s919 + $0x1b1] sm:$0xff]
  %v3168 = vld [vmem:[%s919 + $0x1c1] sm:$0xff]
  %v3169 = vld [vmem:[%s919 + $0x1d1] sm:$0xff]
  %v3170 = vld [vmem:[%s919 + $0x1e1] sm:$0xff]
  %v3171 = vld [vmem:[%s919 + $0x1f1] sm:$0xff]
  %v3172 = vld [vmem:[%s919 + $0x201] sm:$0xff]
  %v3173 = vld [vmem:[%s919 + $0x211] sm:$0xff]
  %3206 = vrot.lane.b32.xlu0 %v3142, 96
  %v3207 = vpop.permute.xlu0 %3206
  %3208 = vrot.lane.b32.xlu0 %v3143, 96
  %v3209 = vpop.permute.xlu0 %3208
  %3210 = vrot.lane.b32.xlu0 %v3144, 96
  %v3211 = vpop.permute.xlu0 %3210
  %3212 = vrot.lane.b32.xlu0 %v3145, 96
  %v3213 = vpop.permute.xlu0 %3212
  %3214 = vrot.lane.b32.xlu0 %v3146, 96
  %v3215 = vpop.permute.xlu0 %3214
  %3216 = vrot.lane.b32.xlu0 %v3147, 96
  %v3217 = vpop.permute.xlu0 %3216
  %3218 = vrot.lane.b32.xlu0 %v3148, 96
  %v3219 = vpop.permute.xlu0 %3218
  %3220 = vrot.lane.b32.xlu0 %v3149, 96
  %v3221 = vpop.permute.xlu0 %3220
  %3222 = vrot.lane.b32.xlu0 %v3150, 96
  %v3223 = vpop.permute.xlu0 %3222
  %3224 = vrot.lane.b32.xlu0 %v3151, 96
  %v3225 = vpop.permute.xlu0 %3224
  %3226 = vrot.lane.b32.xlu0 %v3152, 96
  %v3227 = vpop.permute.xlu0 %3226
  %3228 = vrot.lane.b32.xlu0 %v3153, 96
  %v3229 = vpop.permute.xlu0 %3228
  %3230 = vrot.lane.b32.xlu0 %v3154, 96
  %v3231 = vpop.permute.xlu0 %3230
  %3232 = vrot.lane.b32.xlu0 %v3155, 96
  %v3233 = vpop.permute.xlu0 %3232
  %3234 = vrot.lane.b32.xlu0 %v3156, 96
  %v3235 = vpop.permute.xlu0 %3234
  %3236 = vrot.lane.b32.xlu0 %v3157, 96
  %v3237 = vpop.permute.xlu0 %3236
  %3238 = vrot.lane.b32.xlu0 %v3158, 96
  %v3239 = vpop.permute.xlu0 %3238
  %3240 = vrot.lane.b32.xlu0 %v3159, 96
  %v3241 = vpop.permute.xlu0 %3240
  %3242 = vrot.lane.b32.xlu0 %v3160, 96
  %v3243 = vpop.permute.xlu0 %3242
  %3244 = vrot.lane.b32.xlu0 %v3161, 96
  %v3245 = vpop.permute.xlu0 %3244
  %3246 = vrot.lane.b32.xlu0 %v3162, 96
  %v3247 = vpop.permute.xlu0 %3246
  %3248 = vrot.lane.b32.xlu0 %v3163, 96
  %v3249 = vpop.permute.xlu0 %3248
  %3250 = vrot.lane.b32.xlu0 %v3164, 96
  %v3251 = vpop.permute.xlu0 %3250
  %3252 = vrot.lane.b32.xlu0 %v3165, 96
  %v3253 = vpop.permute.xlu0 %3252
  %3254 = vrot.lane.b32.xlu0 %v3166, 96
  %v3255 = vpop.permute.xlu0 %3254
  %3256 = vrot.lane.b32.xlu0 %v3167, 96
  %v3257 = vpop.permute.xlu0 %3256
  %3258 = vrot.lane.b32.xlu0 %v3168, 96
  %v3259 = vpop.permute.xlu0 %3258
  %3260 = vrot.lane.b32.xlu0 %v3169, 96
  %v3261 = vpop.permute.xlu0 %3260
  %3262 = vrot.lane.b32.xlu0 %v3170, 96
  %v3263 = vpop.permute.xlu0 %3262
  %3264 = vrot.lane.b32.xlu0 %v3171, 96
  %v3265 = vpop.permute.xlu0 %3264
  %3266 = vrot.lane.b32.xlu0 %v3172, 96
  %v3267 = vpop.permute.xlu0 %3266
  %3268 = vrot.lane.b32.xlu0 %v3173, 96
  %v3269 = vpop.permute.xlu0 %3268
  %3302 = vst.msk [vmem:[#allocation2 + $0x8] sm:$0xff] %vm629, %v3207
  %3303 = vst.msk [vmem:[#allocation2 + $0x20] sm:$0xff] %vm629, %v3209
  %3304 = vst.msk [vmem:[#allocation2 + $0x38] sm:$0xff] %vm629, %v3211
  %3305 = vst.msk [vmem:[#allocation2 + $0x50] sm:$0xff] %vm629, %v3213
  %3306 = vst.msk [vmem:[#allocation2 + $0x68] sm:$0xff] %vm629, %v3215
  %3307 = vst.msk [vmem:[#allocation2 + $0x80] sm:$0xff] %vm629, %v3217
  %3308 = vst.msk [vmem:[#allocation2 + $0x98] sm:$0xff] %vm629, %v3219
  %3309 = vst.msk [vmem:[#allocation2 + $0xb0] sm:$0xff] %vm629, %v3221
  %3310 = vst.msk [vmem:[#allocation2 + $0xc8] sm:$0xff] %vm629, %v3223
  %3311 = vst.msk [vmem:[#allocation2 + $0xe0] sm:$0xff] %vm629, %v3225
  %3312 = vst.msk [vmem:[#allocation2 + $0xf8] sm:$0xff] %vm629, %v3227
  %3313 = vst.msk [vmem:[#allocation2 + $0x110] sm:$0xff] %vm629, %v3229
  %3314 = vst.msk [vmem:[#allocation2 + $0x128] sm:$0xff] %vm629, %v3231
  %3315 = vst.msk [vmem:[#allocation2 + $0x140] sm:$0xff] %vm629, %v3233
  %3316 = vst.msk [vmem:[#allocation2 + $0x158] sm:$0xff] %vm629, %v3235
  %3317 = vst.msk [vmem:[#allocation2 + $0x170] sm:$0xff] %vm629, %v3237
  %3318 = vst.msk [vmem:[#allocation2 + $0x188] sm:$0xff] %vm629, %v3239
  %3319 = vst.msk [vmem:[#allocation2 + $0x1a0] sm:$0xff] %vm629, %v3241
  %3320 = vst.msk [vmem:[#allocation2 + $0x1b8] sm:$0xff] %vm629, %v3243
  %3321 = vst.msk [vmem:[#allocation2 + $0x1d0] sm:$0xff] %vm629, %v3245
  %3322 = vst.msk [vmem:[#allocation2 + $0x1e8] sm:$0xff] %vm629, %v3247
  %3323 = vst.msk [vmem:[#allocation2 + $0x200] sm:$0xff] %vm629, %v3249
  %3324 = vst.msk [vmem:[#allocation2 + $0x218] sm:$0xff] %vm629, %v3251
  %3325 = vst.msk [vmem:[#allocation2 + $0x230] sm:$0xff] %vm629, %v3253
  %3326 = vst.msk [vmem:[#allocation2 + $0x248] sm:$0xff] %vm629, %v3255
  %3327 = vst.msk [vmem:[#allocation2 + $0x260] sm:$0xff] %vm629, %v3257
  %3328 = vst.msk [vmem:[#allocation2 + $0x278] sm:$0xff] %vm629, %v3259
  %3329 = vst.msk [vmem:[#allocation2 + $0x290] sm:$0xff] %vm629, %v3261
  %3330 = vst.msk [vmem:[#allocation2 + $0x2a8] sm:$0xff] %vm629, %v3263
  %3331 = vst.msk [vmem:[#allocation2 + $0x2c0] sm:$0xff] %vm629, %v3265
  %3332 = vst.msk [vmem:[#allocation2 + $0x2d8] sm:$0xff] %vm629, %v3267
  %3333 = vst.msk [vmem:[#allocation2 + $0x2f0] sm:$0xff] %vm629, %v3269
  %v3334 = vld [vmem:[%s1112 + $0x1] sm:$0xff]
  %v3335 = vld [vmem:[%s1112 + $0x11] sm:$0xff]
  %v3336 = vld [vmem:[%s1112 + $0x21] sm:$0xff]
  %v3337 = vld [vmem:[%s1112 + $0x31] sm:$0xff]
  %v3338 = vld [vmem:[%s1112 + $0x41] sm:$0xff]
  %v3339 = vld [vmem:[%s1112 + $0x51] sm:$0xff]
  %v3340 = vld [vmem:[%s1112 + $0x61] sm:$0xff]
  %v3341 = vld [vmem:[%s1112 + $0x71] sm:$0xff]
  %v3342 = vld [vmem:[%s1112 + $0x81] sm:$0xff]
  %v3343 = vld [vmem:[%s1112 + $0x91] sm:$0xff]
  %v3344 = vld [vmem:[%s1112 + $0xa1] sm:$0xff]
  %v3345 = vld [vmem:[%s1112 + $0xb1] sm:$0xff]
  %v3346 = vld [vmem:[%s1112 + $0xc1] sm:$0xff]
  %v3347 = vld [vmem:[%s1112 + $0xd1] sm:$0xff]
  %v3348 = vld [vmem:[%s1112 + $0xe1] sm:$0xff]
  %v3349 = vld [vmem:[%s1112 + $0xf1] sm:$0xff]
  %v3350 = vld [vmem:[%s1112 + $0x121] sm:$0xff]
  %v3351 = vld [vmem:[%s1112 + $0x131] sm:$0xff]
  %v3352 = vld [vmem:[%s1112 + $0x141] sm:$0xff]
  %v3353 = vld [vmem:[%s1112 + $0x151] sm:$0xff]
  %v3354 = vld [vmem:[%s1112 + $0x161] sm:$0xff]
  %v3355 = vld [vmem:[%s1112 + $0x171] sm:$0xff]
  %v3356 = vld [vmem:[%s1112 + $0x181] sm:$0xff]
  %v3357 = vld [vmem:[%s1112 + $0x191] sm:$0xff]
  %v3358 = vld [vmem:[%s1112 + $0x1a1] sm:$0xff]
  %v3359 = vld [vmem:[%s1112 + $0x1b1] sm:$0xff]
  %v3360 = vld [vmem:[%s1112 + $0x1c1] sm:$0xff]
  %v3361 = vld [vmem:[%s1112 + $0x1d1] sm:$0xff]
  %v3362 = vld [vmem:[%s1112 + $0x1e1] sm:$0xff]
  %v3363 = vld [vmem:[%s1112 + $0x1f1] sm:$0xff]
  %v3364 = vld [vmem:[%s1112 + $0x201] sm:$0xff]
  %v3365 = vld [vmem:[%s1112 + $0x211] sm:$0xff]
  %3366 = vst.msk [vmem:[#allocation2 + $0x10] sm:$0xff] %vm49, %v3334
  %3367 = vst.msk [vmem:[#allocation2 + $0x28] sm:$0xff] %vm49, %v3335
  %3368 = vst.msk [vmem:[#allocation2 + $0x40] sm:$0xff] %vm49, %v3336
  %3369 = vst.msk [vmem:[#allocation2 + $0x58] sm:$0xff] %vm49, %v3337
  %3370 = vst.msk [vmem:[#allocation2 + $0x70] sm:$0xff] %vm49, %v3338
  %3371 = vst.msk [vmem:[#allocation2 + $0x88] sm:$0xff] %vm49, %v3339
  %3372 = vst.msk [vmem:[#allocation2 + $0xa0] sm:$0xff] %vm49, %v3340
  %3373 = vst.msk [vmem:[#allocation2 + $0xb8] sm:$0xff] %vm49, %v3341
  %3374 = vst.msk [vmem:[#allocation2 + $0xd0] sm:$0xff] %vm49, %v3342
  %3375 = vst.msk [vmem:[#allocation2 + $0xe8] sm:$0xff] %vm49, %v3343
  %3376 = vst.msk [vmem:[#allocation2 + $0x100] sm:$0xff] %vm49, %v3344
  %3377 = vst.msk [vmem:[#allocation2 + $0x118] sm:$0xff] %vm49, %v3345
  %3378 = vst.msk [vmem:[#allocation2 + $0x130] sm:$0xff] %vm49, %v3346
  %3379 = vst.msk [vmem:[#allocation2 + $0x148] sm:$0xff] %vm49, %v3347
  %3380 = vst.msk [vmem:[#allocation2 + $0x160] sm:$0xff] %vm49, %v3348
  %3381 = vst.msk [vmem:[#allocation2 + $0x178] sm:$0xff] %vm49, %v3349
  %3382 = vst.msk [vmem:[#allocation2 + $0x190] sm:$0xff] %vm49, %v3350
  %3383 = vst.msk [vmem:[#allocation2 + $0x1a8] sm:$0xff] %vm49, %v3351
  %3384 = vst.msk [vmem:[#allocation2 + $0x1c0] sm:$0xff] %vm49, %v3352
  %3385 = vst.msk [vmem:[#allocation2 + $0x1d8] sm:$0xff] %vm49, %v3353
  %3386 = vst.msk [vmem:[#allocation2 + $0x1f0] sm:$0xff] %vm49, %v3354
  %3387 = vst.msk [vmem:[#allocation2 + $0x208] sm:$0xff] %vm49, %v3355
  %3388 = vst.msk [vmem:[#allocation2 + $0x220] sm:$0xff] %vm49, %v3356
  %3389 = vst.msk [vmem:[#allocation2 + $0x238] sm:$0xff] %vm49, %v3357
  %3390 = vst.msk [vmem:[#allocation2 + $0x250] sm:$0xff] %vm49, %v3358
  %3391 = vst.msk [vmem:[#allocation2 + $0x268] sm:$0xff] %vm49, %v3359
  %3392 = vst.msk [vmem:[#allocation2 + $0x280] sm:$0xff] %vm49, %v3360
  %3393 = vst.msk [vmem:[#allocation2 + $0x298] sm:$0xff] %vm49, %v3361
  %3394 = vst.msk [vmem:[#allocation2 + $0x2b0] sm:$0xff] %vm49, %v3362
  %3395 = vst.msk [vmem:[#allocation2 + $0x2c8] sm:$0xff] %vm49, %v3363
  %3396 = vst.msk [vmem:[#allocation2 + $0x2e0] sm:$0xff] %vm49, %v3364
  %3397 = vst.msk [vmem:[#allocation2 + $0x2f8] sm:$0xff] %vm49, %v3365
  %v3398 = vld [vmem:[#allocation2] sm:$0xff]
  %v3399 = vld [vmem:[#allocation2 + $0x8] sm:$0xff]
  %v3400 = vld [vmem:[#allocation2 + $0x10] sm:$0xff]
  %v3401 = vld [vmem:[#allocation2 + $0x18] sm:$0xff]
  %v3402 = vld [vmem:[#allocation2 + $0x20] sm:$0xff]
  %v3403 = vld [vmem:[#allocation2 + $0x28] sm:$0xff]
  %v3404 = vld [vmem:[#allocation2 + $0x30] sm:$0xff]
  %v3405 = vld [vmem:[#allocation2 + $0x38] sm:$0xff]
  %v3406 = vld [vmem:[#allocation2 + $0x40] sm:$0xff]
  %v3407 = vld [vmem:[#allocation2 + $0x48] sm:$0xff]
  %v3408 = vld [vmem:[#allocation2 + $0x50] sm:$0xff]
  %v3409 = vld [vmem:[#allocation2 + $0x58] sm:$0xff]
  %v3410 = vld [vmem:[#allocation2 + $0x60] sm:$0xff]
  %v3411 = vld [vmem:[#allocation2 + $0x68] sm:$0xff]
  %v3412 = vld [vmem:[#allocation2 + $0x70] sm:$0xff]
  %v3413 = vld [vmem:[#allocation2 + $0x78] sm:$0xff]
  %v3414 = vld [vmem:[#allocation2 + $0x80] sm:$0xff]
  %v3415 = vld [vmem:[#allocation2 + $0x88] sm:$0xff]
  %v3416 = vld [vmem:[#allocation2 + $0x90] sm:$0xff]
  %v3417 = vld [vmem:[#allocation2 + $0x98] sm:$0xff]
  %v3418 = vld [vmem:[#allocation2 + $0xa0] sm:$0xff]
  %v3419 = vld [vmem:[#allocation2 + $0xa8] sm:$0xff]
  %v3420 = vld [vmem:[#allocation2 + $0xb0] sm:$0xff]
  %v3421 = vld [vmem:[#allocation2 + $0xb8] sm:$0xff]
  %v3422 = vld [vmem:[#allocation2 + $0xc0] sm:$0xff]
  %v3423 = vld [vmem:[#allocation2 + $0xc8] sm:$0xff]
  %v3424 = vld [vmem:[#allocation2 + $0xd0] sm:$0xff]
  %v3425 = vld [vmem:[#allocation2 + $0xd8] sm:$0xff]
  %v3426 = vld [vmem:[#allocation2 + $0xe0] sm:$0xff]
  %v3427 = vld [vmem:[#allocation2 + $0xe8] sm:$0xff]
  %v3428 = vld [vmem:[#allocation2 + $0xf0] sm:$0xff]
  %v3429 = vld [vmem:[#allocation2 + $0xf8] sm:$0xff]
  %v3430 = vld [vmem:[#allocation2 + $0x100] sm:$0xff]
  %v3431 = vld [vmem:[#allocation2 + $0x108] sm:$0xff]
  %v3432 = vld [vmem:[#allocation2 + $0x110] sm:$0xff]
  %v3433 = vld [vmem:[#allocation2 + $0x118] sm:$0xff]
  %v3434 = vld [vmem:[#allocation2 + $0x120] sm:$0xff]
  %v3435 = vld [vmem:[#allocation2 + $0x128] sm:$0xff]
  %v3436 = vld [vmem:[#allocation2 + $0x130] sm:$0xff]
  %v3437 = vld [vmem:[#allocation2 + $0x138] sm:$0xff]
  %v3438 = vld [vmem:[#allocation2 + $0x140] sm:$0xff]
  %v3439 = vld [vmem:[#allocation2 + $0x148] sm:$0xff]
  %v3440 = vld [vmem:[#allocation2 + $0x150] sm:$0xff]
  %v3441 = vld [vmem:[#allocation2 + $0x158] sm:$0xff]
  %v3442 = vld [vmem:[#allocation2 + $0x160] sm:$0xff]
  %v3443 = vld [vmem:[#allocation2 + $0x168] sm:$0xff]
  %v3444 = vld [vmem:[#allocation2 + $0x170] sm:$0xff]
  %v3445 = vld [vmem:[#allocation2 + $0x178] sm:$0xff]
  %v3446 = vld [vmem:[#allocation2 + $0x180] sm:$0xff]
  %v3447 = vld [vmem:[#allocation2 + $0x188] sm:$0xff]
  %v3448 = vld [vmem:[#allocation2 + $0x190] sm:$0xff]
  %v3449 = vld [vmem:[#allocation2 + $0x198] sm:$0xff]
  %v3450 = vld [vmem:[#allocation2 + $0x1a0] sm:$0xff]
  %v3451 = vld [vmem:[#allocation2 + $0x1a8] sm:$0xff]
  %v3452 = vld [vmem:[#allocation2 + $0x1b0] sm:$0xff]
  %v3453 = vld [vmem:[#allocation2 + $0x1b8] sm:$0xff]
  %v3454 = vld [vmem:[#allocation2 + $0x1c0] sm:$0xff]
  %v3455 = vld [vmem:[#allocation2 + $0x1c8] sm:$0xff]
  %v3456 = vld [vmem:[#allocation2 + $0x1d0] sm:$0xff]
  %v3457 = vld [vmem:[#allocation2 + $0x1d8] sm:$0xff]
  %v3458 = vld [vmem:[#allocation2 + $0x1e0] sm:$0xff]
  %v3459 = vld [vmem:[#allocation2 + $0x1e8] sm:$0xff]
  %v3460 = vld [vmem:[#allocation2 + $0x1f0] sm:$0xff]
  %v3461 = vld [vmem:[#allocation2 + $0x1f8] sm:$0xff]
  %v3462 = vld [vmem:[#allocation2 + $0x200] sm:$0xff]
  %v3463 = vld [vmem:[#allocation2 + $0x208] sm:$0xff]
  %v3464 = vld [vmem:[#allocation2 + $0x210] sm:$0xff]
  %v3465 = vld [vmem:[#allocation2 + $0x218] sm:$0xff]
  %v3466 = vld [vmem:[#allocation2 + $0x220] sm:$0xff]
  %v3467 = vld [vmem:[#allocation2 + $0x228] sm:$0xff]
  %v3468 = vld [vmem:[#allocation2 + $0x230] sm:$0xff]
  %v3469 = vld [vmem:[#allocation2 + $0x238] sm:$0xff]
  %v3470 = vld [vmem:[#allocation2 + $0x240] sm:$0xff]
  %v3471 = vld [vmem:[#allocation2 + $0x248] sm:$0xff]
  %v3472 = vld [vmem:[#allocation2 + $0x250] sm:$0xff]
  %v3473 = vld [vmem:[#allocation2 + $0x258] sm:$0xff]
  %v3474 = vld [vmem:[#allocation2 + $0x260] sm:$0xff]
  %v3475 = vld [vmem:[#allocation2 + $0x268] sm:$0xff]
  %v3476 = vld [vmem:[#allocation2 + $0x270] sm:$0xff]
  %v3477 = vld [vmem:[#allocation2 + $0x278] sm:$0xff]
  %v3478 = vld [vmem:[#allocation2 + $0x280] sm:$0xff]
  %v3479 = vld [vmem:[#allocation2 + $0x288] sm:$0xff]
  %v3480 = vld [vmem:[#allocation2 + $0x290] sm:$0xff]
  %v3481 = vld [vmem:[#allocation2 + $0x298] sm:$0xff]
  %v3482 = vld [vmem:[#allocation2 + $0x2a0] sm:$0xff]
  %v3483 = vld [vmem:[#allocation2 + $0x2a8] sm:$0xff]
  %v3484 = vld [vmem:[#allocation2 + $0x2b0] sm:$0xff]
  %v3485 = vld [vmem:[#allocation2 + $0x2b8] sm:$0xff]
  %v3486 = vld [vmem:[#allocation2 + $0x2c0] sm:$0xff]
  %v3487 = vld [vmem:[#allocation2 + $0x2c8] sm:$0xff]
  %v3488 = vld [vmem:[#allocation2 + $0x2d0] sm:$0xff]
  %v3489 = vld [vmem:[#allocation2 + $0x2d8] sm:$0xff]
  %v3490 = vld [vmem:[#allocation2 + $0x2e0] sm:$0xff]
  %v3491 = vld [vmem:[#allocation2 + $0x2e8] sm:$0xff]
  %v3492 = vld [vmem:[#allocation2 + $0x2f0] sm:$0xff]
  %v3493 = vld [vmem:[#allocation2 + $0x2f8] sm:$0xff]
  %v3494 = vld [vmem:[%s2] sm:$0xff]
  %v3495 = vld [vmem:[%s2 + $0x8] sm:$0xff]
  %v3496 = vld [vmem:[%s2 + $0x10] sm:$0xff]
  %v3497 = vld [vmem:[%s2 + $0x18] sm:$0xff]
  %v3498 = vld [vmem:[%s2 + $0x20] sm:$0xff]
  %v3499 = vld [vmem:[%s2 + $0x28] sm:$0xff]
  %v3500 = vld [vmem:[%s2 + $0x30] sm:$0xff]
  %v3501 = vld [vmem:[%s2 + $0x38] sm:$0xff]
  %v3502 = vld [vmem:[%s2 + $0x40] sm:$0xff]
  %v3503 = vld [vmem:[%s2 + $0x48] sm:$0xff]
  %v3504 = vld [vmem:[%s2 + $0x50] sm:$0xff]
  %v3505 = vld [vmem:[%s2 + $0x58] sm:$0xff]
  %v3506 = vld [vmem:[%s2 + $0x60] sm:$0xff]
  %v3507 = vld [vmem:[%s2 + $0x68] sm:$0xff]
  %v3508 = vld [vmem:[%s2 + $0x70] sm:$0xff]
  %v3509 = vld [vmem:[%s2 + $0x78] sm:$0xff]
  %v3510 = vld [vmem:[%s2 + $0x80] sm:$0xff]
  %v3511 = vld [vmem:[%s2 + $0x88] sm:$0xff]
  %v3512 = vld [vmem:[%s2 + $0x90] sm:$0xff]
  %v3513 = vld [vmem:[%s2 + $0x98] sm:$0xff]
  %v3514 = vld [vmem:[%s2 + $0xa0] sm:$0xff]
  %v3515 = vld [vmem:[%s2 + $0xa8] sm:$0xff]
  %v3516 = vld [vmem:[%s2 + $0xb0] sm:$0xff]
  %v3517 = vld [vmem:[%s2 + $0xb8] sm:$0xff]
  %v3518 = vld [vmem:[%s2 + $0xc0] sm:$0xff]
  %v3519 = vld [vmem:[%s2 + $0xc8] sm:$0xff]
  %v3520 = vld [vmem:[%s2 + $0xd0] sm:$0xff]
  %v3521 = vld [vmem:[%s2 + $0xd8] sm:$0xff]
  %v3522 = vld [vmem:[%s2 + $0xe0] sm:$0xff]
  %v3523 = vld [vmem:[%s2 + $0xe8] sm:$0xff]
  %v3524 = vld [vmem:[%s2 + $0xf0] sm:$0xff]
  %v3525 = vld [vmem:[%s2 + $0xf8] sm:$0xff]
  %v3526 = vld [vmem:[%s2 + $0x100] sm:$0xff]
  %v3527 = vld [vmem:[%s2 + $0x108] sm:$0xff]
  %v3528 = vld [vmem:[%s2 + $0x110] sm:$0xff]
  %v3529 = vld [vmem:[%s2 + $0x118] sm:$0xff]
  %v3530 = vld [vmem:[%s3] sm:$0x1]
  %v3532 = vlaneseq
  %v3533 = vshrl.u32 %v3532, 7
  %v3534 = vsub.s32 0, %v3533
  %v3535 = vrot.slane %v3530, %v3534
  %v3538 = vsel %vm49, %v3400, 0
  %v3541 = vsel %vm49, %v3403, 0
  %v3544 = vsel %vm49, %v3406, 0
  %v3547 = vsel %vm49, %v3409, 0
  %v3550 = vsel %vm49, %v3412, 0
  %v3553 = vsel %vm49, %v3415, 0
  %v3556 = vsel %vm49, %v3418, 0
  %v3559 = vsel %vm49, %v3421, 0
  %v3562 = vsel %vm49, %v3424, 0
  %v3565 = vsel %vm49, %v3427, 0
  %v3568 = vsel %vm49, %v3430, 0
  %v3571 = vsel %vm49, %v3433, 0
  %v3574 = vsel %vm49, %v3436, 0
  %v3577 = vsel %vm49, %v3439, 0
  %v3580 = vsel %vm49, %v3442, 0
  %v3583 = vsel %vm49, %v3445, 0
  %v3586 = vsel %vm49, %v3448, 0
  %v3589 = vsel %vm49, %v3451, 0
  %v3592 = vsel %vm49, %v3454, 0
  %v3595 = vsel %vm49, %v3457, 0
  %v3598 = vsel %vm49, %v3460, 0
  %v3601 = vsel %vm49, %v3463, 0
  %v3604 = vsel %vm49, %v3466, 0
  %v3607 = vsel %vm49, %v3469, 0
  %v3610 = vsel %vm49, %v3472, 0
  %v3613 = vsel %vm49, %v3475, 0
  %v3616 = vsel %vm49, %v3478, 0
  %v3619 = vsel %vm49, %v3481, 0
  %v3622 = vsel %vm49, %v3484, 0
  %v3625 = vsel %vm49, %v3487, 0
  %v3628 = vsel %vm49, %v3490, 0
  %v3631 = vsel %vm49, %v3493, 0
  %3633 = vmatprep.subr.mxu0 0.0
  %3634 = vmatpush1.msra.mxu0 %v3494
  %3635 = vmatprep.subr.mxu0 0.0
  %3636 = vmatpush1.msra.mxu0 %v3495
  %3637 = vmatprep.subr.mxu0 0.0
  %3638 = vmatpush1.msra.mxu0 %v3496
  %3639 = vmatprep.subr.mxu0 0.0
  %3640 = vmatpush1.msra.mxu0 %v3497
  %3641 = vmatprep.subr.mxu0 0.0
  %3642 = vmatpush1.msra.mxu0 %v3498
  %3643 = vmatprep.subr.mxu0 0.0
  %3644 = vmatpush1.msra.mxu0 %v3499
  %3645 = vmatprep.subr.mxu0 0.0
  %3646 = vmatpush1.msra.mxu0 %v3500
  %3647 = vmatprep.subr.mxu0 0.0
  %3648 = vmatpush1.msra.mxu0 %v3501
  %3649 = vmatprep.subr.mxu0 0.0
  %3650 = vmatpush1.msra.mxu0 %v3502
  %3651 = vmatprep.subr.mxu0 0.0
  %3652 = vmatpush1.msra.mxu0 %v3503
  %3653 = vmatprep.subr.mxu0 0.0
  %3654 = vmatpush1.msra.mxu0 %v3504
  %3655 = vmatprep.subr.mxu0 0.0
  %3656 = vmatpush1.msra.mxu0 %v3505
  %3657 = vmatprep.subr.mxu0 0.0
  %3658 = vmatpush1.msra.mxu0 %v3506
  %3659 = vmatprep.subr.mxu0 0.0
  %3660 = vmatpush1.msra.mxu0 %v3507
  %3661 = vmatprep.subr.mxu0 0.0
  %3662 = vmatpush1.msra.mxu0 %v3508
  %3663 = vmatprep.subr.mxu0 0.0
  %3664 = vmatpush1.msra.mxu0 %v3509
  %3665 = vmatprep.subr.mxu0 0.0
  %3666 = vmatpush1.msra.mxu0 %v3510
  %3667 = vmatprep.subr.mxu0 0.0
  %3668 = vmatpush1.msra.mxu0 %v3511
  %3669 = vmatprep.subr.mxu0 0.0
  %3670 = vmatpush1.msra.mxu0 %v3512
  %3671 = vmatprep.subr.mxu0 0.0
  %3672 = vmatpush1.msra.mxu0 %v3513
  %3673 = vmatprep.subr.mxu0 0.0
  %3674 = vmatpush1.msra.mxu0 %v3514
  %3675 = vmatprep.subr.mxu0 0.0
  %3676 = vmatpush1.msra.mxu0 %v3515
  %3677 = vmatprep.subr.mxu0 0.0
  %3678 = vmatpush1.msra.mxu0 %v3516
  %3679 = vmatprep.subr.mxu0 0.0
  %3680 = vmatpush1.msra.mxu0 %v3517
  %3681 = vmatprep.subr.mxu0 0.0
  %3682 = vmatpush1.msra.mxu0 %v3518
  %3683 = vmatprep.subr.mxu0 0.0
  %3684 = vmatpush1.msra.mxu0 %v3519
  %3685 = vmatprep.subr.mxu0 0.0
  %3686 = vmatpush1.msra.mxu0 %v3520
  %3687 = vmatprep.subr.mxu0 0.0
  %3688 = vmatpush1.msra.mxu0 %v3521
  %3689 = vmatprep.subr.mxu0 0.0
  %3690 = vmatpush1.msra.mxu0 %v3522
  %3691 = vmatprep.subr.mxu0 0.0
  %3692 = vmatpush1.msra.mxu0 %v3523
  %3693 = vmatprep.subr.mxu0 0.0
  %3694 = vmatpush1.msra.mxu0 %v3524
  %3695 = vmatprep.subr.mxu0 0.0
  %3696 = vmatpush1.msra.mxu0 %v3525
  %3697 = vmatprep.mubr.f32.mxu0 %v3399
  %3698 = vmatmul.mubr.f32.gmra.mrb[0].mxu0 %v3398
  %v3699 = vpop.f32.mrb[0].mxu0
  %v3700 = vadd.f32 %v3535, %v3699
  %v3701 = vpop.f32.mrb[0].mxu0
  %3702 = vmatprep.mubr.f32.mxu0 %v3402
  %3703 = vmatmul.mubr.f32.gmra.mrb[0].mxu0 %v3401
  %v3704 = vpop.f32.mrb[0].mxu0
  %v3705 = vadd.f32 %v3535, %v3704
  %v3706 = vpop.f32.mrb[0].mxu0
  %3707 = vmatprep.mubr.f32.mxu0 %v3405
  %3708 = vmatmul.mubr.f32.gmra.mrb[0].mxu0 %v3404
  %v3709 = vpop.f32.mrb[0].mxu0
  %v3710 = vadd.f32 %v3535, %v3709
  %v3711 = vpop.f32.mrb[0].mxu0
  %3712 = vmatprep.mubr.f32.mxu0 %v3408
  %3713 = vmatmul.mubr.f32.gmra.mrb[0].mxu0 %v3407
  %v3714 = vpop.f32.mrb[0].mxu0
  %v3715 = vadd.f32 %v3535, %v3714
  %v3716 = vpop.f32.mrb[0].mxu0
  %3717 = vmatprep.mubr.f32.mxu0 %v3411
  %3718 = vmatmul.mubr.f32.gmra.mrb[0].mxu0 %v3410
  %v3719 = vpop.f32.mrb[0].mxu0
  %v3720 = vadd.f32 %v3535, %v3719
  %v3721 = vpop.f32.mrb[0].mxu0
  %3722 = vmatprep.mubr.f32.mxu0 %v3414
  %3723 = vmatmul.mubr.f32.gmra.mrb[0].mxu0 %v3413
  %v3724 = vpop.f32.mrb[0].mxu0
  %v3725 = vadd.f32 %v3535, %v3724
  %v3726 = vpop.f32.mrb[0].mxu0
  %3727 = vmatprep.mubr.f32.mxu0 %v3417
  %3728 = vmatmul.mubr.f32.gmra.mrb[0].mxu0 %v3416
  %v3729 = vpop.f32.mrb[0].mxu0
  %v3730 = vadd.f32 %v3535, %v3729
  %v3731 = vpop.f32.mrb[0].mxu0
  %3732 = vmatprep.mubr.f32.mxu0 %v3420
  %3733 = vmatmul.mubr.f32.gmra.mrb[0].mxu0 %v3419
  %v3734 = vpop.f32.mrb[0].mxu0
  %v3735 = vadd.f32 %v3535, %v3734
  %v3736 = vpop.f32.mrb[0].mxu0
  %3737 = vmatprep.mubr.f32.mxu0 %v3423
  %3738 = vmatmul.mubr.f32.gmra.mrb[0].mxu0 %v3422
  %v3739 = vpop.f32.mrb[0].mxu0
  %v3740 = vadd.f32 %v3535, %v3739
  %v3741 = vpop.f32.mrb[0].mxu0
  %3742 = vmatprep.mubr.f32.mxu0 %v3426
  %3743 = vmatmul.mubr.f32.gmra.mrb[0].mxu0 %v3425
  %v3744 = vpop.f32.mrb[0].mxu0
  %v3745 = vadd.f32 %v3535, %v3744
  %v3746 = vpop.f32.mrb[0].mxu0
  %3747 = vmatprep.mubr.f32.mxu0 %v3429
  %3748 = vmatmul.mubr.f32.gmra.mrb[0].mxu0 %v3428
  %v3749 = vpop.f32.mrb[0].mxu0
  %v3750 = vadd.f32 %v3535, %v3749
  %v3751 = vpop.f32.mrb[0].mxu0
  %3752 = vmatprep.mubr.f32.mxu0 %v3432
  %3753 = vmatmul.mubr.f32.gmra.mrb[0].mxu0 %v3431
  %v3754 = vpop.f32.mrb[0].mxu0
  %v3755 = vadd.f32 %v3535, %v3754
  %v3756 = vpop.f32.mrb[0].mxu0
  %3757 = vmatprep.mubr.f32.mxu0 %v3435
  %3758 = vmatmul.mubr.f32.gmra.mrb[0].mxu0 %v3434
  %v3759 = vpop.f32.mrb[0].mxu0
  %v3760 = vadd.f32 %v3535, %v3759
  %v3761 = vpop.f32.mrb[0].mxu0
  %3762 = vmatprep.mubr.f32.mxu0 %v3438
  %3763 = vmatmul.mubr.f32.gmra.mrb[0].mxu0 %v3437
  %v3764 = vpop.f32.mrb[0].mxu0
  %v3765 = vadd.f32 %v3535, %v3764
  %v3766 = vpop.f32.mrb[0].mxu0
  %3767 = vmatprep.mubr.f32.mxu0 %v3441
  %3768 = vmatmul.mubr.f32.gmra.mrb[0].mxu0 %v3440
  %v3769 = vpop.f32.mrb[0].mxu0
  %v3770 = vadd.f32 %v3535, %v3769
  %v3771 = vpop.f32.mrb[0].mxu0
  %3772 = vmatprep.mubr.f32.mxu0 %v3444
  %3773 = vmatmul.mubr.f32.gmra.mrb[0].mxu0 %v3443
  %v3774 = vpop.f32.mrb[0].mxu0
  %v3775 = vadd.f32 %v3535, %v3774
  %v3776 = vpop.f32.mrb[0].mxu0
  %3777 = vmatprep.mubr.f32.mxu0 %v3447
  %3778 = vmatmul.mubr.f32.gmra.mrb[0].mxu0 %v3446
  %v3779 = vpop.f32.mrb[0].mxu0
  %v3780 = vadd.f32 %v3535, %v3779
  %v3781 = vpop.f32.mrb[0].mxu0
  %3782 = vmatprep.mubr.f32.mxu0 %v3450
  %3783 = vmatmul.mubr.f32.gmra.mrb[0].mxu0 %v3449
  %v3784 = vpop.f32.mrb[0].mxu0
  %v3785 = vadd.f32 %v3535, %v3784
  %v3786 = vpop.f32.mrb[0].mxu0
  %3787 = vmatprep.mubr.f32.mxu0 %v3453
  %3788 = vmatmul.mubr.f32.gmra.mrb[0].mxu0 %v3452
  %v3789 = vpop.f32.mrb[0].mxu0
  %v3790 = vadd.f32 %v3535, %v3789
  %v3791 = vpop.f32.mrb[0].mxu0
  %3792 = vmatprep.mubr.f32.mxu0 %v3456
  %3793 = vmatmul.mubr.f32.gmra.mrb[0].mxu0 %v3455
  %v3794 = vpop.f32.mrb[0].mxu0
  %v3795 = vadd.f32 %v3535, %v3794
  %v3796 = vpop.f32.mrb[0].mxu0
  %3797 = vmatprep.mubr.f32.mxu0 %v3459
  %3798 = vmatmul.mubr.f32.gmra.mrb[0].mxu0 %v3458
  %v3799 = vpop.f32.mrb[0].mxu0
  %v3800 = vadd.f32 %v3535, %v3799
  %v3801 = vpop.f32.mrb[0].mxu0
  %3802 = vmatprep.mubr.f32.mxu0 %v3462
  %3803 = vmatmul.mubr.f32.gmra.mrb[0].mxu0 %v3461
  %v3804 = vpop.f32.mrb[0].mxu0
  %v3805 = vadd.f32 %v3535, %v3804
  %v3806 = vpop.f32.mrb[0].mxu0
  %3807 = vmatprep.mubr.f32.mxu0 %v3465
  %3808 = vmatmul.mubr.f32.gmra.mrb[0].mxu0 %v3464
  %v3809 = vpop.f32.mrb[0].mxu0
  %v3810 = vadd.f32 %v3535, %v3809
  %v3811 = vpop.f32.mrb[0].mxu0
  %3812 = vmatprep.mubr.f32.mxu0 %v3468
  %3813 = vmatmul.mubr.f32.gmra.mrb[0].mxu0 %v3467
  %v3814 = vpop.f32.mrb[0].mxu0
  %v3815 = vadd.f32 %v3535, %v3814
  %v3816 = vpop.f32.mrb[0].mxu0
  %3817 = vmatprep.mubr.f32.mxu0 %v3471
  %3818 = vmatmul.mubr.f32.gmra.mrb[0].mxu0 %v3470
  %v3819 = vpop.f32.mrb[0].mxu0
  %v3820 = vadd.f32 %v3535, %v3819
  %v3821 = vpop.f32.mrb[0].mxu0
  %3822 = vmatprep.mubr.f32.mxu0 %v3474
  %3823 = vmatmul.mubr.f32.gmra.mrb[0].mxu0 %v3473
  %v3824 = vpop.f32.mrb[0].mxu0
  %v3825 = vadd.f32 %v3535, %v3824
  %v3826 = vpop.f32.mrb[0].mxu0
  %3827 = vmatprep.mubr.f32.mxu0 %v3477
  %3828 = vmatmul.mubr.f32.gmra.mrb[0].mxu0 %v3476
  %v3829 = vpop.f32.mrb[0].mxu0
  %v3830 = vadd.f32 %v3535, %v3829
  %v3831 = vpop.f32.mrb[0].mxu0
  %3832 = vmatprep.mubr.f32.mxu0 %v3480
  %3833 = vmatmul.mubr.f32.gmra.mrb[0].mxu0 %v3479
  %v3834 = vpop.f32.mrb[0].mxu0
  %v3835 = vadd.f32 %v3535, %v3834
  %v3836 = vpop.f32.mrb[0].mxu0
  %3837 = vmatprep.mubr.f32.mxu0 %v3483
  %3838 = vmatmul.mubr.f32.gmra.mrb[0].mxu0 %v3482
  %v3839 = vpop.f32.mrb[0].mxu0
  %v3840 = vadd.f32 %v3535, %v3839
  %v3841 = vpop.f32.mrb[0].mxu0
  %3842 = vmatprep.mubr.f32.mxu0 %v3486
  %3843 = vmatmul.mubr.f32.gmra.mrb[0].mxu0 %v3485
  %v3844 = vpop.f32.mrb[0].mxu0
  %v3845 = vadd.f32 %v3535, %v3844
  %v3846 = vpop.f32.mrb[0].mxu0
  %3847 = vmatprep.mubr.f32.mxu0 %v3489
  %3848 = vmatmul.mubr.f32.gmra.mrb[0].mxu0 %v3488
  %v3849 = vpop.f32.mrb[0].mxu0
  %v3850 = vadd.f32 %v3535, %v3849
  %v3851 = vpop.f32.mrb[0].mxu0
  %3852 = vmatprep.mubr.f32.mxu0 %v3492
  %3853 = vmatmul.mubr.f32.gmra.mrb[0].mxu0 %v3491
  %v3854 = vpop.f32.mrb[0].mxu0
  %v3855 = vadd.f32 %v3535, %v3854
  %v3856 = vpop.f32.mrb[0].mxu0
  %3857 = vdwg.mxu0
  %3858 = vmatprep.subr.mxu0 0.0
  %3859 = vmatpush1.msra.mxu0 %v3526
  %3860 = vmatprep.subr.mxu0 0.0
  %3861 = vmatpush1.msra.mxu0 %v3527
  %3862 = vmatprep.subr.mxu0 0.0
  %3863 = vmatpush1.msra.mxu0 %v3528
  %3864 = vmatprep.subr.mxu0 0.0
  %3865 = vmatpush1.msra.mxu0 %v3529
  %3866 = vmatprep.subr.mxu0 0.0
  %3867 = vmatpush1.msra.mxu0 0.0
  %3868 = vmatprep.subr.mxu0 0.0
  %3869 = vmatpush1.msra.mxu0 0.0
  %3870 = vmatprep.subr.mxu0 0.0
  %3871 = vmatpush1.msra.mxu0 0.0
  %3872 = vmatprep.subr.mxu0 0.0
  %3873 = vmatpush1.msra.mxu0 0.0
  %3874 = vmatprep.subr.mxu0 0.0
  %3875 = vmatpush1.msra.mxu0 0.0
  %3876 = vmatprep.subr.mxu0 0.0
  %3877 = vmatpush1.msra.mxu0 0.0
  %3878 = vmatprep.subr.mxu0 0.0
  %3879 = vmatpush1.msra.mxu0 0.0
  %3880 = vmatprep.subr.mxu0 0.0
  %3881 = vmatpush1.msra.mxu0 0.0
  %3882 = vmatprep.subr.mxu0 0.0
  %3883 = vmatpush1.msra.mxu0 0.0
  %3884 = vmatprep.subr.mxu0 0.0
  %3885 = vmatpush1.msra.mxu0 0.0
  %3886 = vmatprep.subr.mxu0 0.0
  %3887 = vmatpush1.msra.mxu0 0.0
  %3888 = vmatprep.subr.mxu0 0.0
  %3889 = vmatpush1.msra.mxu0 0.0
  %3890 = vmatprep.subr.mxu0 0.0
  %3891 = vmatpush1.msra.mxu0 0.0
  %3892 = vmatprep.subr.mxu0 0.0
  %3893 = vmatpush1.msra.mxu0 0.0
  %3894 = vmatprep.subr.mxu0 0.0
  %3895 = vmatpush1.msra.mxu0 0.0
  %3896 = vmatprep.subr.mxu0 0.0
  %3897 = vmatpush1.msra.mxu0 0.0
  %3898 = vmatprep.subr.mxu0 0.0
  %3899 = vmatpush1.msra.mxu0 0.0
  %3900 = vmatprep.subr.mxu0 0.0
  %3901 = vmatpush1.msra.mxu0 0.0
  %3902 = vmatprep.subr.mxu0 0.0
  %3903 = vmatpush1.msra.mxu0 0.0
  %3904 = vmatprep.subr.mxu0 0.0
  %3905 = vmatpush1.msra.mxu0 0.0
  %3906 = vmatprep.subr.mxu0 0.0
  %3907 = vmatpush1.msra.mxu0 0.0
  %3908 = vmatprep.subr.mxu0 0.0
  %3909 = vmatpush1.msra.mxu0 0.0
  %3910 = vmatprep.subr.mxu0 0.0
  %3911 = vmatpush1.msra.mxu0 0.0
  %3912 = vmatprep.subr.mxu0 0.0
  %3913 = vmatpush1.msra.mxu0 0.0
  %3914 = vmatprep.subr.mxu0 0.0
  %3915 = vmatpush1.msra.mxu0 0.0
  %3916 = vmatprep.subr.mxu0 0.0
  %3917 = vmatpush1.msra.mxu0 0.0
  %3918 = vmatprep.subr.mxu0 0.0
  %3919 = vmatpush1.msra.mxu0 0.0
  %3920 = vmatprep.subr.mxu0 0.0
  %3921 = vmatpush1.msra.mxu0 0.0
  %3922 = vmatprep.mubr.f32.mxu0 0.0
  %3923 = vmatmul.mubr.f32.gmra.mrb[0].mxu0 %v3538
  %v3924 = vpop.f32.mrb[0].mxu0
  %v3925 = vadd.f32 %v3700, %v3924
  %v3926 = vpop.f32.mrb[0].mxu0
  %3927 = vmatprep.mubr.f32.mxu0 0.0
  %3928 = vmatmul.mubr.f32.gmra.mrb[0].mxu0 %v3541
  %v3929 = vpop.f32.mrb[0].mxu0
  %v3930 = vadd.f32 %v3705, %v3929
  %v3931 = vpop.f32.mrb[0].mxu0
  %3932 = vmatprep.mubr.f32.mxu0 0.0
  %3933 = vmatmul.mubr.f32.gmra.mrb[0].mxu0 %v3544
  %v3934 = vpop.f32.mrb[0].mxu0
  %v3935 = vadd.f32 %v3710, %v3934
  %v3936 = vpop.f32.mrb[0].mxu0
  %3937 = vmatprep.mubr.f32.mxu0 0.0
  %3938 = vmatmul.mubr.f32.gmra.mrb[0].mxu0 %v3547
  %v3939 = vpop.f32.mrb[0].mxu0
  %v3940 = vadd.f32 %v3715, %v3939
  %v3941 = vpop.f32.mrb[0].mxu0
  %3942 = vmatprep.mubr.f32.mxu0 0.0
  %3943 = vmatmul.mubr.f32.gmra.mrb[0].mxu0 %v3550
  %v3944 = vpop.f32.mrb[0].mxu0
  %v3945 = vadd.f32 %v3720, %v3944
  %v3946 = vpop.f32.mrb[0].mxu0
  %3947 = vmatprep.mubr.f32.mxu0 0.0
  %3948 = vmatmul.mubr.f32.gmra.mrb[0].mxu0 %v3553
  %v3949 = vpop.f32.mrb[0].mxu0
  %v3950 = vadd.f32 %v3725, %v3949
  %v3951 = vpop.f32.mrb[0].mxu0
  %3952 = vmatprep.mubr.f32.mxu0 0.0
  %3953 = vmatmul.mubr.f32.gmra.mrb[0].mxu0 %v3556
  %v3954 = vpop.f32.mrb[0].mxu0
  %v3955 = vadd.f32 %v3730, %v3954
  %v3956 = vpop.f32.mrb[0].mxu0
  %3957 = vmatprep.mubr.f32.mxu0 0.0
  %3958 = vmatmul.mubr.f32.gmra.mrb[0].mxu0 %v3559
  %v3959 = vpop.f32.mrb[0].mxu0
  %v3960 = vadd.f32 %v3735, %v3959
  %v3961 = vpop.f32.mrb[0].mxu0
  %3962 = vmatprep.mubr.f32.mxu0 0.0
  %3963 = vmatmul.mubr.f32.gmra.mrb[0].mxu0 %v3562
  %v3964 = vpop.f32.mrb[0].mxu0
  %v3965 = vadd.f32 %v3740, %v3964
  %v3966 = vpop.f32.mrb[0].mxu0
  %3967 = vmatprep.mubr.f32.mxu0 0.0
  %3968 = vmatmul.mubr.f32.gmra.mrb[0].mxu0 %v3565
  %v3969 = vpop.f32.mrb[0].mxu0
  %v3970 = vadd.f32 %v3745, %v3969
  %v3971 = vpop.f32.mrb[0].mxu0
  %3972 = vmatprep.mubr.f32.mxu0 0.0
  %3973 = vmatmul.mubr.f32.gmra.mrb[0].mxu0 %v3568
  %v3974 = vpop.f32.mrb[0].mxu0
  %v3975 = vadd.f32 %v3750, %v3974
  %v3976 = vpop.f32.mrb[0].mxu0
  %3977 = vmatprep.mubr.f32.mxu0 0.0
  %3978 = vmatmul.mubr.f32.gmra.mrb[0].mxu0 %v3571
  %v3979 = vpop.f32.mrb[0].mxu0
  %v3980 = vadd.f32 %v3755, %v3979
  %v3981 = vpop.f32.mrb[0].mxu0
  %3982 = vmatprep.mubr.f32.mxu0 0.0
  %3983 = vmatmul.mubr.f32.gmra.mrb[0].mxu0 %v3574
  %v3984 = vpop.f32.mrb[0].mxu0
  %v3985 = vadd.f32 %v3760, %v3984
  %v3986 = vpop.f32.mrb[0].mxu0
  %3987 = vmatprep.mubr.f32.mxu0 0.0
  %3988 = vmatmul.mubr.f32.gmra.mrb[0].mxu0 %v3577
  %v3989 = vpop.f32.mrb[0].mxu0
  %v3990 = vadd.f32 %v3765, %v3989
  %v3991 = vpop.f32.mrb[0].mxu0
  %3992 = vmatprep.mubr.f32.mxu0 0.0
  %3993 = vmatmul.mubr.f32.gmra.mrb[0].mxu0 %v3580
  %v3994 = vpop.f32.mrb[0].mxu0
  %v3995 = vadd.f32 %v3770, %v3994
  %v3996 = vpop.f32.mrb[0].mxu0
  %3997 = vmatprep.mubr.f32.mxu0 0.0
  %3998 = vmatmul.mubr.f32.gmra.mrb[0].mxu0 %v3583
  %v3999 = vpop.f32.mrb[0].mxu0
  %v4000 = vadd.f32 %v3775, %v3999
  %v4001 = vpop.f32.mrb[0].mxu0
  %4002 = vmatprep.mubr.f32.mxu0 0.0
  %4003 = vmatmul.mubr.f32.gmra.mrb[0].mxu0 %v3586
  %v4004 = vpop.f32.mrb[0].mxu0
  %v4005 = vadd.f32 %v3780, %v4004
  %v4006 = vpop.f32.mrb[0].mxu0
  %4007 = vmatprep.mubr.f32.mxu0 0.0
  %4008 = vmatmul.mubr.f32.gmra.mrb[0].mxu0 %v3589
  %v4009 = vpop.f32.mrb[0].mxu0
  %v4010 = vadd.f32 %v3785, %v4009
  %v4011 = vpop.f32.mrb[0].mxu0
  %4012 = vmatprep.mubr.f32.mxu0 0.0
  %4013 = vmatmul.mubr.f32.gmra.mrb[0].mxu0 %v3592
  %v4014 = vpop.f32.mrb[0].mxu0
  %v4015 = vadd.f32 %v3790, %v4014
  %v4016 = vpop.f32.mrb[0].mxu0
  %4017 = vmatprep.mubr.f32.mxu0 0.0
  %4018 = vmatmul.mubr.f32.gmra.mrb[0].mxu0 %v3595
  %v4019 = vpop.f32.mrb[0].mxu0
  %v4020 = vadd.f32 %v3795, %v4019
  %v4021 = vpop.f32.mrb[0].mxu0
  %4022 = vmatprep.mubr.f32.mxu0 0.0
  %4023 = vmatmul.mubr.f32.gmra.mrb[0].mxu0 %v3598
  %v4024 = vpop.f32.mrb[0].mxu0
  %v4025 = vadd.f32 %v3800, %v4024
  %v4026 = vpop.f32.mrb[0].mxu0
  %4027 = vmatprep.mubr.f32.mxu0 0.0
  %4028 = vmatmul.mubr.f32.gmra.mrb[0].mxu0 %v3601
  %v4029 = vpop.f32.mrb[0].mxu0
  %v4030 = vadd.f32 %v3805, %v4029
  %v4031 = vpop.f32.mrb[0].mxu0
  %4032 = vmatprep.mubr.f32.mxu0 0.0
  %4033 = vmatmul.mubr.f32.gmra.mrb[0].mxu0 %v3604
  %v4034 = vpop.f32.mrb[0].mxu0
  %v4035 = vadd.f32 %v3810, %v4034
  %v4036 = vpop.f32.mrb[0].mxu0
  %4037 = vmatprep.mubr.f32.mxu0 0.0
  %4038 = vmatmul.mubr.f32.gmra.mrb[0].mxu0 %v3607
  %v4039 = vpop.f32.mrb[0].mxu0
  %v4040 = vadd.f32 %v3815, %v4039
  %v4041 = vpop.f32.mrb[0].mxu0
  %4042 = vmatprep.mubr.f32.mxu0 0.0
  %4043 = vmatmul.mubr.f32.gmra.mrb[0].mxu0 %v3610
  %v4044 = vpop.f32.mrb[0].mxu0
  %v4045 = vadd.f32 %v3820, %v4044
  %v4046 = vpop.f32.mrb[0].mxu0
  %4047 = vmatprep.mubr.f32.mxu0 0.0
  %4048 = vmatmul.mubr.f32.gmra.mrb[0].mxu0 %v3613
  %v4049 = vpop.f32.mrb[0].mxu0
  %v4050 = vadd.f32 %v3825, %v4049
  %v4051 = vpop.f32.mrb[0].mxu0
  %4052 = vmatprep.mubr.f32.mxu0 0.0
  %4053 = vmatmul.mubr.f32.gmra.mrb[0].mxu0 %v3616
  %v4054 = vpop.f32.mrb[0].mxu0
  %v4055 = vadd.f32 %v3830, %v4054
  %v4056 = vpop.f32.mrb[0].mxu0
  %4057 = vmatprep.mubr.f32.mxu0 0.0
  %4058 = vmatmul.mubr.f32.gmra.mrb[0].mxu0 %v3619
  %v4059 = vpop.f32.mrb[0].mxu0
  %v4060 = vadd.f32 %v3835, %v4059
  %v4061 = vpop.f32.mrb[0].mxu0
  %4062 = vmatprep.mubr.f32.mxu0 0.0
  %4063 = vmatmul.mubr.f32.gmra.mrb[0].mxu0 %v3622
  %v4064 = vpop.f32.mrb[0].mxu0
  %v4065 = vadd.f32 %v3840, %v4064
  %v4066 = vpop.f32.mrb[0].mxu0
  %4067 = vmatprep.mubr.f32.mxu0 0.0
  %4068 = vmatmul.mubr.f32.gmra.mrb[0].mxu0 %v3625
  %v4069 = vpop.f32.mrb[0].mxu0
  %v4070 = vadd.f32 %v3845, %v4069
  %v4071 = vpop.f32.mrb[0].mxu0
  %4072 = vmatprep.mubr.f32.mxu0 0.0
  %4073 = vmatmul.mubr.f32.gmra.mrb[0].mxu0 %v3628
  %v4074 = vpop.f32.mrb[0].mxu0
  %v4075 = vadd.f32 %v3850, %v4074
  %v4076 = vpop.f32.mrb[0].mxu0
  %4077 = vmatprep.mubr.f32.mxu0 0.0
  %4078 = vmatmul.mubr.f32.gmra.mrb[0].mxu0 %v3631
  %v4079 = vpop.f32.mrb[0].mxu0
  %v4080 = vadd.f32 %v3855, %v4079
  %v4081 = vpop.f32.mrb[0].mxu0
  %4082 = vdwg.mxu0
  %v4083 = vmax.f32 %v1896, %v3925
  %v4084 = vmax.f32 %v1901, %v3930
  %v4085 = vmax.f32 %v1906, %v3935
  %v4086 = vmax.f32 %v1911, %v3940
  %v4087 = vmax.f32 %v1916, %v3945
  %v4088 = vmax.f32 %v1921, %v3950
  %v4089 = vmax.f32 %v1926, %v3955
  %v4090 = vmax.f32 %v1931, %v3960
  %v4091 = vmax.f32 %v1936, %v3965
  %v4092 = vmax.f32 %v1941, %v3970
  %v4093 = vmax.f32 %v1946, %v3975
  %v4094 = vmax.f32 %v1951, %v3980
  %v4095 = vmax.f32 %v1956, %v3985
  %v4096 = vmax.f32 %v1961, %v3990
  %v4097 = vmax.f32 %v1966, %v3995
  %v4098 = vmax.f32 %v1971, %v4000
  %v4099 = vmax.f32 %v1976, %v4005
  %v4100 = vmax.f32 %v1981, %v4010
  %v4101 = vmax.f32 %v1986, %v4015
  %v4102 = vmax.f32 %v1991, %v4020
  %v4103 = vmax.f32 %v1996, %v4025
  %v4104 = vmax.f32 %v2001, %v4030
  %v4105 = vmax.f32 %v2006, %v4035
  %v4106 = vmax.f32 %v2011, %v4040
  %v4107 = vmax.f32 %v2016, %v4045
  %v4108 = vmax.f32 %v2021, %v4050
  %v4109 = vmax.f32 %v2026, %v4055
  %v4110 = vmax.f32 %v2031, %v4060
  %v4111 = vmax.f32 %v2036, %v4065
  %v4112 = vmax.f32 %v2041, %v4070
  %v4113 = vmax.f32 %v2046, %v4075
  %v4114 = vmax.f32 %v2051, %v4080
  %v4115 = vmax.f32 %v4083, 0.0
  %v4116 = vmax.f32 %v4084, 0.0
  %v4117 = vmax.f32 %v4085, 0.0
  %v4118 = vmax.f32 %v4086, 0.0
  %v4119 = vmax.f32 %v4087, 0.0
  %v4120 = vmax.f32 %v4088, 0.0
  %v4121 = vmax.f32 %v4089, 0.0
  %v4122 = vmax.f32 %v4090, 0.0
  %v4123 = vmax.f32 %v4091, 0.0
  %v4124 = vmax.f32 %v4092, 0.0
  %v4125 = vmax.f32 %v4093, 0.0
  %v4126 = vmax.f32 %v4094, 0.0
  %v4127 = vmax.f32 %v4095, 0.0
  %v4128 = vmax.f32 %v4096, 0.0
  %v4129 = vmax.f32 %v4097, 0.0
  %v4130 = vmax.f32 %v4098, 0.0
  %v4131 = vmax.f32 %v4099, 0.0
  %v4132 = vmax.f32 %v4100, 0.0
  %v4133 = vmax.f32 %v4101, 0.0
  %v4134 = vmax.f32 %v4102, 0.0
  %v4135 = vmax.f32 %v4103, 0.0
  %v4136 = vmax.f32 %v4104, 0.0
  %v4137 = vmax.f32 %v4105, 0.0
  %v4138 = vmax.f32 %v4106, 0.0
  %v4139 = vmax.f32 %v4107, 0.0
  %v4140 = vmax.f32 %v4108, 0.0
  %v4141 = vmax.f32 %v4109, 0.0
  %v4142 = vmax.f32 %v4110, 0.0
  %v4143 = vmax.f32 %v4111, 0.0
  %v4144 = vmax.f32 %v4112, 0.0
  %v4145 = vmax.f32 %v4113, 0.0
  %v4146 = vmax.f32 %v4114, 0.0
  %v4147 = vmax.f32 %v4115, %v4116
  %v4148 = vmax.f32 %v4117, %v4118
  %v4149 = vmax.f32 %v4119, %v4120
  %v4150 = vmax.f32 %v4121, %v4122
  %v4151 = vmax.f32 %v4123, %v4124
  %v4152 = vmax.f32 %v4125, %v4126
  %v4153 = vmax.f32 %v4127, %v4128
  %v4154 = vmax.f32 %v4129, %v4130
  %v4155 = vmax.f32 %v4131, %v4132
  %v4156 = vmax.f32 %v4133, %v4134
  %v4157 = vmax.f32 %v4135, %v4136
  %v4158 = vmax.f32 %v4137, %v4138
  %v4159 = vmax.f32 %v4139, %v4140
  %v4160 = vmax.f32 %v4141, %v4142
  %v4161 = vmax.f32 %v4143, %v4144
  %v4162 = vmax.f32 %v4145, %v4146
  %vm4163 = vcmask 523264
  %4164 = vst.msk [vmem:[%s4] sm:$0xff] %vm4163, %v4147
  %4165 = vst.msk [vmem:[%s4 + $0x8] sm:$0xff] %vm4163, %v4148
  %4166 = vst.msk [vmem:[%s4 + $0x10] sm:$0xff] %vm4163, %v4149
  %4167 = vst.msk [vmem:[%s4 + $0x18] sm:$0xff] %vm4163, %v4150
  %4168 = vst.msk [vmem:[%s4 + $0x20] sm:$0xff] %vm4163, %v4151
  %4169 = vst.msk [vmem:[%s4 + $0x28] sm:$0xff] %vm4163, %v4152
  %4170 = vst.msk [vmem:[%s4 + $0x30] sm:$0xff] %vm4163, %v4153
  %4171 = vst.msk [vmem:[%s4 + $0x38] sm:$0xff] %vm4163, %v4154
  %4172 = vst.msk [vmem:[%s4 + $0x40] sm:$0xff] %vm4163, %v4155
  %4173 = vst.msk [vmem:[%s4 + $0x48] sm:$0xff] %vm4163, %v4156
  %4174 = vst.msk [vmem:[%s4 + $0x50] sm:$0xff] %vm4163, %v4157
  %4175 = vst.msk [vmem:[%s4 + $0x58] sm:$0xff] %vm4163, %v4158
  %4176 = vst.msk [vmem:[%s4 + $0x60] sm:$0xff] %vm4163, %v4159
  %4177 = vst.msk [vmem:[%s4 + $0x68] sm:$0xff] %vm4163, %v4160
  %4178 = vst.msk [vmem:[%s4 + $0x70] sm:$0xff] %vm4163, %v4161
  %4179 = vst.msk [vmem:[%s4 + $0x78] sm:$0xff] %vm4163, %v4162
  // Predicated region
  $region18: #{simple_cnn_forward.4} parent=0 // pred_check
    _
  $region19: #{simple_cnn_forward.4} parent=0 // pred_check_branch
    %4181 = sbr.rel (0) target = $region21
  $region20: #{simple_cnn_forward.4} parent=0 // pred_region
    _
  $region21: #{simple_cnn_forward.4} parent=0 // pred_fallthru
    _
  // Predicated region
  $region22: #{simple_cnn_forward.4} parent=0 // pred_check
    _
  $region23: #{simple_cnn_forward.4} parent=0 // pred_check_branch
    %4183 = sbr.rel (0) target = $region25
  $region24: #{simple_cnn_forward.4} parent=0 // pred_region
    _
  $region25: #{simple_cnn_forward.4} parent=0 // pred_fallthru
    _

</llo_original>
